<compile_context>
chip_gen: v7x
topology: tpu7x:2x2x1
jax: 0.10.0
libtpu: 0.0.40
codegen_flags: <defaults>
</compile_context>

<pallas_src>
import jax
import jax.numpy as jnp
from jax.experimental import pallas as pl
from jax.experimental.pallas import tpu as pltpu

LEAKY_SLOPE = 0.01   # nn.LeakyReLU default negative_slope
BN_EPS = 1e-5        # nn.BatchNorm2d default eps


# ---------------------------------------------------------------------------
# Wrapper: weight repacking (block-diagonal / banded), single fused pallas_call
# ---------------------------------------------------------------------------
def basic_res_block(x_nchw, params, *, out_dtype=jnp.float32):
    """Forward of BasicResBlock. x_nchw: (N, Cin, H, W) f32 -> (N, Cout, H, W)."""
    n, cin, h, w = x_nchw.shape
    cout = params['wt'].shape[0]
    nh = n * h
    rows = n * h * w
    wcin, wcout = w * cin, w * cout
    inv_rows = 1.0 / float(rows)

    # NCHW f32 -> lane-dense (N*H, W*Cin) bf16 (channels fastest, W*Cin on lanes).
    x = jnp.transpose(x_nchw, (0, 2, 3, 1)).reshape(nh, wcin).astype(jnp.bfloat16)

    # --- transform_conv (1x1): block-diagonal weight kron(I_W, Wt): (W*Cin, W*Cout)
    wt = jnp.transpose(params['wt'].reshape(cout, cin), (1, 0)).astype(jnp.float32)
    wtk = jnp.kron(jnp.eye(w, dtype=jnp.float32), wt).astype(jnp.bfloat16)
    btr = jnp.tile(params['bt'].reshape(1, cout).astype(jnp.float32), (1, w))

    # --- 3x3 convs: one banded matrix per dy.  Band_dy[p*C+i, x*C+o] =
    #     W[dy, dx, i, o] where p = x + dx - 1 (W-padding folded in via eye(k)).
    def banded(wk):                       # wk: (Cout, Cin=Cout, 3, 3) OIHW
        wtap = jnp.transpose(wk, (2, 3, 1, 0)).astype(jnp.float32)  # (3,3,ci,co)
        bands = []
        for dy in range(3):
            b = sum(jnp.kron(jnp.eye(w, k=1 - dx, dtype=jnp.float32), wtap[dy, dx])
                    for dx in range(3))
            bands.append(b)
        return jnp.stack(bands).astype(jnp.bfloat16)                # (3, W*C, W*C)

    wb1 = banded(params['w1'])
    wb2 = banded(params['w2'])

    # --- BN channel fold / unfold selectors: F (W*C, C) sums W positions per
    #     channel; Ft (C, W*C) broadcasts per-channel scale/shift back to lanes.
    fold = jnp.kron(jnp.ones((w, 1), jnp.float32), jnp.eye(cout, dtype=jnp.float32))
    unfold = fold.T

    g1 = params['g1'].reshape(1, cout).astype(jnp.float32)
    b1 = params['b1'].reshape(1, cout).astype(jnp.float32)
    g2 = params['g2'].reshape(1, cout).astype(jnp.float32)
    b2 = params['b2'].reshape(1, cout).astype(jnp.float32)

    # -----------------------------------------------------------------------
    # Fused kernel (gridless; whole problem in VMEM at these shapes).
    # -----------------------------------------------------------------------
    def kernel(x_ref, wtk_ref, btr_ref, fold_ref, unfold_ref,
               g1_ref, b1_ref, wb1_ref, g2_ref, b2_ref, wb2_ref, o_ref):
        # ---- 1x1 transform conv: lane-dense block-diagonal matmul, f32 acc ----
        residual = jnp.dot(x_ref[...], wtk_ref[...],
                           preferred_element_type=jnp.float32) + btr_ref[...]

        # ---- train-mode BatchNorm folded to scale/shift + leaky_relu ---------
        def bn_act(v, g_ref, b_ref):
            colsum = jnp.sum(v, axis=0, keepdims=True)            # (1, W*C)
            colsq = jnp.sum(v * v, axis=0, keepdims=True)         # (1, W*C)
            moments = jnp.dot(jnp.concatenate([colsum, colsq], axis=0),
                              fold_ref[...],
                              preferred_element_type=jnp.float32)  # (2, C)
            mean = moments[0:1, :] * inv_rows
            var = moments[1:2, :] * inv_rows - mean * mean         # biased var
            scale = g_ref[...] * jax.lax.rsqrt(var + BN_EPS)       # (1, C), EUP
            shift = b_ref[...] - mean * scale                      # (1, C)
            ss = jnp.dot(jnp.concatenate([scale, shift], axis=0),
                         unfold_ref[...],
                         preferred_element_type=jnp.float32)       # (2, W*C)
            y = v * ss[0:1, :] + ss[1:2, :]                        # one FMA / elem
            return jnp.where(y > 0, y, LEAKY_SLOPE * y)

        # ---- 3x3 "same" conv: H zero-pad + 3 banded lane-dense matmuls -------
        def conv3x3(v, wb_ref):
            a = v.astype(jnp.bfloat16).reshape(n, h, wcout)
            zrow = jnp.zeros((n, 1, wcout), jnp.bfloat16)
            ap = jnp.concatenate([zrow, a, zrow], axis=1)          # (n, h+2, W*C)
            acc = jnp.zeros((nh, wcout), jnp.float32)
            for dy in range(3):                                    # static unroll
                band = ap[:, dy:dy + h, :].reshape(nh, wcout)
                acc = acc + jnp.dot(band, wb_ref[dy],
                                    preferred_element_type=jnp.float32)
            return acc

        out = bn_act(residual, g1_ref, b1_ref)
        out = conv3x3(out, wb1_ref)
        out = bn_act(out, g2_ref, b2_ref)
        out = conv3x3(out, wb2_ref)
        # Lane-dense (N*H, W*C) store: unmasked, full 128-lane vregs.
        o_ref[...] = (out + residual).astype(o_ref.dtype)

    kernel_inputs = (x, wtk, btr, fold, unfold, g1, b1, wb1, g2, b2, wb2)

    # --- cost estimate & VMEM limit derived from actual buffer sizes ----------
    flops = (2 * nh * wcin * wcout                      # 1x1 block-diag matmul
             + 2 * (3 * 2 * nh * wcout * wcout)         # two 3x3 convs, 3 bands each
             + 2 * (2 * 2 * wcout * cout + 2 * 2 * cout * wcout)   # BN fold/unfold
             + 14 * nh * wcout)                         # BN / act / residual epilogue
    in_bytes = sum(int(a.size) * a.dtype.itemsize for a in kernel_inputs)
    out_bytes = nh * wcout * jnp.dtype(out_dtype).itemsize
    scratch_bytes = 8 * nh * wcout * 4 + 2 * n * (h + 2) * wcout * 2
    vmem_limit = int(min(64 * 1024 * 1024,
                         max(16 * 1024 * 1024,
                             2 * (in_bytes + out_bytes + scratch_bytes))))

    vmem = pl.BlockSpec(memory_space=pltpu.MemorySpace.VMEM)
    y = pl.pallas_call(
        kernel,
        out_shape=jax.ShapeDtypeStruct((nh, wcout), out_dtype),
        in_specs=[vmem] * len(kernel_inputs),
        out_specs=vmem,
        compiler_params=pltpu.CompilerParams(vmem_limit_bytes=vmem_limit),
        cost_estimate=pl.CostEstimate(flops=flops,
                                      transcendentals=2 * cout,
                                      bytes_accessed=in_bytes + out_bytes),
    )(*kernel_inputs)

    # (N*H, W*C) -> NHWC is a free row-major reshape; only the NCHW transpose moves data.
    y = y.reshape(n, h, w, cout)
    return jnp.transpose(y, (0, 3, 1, 2))


# ---------------------------------------------------------------------------
# Deterministic parameter init (matches module structure; BN at default init)
# ---------------------------------------------------------------------------
def init_params(key, input_nch, output_nch):
    k0, k1, k2, k3 = jax.random.split(key, 4)
    return dict(
        wt=jax.random.normal(k0, (output_nch, input_nch, 1, 1), jnp.float32)
           / jnp.sqrt(float(input_nch)),
        bt=jax.random.normal(k1, (output_nch,), jnp.float32) * 0.05,
        w1=jax.random.normal(k2, (output_nch, output_nch, 3, 3), jnp.float32)
           / jnp.sqrt(9.0 * output_nch),
        w2=jax.random.normal(k3, (output_nch, output_nch, 3, 3), jnp.float32)
           / jnp.sqrt(9.0 * output_nch),
        g1=jnp.ones((output_nch,), jnp.float32),
        b1=jnp.zeros((output_nch,), jnp.float32),
        g2=jnp.ones((output_nch,), jnp.float32),
        b2=jnp.zeros((output_nch,), jnp.float32),
    )


# ---------------------------------------------------------------------------
# Pure-JAX f32 reference (same semantics as the PyTorch forward, training mode)
# ---------------------------------------------------------------------------
def basic_res_block_ref(x, p):
    dn = ('NCHW', 'OIHW', 'NCHW')
    x = jax.lax.conv_general_dilated(x, p['wt'], (1, 1), 'VALID',
                                     dimension_numbers=dn)
    x = x + p['bt'].reshape(1, -1, 1, 1)
    residual = x

    def bn_act(v, g, b):
        mean = jnp.mean(v, axis=(0, 2, 3), keepdims=True)
        var = jnp.mean(jnp.square(v - mean), axis=(0, 2, 3), keepdims=True)
        y = (v - mean) * jax.lax.rsqrt(var + BN_EPS)
        y = y * g.reshape(1, -1, 1, 1) + b.reshape(1, -1, 1, 1)
        return jnp.where(y > 0, y, LEAKY_SLOPE * y)

    out = bn_act(x, p['g1'], p['b1'])
    out = jax.lax.conv_general_dilated(out, p['w1'], (1, 1), ((1, 1), (1, 1)),
                                       dimension_numbers=dn)
    out = bn_act(out, p['g2'], p['b2'])
    out = jax.lax.conv_general_dilated(out, p['w2'], (1, 1), ((1, 1), (1, 1)),
                                       dimension_numbers=dn)
    return out + residual


if __name__ == "__main__":
    key = jax.random.PRNGKey(0)
    kx, kp = jax.random.split(key)

    # Small shapes consistent with the module: batch=2, input_nch=4, 16x16, output_nch=32
    N, CIN, H, W, COUT = 2, 4, 16, 16, 32
    x = jax.random.normal(kx, (N, CIN, H, W), jnp.float32)
    params = init_params(kp, CIN, COUT)

    y = basic_res_block(x, params)
    jax.block_until_ready(y)
    assert y.shape == (N, COUT, H, W), y.shape

    # Check against the f32 reference (bf16 MXU inputs -> 2% relative-to-max tol).
    y_ref = basic_res_block_ref(x, params)
    err = float(jnp.max(jnp.abs(y - y_ref)))
    scale = float(jnp.max(jnp.abs(y_ref))) + 1e-6
    assert err / scale < 2e-2, (err, scale)

    print("KERNEL_OK")
</pallas_src>

<mosaic_0001>
module attributes {stable_mosaic.version = 11 : i64} {
  func.func @kernel(%arg0: memref<32x64xbf16, #tpu.memory_space<vmem>>, %arg1: memref<64x512xbf16, #tpu.memory_space<vmem>>, %arg2: memref<1x512xf32, #tpu.memory_space<vmem>>, %arg3: memref<512x32xf32, #tpu.memory_space<vmem>>, %arg4: memref<32x512xf32, #tpu.memory_space<vmem>>, %arg5: memref<1x32xf32, #tpu.memory_space<vmem>>, %arg6: memref<1x32xf32, #tpu.memory_space<vmem>>, %arg7: memref<3x512x512xbf16, #tpu.memory_space<vmem>>, %arg8: memref<1x32xf32, #tpu.memory_space<vmem>>, %arg9: memref<1x32xf32, #tpu.memory_space<vmem>>, %arg10: memref<3x512x512xbf16, #tpu.memory_space<vmem>>, %arg11: memref<32x512xf32, #tpu.memory_space<vmem>>) attributes {dimension_semantics = [], scalar_prefetch = 0 : i64, scratch_operands = 0 : i64, tpu.core_type = #tpu.core_type<tc>} {
    %c0 = arith.constant 0 : index
    %c0_0 = arith.constant 0 : index
    %0 = vector.load %arg0[%c0, %c0_0] : memref<32x64xbf16, #tpu.memory_space<vmem>>, vector<32x64xbf16>
    %c0_1 = arith.constant 0 : index
    %c0_2 = arith.constant 0 : index
    %1 = vector.load %arg1[%c0_1, %c0_2] : memref<64x512xbf16, #tpu.memory_space<vmem>>, vector<64x512xbf16>
    %cst = arith.constant dense<0.000000e+00> : vector<32x512xf32>
    %2 = tpu.matmul %0, %1, %cst {dimension_numbers = #tpu.dot_dimension_numbers<[1], [0], [0], [1], [0, 0, 1, 1], [], []>} : vector<32x64xbf16>, vector<64x512xbf16>, vector<32x512xf32> -> vector<32x512xf32>
    %c0_3 = arith.constant 0 : index
    %c0_4 = arith.constant 0 : index
    %3 = vector.load %arg2[%c0_3, %c0_4] : memref<1x512xf32, #tpu.memory_space<vmem>>, vector<1x512xf32>
    %4 = vector.broadcast %3 : vector<1x512xf32> to vector<32x512xf32>
    %5 = arith.addf %2, %4 : vector<32x512xf32>
    %cst_5 = arith.constant dense<0.000000e+00> : vector<512xf32>
    %6 = vector.multi_reduction <add>, %5, %cst_5 [0] : vector<32x512xf32> to vector<512xf32>
    %7 = vector.shape_cast %6 : vector<512xf32> to vector<1x512xf32>
    %8 = arith.mulf %5, %5 : vector<32x512xf32>
    %cst_6 = arith.constant dense<0.000000e+00> : vector<512xf32>
    %9 = vector.multi_reduction <add>, %8, %cst_6 [0] : vector<32x512xf32> to vector<512xf32>
    %10 = vector.shape_cast %9 : vector<512xf32> to vector<1x512xf32>
    %11 = tpu.concatenate %7, %10 in 0 : vector<1x512xf32>, vector<1x512xf32> -> vector<2x512xf32>
    %c0_7 = arith.constant 0 : index
    %c0_8 = arith.constant 0 : index
    %12 = vector.load %arg3[%c0_7, %c0_8] : memref<512x32xf32, #tpu.memory_space<vmem>>, vector<512x32xf32>
    %cst_9 = arith.constant dense<0.000000e+00> : vector<2x32xf32>
    %13 = tpu.matmul %11, %12, %cst_9 {dimension_numbers = #tpu.dot_dimension_numbers<[1], [0], [0], [1], [0, 0, 1, 1], [], []>} : vector<2x512xf32>, vector<512x32xf32>, vector<2x32xf32> -> vector<2x32xf32>
    %14 = vector.extract_strided_slice %13 {offsets = [0, 0], sizes = [1, 32], strides = [1, 1]} : vector<2x32xf32> to vector<1x32xf32>
    %cst_10 = arith.constant 0.001953125 : f32
    %15 = vector.broadcast %cst_10 : f32 to vector<1x32xf32>
    %16 = arith.mulf %14, %15 : vector<1x32xf32>
    %17 = vector.extract_strided_slice %13 {offsets = [1, 0], sizes = [1, 32], strides = [1, 1]} : vector<2x32xf32> to vector<1x32xf32>
    %cst_11 = arith.constant 0.001953125 : f32
    %18 = vector.broadcast %cst_11 : f32 to vector<1x32xf32>
    %19 = arith.mulf %17, %18 : vector<1x32xf32>
    %20 = arith.mulf %16, %16 : vector<1x32xf32>
    %21 = arith.subf %19, %20 : vector<1x32xf32>
    %c0_12 = arith.constant 0 : index
    %c0_13 = arith.constant 0 : index
    %22 = vector.load %arg5[%c0_12, %c0_13] : memref<1x32xf32, #tpu.memory_space<vmem>>, vector<1x32xf32>
    %cst_14 = arith.constant 9.99999974E-6 : f32
    %23 = vector.broadcast %cst_14 : f32 to vector<1x32xf32>
    %24 = arith.addf %21, %23 : vector<1x32xf32>
    %25 = math.rsqrt %24 : vector<1x32xf32>
    %26 = arith.mulf %22, %25 : vector<1x32xf32>
    %c0_15 = arith.constant 0 : index
    %c0_16 = arith.constant 0 : index
    %27 = vector.load %arg6[%c0_15, %c0_16] : memref<1x32xf32, #tpu.memory_space<vmem>>, vector<1x32xf32>
    %28 = arith.mulf %16, %26 : vector<1x32xf32>
    %29 = arith.subf %27, %28 : vector<1x32xf32>
    %30 = tpu.concatenate %26, %29 in 0 : vector<1x32xf32>, vector<1x32xf32> -> vector<2x32xf32>
    %c0_17 = arith.constant 0 : index
    %c0_18 = arith.constant 0 : index
    %31 = vector.load %arg4[%c0_17, %c0_18] : memref<32x512xf32, #tpu.memory_space<vmem>>, vector<32x512xf32>
    %cst_19 = arith.constant dense<0.000000e+00> : vector<2x512xf32>
    %32 = tpu.matmul %30, %31, %cst_19 {dimension_numbers = #tpu.dot_dimension_numbers<[1], [0], [0], [1], [0, 0, 1, 1], [], []>} : vector<2x32xf32>, vector<32x512xf32>, vector<2x512xf32> -> vector<2x512xf32>
    %33 = vector.extract_strided_slice %32 {offsets = [0, 0], sizes = [1, 512], strides = [1, 1]} : vector<2x512xf32> to vector<1x512xf32>
    %34 = vector.broadcast %33 : vector<1x512xf32> to vector<32x512xf32>
    %35 = arith.mulf %5, %34 : vector<32x512xf32>
    %36 = vector.extract_strided_slice %32 {offsets = [1, 0], sizes = [1, 512], strides = [1, 1]} : vector<2x512xf32> to vector<1x512xf32>
    %37 = vector.broadcast %36 : vector<1x512xf32> to vector<32x512xf32>
    %38 = arith.addf %35, %37 : vector<32x512xf32>
    %cst_20 = arith.constant 0.000000e+00 : f32
    %39 = vector.broadcast %cst_20 : f32 to vector<32x512xf32>
    %40 = arith.cmpf ogt, %38, %39 : vector<32x512xf32>
    %cst_21 = arith.constant 0.00999999977 : f32
    %41 = vector.broadcast %cst_21 : f32 to vector<32x512xf32>
    %42 = arith.mulf %41, %38 : vector<32x512xf32>
    %43 = arith.select %40, %38, %42 : vector<32x512xi1>, vector<32x512xf32>
    %44 = arith.truncf %43 : vector<32x512xf32> to vector<32x512xbf16>
    %45 = vector.shape_cast %44 : vector<32x512xbf16> to vector<2x16x512xbf16>
    %cst_22 = arith.constant 0.000000e+00 : bf16
    %46 = vector.broadcast %cst_22 : bf16 to vector<2x1x512xbf16>
    %47 = tpu.concatenate %46, %45, %46 in 1 : vector<2x1x512xbf16>, vector<2x16x512xbf16>, vector<2x1x512xbf16> -> vector<2x18x512xbf16>
    %cst_23 = arith.constant 0.000000e+00 : f32
    %48 = vector.broadcast %cst_23 : f32 to vector<32x512xf32>
    %49 = vector.extract_strided_slice %47 {offsets = [0, 0, 0], sizes = [2, 16, 512], strides = [1, 1, 1]} : vector<2x18x512xbf16> to vector<2x16x512xbf16>
    %50 = vector.shape_cast %49 : vector<2x16x512xbf16> to vector<32x512xbf16>
    %c0_24 = arith.constant 0 : index
    %c0_25 = arith.constant 0 : index
    %c0_26 = arith.constant 0 : index
    %51 = vector.load %arg7[%c0_24, %c0_25, %c0_26] : memref<3x512x512xbf16, #tpu.memory_space<vmem>>, vector<1x512x512xbf16>
    %52 = vector.shape_cast %51 : vector<1x512x512xbf16> to vector<512x512xbf16>
    %cst_27 = arith.constant dense<0.000000e+00> : vector<32x512xf32>
    %53 = tpu.matmul %50, %52, %cst_27 {dimension_numbers = #tpu.dot_dimension_numbers<[1], [0], [0], [1], [0, 0, 1, 1], [], []>} : vector<32x512xbf16>, vector<512x512xbf16>, vector<32x512xf32> -> vector<32x512xf32>
    %54 = arith.addf %48, %53 : vector<32x512xf32>
    %55 = vector.extract_strided_slice %47 {offsets = [0, 1, 0], sizes = [2, 16, 512], strides = [1, 1, 1]} : vector<2x18x512xbf16> to vector<2x16x512xbf16>
    %56 = vector.shape_cast %55 : vector<2x16x512xbf16> to vector<32x512xbf16>
    %c1 = arith.constant 1 : index
    %c0_28 = arith.constant 0 : index
    %c0_29 = arith.constant 0 : index
    %57 = vector.load %arg7[%c1, %c0_28, %c0_29] : memref<3x512x512xbf16, #tpu.memory_space<vmem>>, vector<1x512x512xbf16>
    %58 = vector.shape_cast %57 : vector<1x512x512xbf16> to vector<512x512xbf16>
    %cst_30 = arith.constant dense<0.000000e+00> : vector<32x512xf32>
    %59 = tpu.matmul %56, %58, %cst_30 {dimension_numbers = #tpu.dot_dimension_numbers<[1], [0], [0], [1], [0, 0, 1, 1], [], []>} : vector<32x512xbf16>, vector<512x512xbf16>, vector<32x512xf32> -> vector<32x512xf32>
    %60 = arith.addf %54, %59 : vector<32x512xf32>
    %61 = vector.extract_strided_slice %47 {offsets = [0, 2, 0], sizes = [2, 16, 512], strides = [1, 1, 1]} : vector<2x18x512xbf16> to vector<2x16x512xbf16>
    %62 = vector.shape_cast %61 : vector<2x16x512xbf16> to vector<32x512xbf16>
    %c2 = arith.constant 2 : index
    %c0_31 = arith.constant 0 : index
    %c0_32 = arith.constant 0 : index
    %63 = vector.load %arg7[%c2, %c0_31, %c0_32] : memref<3x512x512xbf16, #tpu.memory_space<vmem>>, vector<1x512x512xbf16>
    %64 = vector.shape_cast %63 : vector<1x512x512xbf16> to vector<512x512xbf16>
    %cst_33 = arith.constant dense<0.000000e+00> : vector<32x512xf32>
    %65 = tpu.matmul %62, %64, %cst_33 {dimension_numbers = #tpu.dot_dimension_numbers<[1], [0], [0], [1], [0, 0, 1, 1], [], []>} : vector<32x512xbf16>, vector<512x512xbf16>, vector<32x512xf32> -> vector<32x512xf32>
    %66 = arith.addf %60, %65 : vector<32x512xf32>
    %cst_34 = arith.constant dense<0.000000e+00> : vector<512xf32>
    %67 = vector.multi_reduction <add>, %66, %cst_34 [0] : vector<32x512xf32> to vector<512xf32>
    %68 = vector.shape_cast %67 : vector<512xf32> to vector<1x512xf32>
    %69 = arith.mulf %66, %66 : vector<32x512xf32>
    %cst_35 = arith.constant dense<0.000000e+00> : vector<512xf32>
    %70 = vector.multi_reduction <add>, %69, %cst_35 [0] : vector<32x512xf32> to vector<512xf32>
    %71 = vector.shape_cast %70 : vector<512xf32> to vector<1x512xf32>
    %72 = tpu.concatenate %68, %71 in 0 : vector<1x512xf32>, vector<1x512xf32> -> vector<2x512xf32>
    %c0_36 = arith.constant 0 : index
    %c0_37 = arith.constant 0 : index
    %73 = vector.load %arg3[%c0_36, %c0_37] : memref<512x32xf32, #tpu.memory_space<vmem>>, vector<512x32xf32>
    %cst_38 = arith.constant dense<0.000000e+00> : vector<2x32xf32>
    %74 = tpu.matmul %72, %73, %cst_38 {dimension_numbers = #tpu.dot_dimension_numbers<[1], [0], [0], [1], [0, 0, 1, 1], [], []>} : vector<2x512xf32>, vector<512x32xf32>, vector<2x32xf32> -> vector<2x32xf32>
    %75 = vector.extract_strided_slice %74 {offsets = [0, 0], sizes = [1, 32], strides = [1, 1]} : vector<2x32xf32> to vector<1x32xf32>
    %cst_39 = arith.constant 0.001953125 : f32
    %76 = vector.broadcast %cst_39 : f32 to vector<1x32xf32>
    %77 = arith.mulf %75, %76 : vector<1x32xf32>
    %78 = vector.extract_strided_slice %74 {offsets = [1, 0], sizes = [1, 32], strides = [1, 1]} : vector<2x32xf32> to vector<1x32xf32>
    %cst_40 = arith.constant 0.001953125 : f32
    %79 = vector.broadcast %cst_40 : f32 to vector<1x32xf32>
    %80 = arith.mulf %78, %79 : vector<1x32xf32>
    %81 = arith.mulf %77, %77 : vector<1x32xf32>
    %82 = arith.subf %80, %81 : vector<1x32xf32>
    %c0_41 = arith.constant 0 : index
    %c0_42 = arith.constant 0 : index
    %83 = vector.load %arg8[%c0_41, %c0_42] : memref<1x32xf32, #tpu.memory_space<vmem>>, vector<1x32xf32>
    %cst_43 = arith.constant 9.99999974E-6 : f32
    %84 = vector.broadcast %cst_43 : f32 to vector<1x32xf32>
    %85 = arith.addf %82, %84 : vector<1x32xf32>
    %86 = math.rsqrt %85 : vector<1x32xf32>
    %87 = arith.mulf %83, %86 : vector<1x32xf32>
    %c0_44 = arith.constant 0 : index
    %c0_45 = arith.constant 0 : index
    %88 = vector.load %arg9[%c0_44, %c0_45] : memref<1x32xf32, #tpu.memory_space<vmem>>, vector<1x32xf32>
    %89 = arith.mulf %77, %87 : vector<1x32xf32>
    %90 = arith.subf %88, %89 : vector<1x32xf32>
    %91 = tpu.concatenate %87, %90 in 0 : vector<1x32xf32>, vector<1x32xf32> -> vector<2x32xf32>
    %c0_46 = arith.constant 0 : index
    %c0_47 = arith.constant 0 : index
    %92 = vector.load %arg4[%c0_46, %c0_47] : memref<32x512xf32, #tpu.memory_space<vmem>>, vector<32x512xf32>
    %cst_48 = arith.constant dense<0.000000e+00> : vector<2x512xf32>
    %93 = tpu.matmul %91, %92, %cst_48 {dimension_numbers = #tpu.dot_dimension_numbers<[1], [0], [0], [1], [0, 0, 1, 1], [], []>} : vector<2x32xf32>, vector<32x512xf32>, vector<2x512xf32> -> vector<2x512xf32>
    %94 = vector.extract_strided_slice %93 {offsets = [0, 0], sizes = [1, 512], strides = [1, 1]} : vector<2x512xf32> to vector<1x512xf32>
    %95 = vector.broadcast %94 : vector<1x512xf32> to vector<32x512xf32>
    %96 = arith.mulf %66, %95 : vector<32x512xf32>
    %97 = vector.extract_strided_slice %93 {offsets = [1, 0], sizes = [1, 512], strides = [1, 1]} : vector<2x512xf32> to vector<1x512xf32>
    %98 = vector.broadcast %97 : vector<1x512xf32> to vector<32x512xf32>
    %99 = arith.addf %96, %98 : vector<32x512xf32>
    %cst_49 = arith.constant 0.000000e+00 : f32
    %100 = vector.broadcast %cst_49 : f32 to vector<32x512xf32>
    %101 = arith.cmpf ogt, %99, %100 : vector<32x512xf32>
    %cst_50 = arith.constant 0.00999999977 : f32
    %102 = vector.broadcast %cst_50 : f32 to vector<32x512xf32>
    %103 = arith.mulf %102, %99 : vector<32x512xf32>
    %104 = arith.select %101, %99, %103 : vector<32x512xi1>, vector<32x512xf32>
    %105 = arith.truncf %104 : vector<32x512xf32> to vector<32x512xbf16>
    %106 = vector.shape_cast %105 : vector<32x512xbf16> to vector<2x16x512xbf16>
    %cst_51 = arith.constant 0.000000e+00 : bf16
    %107 = vector.broadcast %cst_51 : bf16 to vector<2x1x512xbf16>
    %108 = tpu.concatenate %107, %106, %107 in 1 : vector<2x1x512xbf16>, vector<2x16x512xbf16>, vector<2x1x512xbf16> -> vector<2x18x512xbf16>
    %cst_52 = arith.constant 0.000000e+00 : f32
    %109 = vector.broadcast %cst_52 : f32 to vector<32x512xf32>
    %110 = vector.extract_strided_slice %108 {offsets = [0, 0, 0], sizes = [2, 16, 512], strides = [1, 1, 1]} : vector<2x18x512xbf16> to vector<2x16x512xbf16>
    %111 = vector.shape_cast %110 : vector<2x16x512xbf16> to vector<32x512xbf16>
    %c0_53 = arith.constant 0 : index
    %c0_54 = arith.constant 0 : index
    %c0_55 = arith.constant 0 : index
    %112 = vector.load %arg10[%c0_53, %c0_54, %c0_55] : memref<3x512x512xbf16, #tpu.memory_space<vmem>>, vector<1x512x512xbf16>
    %113 = vector.shape_cast %112 : vector<1x512x512xbf16> to vector<512x512xbf16>
    %cst_56 = arith.constant dense<0.000000e+00> : vector<32x512xf32>
    %114 = tpu.matmul %111, %113, %cst_56 {dimension_numbers = #tpu.dot_dimension_numbers<[1], [0], [0], [1], [0, 0, 1, 1], [], []>} : vector<32x512xbf16>, vector<512x512xbf16>, vector<32x512xf32> -> vector<32x512xf32>
    %115 = arith.addf %109, %114 : vector<32x512xf32>
    %116 = vector.extract_strided_slice %108 {offsets = [0, 1, 0], sizes = [2, 16, 512], strides = [1, 1, 1]} : vector<2x18x512xbf16> to vector<2x16x512xbf16>
    %117 = vector.shape_cast %116 : vector<2x16x512xbf16> to vector<32x512xbf16>
    %c1_57 = arith.constant 1 : index
    %c0_58 = arith.constant 0 : index
    %c0_59 = arith.constant 0 : index
    %118 = vector.load %arg10[%c1_57, %c0_58, %c0_59] : memref<3x512x512xbf16, #tpu.memory_space<vmem>>, vector<1x512x512xbf16>
    %119 = vector.shape_cast %118 : vector<1x512x512xbf16> to vector<512x512xbf16>
    %cst_60 = arith.constant dense<0.000000e+00> : vector<32x512xf32>
    %120 = tpu.matmul %117, %119, %cst_60 {dimension_numbers = #tpu.dot_dimension_numbers<[1], [0], [0], [1], [0, 0, 1, 1], [], []>} : vector<32x512xbf16>, vector<512x512xbf16>, vector<32x512xf32> -> vector<32x512xf32>
    %121 = arith.addf %115, %120 : vector<32x512xf32>
    %122 = vector.extract_strided_slice %108 {offsets = [0, 2, 0], sizes = [2, 16, 512], strides = [1, 1, 1]} : vector<2x18x512xbf16> to vector<2x16x512xbf16>
    %123 = vector.shape_cast %122 : vector<2x16x512xbf16> to vector<32x512xbf16>
    %c2_61 = arith.constant 2 : index
    %c0_62 = arith.constant 0 : index
    %c0_63 = arith.constant 0 : index
    %124 = vector.load %arg10[%c2_61, %c0_62, %c0_63] : memref<3x512x512xbf16, #tpu.memory_space<vmem>>, vector<1x512x512xbf16>
    %125 = vector.shape_cast %124 : vector<1x512x512xbf16> to vector<512x512xbf16>
    %cst_64 = arith.constant dense<0.000000e+00> : vector<32x512xf32>
    %126 = tpu.matmul %123, %125, %cst_64 {dimension_numbers = #tpu.dot_dimension_numbers<[1], [0], [0], [1], [0, 0, 1, 1], [], []>} : vector<32x512xbf16>, vector<512x512xbf16>, vector<32x512xf32> -> vector<32x512xf32>
    %127 = arith.addf %121, %126 : vector<32x512xf32>
    %128 = arith.addf %127, %5 : vector<32x512xf32>
    %c0_65 = arith.constant 0 : index
    %c0_66 = arith.constant 0 : index
    %129 = vector.load %arg11[%c0_65, %c0_66] : memref<32x512xf32, #tpu.memory_space<vmem>>, vector<32x512xf32>
    tpu.vector_store %arg11[%c0_65, %c0_66], %128 {strides = array<i32>} : memref<32x512xf32, #tpu.memory_space<vmem>>, vector<32x512xf32>,
    return
  }
}

</mosaic_0001>

<llo_original>
// kernel: tpu_custom_call.1
$region0: #{tpu_custom_call.1}
  #allocation0 [shape = 'u32[]', space=smem, size = 0x4, offset = 0x4, fixed_abs, tag = 'smem constant byte address 0x4 - core index']
  #allocation1 [shape = 'u32[144,128]{1,0:T(1,128)}', space=vmem, size = 0x12000, scoped, tag = 'internal scratch']
  %s0 = inlined_call_operand.hbm [shape: bf16[32,64], index: 0, kind: input, shape index: {}]
  %s1 = inlined_call_operand.hbm [shape: bf16[64,512], index: 1, kind: input, shape index: {}]
  %s2 = inlined_call_operand.hbm [shape: f32[1,512], index: 2, kind: input, shape index: {}]
  %s3 = inlined_call_operand.vmem [shape: f32[512,32], index: 3, kind: input, shape index: {}]
  %s4 = inlined_call_operand.hbm [shape: f32[32,512], index: 4, kind: input, shape index: {}]
  %s5 = inlined_call_operand.hbm [shape: f32[1,32], index: 5, kind: input, shape index: {}]
  %s6 = inlined_call_operand.hbm [shape: f32[1,32], index: 6, kind: input, shape index: {}]
  %s7 = inlined_call_operand.hbm [shape: bf16[3,512,512], index: 7, kind: input, shape index: {}]
  %s8 = inlined_call_operand.hbm [shape: f32[1,32], index: 8, kind: input, shape index: {}]
  %s9 = inlined_call_operand.hbm [shape: f32[1,32], index: 9, kind: input, shape index: {}]
  %s10 = inlined_call_operand.hbm [shape: bf16[3,512,512], index: 10, kind: input, shape index: {}]
  %s11 = inlined_call_operand.hbm [shape: f32[32,512], index: 11, kind: output, shape index: {}]
  %s12 = sld [smem:[#allocation0]]
  $region94: #{tpu_custom_call.1} parent=0
    _
  %s14 = ssub.s32 1, %s12
  %s15 = scalar_select 0, %s14, %s12
  $region1: #{tpu_custom_call.1} parent=0
    #allocation2 [shape = 'u8[8192]{0}', space=vmem, size = 0x2000, scoped, tag = 'input window, operand 0, single buffered']
    #allocation3 [shape = 's32[1]{0}', space=sflag, size = 0x4, scoped, tag = 'scoped memory for tpu_custom_call.1']
    #allocation4 [shape = 's32[1]{0}', space=sflag, size = 0x4, scoped, tag = 'scoped memory for tpu_custom_call.1']
    #allocation5 [shape = 'u8[65536]{0}', space=vmem, size = 0x10000, scoped, tag = 'input window, operand 1, single buffered']
    #allocation6 [shape = 's32[1]{0}', space=sflag, size = 0x4, scoped, tag = 'scoped memory for tpu_custom_call.1']
    #allocation7 [shape = 'u8[2048]{0}', space=vmem, size = 0x800, scoped, tag = 'input window, operand 2, single buffered']
    #allocation8 [shape = 'u8[65536]{0}', space=vmem, size = 0x10000, scoped, tag = 'input window, operand 4, single buffered']
    #allocation9 [shape = 's32[1]{0}', space=sflag, size = 0x4, scoped, tag = 'scoped memory for tpu_custom_call.1']
    #allocation10 [shape = 'u8[512]{0}', space=vmem, size = 0x400, scoped, tag = 'input window, operand 5, single buffered']
    #allocation11 [shape = 'u8[512]{0}', space=vmem, size = 0x400, scoped, tag = 'input window, operand 6, single buffered']
    #allocation12 [shape = 's32[1]{0}', space=sflag, size = 0x4, scoped, tag = 'scoped memory for tpu_custom_call.1']
    #allocation13 [shape = 'u8[1572864]{0}', space=vmem, size = 0x180000, scoped, tag = 'input window, operand 7, single buffered']
    #allocation14 [shape = 'u8[512]{0}', space=vmem, size = 0x400, scoped, tag = 'input window, operand 8, single buffered']
    #allocation15 [shape = 's32[1]{0}', space=sflag, size = 0x4, scoped, tag = 'scoped memory for tpu_custom_call.1']
    #allocation16 [shape = 'u8[512]{0}', space=vmem, size = 0x400, scoped, tag = 'input window, operand 9, single buffered']
    #allocation17 [shape = 'u8[1572864]{0}', space=vmem, size = 0x180000, scoped, tag = 'input window, operand 10, single buffered']
    #allocation18 [shape = 's32[1]{0}', space=sflag, size = 0x4, scoped, tag = 'scoped memory for tpu_custom_call.1']
    #allocation19 [shape = 'u8[65536]{0}', space=vmem, size = 0x10000, scoped, tag = 'output window, operand 0, single buffered']
    %16 = vsyncpa [#allocation3], 0
    %17 = vsyncpa [#allocation6], 0
    %18 = vsyncpa [#allocation9], 0
    %19 = vsyncpa [#allocation12], 0
    %20 = vsyncpa [#allocation15], 0
    %21 = vsyncpa [#allocation18], 0
    %22 = vsyncpa [#allocation4], 0
    // Predicated region
    $region2: #{tpu_custom_call.1} parent=1 // pred_check
      _
    $region3: #{tpu_custom_call.1} parent=1 // pred_check_branch
      %24 = sbr.rel (0) target = $region5
    $region4: #{tpu_custom_call.1} parent=1 // pred_region
      %s26 = ssub.s32 256, 256
      %27 = vsyncadd [#allocation3], %s26
      %s28 = sshll.u32 [#allocation2], 4
      %s29 = int_to_ptr.vmem [resolvable:$true] %s28
      %34 = dma.hbm_to_vmem [thread:$0]  %s0, 256, %s29, [#allocation3], 64, 64, 4
    $region5: #{tpu_custom_call.1} parent=1 // pred_fallthru
      _
    // Predicated region
    $region6: #{tpu_custom_call.1} parent=1 // pred_check
      _
    $region7: #{tpu_custom_call.1} parent=1 // pred_check_branch
      %36 = sbr.rel (0) target = $region9
    $region8: #{tpu_custom_call.1} parent=1 // pred_region
      %s38 = ssub.s32 2048, 2048
      %39 = vsyncadd [#allocation6], %s38
      %s40 = sshll.u32 [#allocation5], 4
      %s41 = int_to_ptr.vmem [resolvable:$true] %s40
      %46 = dma.hbm_to_vmem [thread:$0]  %s1, 2048, %s41, [#allocation6], 256, 256, 16
    $region9: #{tpu_custom_call.1} parent=1 // pred_fallthru
      _
    // Predicated region
    $region10: #{tpu_custom_call.1} parent=1 // pred_check
      _
    $region11: #{tpu_custom_call.1} parent=1 // pred_check_branch
      %48 = sbr.rel (0) target = $region13
    $region12: #{tpu_custom_call.1} parent=1 // pred_region
      %s50 = ssub.s32 64, 64
      %51 = vsyncadd [#allocation6], %s50
      %s53 = sshll.u32 [#allocation7], 4
      %s54 = int_to_ptr.vmem [resolvable:$true] %s53
      %56 = dma.hbm_to_vmem [thread:$0]  %s2, 64, %s54, [#allocation6]
    $region13: #{tpu_custom_call.1} parent=1 // pred_fallthru
      _
    // Predicated region
    $region14: #{tpu_custom_call.1} parent=1 // pred_check
      _
    $region15: #{tpu_custom_call.1} parent=1 // pred_check_branch
      %58 = sbr.rel (0) target = $region17
    $region16: #{tpu_custom_call.1} parent=1 // pred_region
      _
    $region17: #{tpu_custom_call.1} parent=1 // pred_fallthru
      _
    // Predicated region
    $region18: #{tpu_custom_call.1} parent=1 // pred_check
      _
    $region19: #{tpu_custom_call.1} parent=1 // pred_check_branch
      %60 = sbr.rel (0) target = $region21
    $region20: #{tpu_custom_call.1} parent=1 // pred_region
      %s62 = ssub.s32 2048, 2048
      %63 = vsyncadd [#allocation9], %s62
      %s64 = sshll.u32 [#allocation8], 4
      %s65 = int_to_ptr.vmem [resolvable:$true] %s64
      %70 = dma.hbm_to_vmem [thread:$0]  %s4, 2048, %s65, [#allocation9], 512, 512, 32
    $region21: #{tpu_custom_call.1} parent=1 // pred_fallthru
      _
    // Predicated region
    $region22: #{tpu_custom_call.1} parent=1 // pred_check
      _
    $region23: #{tpu_custom_call.1} parent=1 // pred_check_branch
      %72 = sbr.rel (0) target = $region25
    $region24: #{tpu_custom_call.1} parent=1 // pred_region
      %s74 = ssub.s32 16, 16
      %75 = vsyncadd [#allocation9], %s74
      %s77 = sshll.u32 [#allocation10], 4
      %s78 = int_to_ptr.vmem [resolvable:$true] %s77
      %80 = dma.hbm_to_vmem [thread:$0]  %s5, 16, %s78, [#allocation9]
    $region25: #{tpu_custom_call.1} parent=1 // pred_fallthru
      _
    // Predicated region
    $region26: #{tpu_custom_call.1} parent=1 // pred_check
      _
    $region27: #{tpu_custom_call.1} parent=1 // pred_check_branch
      %82 = sbr.rel (0) target = $region29
    $region28: #{tpu_custom_call.1} parent=1 // pred_region
      %s84 = ssub.s32 16, 16
      %85 = vsyncadd [#allocation12], %s84
      %s87 = sshll.u32 [#allocation11], 4
      %s88 = int_to_ptr.vmem [resolvable:$true] %s87
      %90 = dma.hbm_to_vmem [thread:$0]  %s6, 16, %s88, [#allocation12]
    $region29: #{tpu_custom_call.1} parent=1 // pred_fallthru
      _
    // Predicated region
    $region30: #{tpu_custom_call.1} parent=1 // pred_check
      _
    $region31: #{tpu_custom_call.1} parent=1 // pred_check_branch
      %92 = sbr.rel (0) target = $region33
    $region32: #{tpu_custom_call.1} parent=1 // pred_region
      %s94 = ssub.s32 49152, 49152
      %95 = vsyncadd [#allocation12], %s94
      %s96 = sshll.u32 [#allocation13], 4
      %s97 = int_to_ptr.vmem [resolvable:$true] %s96
      %102 = dma.hbm_to_vmem [thread:$0]  %s7, 49152, %s97, [#allocation12], 256, 256, 16
    $region33: #{tpu_custom_call.1} parent=1 // pred_fallthru
      _
    // Predicated region
    $region34: #{tpu_custom_call.1} parent=1 // pred_check
      _
    $region35: #{tpu_custom_call.1} parent=1 // pred_check_branch
      %104 = sbr.rel (0) target = $region37
    $region36: #{tpu_custom_call.1} parent=1 // pred_region
      %s106 = ssub.s32 16, 16
      %107 = vsyncadd [#allocation15], %s106
      %s109 = sshll.u32 [#allocation14], 4
      %s110 = int_to_ptr.vmem [resolvable:$true] %s109
      %112 = dma.hbm_to_vmem [thread:$0]  %s8, 16, %s110, [#allocation15]
    $region37: #{tpu_custom_call.1} parent=1 // pred_fallthru
      _
    // Predicated region
    $region38: #{tpu_custom_call.1} parent=1 // pred_check
      _
    $region39: #{tpu_custom_call.1} parent=1 // pred_check_branch
      %114 = sbr.rel (0) target = $region41
    $region40: #{tpu_custom_call.1} parent=1 // pred_region
      %s116 = ssub.s32 16, 16
      %117 = vsyncadd [#allocation15], %s116
      %s119 = sshll.u32 [#allocation16], 4
      %s120 = int_to_ptr.vmem [resolvable:$true] %s119
      %122 = dma.hbm_to_vmem [thread:$0]  %s9, 16, %s120, [#allocation15]
    $region41: #{tpu_custom_call.1} parent=1 // pred_fallthru
      _
    // Predicated region
    $region42: #{tpu_custom_call.1} parent=1 // pred_check
      _
    $region43: #{tpu_custom_call.1} parent=1 // pred_check_branch
      %124 = sbr.rel (0) target = $region45
    $region44: #{tpu_custom_call.1} parent=1 // pred_region
      %s126 = ssub.s32 49152, 49152
      %127 = vsyncadd [#allocation18], %s126
      %s128 = sshll.u32 [#allocation17], 4
      %s129 = int_to_ptr.vmem [resolvable:$true] %s128
      %134 = dma.hbm_to_vmem [thread:$0]  %s10, 49152, %s129, [#allocation18], 256, 256, 16
    $region45: #{tpu_custom_call.1} parent=1 // pred_fallthru
      _
    // Predicated region
    $region46: #{tpu_custom_call.1} parent=1 // pred_check
      _
    $region47: #{tpu_custom_call.1} parent=1 // pred_check_branch
      %136 = sbr.rel (0) target = $region49
    $region48: #{tpu_custom_call.1} parent=1 // pred_region
      %137 = dma.done [#allocation3], 256
    $region49: #{tpu_custom_call.1} parent=1 // pred_fallthru
      _
    // Predicated region
    $region50: #{tpu_custom_call.1} parent=1 // pred_check
      _
    $region51: #{tpu_custom_call.1} parent=1 // pred_check_branch
      %139 = sbr.rel (0) target = $region53
    $region52: #{tpu_custom_call.1} parent=1 // pred_region
      %140 = dma.done [#allocation6], 2048
    $region53: #{tpu_custom_call.1} parent=1 // pred_fallthru
      _
    // Predicated region
    $region54: #{tpu_custom_call.1} parent=1 // pred_check
      _
    $region55: #{tpu_custom_call.1} parent=1 // pred_check_branch
      %142 = sbr.rel (0) target = $region57
    $region56: #{tpu_custom_call.1} parent=1 // pred_region
      %143 = dma.done [#allocation6], 64
    $region57: #{tpu_custom_call.1} parent=1 // pred_fallthru
      _
    // Predicated region
    $region58: #{tpu_custom_call.1} parent=1 // pred_check
      _
    $region59: #{tpu_custom_call.1} parent=1 // pred_check_branch
      %145 = sbr.rel (0) target = $region61
    $region60: #{tpu_custom_call.1} parent=1 // pred_region
      %146 = dma.done [#allocation9], 2048
    $region61: #{tpu_custom_call.1} parent=1 // pred_fallthru
      _
    // Predicated region
    $region62: #{tpu_custom_call.1} parent=1 // pred_check
      _
    $region63: #{tpu_custom_call.1} parent=1 // pred_check_branch
      %148 = sbr.rel (0) target = $region65
    $region64: #{tpu_custom_call.1} parent=1 // pred_region
      %149 = dma.done [#allocation9], 16
    $region65: #{tpu_custom_call.1} parent=1 // pred_fallthru
      _
    // Predicated region
    $region66: #{tpu_custom_call.1} parent=1 // pred_check
      _
    $region67: #{tpu_custom_call.1} parent=1 // pred_check_branch
      %151 = sbr.rel (0) target = $region69
    $region68: #{tpu_custom_call.1} parent=1 // pred_region
      %152 = dma.done [#allocation12], 16
    $region69: #{tpu_custom_call.1} parent=1 // pred_fallthru
      _
    // Predicated region
    $region70: #{tpu_custom_call.1} parent=1 // pred_check
      _
    $region71: #{tpu_custom_call.1} parent=1 // pred_check_branch
      %154 = sbr.rel (0) target = $region73
    $region72: #{tpu_custom_call.1} parent=1 // pred_region
      %155 = dma.done [#allocation12], 49152
    $region73: #{tpu_custom_call.1} parent=1 // pred_fallthru
      _
    // Predicated region
    $region74: #{tpu_custom_call.1} parent=1 // pred_check
      _
    $region75: #{tpu_custom_call.1} parent=1 // pred_check_branch
      %157 = sbr.rel (0) target = $region77
    $region76: #{tpu_custom_call.1} parent=1 // pred_region
      %158 = dma.done [#allocation15], 16
    $region77: #{tpu_custom_call.1} parent=1 // pred_fallthru
      _
    // Predicated region
    $region78: #{tpu_custom_call.1} parent=1 // pred_check
      _
    $region79: #{tpu_custom_call.1} parent=1 // pred_check_branch
      %160 = sbr.rel (0) target = $region81
    $region80: #{tpu_custom_call.1} parent=1 // pred_region
      %161 = dma.done [#allocation15], 16
    $region81: #{tpu_custom_call.1} parent=1 // pred_fallthru
      _
    // Predicated region
    $region82: #{tpu_custom_call.1} parent=1 // pred_check
      _
    $region83: #{tpu_custom_call.1} parent=1 // pred_check_branch
      %163 = sbr.rel (0) target = $region85
    $region84: #{tpu_custom_call.1} parent=1 // pred_region
      %164 = dma.done [#allocation18], 49152
    $region85: #{tpu_custom_call.1} parent=1 // pred_fallthru
      _
    %v166 = vld [vmem:[#allocation2] sm:$0xf]
    %v167 = vld [vmem:[#allocation2 + $0x4] sm:$0xf]
    %v168 = vld [vmem:[#allocation2 + $0x8] sm:$0xf]
    %v169 = vld [vmem:[#allocation2 + $0xc] sm:$0xf]
    %v170 = vld [vmem:[#allocation5] sm:$0xff]
    %v171 = vld [vmem:[#allocation5 + $0x8] sm:$0xff]
    %v172 = vld [vmem:[#allocation5 + $0x10] sm:$0xff]
    %v173 = vld [vmem:[#allocation5 + $0x18] sm:$0xff]
    %v174 = vld [vmem:[#allocation5 + $0x20] sm:$0xff]
    %v175 = vld [vmem:[#allocation5 + $0x28] sm:$0xff]
    %v176 = vld [vmem:[#allocation5 + $0x30] sm:$0xff]
    %v177 = vld [vmem:[#allocation5 + $0x38] sm:$0xff]
    %v178 = vld [vmem:[#allocation5 + $0x40] sm:$0xff]
    %v179 = vld [vmem:[#allocation5 + $0x48] sm:$0xff]
    %v180 = vld [vmem:[#allocation5 + $0x50] sm:$0xff]
    %v181 = vld [vmem:[#allocation5 + $0x58] sm:$0xff]
    %v182 = vld [vmem:[#allocation5 + $0x60] sm:$0xff]
    %v183 = vld [vmem:[#allocation5 + $0x68] sm:$0xff]
    %v184 = vld [vmem:[#allocation5 + $0x70] sm:$0xff]
    %v185 = vld [vmem:[#allocation5 + $0x78] sm:$0xff]
    %v186 = vld [vmem:[#allocation7] sm:$0xf]
    %v188 = vlaneseq
    %v189 = vshrl.u32 %v188, 7
    %v190 = vsub.s32 0, %v189
    %v191 = vrot.slane %v186, %v190
    %v192 = vlaneseq
    %v193 = vshrl.u32 %v192, 7
    %v194 = vsub.s32 1, %v193
    %v195 = vrot.slane %v186, %v194
    %v196 = vlaneseq
    %v197 = vshrl.u32 %v196, 7
    %v198 = vsub.s32 2, %v197
    %v199 = vrot.slane %v186, %v198
    %v200 = vlaneseq
    %v201 = vshrl.u32 %v200, 7
    %v202 = vsub.s32 3, %v201
    %v203 = vrot.slane %v186, %v202
    %v212 = vunpack.c.l.b16 %v166
    %v213 = vunpack.c.l.b16 %v167
    %v214 = vunpack.c.l.b16 %v168
    %v215 = vunpack.c.l.b16 %v169
    %v216 = vpack.c.b16 %v213, %v212
    %v217 = vpack.c.b16 %v215, %v214
    %v234 = vunpack.c.l.b16 %v170
    %v235 = vunpack.c.h.b16 %v170
    %v236 = vunpack.c.l.b16 %v171
    %v237 = vunpack.c.h.b16 %v171
    %v238 = vunpack.c.l.b16 %v172
    %v239 = vunpack.c.h.b16 %v172
    %v240 = vunpack.c.l.b16 %v173
    %v241 = vunpack.c.h.b16 %v173
    %v242 = vunpack.c.l.b16 %v174
    %v243 = vunpack.c.h.b16 %v174
    %v244 = vunpack.c.l.b16 %v175
    %v245 = vunpack.c.h.b16 %v175
    %v246 = vunpack.c.l.b16 %v176
    %v247 = vunpack.c.h.b16 %v176
    %v248 = vunpack.c.l.b16 %v177
    %v249 = vunpack.c.h.b16 %v177
    %v250 = vunpack.c.l.b16 %v178
    %v251 = vunpack.c.h.b16 %v178
    %v252 = vunpack.c.l.b16 %v179
    %v253 = vunpack.c.h.b16 %v179
    %v254 = vunpack.c.l.b16 %v180
    %v255 = vunpack.c.h.b16 %v180
    %v256 = vunpack.c.l.b16 %v181
    %v257 = vunpack.c.h.b16 %v181
    %v258 = vunpack.c.l.b16 %v182
    %v259 = vunpack.c.h.b16 %v182
    %v260 = vunpack.c.l.b16 %v183
    %v261 = vunpack.c.h.b16 %v183
    %v262 = vunpack.c.l.b16 %v184
    %v263 = vunpack.c.h.b16 %v184
    %v264 = vunpack.c.l.b16 %v185
    %v265 = vunpack.c.h.b16 %v185
    %v266 = vpack.c.b16 %v238, %v234
    %v267 = vpack.c.b16 %v239, %v235
    %v268 = vpack.c.b16 %v240, %v236
    %v269 = vpack.c.b16 %v241, %v237
    %v270 = vpack.c.b16 %v246, %v242
    %v271 = vpack.c.b16 %v247, %v243
    %v272 = vpack.c.b16 %v248, %v244
    %v273 = vpack.c.b16 %v249, %v245
    %v274 = vpack.c.b16 %v254, %v250
    %v275 = vpack.c.b16 %v255, %v251
    %v276 = vpack.c.b16 %v256, %v252
    %v277 = vpack.c.b16 %v257, %v253
    %v278 = vpack.c.b16 %v262, %v258
    %v279 = vpack.c.b16 %v263, %v259
    %v280 = vpack.c.b16 %v264, %v260
    %v281 = vpack.c.b16 %v265, %v261
    %vm298 = vcmask 523264
    %v300 = vsel %vm298, %v216, 0
    %v303 = vsel %vm298, %v217, 0
    %305 = vmatprep.subr.bf16.mxu0 %v267
    %306 = vmatpush1.bf16.msra.mxu0 %v266
    %307 = vmatprep.subr.bf16.mxu0 %v271
    %308 = vmatpush1.bf16.msra.mxu0 %v270
    %309 = vmatprep.subr.bf16.mxu0 %v275
    %310 = vmatpush1.bf16.msra.mxu0 %v274
    %311 = vmatprep.subr.bf16.mxu0 %v279
    %312 = vmatpush1.bf16.msra.mxu0 %v278
    %313 = vmatprep.subr.bf16.mxu0 0
    %314 = vmatpush1.bf16.msra.mxu0 0
    %315 = vmatprep.subr.bf16.mxu0 0
    %316 = vmatpush1.bf16.msra.mxu0 0
    %317 = vmatprep.subr.bf16.mxu0 0
    %318 = vmatpush1.bf16.msra.mxu0 0
    %319 = vmatprep.subr.bf16.mxu0 0
    %320 = vmatpush1.bf16.msra.mxu0 0
    %321 = vmatprep.subr.bf16.mxu0 0
    %322 = vmatpush1.bf16.msra.mxu0 0
    %323 = vmatprep.subr.bf16.mxu0 0
    %324 = vmatpush1.bf16.msra.mxu0 0
    %325 = vmatprep.subr.bf16.mxu0 0
    %326 = vmatpush1.bf16.msra.mxu0 0
    %327 = vmatprep.subr.bf16.mxu0 0
    %328 = vmatpush1.bf16.msra.mxu0 0
    %329 = vmatprep.subr.bf16.mxu0 0
    %330 = vmatpush1.bf16.msra.mxu0 0
    %331 = vmatprep.subr.bf16.mxu0 0
    %332 = vmatpush1.bf16.msra.mxu0 0
    %333 = vmatprep.subr.bf16.mxu0 0
    %334 = vmatpush1.bf16.msra.mxu0 0
    %335 = vmatprep.subr.bf16.mxu0 0
    %336 = vmatpush1.bf16.msra.mxu0 0
    %337 = vmatprep.mubr.bf16.mxu0 0
    %338 = vmatmul.mubr.bf16.gmra.mrb[0].mxu0 %v300
    %v339 = vpop.f32.mrb[0].mxu0
    %v340 = vadd.f32 %v191, %v339
    %v341 = vpop.f32.mrb[0].mxu0
    %v342 = vadd.f32 %v195, %v341
    %v343 = vpop.f32.mrb[0].mxu0
    %v344 = vadd.f32 %v191, %v343
    %v345 = vpop.f32.mrb[0].mxu0
    %v346 = vadd.f32 %v195, %v345
    %347 = vmatprep.mubr.bf16.mxu0 0
    %348 = vmatmul.mubr.bf16.gmra.mrb[0].mxu0 %v303
    %v349 = vpop.f32.mrb[0].mxu0
    %v350 = vadd.f32 %v191, %v349
    %v351 = vpop.f32.mrb[0].mxu0
    %v352 = vadd.f32 %v195, %v351
    %v353 = vpop.f32.mrb[0].mxu0
    %v354 = vadd.f32 %v191, %v353
    %v355 = vpop.f32.mrb[0].mxu0
    %v356 = vadd.f32 %v195, %v355
    %357 = vdwg.mxu0
    %358 = vmatprep.subr.bf16.mxu0 %v269
    %359 = vmatpush1.bf16.msra.mxu0 %v268
    %360 = vmatprep.subr.bf16.mxu0 %v273
    %361 = vmatpush1.bf16.msra.mxu0 %v272
    %362 = vmatprep.subr.bf16.mxu0 %v277
    %363 = vmatpush1.bf16.msra.mxu0 %v276
    %364 = vmatprep.subr.bf16.mxu0 %v281
    %365 = vmatpush1.bf16.msra.mxu0 %v280
    %366 = vmatprep.subr.bf16.mxu0 0
    %367 = vmatpush1.bf16.msra.mxu0 0
    %368 = vmatprep.subr.bf16.mxu0 0
    %369 = vmatpush1.bf16.msra.mxu0 0
    %370 = vmatprep.subr.bf16.mxu0 0
    %371 = vmatpush1.bf16.msra.mxu0 0
    %372 = vmatprep.subr.bf16.mxu0 0
    %373 = vmatpush1.bf16.msra.mxu0 0
    %374 = vmatprep.subr.bf16.mxu0 0
    %375 = vmatpush1.bf16.msra.mxu0 0
    %376 = vmatprep.subr.bf16.mxu0 0
    %377 = vmatpush1.bf16.msra.mxu0 0
    %378 = vmatprep.subr.bf16.mxu0 0
    %379 = vmatpush1.bf16.msra.mxu0 0
    %380 = vmatprep.subr.bf16.mxu0 0
    %381 = vmatpush1.bf16.msra.mxu0 0
    %382 = vmatprep.subr.bf16.mxu0 0
    %383 = vmatpush1.bf16.msra.mxu0 0
    %384 = vmatprep.subr.bf16.mxu0 0
    %385 = vmatpush1.bf16.msra.mxu0 0
    %386 = vmatprep.subr.bf16.mxu0 0
    %387 = vmatpush1.bf16.msra.mxu0 0
    %388 = vmatprep.subr.bf16.mxu0 0
    %389 = vmatpush1.bf16.msra.mxu0 0
    %390 = vmatprep.mubr.bf16.mxu0 0
    %391 = vmatmul.mubr.bf16.gmra.mrb[0].mxu0 %v300
    %v392 = vpop.f32.mrb[0].mxu0
    %v393 = vadd.f32 %v199, %v392
    %v394 = vpop.f32.mrb[0].mxu0
    %v395 = vadd.f32 %v203, %v394
    %v396 = vpop.f32.mrb[0].mxu0
    %v397 = vadd.f32 %v199, %v396
    %v398 = vpop.f32.mrb[0].mxu0
    %v399 = vadd.f32 %v203, %v398
    %400 = vmatprep.mubr.bf16.mxu0 0
    %401 = vmatmul.mubr.bf16.gmra.mrb[0].mxu0 %v303
    %v402 = vpop.f32.mrb[0].mxu0
    %v403 = vadd.f32 %v199, %v402
    %v404 = vpop.f32.mrb[0].mxu0
    %v405 = vadd.f32 %v203, %v404
    %v406 = vpop.f32.mrb[0].mxu0
    %v407 = vadd.f32 %v199, %v406
    %v408 = vpop.f32.mrb[0].mxu0
    %v409 = vadd.f32 %v203, %v408
    %410 = vdwg.mxu0
    %v411 = vadd.f32 %v340, %v344
    %v412 = vadd.f32 %v411, %v350
    %v413 = vadd.f32 %v412, %v354
    %v414 = vrot.slane %v413, 4
    %v415 = vadd.f32 %v413, %v414
    %v416 = vrot.slane %v415, 2
    %v417 = vadd.f32 %v415, %v416
    %v418 = vrot.slane %v417, 1
    %v419 = vadd.f32 %v417, %v418
    %v420 = vadd.f32 %v342, %v346
    %v421 = vadd.f32 %v420, %v352
    %v422 = vadd.f32 %v421, %v356
    %v423 = vrot.slane %v422, 4
    %v424 = vadd.f32 %v422, %v423
    %v425 = vrot.slane %v424, 2
    %v426 = vadd.f32 %v424, %v425
    %v427 = vrot.slane %v426, 1
    %v428 = vadd.f32 %v426, %v427
    %v429 = vadd.f32 %v393, %v397
    %v430 = vadd.f32 %v429, %v403
    %v431 = vadd.f32 %v430, %v407
    %v432 = vrot.slane %v431, 4
    %v433 = vadd.f32 %v431, %v432
    %v434 = vrot.slane %v433, 2
    %v435 = vadd.f32 %v433, %v434
    %v436 = vrot.slane %v435, 1
    %v437 = vadd.f32 %v435, %v436
    %v438 = vadd.f32 %v395, %v399
    %v439 = vadd.f32 %v438, %v405
    %v440 = vadd.f32 %v439, %v409
    %v441 = vrot.slane %v440, 4
    %v442 = vadd.f32 %v440, %v441
    %v443 = vrot.slane %v442, 2
    %v444 = vadd.f32 %v442, %v443
    %v445 = vrot.slane %v444, 1
    %v446 = vadd.f32 %v444, %v445
    %v447 = vmul.f32 %v340, %v340
    %v448 = vmul.f32 %v342, %v342
    %v449 = vmul.f32 %v393, %v393
    %v450 = vmul.f32 %v395, %v395
    %v451 = vmul.f32 %v344, %v344
    %v452 = vmul.f32 %v346, %v346
    %v453 = vmul.f32 %v397, %v397
    %v454 = vmul.f32 %v399, %v399
    %v455 = vmul.f32 %v350, %v350
    %v456 = vmul.f32 %v352, %v352
    %v457 = vmul.f32 %v403, %v403
    %v458 = vmul.f32 %v405, %v405
    %v459 = vmul.f32 %v354, %v354
    %v460 = vmul.f32 %v356, %v356
    %v461 = vmul.f32 %v407, %v407
    %v462 = vmul.f32 %v409, %v409
    %v463 = vadd.f32 %v447, %v451
    %v464 = vadd.f32 %v463, %v455
    %v465 = vadd.f32 %v464, %v459
    %v466 = vrot.slane %v465, 4
    %v467 = vadd.f32 %v465, %v466
    %v468 = vrot.slane %v467, 2
    %v469 = vadd.f32 %v467, %v468
    %v470 = vrot.slane %v469, 1
    %v471 = vadd.f32 %v469, %v470
    %v472 = vadd.f32 %v448, %v452
    %v473 = vadd.f32 %v472, %v456
    %v474 = vadd.f32 %v473, %v460
    %v475 = vrot.slane %v474, 4
    %v476 = vadd.f32 %v474, %v475
    %v477 = vrot.slane %v476, 2
    %v478 = vadd.f32 %v476, %v477
    %v479 = vrot.slane %v478, 1
    %v480 = vadd.f32 %v478, %v479
    %v481 = vadd.f32 %v449, %v453
    %v482 = vadd.f32 %v481, %v457
    %v483 = vadd.f32 %v482, %v461
    %v484 = vrot.slane %v483, 4
    %v485 = vadd.f32 %v483, %v484
    %v486 = vrot.slane %v485, 2
    %v487 = vadd.f32 %v485, %v486
    %v488 = vrot.slane %v487, 1
    %v489 = vadd.f32 %v487, %v488
    %v490 = vadd.f32 %v450, %v454
    %v491 = vadd.f32 %v490, %v458
    %v492 = vadd.f32 %v491, %v462
    %v493 = vrot.slane %v492, 4
    %v494 = vadd.f32 %v492, %v493
    %v495 = vrot.slane %v494, 2
    %v496 = vadd.f32 %v494, %v495
    %v497 = vrot.slane %v496, 1
    %v498 = vadd.f32 %v496, %v497
    %vm499 = vcmask 1040384
    %v500 = vsel %vm499, %v419, %v471
    %v501 = vsel %vm499, %v428, %v480
    %v502 = vsel %vm499, %v437, %v489
    %v503 = vsel %vm499, %v446, %v498
    %v504 = vld [vmem:[%s3] sm:$0xff]
    %v505 = vld [vmem:[%s3 + $0x8] sm:$0xff]
    %v506 = vld [vmem:[%s3 + $0x10] sm:$0xff]
    %v507 = vld [vmem:[%s3 + $0x18] sm:$0xff]
    %v508 = vld [vmem:[%s3 + $0x20] sm:$0xff]
    %v509 = vld [vmem:[%s3 + $0x28] sm:$0xff]
    %v510 = vld [vmem:[%s3 + $0x30] sm:$0xff]
    %v511 = vld [vmem:[%s3 + $0x38] sm:$0xff]
    %v512 = vld [vmem:[%s3 + $0x40] sm:$0xff]
    %v513 = vld [vmem:[%s3 + $0x48] sm:$0xff]
    %v514 = vld [vmem:[%s3 + $0x50] sm:$0xff]
    %v515 = vld [vmem:[%s3 + $0x58] sm:$0xff]
    %v516 = vld [vmem:[%s3 + $0x60] sm:$0xff]
    %v517 = vld [vmem:[%s3 + $0x68] sm:$0xff]
    %v518 = vld [vmem:[%s3 + $0x70] sm:$0xff]
    %v519 = vld [vmem:[%s3 + $0x78] sm:$0xff]
    %v520 = vld [vmem:[%s3 + $0x80] sm:$0xff]
    %v521 = vld [vmem:[%s3 + $0x88] sm:$0xff]
    %v522 = vld [vmem:[%s3 + $0x90] sm:$0xff]
    %v523 = vld [vmem:[%s3 + $0x98] sm:$0xff]
    %v524 = vld [vmem:[%s3 + $0xa0] sm:$0xff]
    %v525 = vld [vmem:[%s3 + $0xa8] sm:$0xff]
    %v526 = vld [vmem:[%s3 + $0xb0] sm:$0xff]
    %v527 = vld [vmem:[%s3 + $0xb8] sm:$0xff]
    %v528 = vld [vmem:[%s3 + $0xc0] sm:$0xff]
    %v529 = vld [vmem:[%s3 + $0xc8] sm:$0xff]
    %v530 = vld [vmem:[%s3 + $0xd0] sm:$0xff]
    %v531 = vld [vmem:[%s3 + $0xd8] sm:$0xff]
    %v532 = vld [vmem:[%s3 + $0xe0] sm:$0xff]
    %v533 = vld [vmem:[%s3 + $0xe8] sm:$0xff]
    %v534 = vld [vmem:[%s3 + $0xf0] sm:$0xff]
    %v535 = vld [vmem:[%s3 + $0xf8] sm:$0xff]
    %v536 = vld [vmem:[%s3 + $0x100] sm:$0xff]
    %v537 = vld [vmem:[%s3 + $0x108] sm:$0xff]
    %v538 = vld [vmem:[%s3 + $0x110] sm:$0xff]
    %v539 = vld [vmem:[%s3 + $0x118] sm:$0xff]
    %v540 = vld [vmem:[%s3 + $0x120] sm:$0xff]
    %v541 = vld [vmem:[%s3 + $0x128] sm:$0xff]
    %v542 = vld [vmem:[%s3 + $0x130] sm:$0xff]
    %v543 = vld [vmem:[%s3 + $0x138] sm:$0xff]
    %v544 = vld [vmem:[%s3 + $0x140] sm:$0xff]
    %v545 = vld [vmem:[%s3 + $0x148] sm:$0xff]
    %v546 = vld [vmem:[%s3 + $0x150] sm:$0xff]
    %v547 = vld [vmem:[%s3 + $0x158] sm:$0xff]
    %v548 = vld [vmem:[%s3 + $0x160] sm:$0xff]
    %v549 = vld [vmem:[%s3 + $0x168] sm:$0xff]
    %v550 = vld [vmem:[%s3 + $0x170] sm:$0xff]
    %v551 = vld [vmem:[%s3 + $0x178] sm:$0xff]
    %v552 = vld [vmem:[%s3 + $0x180] sm:$0xff]
    %v553 = vld [vmem:[%s3 + $0x188] sm:$0xff]
    %v554 = vld [vmem:[%s3 + $0x190] sm:$0xff]
    %v555 = vld [vmem:[%s3 + $0x198] sm:$0xff]
    %v556 = vld [vmem:[%s3 + $0x1a0] sm:$0xff]
    %v557 = vld [vmem:[%s3 + $0x1a8] sm:$0xff]
    %v558 = vld [vmem:[%s3 + $0x1b0] sm:$0xff]
    %v559 = vld [vmem:[%s3 + $0x1b8] sm:$0xff]
    %v560 = vld [vmem:[%s3 + $0x1c0] sm:$0xff]
    %v561 = vld [vmem:[%s3 + $0x1c8] sm:$0xff]
    %v562 = vld [vmem:[%s3 + $0x1d0] sm:$0xff]
    %v563 = vld [vmem:[%s3 + $0x1d8] sm:$0xff]
    %v564 = vld [vmem:[%s3 + $0x1e0] sm:$0xff]
    %v565 = vld [vmem:[%s3 + $0x1e8] sm:$0xff]
    %v566 = vld [vmem:[%s3 + $0x1f0] sm:$0xff]
    %v567 = vld [vmem:[%s3 + $0x1f8] sm:$0xff]
    %568 = vmatprep.subr.mxu0 0.0
    %569 = vmatpush1.msra.mxu0 %v504
    %570 = vmatprep.subr.mxu0 0.0
    %571 = vmatpush1.msra.mxu0 %v505
    %572 = vmatprep.subr.mxu0 0.0
    %573 = vmatpush1.msra.mxu0 %v506
    %574 = vmatprep.subr.mxu0 0.0
    %575 = vmatpush1.msra.mxu0 %v507
    %576 = vmatprep.subr.mxu0 0.0
    %577 = vmatpush1.msra.mxu0 %v508
    %578 = vmatprep.subr.mxu0 0.0
    %579 = vmatpush1.msra.mxu0 %v509
    %580 = vmatprep.subr.mxu0 0.0
    %581 = vmatpush1.msra.mxu0 %v510
    %582 = vmatprep.subr.mxu0 0.0
    %583 = vmatpush1.msra.mxu0 %v511
    %584 = vmatprep.subr.mxu0 0.0
    %585 = vmatpush1.msra.mxu0 %v512
    %586 = vmatprep.subr.mxu0 0.0
    %587 = vmatpush1.msra.mxu0 %v513
    %588 = vmatprep.subr.mxu0 0.0
    %589 = vmatpush1.msra.mxu0 %v514
    %590 = vmatprep.subr.mxu0 0.0
    %591 = vmatpush1.msra.mxu0 %v515
    %592 = vmatprep.subr.mxu0 0.0
    %593 = vmatpush1.msra.mxu0 %v516
    %594 = vmatprep.subr.mxu0 0.0
    %595 = vmatpush1.msra.mxu0 %v517
    %596 = vmatprep.subr.mxu0 0.0
    %597 = vmatpush1.msra.mxu0 %v518
    %598 = vmatprep.subr.mxu0 0.0
    %599 = vmatpush1.msra.mxu0 %v519
    %600 = vmatprep.subr.mxu0 0.0
    %601 = vmatpush1.msra.mxu0 %v520
    %602 = vmatprep.subr.mxu0 0.0
    %603 = vmatpush1.msra.mxu0 %v521
    %604 = vmatprep.subr.mxu0 0.0
    %605 = vmatpush1.msra.mxu0 %v522
    %606 = vmatprep.subr.mxu0 0.0
    %607 = vmatpush1.msra.mxu0 %v523
    %608 = vmatprep.subr.mxu0 0.0
    %609 = vmatpush1.msra.mxu0 %v524
    %610 = vmatprep.subr.mxu0 0.0
    %611 = vmatpush1.msra.mxu0 %v525
    %612 = vmatprep.subr.mxu0 0.0
    %613 = vmatpush1.msra.mxu0 %v526
    %614 = vmatprep.subr.mxu0 0.0
    %615 = vmatpush1.msra.mxu0 %v527
    %616 = vmatprep.subr.mxu0 0.0
    %617 = vmatpush1.msra.mxu0 %v528
    %618 = vmatprep.subr.mxu0 0.0
    %619 = vmatpush1.msra.mxu0 %v529
    %620 = vmatprep.subr.mxu0 0.0
    %621 = vmatpush1.msra.mxu0 %v530
    %622 = vmatprep.subr.mxu0 0.0
    %623 = vmatpush1.msra.mxu0 %v531
    %624 = vmatprep.subr.mxu0 0.0
    %625 = vmatpush1.msra.mxu0 %v532
    %626 = vmatprep.subr.mxu0 0.0
    %627 = vmatpush1.msra.mxu0 %v533
    %628 = vmatprep.subr.mxu0 0.0
    %629 = vmatpush1.msra.mxu0 %v534
    %630 = vmatprep.subr.mxu0 0.0
    %631 = vmatpush1.msra.mxu0 %v535
    %632 = vmatprep.mubr.f32.mxu0 %v501
    %633 = vmatmul.mubr.f32.gmra.mrb[0].mxu0 %v500
    %v634 = vpop.f32.mrb[0].mxu0
    %v635 = vadd.f32 0.0, %v634
    %v636 = vpop.f32.mrb[0].mxu0
    %637 = vdwg.mxu0
    %638 = vmatprep.subr.mxu0 0.0
    %639 = vmatpush1.msra.mxu0 %v536
    %640 = vmatprep.subr.mxu0 0.0
    %641 = vmatpush1.msra.mxu0 %v537
    %642 = vmatprep.subr.mxu0 0.0
    %643 = vmatpush1.msra.mxu0 %v538
    %644 = vmatprep.subr.mxu0 0.0
    %645 = vmatpush1.msra.mxu0 %v539
    %646 = vmatprep.subr.mxu0 0.0
    %647 = vmatpush1.msra.mxu0 %v540
    %648 = vmatprep.subr.mxu0 0.0
    %649 = vmatpush1.msra.mxu0 %v541
    %650 = vmatprep.subr.mxu0 0.0
    %651 = vmatpush1.msra.mxu0 %v542
    %652 = vmatprep.subr.mxu0 0.0
    %653 = vmatpush1.msra.mxu0 %v543
    %654 = vmatprep.subr.mxu0 0.0
    %655 = vmatpush1.msra.mxu0 %v544
    %656 = vmatprep.subr.mxu0 0.0
    %657 = vmatpush1.msra.mxu0 %v545
    %658 = vmatprep.subr.mxu0 0.0
    %659 = vmatpush1.msra.mxu0 %v546
    %660 = vmatprep.subr.mxu0 0.0
    %661 = vmatpush1.msra.mxu0 %v547
    %662 = vmatprep.subr.mxu0 0.0
    %663 = vmatpush1.msra.mxu0 %v548
    %664 = vmatprep.subr.mxu0 0.0
    %665 = vmatpush1.msra.mxu0 %v549
    %666 = vmatprep.subr.mxu0 0.0
    %667 = vmatpush1.msra.mxu0 %v550
    %668 = vmatprep.subr.mxu0 0.0
    %669 = vmatpush1.msra.mxu0 %v551
    %670 = vmatprep.subr.mxu0 0.0
    %671 = vmatpush1.msra.mxu0 %v552
    %672 = vmatprep.subr.mxu0 0.0
    %673 = vmatpush1.msra.mxu0 %v553
    %674 = vmatprep.subr.mxu0 0.0
    %675 = vmatpush1.msra.mxu0 %v554
    %676 = vmatprep.subr.mxu0 0.0
    %677 = vmatpush1.msra.mxu0 %v555
    %678 = vmatprep.subr.mxu0 0.0
    %679 = vmatpush1.msra.mxu0 %v556
    %680 = vmatprep.subr.mxu0 0.0
    %681 = vmatpush1.msra.mxu0 %v557
    %682 = vmatprep.subr.mxu0 0.0
    %683 = vmatpush1.msra.mxu0 %v558
    %684 = vmatprep.subr.mxu0 0.0
    %685 = vmatpush1.msra.mxu0 %v559
    %686 = vmatprep.subr.mxu0 0.0
    %687 = vmatpush1.msra.mxu0 %v560
    %688 = vmatprep.subr.mxu0 0.0
    %689 = vmatpush1.msra.mxu0 %v561
    %690 = vmatprep.subr.mxu0 0.0
    %691 = vmatpush1.msra.mxu0 %v562
    %692 = vmatprep.subr.mxu0 0.0
    %693 = vmatpush1.msra.mxu0 %v563
    %694 = vmatprep.subr.mxu0 0.0
    %695 = vmatpush1.msra.mxu0 %v564
    %696 = vmatprep.subr.mxu0 0.0
    %697 = vmatpush1.msra.mxu0 %v565
    %698 = vmatprep.subr.mxu0 0.0
    %699 = vmatpush1.msra.mxu0 %v566
    %700 = vmatprep.subr.mxu0 0.0
    %701 = vmatpush1.msra.mxu0 %v567
    %702 = vmatprep.mubr.f32.mxu0 %v503
    %703 = vmatmul.mubr.f32.gmra.mrb[0].mxu0 %v502
    %v704 = vpop.f32.mrb[0].mxu0
    %v705 = vadd.f32 %v635, %v704
    %v706 = vpop.f32.mrb[0].mxu0
    %707 = vdwg.mxu0
    %v708 = vmul.f32 %v705, 0.001953125
    %v709 = vmul.f32 %v708, %v708
    %v711 = vrot.slane %v709, 7
    %v713 = vsub.f32 %v708, %v711
    %v714 = vld [vmem:[#allocation10] sm:$0x1]
    %v715 = vadd.f32 %v713, 1e-05
    %v716 = vrsqrt.pop %v715
    %v719 = vunpack.c.l.s4 1966171168
    %v720 = vunpack.c.0.s8 %v719
    %v721 = vlaneseq
    %v722 = vshrl.u32 %v721, 7
    %v723 = vsub.s32 %v720, %v722
    %v724 = vrot.slane %v716, %v723
    %v725 = vcombine.high %v724, %v724
    %v727 = vunpack.c.l.s4 1966171168
    %v728 = vunpack.c.0.s8 %v727
    %v729 = vlaneseq
    %v730 = vshrl.u32 %v729, 7
    %v731 = vsub.s32 %v728, %v730
    %v732 = vrot.slane %v725, %v731
    %v734 = vmul.f32 %v714, %v732
    %v735 = vld [vmem:[#allocation11] sm:$0x1]
    %v736 = vmul.f32 %v708, %v734
    %v737 = vsub.f32 %v735, %v736
    %v739 = vlaneseq
    %v740 = vshrl.u32 %v739, 7
    %v741 = vsub.s32 0, %v740
    %v742 = vrot.slane %v737, %v741
    %v744 = vsel %vm499, %v734, %v742
    %v745 = vld [vmem:[#allocation8] sm:$0xff]
    %v746 = vld [vmem:[#allocation8 + $0x8] sm:$0xff]
    %v747 = vld [vmem:[#allocation8 + $0x10] sm:$0xff]
    %v748 = vld [vmem:[#allocation8 + $0x18] sm:$0xff]
    %v749 = vld [vmem:[#allocation8 + $0x20] sm:$0xff]
    %v750 = vld [vmem:[#allocation8 + $0x28] sm:$0xff]
    %v751 = vld [vmem:[#allocation8 + $0x30] sm:$0xff]
    %v752 = vld [vmem:[#allocation8 + $0x38] sm:$0xff]
    %v753 = vld [vmem:[#allocation8 + $0x40] sm:$0xff]
    %v754 = vld [vmem:[#allocation8 + $0x48] sm:$0xff]
    %v755 = vld [vmem:[#allocation8 + $0x50] sm:$0xff]
    %v756 = vld [vmem:[#allocation8 + $0x58] sm:$0xff]
    %v757 = vld [vmem:[#allocation8 + $0x60] sm:$0xff]
    %v758 = vld [vmem:[#allocation8 + $0x68] sm:$0xff]
    %v759 = vld [vmem:[#allocation8 + $0x70] sm:$0xff]
    %v760 = vld [vmem:[#allocation8 + $0x78] sm:$0xff]
    %vm761 = vcmask 261120
    %v763 = vsel %vm761, %v744, 0
    %765 = vmatprep.subr.mxu0 %v746
    %766 = vmatpush1.msra.mxu0 %v745
    %767 = vmatprep.subr.mxu0 %v750
    %768 = vmatpush1.msra.mxu0 %v749
    %769 = vmatprep.subr.mxu0 %v754
    %770 = vmatpush1.msra.mxu0 %v753
    %771 = vmatprep.subr.mxu0 %v758
    %772 = vmatpush1.msra.mxu0 %v757
    %773 = vmatprep.subr.mxu0 0.0
    %774 = vmatpush1.msra.mxu0 0.0
    %775 = vmatprep.subr.mxu0 0.0
    %776 = vmatpush1.msra.mxu0 0.0
    %777 = vmatprep.subr.mxu0 0.0
    %778 = vmatpush1.msra.mxu0 0.0
    %779 = vmatprep.subr.mxu0 0.0
    %780 = vmatpush1.msra.mxu0 0.0
    %781 = vmatprep.subr.mxu0 0.0
    %782 = vmatpush1.msra.mxu0 0.0
    %783 = vmatprep.subr.mxu0 0.0
    %784 = vmatpush1.msra.mxu0 0.0
    %785 = vmatprep.subr.mxu0 0.0
    %786 = vmatpush1.msra.mxu0 0.0
    %787 = vmatprep.subr.mxu0 0.0
    %788 = vmatpush1.msra.mxu0 0.0
    %789 = vmatprep.subr.mxu0 0.0
    %790 = vmatpush1.msra.mxu0 0.0
    %791 = vmatprep.subr.mxu0 0.0
    %792 = vmatpush1.msra.mxu0 0.0
    %793 = vmatprep.subr.mxu0 0.0
    %794 = vmatpush1.msra.mxu0 0.0
    %795 = vmatprep.subr.mxu0 0.0
    %796 = vmatpush1.msra.mxu0 0.0
    %797 = vmatprep.subr.mxu0 0.0
    %798 = vmatpush1.msra.mxu0 0.0
    %799 = vmatprep.subr.mxu0 0.0
    %800 = vmatpush1.msra.mxu0 0.0
    %801 = vmatprep.subr.mxu0 0.0
    %802 = vmatpush1.msra.mxu0 0.0
    %803 = vmatprep.subr.mxu0 0.0
    %804 = vmatpush1.msra.mxu0 0.0
    %805 = vmatprep.subr.mxu0 0.0
    %806 = vmatpush1.msra.mxu0 0.0
    %807 = vmatprep.subr.mxu0 0.0
    %808 = vmatpush1.msra.mxu0 0.0
    %809 = vmatprep.subr.mxu0 0.0
    %810 = vmatpush1.msra.mxu0 0.0
    %811 = vmatprep.subr.mxu0 0.0
    %812 = vmatpush1.msra.mxu0 0.0
    %813 = vmatprep.subr.mxu0 0.0
    %814 = vmatpush1.msra.mxu0 0.0
    %815 = vmatprep.subr.mxu0 0.0
    %816 = vmatpush1.msra.mxu0 0.0
    %817 = vmatprep.subr.mxu0 0.0
    %818 = vmatpush1.msra.mxu0 0.0
    %819 = vmatprep.subr.mxu0 0.0
    %820 = vmatpush1.msra.mxu0 0.0
    %821 = vmatprep.subr.mxu0 0.0
    %822 = vmatpush1.msra.mxu0 0.0
    %823 = vmatprep.subr.mxu0 0.0
    %824 = vmatpush1.msra.mxu0 0.0
    %825 = vmatprep.subr.mxu0 0.0
    %826 = vmatpush1.msra.mxu0 0.0
    %827 = vmatprep.subr.mxu0 0.0
    %828 = vmatpush1.msra.mxu0 0.0
    %829 = vmatprep.mubr.f32.mxu0 0.0
    %830 = vmatmul.mubr.f32.gmra.mrb[0].mxu0 %v763
    %v831 = vpop.f32.mrb[0].mxu0
    %v832 = vadd.f32 0.0, %v831
    %v833 = vpop.f32.mrb[0].mxu0
    %v834 = vadd.f32 0.0, %v833
    %835 = vdwg.mxu0
    %836 = vmatprep.subr.mxu0 %v748
    %837 = vmatpush1.msra.mxu0 %v747
    %838 = vmatprep.subr.mxu0 %v752
    %839 = vmatpush1.msra.mxu0 %v751
    %840 = vmatprep.subr.mxu0 %v756
    %841 = vmatpush1.msra.mxu0 %v755
    %842 = vmatprep.subr.mxu0 %v760
    %843 = vmatpush1.msra.mxu0 %v759
    %844 = vmatprep.subr.mxu0 0.0
    %845 = vmatpush1.msra.mxu0 0.0
    %846 = vmatprep.subr.mxu0 0.0
    %847 = vmatpush1.msra.mxu0 0.0
    %848 = vmatprep.subr.mxu0 0.0
    %849 = vmatpush1.msra.mxu0 0.0
    %850 = vmatprep.subr.mxu0 0.0
    %851 = vmatpush1.msra.mxu0 0.0
    %852 = vmatprep.subr.mxu0 0.0
    %853 = vmatpush1.msra.mxu0 0.0
    %854 = vmatprep.subr.mxu0 0.0
    %855 = vmatpush1.msra.mxu0 0.0
    %856 = vmatprep.subr.mxu0 0.0
    %857 = vmatpush1.msra.mxu0 0.0
    %858 = vmatprep.subr.mxu0 0.0
    %859 = vmatpush1.msra.mxu0 0.0
    %860 = vmatprep.subr.mxu0 0.0
    %861 = vmatpush1.msra.mxu0 0.0
    %862 = vmatprep.subr.mxu0 0.0
    %863 = vmatpush1.msra.mxu0 0.0
    %864 = vmatprep.subr.mxu0 0.0
    %865 = vmatpush1.msra.mxu0 0.0
    %866 = vmatprep.subr.mxu0 0.0
    %867 = vmatpush1.msra.mxu0 0.0
    %868 = vmatprep.subr.mxu0 0.0
    %869 = vmatpush1.msra.mxu0 0.0
    %870 = vmatprep.subr.mxu0 0.0
    %871 = vmatpush1.msra.mxu0 0.0
    %872 = vmatprep.subr.mxu0 0.0
    %873 = vmatpush1.msra.mxu0 0.0
    %874 = vmatprep.subr.mxu0 0.0
    %875 = vmatpush1.msra.mxu0 0.0
    %876 = vmatprep.subr.mxu0 0.0
    %877 = vmatpush1.msra.mxu0 0.0
    %878 = vmatprep.subr.mxu0 0.0
    %879 = vmatpush1.msra.mxu0 0.0
    %880 = vmatprep.subr.mxu0 0.0
    %881 = vmatpush1.msra.mxu0 0.0
    %882 = vmatprep.subr.mxu0 0.0
    %883 = vmatpush1.msra.mxu0 0.0
    %884 = vmatprep.subr.mxu0 0.0
    %885 = vmatpush1.msra.mxu0 0.0
    %886 = vmatprep.subr.mxu0 0.0
    %887 = vmatpush1.msra.mxu0 0.0
    %888 = vmatprep.subr.mxu0 0.0
    %889 = vmatpush1.msra.mxu0 0.0
    %890 = vmatprep.subr.mxu0 0.0
    %891 = vmatpush1.msra.mxu0 0.0
    %892 = vmatprep.subr.mxu0 0.0
    %893 = vmatpush1.msra.mxu0 0.0
    %894 = vmatprep.subr.mxu0 0.0
    %895 = vmatpush1.msra.mxu0 0.0
    %896 = vmatprep.subr.mxu0 0.0
    %897 = vmatpush1.msra.mxu0 0.0
    %898 = vmatprep.subr.mxu0 0.0
    %899 = vmatpush1.msra.mxu0 0.0
    %900 = vmatprep.mubr.f32.mxu0 0.0
    %901 = vmatmul.mubr.f32.gmra.mrb[0].mxu0 %v763
    %v902 = vpop.f32.mrb[0].mxu0
    %v903 = vadd.f32 0.0, %v902
    %v904 = vpop.f32.mrb[0].mxu0
    %v905 = vadd.f32 0.0, %v904
    %906 = vdwg.mxu0
    %v907 = vlaneseq
    %v908 = vshrl.u32 %v907, 7
    %v909 = vsub.s32 0, %v908
    %v910 = vrot.slane %v832, %v909
    %v911 = vlaneseq
    %v912 = vshrl.u32 %v911, 7
    %v913 = vsub.s32 0, %v912
    %v914 = vrot.slane %v834, %v913
    %v915 = vlaneseq
    %v916 = vshrl.u32 %v915, 7
    %v917 = vsub.s32 0, %v916
    %v918 = vrot.slane %v903, %v917
    %v919 = vlaneseq
    %v920 = vshrl.u32 %v919, 7
    %v921 = vsub.s32 0, %v920
    %v922 = vrot.slane %v905, %v921
    %v923 = vmul.f32 %v340, %v910
    %v924 = vmul.f32 %v342, %v914
    %v925 = vmul.f32 %v393, %v918
    %v926 = vmul.f32 %v395, %v922
    %v927 = vmul.f32 %v344, %v910
    %v928 = vmul.f32 %v346, %v914
    %v929 = vmul.f32 %v397, %v918
    %v930 = vmul.f32 %v399, %v922
    %v931 = vmul.f32 %v350, %v910
    %v932 = vmul.f32 %v352, %v914
    %v933 = vmul.f32 %v403, %v918
    %v934 = vmul.f32 %v405, %v922
    %v935 = vmul.f32 %v354, %v910
    %v936 = vmul.f32 %v356, %v914
    %v937 = vmul.f32 %v407, %v918
    %v938 = vmul.f32 %v409, %v922
    %v939 = vlaneseq
    %v940 = vshrl.u32 %v939, 7
    %v941 = vsub.s32 1, %v940
    %v942 = vrot.slane %v832, %v941
    %v943 = vlaneseq
    %v944 = vshrl.u32 %v943, 7
    %v945 = vsub.s32 1, %v944
    %v946 = vrot.slane %v834, %v945
    %v947 = vlaneseq
    %v948 = vshrl.u32 %v947, 7
    %v949 = vsub.s32 1, %v948
    %v950 = vrot.slane %v903, %v949
    %v951 = vlaneseq
    %v952 = vshrl.u32 %v951, 7
    %v953 = vsub.s32 1, %v952
    %v954 = vrot.slane %v905, %v953
    %v955 = vadd.f32 %v923, %v942
    %v956 = vadd.f32 %v924, %v946
    %v957 = vadd.f32 %v925, %v950
    %v958 = vadd.f32 %v926, %v954
    %v959 = vadd.f32 %v927, %v942
    %v960 = vadd.f32 %v928, %v946
    %v961 = vadd.f32 %v929, %v950
    %v962 = vadd.f32 %v930, %v954
    %v963 = vadd.f32 %v931, %v942
    %v964 = vadd.f32 %v932, %v946
    %v965 = vadd.f32 %v933, %v950
    %v966 = vadd.f32 %v934, %v954
    %v967 = vadd.f32 %v935, %v942
    %v968 = vadd.f32 %v936, %v946
    %v969 = vadd.f32 %v937, %v950
    %v970 = vadd.f32 %v938, %v954
    %vm971 = vcmp.gt.f32.partialorder %v955, 0.0
    %vm972 = vcmp.gt.f32.partialorder %v956, 0.0
    %vm973 = vcmp.gt.f32.partialorder %v957, 0.0
    %vm974 = vcmp.gt.f32.partialorder %v958, 0.0
    %vm975 = vcmp.gt.f32.partialorder %v959, 0.0
    %vm976 = vcmp.gt.f32.partialorder %v960, 0.0
    %vm977 = vcmp.gt.f32.partialorder %v961, 0.0
    %vm978 = vcmp.gt.f32.partialorder %v962, 0.0
    %vm979 = vcmp.gt.f32.partialorder %v963, 0.0
    %vm980 = vcmp.gt.f32.partialorder %v964, 0.0
    %vm981 = vcmp.gt.f32.partialorder %v965, 0.0
    %vm982 = vcmp.gt.f32.partialorder %v966, 0.0
    %vm983 = vcmp.gt.f32.partialorder %v967, 0.0
    %vm984 = vcmp.gt.f32.partialorder %v968, 0.0
    %vm985 = vcmp.gt.f32.partialorder %v969, 0.0
    %vm986 = vcmp.gt.f32.partialorder %v970, 0.0
    %v987 = vmul.f32 %v955, 0.01
    %v988 = vmul.f32 %v956, 0.01
    %v989 = vmul.f32 %v957, 0.01
    %v990 = vmul.f32 %v958, 0.01
    %v991 = vmul.f32 %v959, 0.01
    %v992 = vmul.f32 %v960, 0.01
    %v993 = vmul.f32 %v961, 0.01
    %v994 = vmul.f32 %v962, 0.01
    %v995 = vmul.f32 %v963, 0.01
    %v996 = vmul.f32 %v964, 0.01
    %v997 = vmul.f32 %v965, 0.01
    %v998 = vmul.f32 %v966, 0.01
    %v999 = vmul.f32 %v967, 0.01
    %v1000 = vmul.f32 %v968, 0.01
    %v1001 = vmul.f32 %v969, 0.01
    %v1002 = vmul.f32 %v970, 0.01
    %v1003 = vsel %vm971, %v955, %v987
    %v1004 = vsel %vm972, %v956, %v988
    %v1005 = vsel %vm973, %v957, %v989
    %v1006 = vsel %vm974, %v958, %v990
    %v1007 = vsel %vm975, %v959, %v991
    %v1008 = vsel %vm976, %v960, %v992
    %v1009 = vsel %vm977, %v961, %v993
    %v1010 = vsel %vm978, %v962, %v994
    %v1011 = vsel %vm979, %v963, %v995
    %v1012 = vsel %vm980, %v964, %v996
    %v1013 = vsel %vm981, %v965, %v997
    %v1014 = vsel %vm982, %v966, %v998
    %v1015 = vsel %vm983, %v967, %v999
    %v1016 = vsel %vm984, %v968, %v1000
    %v1017 = vsel %vm985, %v969, %v1001
    %v1018 = vsel %vm986, %v970, %v1002
    %v1019 = vpack.c.bf16 %v1007, %v1003
    %v1020 = vpack.c.bf16 %v1008, %v1004
    %v1021 = vpack.c.bf16 %v1009, %v1005
    %v1022 = vpack.c.bf16 %v1010, %v1006
    %v1023 = vpack.c.bf16 %v1015, %v1011
    %v1024 = vpack.c.bf16 %v1016, %v1012
    %v1025 = vpack.c.bf16 %v1017, %v1013
    %v1026 = vpack.c.bf16 %v1018, %v1014
    %v1028 = vshrl.u32 %v1019, 16
    %v1030 = vrot.slane %v1028, 7
    %v1031 = vshll.u32 %v1019, 16
    %v1033 = vor.u32 %v1030, %v1031
    %v1035 = vshrl.u32 %v1020, 16
    %v1037 = vrot.slane %v1035, 7
    %v1038 = vshll.u32 %v1020, 16
    %v1040 = vor.u32 %v1037, %v1038
    %v1042 = vshrl.u32 %v1021, 16
    %v1044 = vrot.slane %v1042, 7
    %v1045 = vshll.u32 %v1021, 16
    %v1047 = vor.u32 %v1044, %v1045
    %v1049 = vshrl.u32 %v1022, 16
    %v1051 = vrot.slane %v1049, 7
    %v1052 = vshll.u32 %v1022, 16
    %v1054 = vor.u32 %v1051, %v1052
    %v1056 = vshrl.u32 %v1023, 16
    %v1058 = vrot.slane %v1056, 7
    %v1059 = vshll.u32 %v1023, 16
    %v1061 = vor.u32 %v1058, %v1059
    %v1063 = vshrl.u32 %v1024, 16
    %v1065 = vrot.slane %v1063, 7
    %v1066 = vshll.u32 %v1024, 16
    %v1068 = vor.u32 %v1065, %v1066
    %v1070 = vshrl.u32 %v1025, 16
    %v1072 = vrot.slane %v1070, 7
    %v1073 = vshll.u32 %v1025, 16
    %v1075 = vor.u32 %v1072, %v1073
    %v1077 = vshrl.u32 %v1026, 16
    %v1079 = vrot.slane %v1077, 7
    %v1080 = vshll.u32 %v1026, 16
    %v1082 = vor.u32 %v1079, %v1080
    %vm1099 = vcmask 1040384
    %vm1100 = vsmask.f32 256
    %vm1101 = vmand %vm1099, %vm1100
    %v1102 = vsel %vm1101, 0, %v1033
    %v1103 = vsel %vm1101, 0, %v1040
    %v1104 = vsel %vm1101, 0, %v1047
    %v1105 = vsel %vm1101, 0, %v1054
    %v1106 = vsel %vm1101, 0, %v1061
    %v1107 = vsel %vm1101, 0, %v1068
    %v1108 = vsel %vm1101, 0, %v1075
    %v1109 = vsel %vm1101, 0, %v1082
    %v1110 = vsel %vm1101, %v1030, 0
    %v1111 = vsel %vm1101, %v1037, 0
    %v1112 = vsel %vm1101, %v1044, 0
    %v1113 = vsel %vm1101, %v1051, 0
    %v1114 = vsel %vm1101, %v1058, 0
    %v1115 = vsel %vm1101, %v1065, 0
    %v1116 = vsel %vm1101, %v1072, 0
    %v1117 = vsel %vm1101, %v1079, 0
    %v1118 = vld [vmem:[#allocation13] sm:$0xff]
    %v1119 = vld [vmem:[#allocation13 + $0x8] sm:$0xff]
    %v1120 = vld [vmem:[#allocation13 + $0x10] sm:$0xff]
    %v1121 = vld [vmem:[#allocation13 + $0x18] sm:$0xff]
    %v1122 = vld [vmem:[#allocation13 + $0x20] sm:$0xff]
    %v1123 = vld [vmem:[#allocation13 + $0x28] sm:$0xff]
    %v1124 = vld [vmem:[#allocation13 + $0x30] sm:$0xff]
    %v1125 = vld [vmem:[#allocation13 + $0x38] sm:$0xff]
    %v1126 = vld [vmem:[#allocation13 + $0x40] sm:$0xff]
    %v1127 = vld [vmem:[#allocation13 + $0x48] sm:$0xff]
    %v1128 = vld [vmem:[#allocation13 + $0x50] sm:$0xff]
    %v1129 = vld [vmem:[#allocation13 + $0x58] sm:$0xff]
    %v1130 = vld [vmem:[#allocation13 + $0x60] sm:$0xff]
    %v1131 = vld [vmem:[#allocation13 + $0x68] sm:$0xff]
    %v1132 = vld [vmem:[#allocation13 + $0x70] sm:$0xff]
    %v1133 = vld [vmem:[#allocation13 + $0x78] sm:$0xff]
    %v1134 = vld [vmem:[#allocation13 + $0x80] sm:$0xff]
    %v1135 = vld [vmem:[#allocation13 + $0x88] sm:$0xff]
    %v1136 = vld [vmem:[#allocation13 + $0x90] sm:$0xff]
    %v1137 = vld [vmem:[#allocation13 + $0x98] sm:$0xff]
    %v1138 = vld [vmem:[#allocation13 + $0xa0] sm:$0xff]
    %v1139 = vld [vmem:[#allocation13 + $0xa8] sm:$0xff]
    %v1140 = vld [vmem:[#allocation13 + $0xb0] sm:$0xff]
    %v1141 = vld [vmem:[#allocation13 + $0xb8] sm:$0xff]
    %v1142 = vld [vmem:[#allocation13 + $0xc0] sm:$0xff]
    %v1143 = vld [vmem:[#allocation13 + $0xc8] sm:$0xff]
    %v1144 = vld [vmem:[#allocation13 + $0xd0] sm:$0xff]
    %v1145 = vld [vmem:[#allocation13 + $0xd8] sm:$0xff]
    %v1146 = vld [vmem:[#allocation13 + $0xe0] sm:$0xff]
    %v1147 = vld [vmem:[#allocation13 + $0xe8] sm:$0xff]
    %v1148 = vld [vmem:[#allocation13 + $0xf0] sm:$0xff]
    %v1149 = vld [vmem:[#allocation13 + $0xf8] sm:$0xff]
    %v1150 = vld [vmem:[#allocation13 + $0x100] sm:$0xff]
    %v1151 = vld [vmem:[#allocation13 + $0x108] sm:$0xff]
    %v1152 = vld [vmem:[#allocation13 + $0x110] sm:$0xff]
    %v1153 = vld [vmem:[#allocation13 + $0x118] sm:$0xff]
    %v1154 = vld [vmem:[#allocation13 + $0x120] sm:$0xff]
    %v1155 = vld [vmem:[#allocation13 + $0x128] sm:$0xff]
    %v1156 = vld [vmem:[#allocation13 + $0x130] sm:$0xff]
    %v1157 = vld [vmem:[#allocation13 + $0x138] sm:$0xff]
    %v1158 = vld [vmem:[#allocation13 + $0x140] sm:$0xff]
    %v1159 = vld [vmem:[#allocation13 + $0x148] sm:$0xff]
    %v1160 = vld [vmem:[#allocation13 + $0x150] sm:$0xff]
    %v1161 = vld [vmem:[#allocation13 + $0x158] sm:$0xff]
    %v1162 = vld [vmem:[#allocation13 + $0x160] sm:$0xff]
    %v1163 = vld [vmem:[#allocation13 + $0x168] sm:$0xff]
    %v1164 = vld [vmem:[#allocation13 + $0x170] sm:$0xff]
    %v1165 = vld [vmem:[#allocation13 + $0x178] sm:$0xff]
    %v1166 = vld [vmem:[#allocation13 + $0x180] sm:$0xff]
    %v1167 = vld [vmem:[#allocation13 + $0x188] sm:$0xff]
    %v1168 = vld [vmem:[#allocation13 + $0x190] sm:$0xff]
    %v1169 = vld [vmem:[#allocation13 + $0x198] sm:$0xff]
    %v1170 = vld [vmem:[#allocation13 + $0x1a0] sm:$0xff]
    %v1171 = vld [vmem:[#allocation13 + $0x1a8] sm:$0xff]
    %v1172 = vld [vmem:[#allocation13 + $0x1b0] sm:$0xff]
    %v1173 = vld [vmem:[#allocation13 + $0x1b8] sm:$0xff]
    %v1174 = vld [vmem:[#allocation13 + $0x1c0] sm:$0xff]
    %v1175 = vld [vmem:[#allocation13 + $0x1c8] sm:$0xff]
    %v1176 = vld [vmem:[#allocation13 + $0x1d0] sm:$0xff]
    %v1177 = vld [vmem:[#allocation13 + $0x1d8] sm:$0xff]
    %v1178 = vld [vmem:[#allocation13 + $0x1e0] sm:$0xff]
    %v1179 = vld [vmem:[#allocation13 + $0x1e8] sm:$0xff]
    %v1180 = vld [vmem:[#allocation13 + $0x1f0] sm:$0xff]
    %v1181 = vld [vmem:[#allocation13 + $0x1f8] sm:$0xff]
    %v1182 = vld [vmem:[#allocation13 + $0x200] sm:$0xff]
    %v1183 = vld [vmem:[#allocation13 + $0x208] sm:$0xff]
    %v1184 = vld [vmem:[#allocation13 + $0x210] sm:$0xff]
    %v1185 = vld [vmem:[#allocation13 + $0x218] sm:$0xff]
    %v1186 = vld [vmem:[#allocation13 + $0x220] sm:$0xff]
    %v1187 = vld [vmem:[#allocation13 + $0x228] sm:$0xff]
    %v1188 = vld [vmem:[#allocation13 + $0x230] sm:$0xff]
    %v1189 = vld [vmem:[#allocation13 + $0x238] sm:$0xff]
    %v1190 = vld [vmem:[#allocation13 + $0x240] sm:$0xff]
    %v1191 = vld [vmem:[#allocation13 + $0x248] sm:$0xff]
    %v1192 = vld [vmem:[#allocation13 + $0x250] sm:$0xff]
    %v1193 = vld [vmem:[#allocation13 + $0x258] sm:$0xff]
    %v1194 = vld [vmem:[#allocation13 + $0x260] sm:$0xff]
    %v1195 = vld [vmem:[#allocation13 + $0x268] sm:$0xff]
    %v1196 = vld [vmem:[#allocation13 + $0x270] sm:$0xff]
    %v1197 = vld [vmem:[#allocation13 + $0x278] sm:$0xff]
    %v1198 = vld [vmem:[#allocation13 + $0x280] sm:$0xff]
    %v1199 = vld [vmem:[#allocation13 + $0x288] sm:$0xff]
    %v1200 = vld [vmem:[#allocation13 + $0x290] sm:$0xff]
    %v1201 = vld [vmem:[#allocation13 + $0x298] sm:$0xff]
    %v1202 = vld [vmem:[#allocation13 + $0x2a0] sm:$0xff]
    %v1203 = vld [vmem:[#allocation13 + $0x2a8] sm:$0xff]
    %v1204 = vld [vmem:[#allocation13 + $0x2b0] sm:$0xff]
    %v1205 = vld [vmem:[#allocation13 + $0x2b8] sm:$0xff]
    %v1206 = vld [vmem:[#allocation13 + $0x2c0] sm:$0xff]
    %v1207 = vld [vmem:[#allocation13 + $0x2c8] sm:$0xff]
    %v1208 = vld [vmem:[#allocation13 + $0x2d0] sm:$0xff]
    %v1209 = vld [vmem:[#allocation13 + $0x2d8] sm:$0xff]
    %v1210 = vld [vmem:[#allocation13 + $0x2e0] sm:$0xff]
    %v1211 = vld [vmem:[#allocation13 + $0x2e8] sm:$0xff]
    %v1212 = vld [vmem:[#allocation13 + $0x2f0] sm:$0xff]
    %v1213 = vld [vmem:[#allocation13 + $0x2f8] sm:$0xff]
    %v1214 = vld [vmem:[#allocation13 + $0x300] sm:$0xff]
    %v1215 = vld [vmem:[#allocation13 + $0x308] sm:$0xff]
    %v1216 = vld [vmem:[#allocation13 + $0x310] sm:$0xff]
    %v1217 = vld [vmem:[#allocation13 + $0x318] sm:$0xff]
    %v1218 = vld [vmem:[#allocation13 + $0x320] sm:$0xff]
    %v1219 = vld [vmem:[#allocation13 + $0x328] sm:$0xff]
    %v1220 = vld [vmem:[#allocation13 + $0x330] sm:$0xff]
    %v1221 = vld [vmem:[#allocation13 + $0x338] sm:$0xff]
    %v1222 = vld [vmem:[#allocation13 + $0x340] sm:$0xff]
    %v1223 = vld [vmem:[#allocation13 + $0x348] sm:$0xff]
    %v1224 = vld [vmem:[#allocation13 + $0x350] sm:$0xff]
    %v1225 = vld [vmem:[#allocation13 + $0x358] sm:$0xff]
    %v1226 = vld [vmem:[#allocation13 + $0x360] sm:$0xff]
    %v1227 = vld [vmem:[#allocation13 + $0x368] sm:$0xff]
    %v1228 = vld [vmem:[#allocation13 + $0x370] sm:$0xff]
    %v1229 = vld [vmem:[#allocation13 + $0x378] sm:$0xff]
    %v1230 = vld [vmem:[#allocation13 + $0x380] sm:$0xff]
    %v1231 = vld [vmem:[#allocation13 + $0x388] sm:$0xff]
    %v1232 = vld [vmem:[#allocation13 + $0x390] sm:$0xff]
    %v1233 = vld [vmem:[#allocation13 + $0x398] sm:$0xff]
    %v1234 = vld [vmem:[#allocation13 + $0x3a0] sm:$0xff]
    %v1235 = vld [vmem:[#allocation13 + $0x3a8] sm:$0xff]
    %v1236 = vld [vmem:[#allocation13 + $0x3b0] sm:$0xff]
    %v1237 = vld [vmem:[#allocation13 + $0x3b8] sm:$0xff]
    %v1238 = vld [vmem:[#allocation13 + $0x3c0] sm:$0xff]
    %v1239 = vld [vmem:[#allocation13 + $0x3c8] sm:$0xff]
    %v1240 = vld [vmem:[#allocation13 + $0x3d0] sm:$0xff]
    %v1241 = vld [vmem:[#allocation13 + $0x3d8] sm:$0xff]
    %v1242 = vld [vmem:[#allocation13 + $0x3e0] sm:$0xff]
    %v1243 = vld [vmem:[#allocation13 + $0x3e8] sm:$0xff]
    %v1244 = vld [vmem:[#allocation13 + $0x3f0] sm:$0xff]
    %v1245 = vld [vmem:[#allocation13 + $0x3f8] sm:$0xff]
    %vm1246 = vsmask.f32 7424
    %v1248 = vshrl.u32 %v1102, 16
    %v1250 = vshll.u32 %v1102, 16
    %v1252 = vrot.slane %v1250, 1
    %v1253 = vor.u32 %v1248, %v1252
    %v1255 = vshll.u32 %v1110, 16
    %v1257 = vrot.slane %v1255, 1
    %v1258 = vsel %vm1246, %v1253, %v1257
    %v1260 = vshrl.u32 %v1103, 16
    %v1262 = vshll.u32 %v1103, 16
    %v1264 = vrot.slane %v1262, 1
    %v1265 = vor.u32 %v1260, %v1264
    %v1267 = vshll.u32 %v1111, 16
    %v1269 = vrot.slane %v1267, 1
    %v1270 = vsel %vm1246, %v1265, %v1269
    %v1272 = vshrl.u32 %v1104, 16
    %v1274 = vshll.u32 %v1104, 16
    %v1276 = vrot.slane %v1274, 1
    %v1277 = vor.u32 %v1272, %v1276
    %v1279 = vshll.u32 %v1112, 16
    %v1281 = vrot.slane %v1279, 1
    %v1282 = vsel %vm1246, %v1277, %v1281
    %v1284 = vshrl.u32 %v1105, 16
    %v1286 = vshll.u32 %v1105, 16
    %v1288 = vrot.slane %v1286, 1
    %v1289 = vor.u32 %v1284, %v1288
    %v1291 = vshll.u32 %v1113, 16
    %v1293 = vrot.slane %v1291, 1
    %v1294 = vsel %vm1246, %v1289, %v1293
    %v1296 = vshrl.u32 %v1106, 16
    %v1298 = vshll.u32 %v1106, 16
    %v1300 = vrot.slane %v1298, 1
    %v1301 = vor.u32 %v1296, %v1300
    %v1303 = vshll.u32 %v1114, 16
    %v1305 = vrot.slane %v1303, 1
    %v1306 = vsel %vm1246, %v1301, %v1305
    %v1308 = vshrl.u32 %v1107, 16
    %v1310 = vshll.u32 %v1107, 16
    %v1312 = vrot.slane %v1310, 1
    %v1313 = vor.u32 %v1308, %v1312
    %v1315 = vshll.u32 %v1115, 16
    %v1317 = vrot.slane %v1315, 1
    %v1318 = vsel %vm1246, %v1313, %v1317
    %v1320 = vshrl.u32 %v1108, 16
    %v1322 = vshll.u32 %v1108, 16
    %v1324 = vrot.slane %v1322, 1
    %v1325 = vor.u32 %v1320, %v1324
    %v1327 = vshll.u32 %v1116, 16
    %v1329 = vrot.slane %v1327, 1
    %v1330 = vsel %vm1246, %v1325, %v1329
    %v1332 = vshrl.u32 %v1109, 16
    %v1334 = vshll.u32 %v1109, 16
    %v1336 = vrot.slane %v1334, 1
    %v1337 = vor.u32 %v1332, %v1336
    %v1339 = vshll.u32 %v1117, 16
    %v1341 = vrot.slane %v1339, 1
    %v1342 = vsel %vm1246, %v1337, %v1341
    %s1351 = scalar_lea.vmem [#allocation13], 1024
    %v1352 = vld [vmem:[%s1351] sm:$0xff]
    %v1353 = vld [vmem:[%s1351 + $0x8] sm:$0xff]
    %v1354 = vld [vmem:[%s1351 + $0x10] sm:$0xff]
    %v1355 = vld [vmem:[%s1351 + $0x18] sm:$0xff]
    %v1356 = vld [vmem:[%s1351 + $0x20] sm:$0xff]
    %v1357 = vld [vmem:[%s1351 + $0x28] sm:$0xff]
    %v1358 = vld [vmem:[%s1351 + $0x30] sm:$0xff]
    %v1359 = vld [vmem:[%s1351 + $0x38] sm:$0xff]
    %v1360 = vld [vmem:[%s1351 + $0x40] sm:$0xff]
    %v1361 = vld [vmem:[%s1351 + $0x48] sm:$0xff]
    %v1362 = vld [vmem:[%s1351 + $0x50] sm:$0xff]
    %v1363 = vld [vmem:[%s1351 + $0x58] sm:$0xff]
    %v1364 = vld [vmem:[%s1351 + $0x60] sm:$0xff]
    %v1365 = vld [vmem:[%s1351 + $0x68] sm:$0xff]
    %v1366 = vld [vmem:[%s1351 + $0x70] sm:$0xff]
    %v1367 = vld [vmem:[%s1351 + $0x78] sm:$0xff]
    %v1368 = vld [vmem:[%s1351 + $0x80] sm:$0xff]
    %v1369 = vld [vmem:[%s1351 + $0x88] sm:$0xff]
    %v1370 = vld [vmem:[%s1351 + $0x90] sm:$0xff]
    %v1371 = vld [vmem:[%s1351 + $0x98] sm:$0xff]
    %v1372 = vld [vmem:[%s1351 + $0xa0] sm:$0xff]
    %v1373 = vld [vmem:[%s1351 + $0xa8] sm:$0xff]
    %v1374 = vld [vmem:[%s1351 + $0xb0] sm:$0xff]
    %v1375 = vld [vmem:[%s1351 + $0xb8] sm:$0xff]
    %v1376 = vld [vmem:[%s1351 + $0xc0] sm:$0xff]
    %v1377 = vld [vmem:[%s1351 + $0xc8] sm:$0xff]
    %v1378 = vld [vmem:[%s1351 + $0xd0] sm:$0xff]
    %v1379 = vld [vmem:[%s1351 + $0xd8] sm:$0xff]
    %v1380 = vld [vmem:[%s1351 + $0xe0] sm:$0xff]
    %v1381 = vld [vmem:[%s1351 + $0xe8] sm:$0xff]
    %v1382 = vld [vmem:[%s1351 + $0xf0] sm:$0xff]
    %v1383 = vld [vmem:[%s1351 + $0xf8] sm:$0xff]
    %v1384 = vld [vmem:[%s1351 + $0x100] sm:$0xff]
    %v1385 = vld [vmem:[%s1351 + $0x108] sm:$0xff]
    %v1386 = vld [vmem:[%s1351 + $0x110] sm:$0xff]
    %v1387 = vld [vmem:[%s1351 + $0x118] sm:$0xff]
    %v1388 = vld [vmem:[%s1351 + $0x120] sm:$0xff]
    %v1389 = vld [vmem:[%s1351 + $0x128] sm:$0xff]
    %v1390 = vld [vmem:[%s1351 + $0x130] sm:$0xff]
    %v1391 = vld [vmem:[%s1351 + $0x138] sm:$0xff]
    %v1392 = vld [vmem:[%s1351 + $0x140] sm:$0xff]
    %v1393 = vld [vmem:[%s1351 + $0x148] sm:$0xff]
    %v1394 = vld [vmem:[%s1351 + $0x150] sm:$0xff]
    %v1395 = vld [vmem:[%s1351 + $0x158] sm:$0xff]
    %v1396 = vld [vmem:[%s1351 + $0x160] sm:$0xff]
    %v1397 = vld [vmem:[%s1351 + $0x168] sm:$0xff]
    %v1398 = vld [vmem:[%s1351 + $0x170] sm:$0xff]
    %v1399 = vld [vmem:[%s1351 + $0x178] sm:$0xff]
    %v1400 = vld [vmem:[%s1351 + $0x180] sm:$0xff]
    %v1401 = vld [vmem:[%s1351 + $0x188] sm:$0xff]
    %v1402 = vld [vmem:[%s1351 + $0x190] sm:$0xff]
    %v1403 = vld [vmem:[%s1351 + $0x198] sm:$0xff]
    %v1404 = vld [vmem:[%s1351 + $0x1a0] sm:$0xff]
    %v1405 = vld [vmem:[%s1351 + $0x1a8] sm:$0xff]
    %v1406 = vld [vmem:[%s1351 + $0x1b0] sm:$0xff]
    %v1407 = vld [vmem:[%s1351 + $0x1b8] sm:$0xff]
    %v1408 = vld [vmem:[%s1351 + $0x1c0] sm:$0xff]
    %v1409 = vld [vmem:[%s1351 + $0x1c8] sm:$0xff]
    %v1410 = vld [vmem:[%s1351 + $0x1d0] sm:$0xff]
    %v1411 = vld [vmem:[%s1351 + $0x1d8] sm:$0xff]
    %v1412 = vld [vmem:[%s1351 + $0x1e0] sm:$0xff]
    %v1413 = vld [vmem:[%s1351 + $0x1e8] sm:$0xff]
    %v1414 = vld [vmem:[%s1351 + $0x1f0] sm:$0xff]
    %v1415 = vld [vmem:[%s1351 + $0x1f8] sm:$0xff]
    %v1416 = vld [vmem:[%s1351 + $0x200] sm:$0xff]
    %v1417 = vld [vmem:[%s1351 + $0x208] sm:$0xff]
    %v1418 = vld [vmem:[%s1351 + $0x210] sm:$0xff]
    %v1419 = vld [vmem:[%s1351 + $0x218] sm:$0xff]
    %v1420 = vld [vmem:[%s1351 + $0x220] sm:$0xff]
    %v1421 = vld [vmem:[%s1351 + $0x228] sm:$0xff]
    %v1422 = vld [vmem:[%s1351 + $0x230] sm:$0xff]
    %v1423 = vld [vmem:[%s1351 + $0x238] sm:$0xff]
    %v1424 = vld [vmem:[%s1351 + $0x240] sm:$0xff]
    %v1425 = vld [vmem:[%s1351 + $0x248] sm:$0xff]
    %v1426 = vld [vmem:[%s1351 + $0x250] sm:$0xff]
    %v1427 = vld [vmem:[%s1351 + $0x258] sm:$0xff]
    %v1428 = vld [vmem:[%s1351 + $0x260] sm:$0xff]
    %v1429 = vld [vmem:[%s1351 + $0x268] sm:$0xff]
    %v1430 = vld [vmem:[%s1351 + $0x270] sm:$0xff]
    %v1431 = vld [vmem:[%s1351 + $0x278] sm:$0xff]
    %v1432 = vld [vmem:[%s1351 + $0x280] sm:$0xff]
    %v1433 = vld [vmem:[%s1351 + $0x288] sm:$0xff]
    %v1434 = vld [vmem:[%s1351 + $0x290] sm:$0xff]
    %v1435 = vld [vmem:[%s1351 + $0x298] sm:$0xff]
    %v1436 = vld [vmem:[%s1351 + $0x2a0] sm:$0xff]
    %v1437 = vld [vmem:[%s1351 + $0x2a8] sm:$0xff]
    %v1438 = vld [vmem:[%s1351 + $0x2b0] sm:$0xff]
    %v1439 = vld [vmem:[%s1351 + $0x2b8] sm:$0xff]
    %v1440 = vld [vmem:[%s1351 + $0x2c0] sm:$0xff]
    %v1441 = vld [vmem:[%s1351 + $0x2c8] sm:$0xff]
    %v1442 = vld [vmem:[%s1351 + $0x2d0] sm:$0xff]
    %v1443 = vld [vmem:[%s1351 + $0x2d8] sm:$0xff]
    %v1444 = vld [vmem:[%s1351 + $0x2e0] sm:$0xff]
    %v1445 = vld [vmem:[%s1351 + $0x2e8] sm:$0xff]
    %v1446 = vld [vmem:[%s1351 + $0x2f0] sm:$0xff]
    %v1447 = vld [vmem:[%s1351 + $0x2f8] sm:$0xff]
    %v1448 = vld [vmem:[%s1351 + $0x300] sm:$0xff]
    %v1449 = vld [vmem:[%s1351 + $0x308] sm:$0xff]
    %v1450 = vld [vmem:[%s1351 + $0x310] sm:$0xff]
    %v1451 = vld [vmem:[%s1351 + $0x318] sm:$0xff]
    %v1452 = vld [vmem:[%s1351 + $0x320] sm:$0xff]
    %v1453 = vld [vmem:[%s1351 + $0x328] sm:$0xff]
    %v1454 = vld [vmem:[%s1351 + $0x330] sm:$0xff]
    %v1455 = vld [vmem:[%s1351 + $0x338] sm:$0xff]
    %v1456 = vld [vmem:[%s1351 + $0x340] sm:$0xff]
    %v1457 = vld [vmem:[%s1351 + $0x348] sm:$0xff]
    %v1458 = vld [vmem:[%s1351 + $0x350] sm:$0xff]
    %v1459 = vld [vmem:[%s1351 + $0x358] sm:$0xff]
    %v1460 = vld [vmem:[%s1351 + $0x360] sm:$0xff]
    %v1461 = vld [vmem:[%s1351 + $0x368] sm:$0xff]
    %v1462 = vld [vmem:[%s1351 + $0x370] sm:$0xff]
    %v1463 = vld [vmem:[%s1351 + $0x378] sm:$0xff]
    %v1464 = vld [vmem:[%s1351 + $0x380] sm:$0xff]
    %v1465 = vld [vmem:[%s1351 + $0x388] sm:$0xff]
    %v1466 = vld [vmem:[%s1351 + $0x390] sm:$0xff]
    %v1467 = vld [vmem:[%s1351 + $0x398] sm:$0xff]
    %v1468 = vld [vmem:[%s1351 + $0x3a0] sm:$0xff]
    %v1469 = vld [vmem:[%s1351 + $0x3a8] sm:$0xff]
    %v1470 = vld [vmem:[%s1351 + $0x3b0] sm:$0xff]
    %v1471 = vld [vmem:[%s1351 + $0x3b8] sm:$0xff]
    %v1472 = vld [vmem:[%s1351 + $0x3c0] sm:$0xff]
    %v1473 = vld [vmem:[%s1351 + $0x3c8] sm:$0xff]
    %v1474 = vld [vmem:[%s1351 + $0x3d0] sm:$0xff]
    %v1475 = vld [vmem:[%s1351 + $0x3d8] sm:$0xff]
    %v1476 = vld [vmem:[%s1351 + $0x3e0] sm:$0xff]
    %v1477 = vld [vmem:[%s1351 + $0x3e8] sm:$0xff]
    %v1478 = vld [vmem:[%s1351 + $0x3f0] sm:$0xff]
    %v1479 = vld [vmem:[%s1351 + $0x3f8] sm:$0xff]
    %v1608 = vunpack.c.l.b16 %v1352
    %v1609 = vunpack.c.h.b16 %v1352
    %v1610 = vunpack.c.l.b16 %v1353
    %v1611 = vunpack.c.h.b16 %v1353
    %v1612 = vunpack.c.l.b16 %v1354
    %v1613 = vunpack.c.h.b16 %v1354
    %v1614 = vunpack.c.l.b16 %v1355
    %v1615 = vunpack.c.h.b16 %v1355
    %v1616 = vunpack.c.l.b16 %v1356
    %v1617 = vunpack.c.h.b16 %v1356
    %v1618 = vunpack.c.l.b16 %v1357
    %v1619 = vunpack.c.h.b16 %v1357
    %v1620 = vunpack.c.l.b16 %v1358
    %v1621 = vunpack.c.h.b16 %v1358
    %v1622 = vunpack.c.l.b16 %v1359
    %v1623 = vunpack.c.h.b16 %v1359
    %v1624 = vunpack.c.l.b16 %v1360
    %v1625 = vunpack.c.h.b16 %v1360
    %v1626 = vunpack.c.l.b16 %v1361
    %v1627 = vunpack.c.h.b16 %v1361
    %v1628 = vunpack.c.l.b16 %v1362
    %v1629 = vunpack.c.h.b16 %v1362
    %v1630 = vunpack.c.l.b16 %v1363
    %v1631 = vunpack.c.h.b16 %v1363
    %v1632 = vunpack.c.l.b16 %v1364
    %v1633 = vunpack.c.h.b16 %v1364
    %v1634 = vunpack.c.l.b16 %v1365
    %v1635 = vunpack.c.h.b16 %v1365
    %v1636 = vunpack.c.l.b16 %v1366
    %v1637 = vunpack.c.h.b16 %v1366
    %v1638 = vunpack.c.l.b16 %v1367
    %v1639 = vunpack.c.h.b16 %v1367
    %v1640 = vunpack.c.l.b16 %v1368
    %v1641 = vunpack.c.h.b16 %v1368
    %v1642 = vunpack.c.l.b16 %v1369
    %v1643 = vunpack.c.h.b16 %v1369
    %v1644 = vunpack.c.l.b16 %v1370
    %v1645 = vunpack.c.h.b16 %v1370
    %v1646 = vunpack.c.l.b16 %v1371
    %v1647 = vunpack.c.h.b16 %v1371
    %v1648 = vunpack.c.l.b16 %v1372
    %v1649 = vunpack.c.h.b16 %v1372
    %v1650 = vunpack.c.l.b16 %v1373
    %v1651 = vunpack.c.h.b16 %v1373
    %v1652 = vunpack.c.l.b16 %v1374
    %v1653 = vunpack.c.h.b16 %v1374
    %v1654 = vunpack.c.l.b16 %v1375
    %v1655 = vunpack.c.h.b16 %v1375
    %v1656 = vunpack.c.l.b16 %v1376
    %v1657 = vunpack.c.h.b16 %v1376
    %v1658 = vunpack.c.l.b16 %v1377
    %v1659 = vunpack.c.h.b16 %v1377
    %v1660 = vunpack.c.l.b16 %v1378
    %v1661 = vunpack.c.h.b16 %v1378
    %v1662 = vunpack.c.l.b16 %v1379
    %v1663 = vunpack.c.h.b16 %v1379
    %v1664 = vunpack.c.l.b16 %v1380
    %v1665 = vunpack.c.h.b16 %v1380
    %v1666 = vunpack.c.l.b16 %v1381
    %v1667 = vunpack.c.h.b16 %v1381
    %v1668 = vunpack.c.l.b16 %v1382
    %v1669 = vunpack.c.h.b16 %v1382
    %v1670 = vunpack.c.l.b16 %v1383
    %v1671 = vunpack.c.h.b16 %v1383
    %v1672 = vunpack.c.l.b16 %v1384
    %v1673 = vunpack.c.h.b16 %v1384
    %v1674 = vunpack.c.l.b16 %v1385
    %v1675 = vunpack.c.h.b16 %v1385
    %v1676 = vunpack.c.l.b16 %v1386
    %v1677 = vunpack.c.h.b16 %v1386
    %v1678 = vunpack.c.l.b16 %v1387
    %v1679 = vunpack.c.h.b16 %v1387
    %v1680 = vunpack.c.l.b16 %v1388
    %v1681 = vunpack.c.h.b16 %v1388
    %v1682 = vunpack.c.l.b16 %v1389
    %v1683 = vunpack.c.h.b16 %v1389
    %v1684 = vunpack.c.l.b16 %v1390
    %v1685 = vunpack.c.h.b16 %v1390
    %v1686 = vunpack.c.l.b16 %v1391
    %v1687 = vunpack.c.h.b16 %v1391
    %v1688 = vunpack.c.l.b16 %v1392
    %v1689 = vunpack.c.h.b16 %v1392
    %v1690 = vunpack.c.l.b16 %v1393
    %v1691 = vunpack.c.h.b16 %v1393
    %v1692 = vunpack.c.l.b16 %v1394
    %v1693 = vunpack.c.h.b16 %v1394
    %v1694 = vunpack.c.l.b16 %v1395
    %v1695 = vunpack.c.h.b16 %v1395
    %v1696 = vunpack.c.l.b16 %v1396
    %v1697 = vunpack.c.h.b16 %v1396
    %v1698 = vunpack.c.l.b16 %v1397
    %v1699 = vunpack.c.h.b16 %v1397
    %v1700 = vunpack.c.l.b16 %v1398
    %v1701 = vunpack.c.h.b16 %v1398
    %v1702 = vunpack.c.l.b16 %v1399
    %v1703 = vunpack.c.h.b16 %v1399
    %v1704 = vunpack.c.l.b16 %v1400
    %v1705 = vunpack.c.h.b16 %v1400
    %v1706 = vunpack.c.l.b16 %v1401
    %v1707 = vunpack.c.h.b16 %v1401
    %v1708 = vunpack.c.l.b16 %v1402
    %v1709 = vunpack.c.h.b16 %v1402
    %v1710 = vunpack.c.l.b16 %v1403
    %v1711 = vunpack.c.h.b16 %v1403
    %v1712 = vunpack.c.l.b16 %v1404
    %v1713 = vunpack.c.h.b16 %v1404
    %v1714 = vunpack.c.l.b16 %v1405
    %v1715 = vunpack.c.h.b16 %v1405
    %v1716 = vunpack.c.l.b16 %v1406
    %v1717 = vunpack.c.h.b16 %v1406
    %v1718 = vunpack.c.l.b16 %v1407
    %v1719 = vunpack.c.h.b16 %v1407
    %v1720 = vunpack.c.l.b16 %v1408
    %v1721 = vunpack.c.h.b16 %v1408
    %v1722 = vunpack.c.l.b16 %v1409
    %v1723 = vunpack.c.h.b16 %v1409
    %v1724 = vunpack.c.l.b16 %v1410
    %v1725 = vunpack.c.h.b16 %v1410
    %v1726 = vunpack.c.l.b16 %v1411
    %v1727 = vunpack.c.h.b16 %v1411
    %v1728 = vunpack.c.l.b16 %v1412
    %v1729 = vunpack.c.h.b16 %v1412
    %v1730 = vunpack.c.l.b16 %v1413
    %v1731 = vunpack.c.h.b16 %v1413
    %v1732 = vunpack.c.l.b16 %v1414
    %v1733 = vunpack.c.h.b16 %v1414
    %v1734 = vunpack.c.l.b16 %v1415
    %v1735 = vunpack.c.h.b16 %v1415
    %v1736 = vunpack.c.l.b16 %v1416
    %v1737 = vunpack.c.h.b16 %v1416
    %v1738 = vunpack.c.l.b16 %v1417
    %v1739 = vunpack.c.h.b16 %v1417
    %v1740 = vunpack.c.l.b16 %v1418
    %v1741 = vunpack.c.h.b16 %v1418
    %v1742 = vunpack.c.l.b16 %v1419
    %v1743 = vunpack.c.h.b16 %v1419
    %v1744 = vunpack.c.l.b16 %v1420
    %v1745 = vunpack.c.h.b16 %v1420
    %v1746 = vunpack.c.l.b16 %v1421
    %v1747 = vunpack.c.h.b16 %v1421
    %v1748 = vunpack.c.l.b16 %v1422
    %v1749 = vunpack.c.h.b16 %v1422
    %v1750 = vunpack.c.l.b16 %v1423
    %v1751 = vunpack.c.h.b16 %v1423
    %v1752 = vunpack.c.l.b16 %v1424
    %v1753 = vunpack.c.h.b16 %v1424
    %v1754 = vunpack.c.l.b16 %v1425
    %v1755 = vunpack.c.h.b16 %v1425
    %v1756 = vunpack.c.l.b16 %v1426
    %v1757 = vunpack.c.h.b16 %v1426
    %v1758 = vunpack.c.l.b16 %v1427
    %v1759 = vunpack.c.h.b16 %v1427
    %v1760 = vunpack.c.l.b16 %v1428
    %v1761 = vunpack.c.h.b16 %v1428
    %v1762 = vunpack.c.l.b16 %v1429
    %v1763 = vunpack.c.h.b16 %v1429
    %v1764 = vunpack.c.l.b16 %v1430
    %v1765 = vunpack.c.h.b16 %v1430
    %v1766 = vunpack.c.l.b16 %v1431
    %v1767 = vunpack.c.h.b16 %v1431
    %v1768 = vunpack.c.l.b16 %v1432
    %v1769 = vunpack.c.h.b16 %v1432
    %v1770 = vunpack.c.l.b16 %v1433
    %v1771 = vunpack.c.h.b16 %v1433
    %v1772 = vunpack.c.l.b16 %v1434
    %v1773 = vunpack.c.h.b16 %v1434
    %v1774 = vunpack.c.l.b16 %v1435
    %v1775 = vunpack.c.h.b16 %v1435
    %v1776 = vunpack.c.l.b16 %v1436
    %v1777 = vunpack.c.h.b16 %v1436
    %v1778 = vunpack.c.l.b16 %v1437
    %v1779 = vunpack.c.h.b16 %v1437
    %v1780 = vunpack.c.l.b16 %v1438
    %v1781 = vunpack.c.h.b16 %v1438
    %v1782 = vunpack.c.l.b16 %v1439
    %v1783 = vunpack.c.h.b16 %v1439
    %v1784 = vunpack.c.l.b16 %v1440
    %v1785 = vunpack.c.h.b16 %v1440
    %v1786 = vunpack.c.l.b16 %v1441
    %v1787 = vunpack.c.h.b16 %v1441
    %v1788 = vunpack.c.l.b16 %v1442
    %v1789 = vunpack.c.h.b16 %v1442
    %v1790 = vunpack.c.l.b16 %v1443
    %v1791 = vunpack.c.h.b16 %v1443
    %v1792 = vunpack.c.l.b16 %v1444
    %v1793 = vunpack.c.h.b16 %v1444
    %v1794 = vunpack.c.l.b16 %v1445
    %v1795 = vunpack.c.h.b16 %v1445
    %v1796 = vunpack.c.l.b16 %v1446
    %v1797 = vunpack.c.h.b16 %v1446
    %v1798 = vunpack.c.l.b16 %v1447
    %v1799 = vunpack.c.h.b16 %v1447
    %v1800 = vunpack.c.l.b16 %v1448
    %v1801 = vunpack.c.h.b16 %v1448
    %v1802 = vunpack.c.l.b16 %v1449
    %v1803 = vunpack.c.h.b16 %v1449
    %v1804 = vunpack.c.l.b16 %v1450
    %v1805 = vunpack.c.h.b16 %v1450
    %v1806 = vunpack.c.l.b16 %v1451
    %v1807 = vunpack.c.h.b16 %v1451
    %v1808 = vunpack.c.l.b16 %v1452
    %v1809 = vunpack.c.h.b16 %v1452
    %v1810 = vunpack.c.l.b16 %v1453
    %v1811 = vunpack.c.h.b16 %v1453
    %v1812 = vunpack.c.l.b16 %v1454
    %v1813 = vunpack.c.h.b16 %v1454
    %v1814 = vunpack.c.l.b16 %v1455
    %v1815 = vunpack.c.h.b16 %v1455
    %v1816 = vunpack.c.l.b16 %v1456
    %v1817 = vunpack.c.h.b16 %v1456
    %v1818 = vunpack.c.l.b16 %v1457
    %v1819 = vunpack.c.h.b16 %v1457
    %v1820 = vunpack.c.l.b16 %v1458
    %v1821 = vunpack.c.h.b16 %v1458
    %v1822 = vunpack.c.l.b16 %v1459
    %v1823 = vunpack.c.h.b16 %v1459
    %v1824 = vunpack.c.l.b16 %v1460
    %v1825 = vunpack.c.h.b16 %v1460
    %v1826 = vunpack.c.l.b16 %v1461
    %v1827 = vunpack.c.h.b16 %v1461
    %v1828 = vunpack.c.l.b16 %v1462
    %v1829 = vunpack.c.h.b16 %v1462
    %v1830 = vunpack.c.l.b16 %v1463
    %v1831 = vunpack.c.h.b16 %v1463
    %v1832 = vunpack.c.l.b16 %v1464
    %v1833 = vunpack.c.h.b16 %v1464
    %v1834 = vunpack.c.l.b16 %v1465
    %v1835 = vunpack.c.h.b16 %v1465
    %v1836 = vunpack.c.l.b16 %v1466
    %v1837 = vunpack.c.h.b16 %v1466
    %v1838 = vunpack.c.l.b16 %v1467
    %v1839 = vunpack.c.h.b16 %v1467
    %v1840 = vunpack.c.l.b16 %v1468
    %v1841 = vunpack.c.h.b16 %v1468
    %v1842 = vunpack.c.l.b16 %v1469
    %v1843 = vunpack.c.h.b16 %v1469
    %v1844 = vunpack.c.l.b16 %v1470
    %v1845 = vunpack.c.h.b16 %v1470
    %v1846 = vunpack.c.l.b16 %v1471
    %v1847 = vunpack.c.h.b16 %v1471
    %v1848 = vunpack.c.l.b16 %v1472
    %v1849 = vunpack.c.h.b16 %v1472
    %v1850 = vunpack.c.l.b16 %v1473
    %v1851 = vunpack.c.h.b16 %v1473
    %v1852 = vunpack.c.l.b16 %v1474
    %v1853 = vunpack.c.h.b16 %v1474
    %v1854 = vunpack.c.l.b16 %v1475
    %v1855 = vunpack.c.h.b16 %v1475
    %v1856 = vunpack.c.l.b16 %v1476
    %v1857 = vunpack.c.h.b16 %v1476
    %v1858 = vunpack.c.l.b16 %v1477
    %v1859 = vunpack.c.h.b16 %v1477
    %v1860 = vunpack.c.l.b16 %v1478
    %v1861 = vunpack.c.h.b16 %v1478
    %v1862 = vunpack.c.l.b16 %v1479
    %v1863 = vunpack.c.h.b16 %v1479
    %v1864 = vpack.c.b16 %v1612, %v1608
    %v1865 = vpack.c.b16 %v1613, %v1609
    %v1866 = vpack.c.b16 %v1614, %v1610
    %v1867 = vpack.c.b16 %v1615, %v1611
    %v1868 = vpack.c.b16 %v1620, %v1616
    %v1869 = vpack.c.b16 %v1621, %v1617
    %v1870 = vpack.c.b16 %v1622, %v1618
    %v1871 = vpack.c.b16 %v1623, %v1619
    %v1872 = vpack.c.b16 %v1628, %v1624
    %v1873 = vpack.c.b16 %v1629, %v1625
    %v1874 = vpack.c.b16 %v1630, %v1626
    %v1875 = vpack.c.b16 %v1631, %v1627
    %v1876 = vpack.c.b16 %v1636, %v1632
    %v1877 = vpack.c.b16 %v1637, %v1633
    %v1878 = vpack.c.b16 %v1638, %v1634
    %v1879 = vpack.c.b16 %v1639, %v1635
    %v1880 = vpack.c.b16 %v1644, %v1640
    %v1881 = vpack.c.b16 %v1645, %v1641
    %v1882 = vpack.c.b16 %v1646, %v1642
    %v1883 = vpack.c.b16 %v1647, %v1643
    %v1884 = vpack.c.b16 %v1652, %v1648
    %v1885 = vpack.c.b16 %v1653, %v1649
    %v1886 = vpack.c.b16 %v1654, %v1650
    %v1887 = vpack.c.b16 %v1655, %v1651
    %v1888 = vpack.c.b16 %v1660, %v1656
    %v1889 = vpack.c.b16 %v1661, %v1657
    %v1890 = vpack.c.b16 %v1662, %v1658
    %v1891 = vpack.c.b16 %v1663, %v1659
    %v1892 = vpack.c.b16 %v1668, %v1664
    %v1893 = vpack.c.b16 %v1669, %v1665
    %v1894 = vpack.c.b16 %v1670, %v1666
    %v1895 = vpack.c.b16 %v1671, %v1667
    %v1896 = vpack.c.b16 %v1676, %v1672
    %v1897 = vpack.c.b16 %v1677, %v1673
    %v1898 = vpack.c.b16 %v1678, %v1674
    %v1899 = vpack.c.b16 %v1679, %v1675
    %v1900 = vpack.c.b16 %v1684, %v1680
    %v1901 = vpack.c.b16 %v1685, %v1681
    %v1902 = vpack.c.b16 %v1686, %v1682
    %v1903 = vpack.c.b16 %v1687, %v1683
    %v1904 = vpack.c.b16 %v1692, %v1688
    %v1905 = vpack.c.b16 %v1693, %v1689
    %v1906 = vpack.c.b16 %v1694, %v1690
    %v1907 = vpack.c.b16 %v1695, %v1691
    %v1908 = vpack.c.b16 %v1700, %v1696
    %v1909 = vpack.c.b16 %v1701, %v1697
    %v1910 = vpack.c.b16 %v1702, %v1698
    %v1911 = vpack.c.b16 %v1703, %v1699
    %v1912 = vpack.c.b16 %v1708, %v1704
    %v1913 = vpack.c.b16 %v1709, %v1705
    %v1914 = vpack.c.b16 %v1710, %v1706
    %v1915 = vpack.c.b16 %v1711, %v1707
    %v1916 = vpack.c.b16 %v1716, %v1712
    %v1917 = vpack.c.b16 %v1717, %v1713
    %v1918 = vpack.c.b16 %v1718, %v1714
    %v1919 = vpack.c.b16 %v1719, %v1715
    %v1920 = vpack.c.b16 %v1724, %v1720
    %v1921 = vpack.c.b16 %v1725, %v1721
    %v1922 = vpack.c.b16 %v1726, %v1722
    %v1923 = vpack.c.b16 %v1727, %v1723
    %v1924 = vpack.c.b16 %v1732, %v1728
    %v1925 = vpack.c.b16 %v1733, %v1729
    %v1926 = vpack.c.b16 %v1734, %v1730
    %v1927 = vpack.c.b16 %v1735, %v1731
    %v1928 = vpack.c.b16 %v1740, %v1736
    %v1929 = vpack.c.b16 %v1741, %v1737
    %v1930 = vpack.c.b16 %v1742, %v1738
    %v1931 = vpack.c.b16 %v1743, %v1739
    %v1932 = vpack.c.b16 %v1748, %v1744
    %v1933 = vpack.c.b16 %v1749, %v1745
    %v1934 = vpack.c.b16 %v1750, %v1746
    %v1935 = vpack.c.b16 %v1751, %v1747
    %v1936 = vpack.c.b16 %v1756, %v1752
    %v1937 = vpack.c.b16 %v1757, %v1753
    %v1938 = vpack.c.b16 %v1758, %v1754
    %v1939 = vpack.c.b16 %v1759, %v1755
    %v1940 = vpack.c.b16 %v1764, %v1760
    %v1941 = vpack.c.b16 %v1765, %v1761
    %v1942 = vpack.c.b16 %v1766, %v1762
    %v1943 = vpack.c.b16 %v1767, %v1763
    %v1944 = vpack.c.b16 %v1772, %v1768
    %v1945 = vpack.c.b16 %v1773, %v1769
    %v1946 = vpack.c.b16 %v1774, %v1770
    %v1947 = vpack.c.b16 %v1775, %v1771
    %v1948 = vpack.c.b16 %v1780, %v1776
    %v1949 = vpack.c.b16 %v1781, %v1777
    %v1950 = vpack.c.b16 %v1782, %v1778
    %v1951 = vpack.c.b16 %v1783, %v1779
    %v1952 = vpack.c.b16 %v1788, %v1784
    %v1953 = vpack.c.b16 %v1789, %v1785
    %v1954 = vpack.c.b16 %v1790, %v1786
    %v1955 = vpack.c.b16 %v1791, %v1787
    %v1956 = vpack.c.b16 %v1796, %v1792
    %v1957 = vpack.c.b16 %v1797, %v1793
    %v1958 = vpack.c.b16 %v1798, %v1794
    %v1959 = vpack.c.b16 %v1799, %v1795
    %v1960 = vpack.c.b16 %v1804, %v1800
    %v1961 = vpack.c.b16 %v1805, %v1801
    %v1962 = vpack.c.b16 %v1806, %v1802
    %v1963 = vpack.c.b16 %v1807, %v1803
    %v1964 = vpack.c.b16 %v1812, %v1808
    %v1965 = vpack.c.b16 %v1813, %v1809
    %v1966 = vpack.c.b16 %v1814, %v1810
    %v1967 = vpack.c.b16 %v1815, %v1811
    %v1968 = vpack.c.b16 %v1820, %v1816
    %v1969 = vpack.c.b16 %v1821, %v1817
    %v1970 = vpack.c.b16 %v1822, %v1818
    %v1971 = vpack.c.b16 %v1823, %v1819
    %v1972 = vpack.c.b16 %v1828, %v1824
    %v1973 = vpack.c.b16 %v1829, %v1825
    %v1974 = vpack.c.b16 %v1830, %v1826
    %v1975 = vpack.c.b16 %v1831, %v1827
    %v1976 = vpack.c.b16 %v1836, %v1832
    %v1977 = vpack.c.b16 %v1837, %v1833
    %v1978 = vpack.c.b16 %v1838, %v1834
    %v1979 = vpack.c.b16 %v1839, %v1835
    %v1980 = vpack.c.b16 %v1844, %v1840
    %v1981 = vpack.c.b16 %v1845, %v1841
    %v1982 = vpack.c.b16 %v1846, %v1842
    %v1983 = vpack.c.b16 %v1847, %v1843
    %v1984 = vpack.c.b16 %v1852, %v1848
    %v1985 = vpack.c.b16 %v1853, %v1849
    %v1986 = vpack.c.b16 %v1854, %v1850
    %v1987 = vpack.c.b16 %v1855, %v1851
    %v1988 = vpack.c.b16 %v1860, %v1856
    %v1989 = vpack.c.b16 %v1861, %v1857
    %v1990 = vpack.c.b16 %v1862, %v1858
    %v1991 = vpack.c.b16 %v1863, %v1859
    %2120 = vmatprep.subr.bf16.mxu0 %v1865
    %2121 = vmatpush1.bf16.msra.mxu0 %v1864
    %2122 = vmatprep.subr.bf16.mxu0 %v1869
    %2123 = vmatpush1.bf16.msra.mxu0 %v1868
    %2124 = vmatprep.subr.bf16.mxu0 %v1873
    %2125 = vmatpush1.bf16.msra.mxu0 %v1872
    %2126 = vmatprep.subr.bf16.mxu0 %v1877
    %2127 = vmatpush1.bf16.msra.mxu0 %v1876
    %2128 = vmatprep.subr.bf16.mxu0 %v1881
    %2129 = vmatpush1.bf16.msra.mxu0 %v1880
    %2130 = vmatprep.subr.bf16.mxu0 %v1885
    %2131 = vmatpush1.bf16.msra.mxu0 %v1884
    %2132 = vmatprep.subr.bf16.mxu0 %v1889
    %2133 = vmatpush1.bf16.msra.mxu0 %v1888
    %2134 = vmatprep.subr.bf16.mxu0 %v1893
    %2135 = vmatpush1.bf16.msra.mxu0 %v1892
    %2136 = vmatprep.subr.bf16.mxu0 %v1897
    %2137 = vmatpush1.bf16.msra.mxu0 %v1896
    %2138 = vmatprep.subr.bf16.mxu0 %v1901
    %2139 = vmatpush1.bf16.msra.mxu0 %v1900
    %2140 = vmatprep.subr.bf16.mxu0 %v1905
    %2141 = vmatpush1.bf16.msra.mxu0 %v1904
    %2142 = vmatprep.subr.bf16.mxu0 %v1909
    %2143 = vmatpush1.bf16.msra.mxu0 %v1908
    %2144 = vmatprep.subr.bf16.mxu0 %v1913
    %2145 = vmatpush1.bf16.msra.mxu0 %v1912
    %2146 = vmatprep.subr.bf16.mxu0 %v1917
    %2147 = vmatpush1.bf16.msra.mxu0 %v1916
    %2148 = vmatprep.subr.bf16.mxu0 %v1921
    %2149 = vmatpush1.bf16.msra.mxu0 %v1920
    %2150 = vmatprep.subr.bf16.mxu0 %v1925
    %2151 = vmatpush1.bf16.msra.mxu0 %v1924
    %2152 = vmatprep.mubr.bf16.mxu0 %v1270
    %2153 = vmatmul.mubr.bf16.gmra.mrb[0].mxu0 %v1258
    %v2154 = vpop.f32.mrb[0].mxu0
    %v2155 = vadd.f32 0.0, %v2154
    %v2156 = vpop.f32.mrb[0].mxu0
    %v2157 = vadd.f32 0.0, %v2156
    %v2158 = vpop.f32.mrb[0].mxu0
    %v2159 = vadd.f32 0.0, %v2158
    %v2160 = vpop.f32.mrb[0].mxu0
    %v2161 = vadd.f32 0.0, %v2160
    %2162 = vmatprep.mubr.bf16.mxu0 %v1318
    %2163 = vmatmul.mubr.bf16.gmra.mrb[0].mxu0 %v1306
    %v2164 = vpop.f32.mrb[0].mxu0
    %v2165 = vadd.f32 0.0, %v2164
    %v2166 = vpop.f32.mrb[0].mxu0
    %v2167 = vadd.f32 0.0, %v2166
    %v2168 = vpop.f32.mrb[0].mxu0
    %v2169 = vadd.f32 0.0, %v2168
    %v2170 = vpop.f32.mrb[0].mxu0
    %v2171 = vadd.f32 0.0, %v2170
    %2172 = vdwg.mxu0
    %2173 = vmatprep.subr.bf16.mxu0 %v1929
    %2174 = vmatpush1.bf16.msra.mxu0 %v1928
    %2175 = vmatprep.subr.bf16.mxu0 %v1933
    %2176 = vmatpush1.bf16.msra.mxu0 %v1932
    %2177 = vmatprep.subr.bf16.mxu0 %v1937
    %2178 = vmatpush1.bf16.msra.mxu0 %v1936
    %2179 = vmatprep.subr.bf16.mxu0 %v1941
    %2180 = vmatpush1.bf16.msra.mxu0 %v1940
    %2181 = vmatprep.subr.bf16.mxu0 %v1945
    %2182 = vmatpush1.bf16.msra.mxu0 %v1944
    %2183 = vmatprep.subr.bf16.mxu0 %v1949
    %2184 = vmatpush1.bf16.msra.mxu0 %v1948
    %2185 = vmatprep.subr.bf16.mxu0 %v1953
    %2186 = vmatpush1.bf16.msra.mxu0 %v1952
    %2187 = vmatprep.subr.bf16.mxu0 %v1957
    %2188 = vmatpush1.bf16.msra.mxu0 %v1956
    %2189 = vmatprep.subr.bf16.mxu0 %v1961
    %2190 = vmatpush1.bf16.msra.mxu0 %v1960
    %2191 = vmatprep.subr.bf16.mxu0 %v1965
    %2192 = vmatpush1.bf16.msra.mxu0 %v1964
    %2193 = vmatprep.subr.bf16.mxu0 %v1969
    %2194 = vmatpush1.bf16.msra.mxu0 %v1968
    %2195 = vmatprep.subr.bf16.mxu0 %v1973
    %2196 = vmatpush1.bf16.msra.mxu0 %v1972
    %2197 = vmatprep.subr.bf16.mxu0 %v1977
    %2198 = vmatpush1.bf16.msra.mxu0 %v1976
    %2199 = vmatprep.subr.bf16.mxu0 %v1981
    %2200 = vmatpush1.bf16.msra.mxu0 %v1980
    %2201 = vmatprep.subr.bf16.mxu0 %v1985
    %2202 = vmatpush1.bf16.msra.mxu0 %v1984
    %2203 = vmatprep.subr.bf16.mxu0 %v1989
    %2204 = vmatpush1.bf16.msra.mxu0 %v1988
    %2205 = vmatprep.mubr.bf16.mxu0 %v1294
    %2206 = vmatmul.mubr.bf16.gmra.mrb[0].mxu0 %v1282
    %v2207 = vpop.f32.mrb[0].mxu0
    %v2208 = vadd.f32 %v2155, %v2207
    %v2209 = vpop.f32.mrb[0].mxu0
    %v2210 = vadd.f32 %v2157, %v2209
    %v2211 = vpop.f32.mrb[0].mxu0
    %v2212 = vadd.f32 %v2159, %v2211
    %v2213 = vpop.f32.mrb[0].mxu0
    %v2214 = vadd.f32 %v2161, %v2213
    %2215 = vmatprep.mubr.bf16.mxu0 %v1342
    %2216 = vmatmul.mubr.bf16.gmra.mrb[0].mxu0 %v1330
    %v2217 = vpop.f32.mrb[0].mxu0
    %v2218 = vadd.f32 %v2165, %v2217
    %v2219 = vpop.f32.mrb[0].mxu0
    %v2220 = vadd.f32 %v2167, %v2219
    %v2221 = vpop.f32.mrb[0].mxu0
    %v2222 = vadd.f32 %v2169, %v2221
    %v2223 = vpop.f32.mrb[0].mxu0
    %v2224 = vadd.f32 %v2171, %v2223
    %2225 = vdwg.mxu0
    %2226 = vmatprep.subr.bf16.mxu0 %v1867
    %2227 = vmatpush1.bf16.msra.mxu0 %v1866
    %2228 = vmatprep.subr.bf16.mxu0 %v1871
    %2229 = vmatpush1.bf16.msra.mxu0 %v1870
    %2230 = vmatprep.subr.bf16.mxu0 %v1875
    %2231 = vmatpush1.bf16.msra.mxu0 %v1874
    %2232 = vmatprep.subr.bf16.mxu0 %v1879
    %2233 = vmatpush1.bf16.msra.mxu0 %v1878
    %2234 = vmatprep.subr.bf16.mxu0 %v1883
    %2235 = vmatpush1.bf16.msra.mxu0 %v1882
    %2236 = vmatprep.subr.bf16.mxu0 %v1887
    %2237 = vmatpush1.bf16.msra.mxu0 %v1886
    %2238 = vmatprep.subr.bf16.mxu0 %v1891
    %2239 = vmatpush1.bf16.msra.mxu0 %v1890
    %2240 = vmatprep.subr.bf16.mxu0 %v1895
    %2241 = vmatpush1.bf16.msra.mxu0 %v1894
    %2242 = vmatprep.subr.bf16.mxu0 %v1899
    %2243 = vmatpush1.bf16.msra.mxu0 %v1898
    %2244 = vmatprep.subr.bf16.mxu0 %v1903
    %2245 = vmatpush1.bf16.msra.mxu0 %v1902
    %2246 = vmatprep.subr.bf16.mxu0 %v1907
    %2247 = vmatpush1.bf16.msra.mxu0 %v1906
    %2248 = vmatprep.subr.bf16.mxu0 %v1911
    %2249 = vmatpush1.bf16.msra.mxu0 %v1910
    %2250 = vmatprep.subr.bf16.mxu0 %v1915
    %2251 = vmatpush1.bf16.msra.mxu0 %v1914
    %2252 = vmatprep.subr.bf16.mxu0 %v1919
    %2253 = vmatpush1.bf16.msra.mxu0 %v1918
    %2254 = vmatprep.subr.bf16.mxu0 %v1923
    %2255 = vmatpush1.bf16.msra.mxu0 %v1922
    %2256 = vmatprep.subr.bf16.mxu0 %v1927
    %2257 = vmatpush1.bf16.msra.mxu0 %v1926
    %2258 = vmatprep.mubr.bf16.mxu0 %v1270
    %2259 = vmatmul.mubr.bf16.gmra.mrb[0].mxu0 %v1258
    %v2260 = vpop.f32.mrb[0].mxu0
    %v2261 = vadd.f32 0.0, %v2260
    %v2262 = vpop.f32.mrb[0].mxu0
    %v2263 = vadd.f32 0.0, %v2262
    %v2264 = vpop.f32.mrb[0].mxu0
    %v2265 = vadd.f32 0.0, %v2264
    %v2266 = vpop.f32.mrb[0].mxu0
    %v2267 = vadd.f32 0.0, %v2266
    %2268 = vmatprep.mubr.bf16.mxu0 %v1318
    %2269 = vmatmul.mubr.bf16.gmra.mrb[0].mxu0 %v1306
    %v2270 = vpop.f32.mrb[0].mxu0
    %v2271 = vadd.f32 0.0, %v2270
    %v2272 = vpop.f32.mrb[0].mxu0
    %v2273 = vadd.f32 0.0, %v2272
    %v2274 = vpop.f32.mrb[0].mxu0
    %v2275 = vadd.f32 0.0, %v2274
    %v2276 = vpop.f32.mrb[0].mxu0
    %v2277 = vadd.f32 0.0, %v2276
    %2278 = vdwg.mxu0
    %2279 = vmatprep.subr.bf16.mxu0 %v1931
    %2280 = vmatpush1.bf16.msra.mxu0 %v1930
    %2281 = vmatprep.subr.bf16.mxu0 %v1935
    %2282 = vmatpush1.bf16.msra.mxu0 %v1934
    %2283 = vmatprep.subr.bf16.mxu0 %v1939
    %2284 = vmatpush1.bf16.msra.mxu0 %v1938
    %2285 = vmatprep.subr.bf16.mxu0 %v1943
    %2286 = vmatpush1.bf16.msra.mxu0 %v1942
    %2287 = vmatprep.subr.bf16.mxu0 %v1947
    %2288 = vmatpush1.bf16.msra.mxu0 %v1946
    %2289 = vmatprep.subr.bf16.mxu0 %v1951
    %2290 = vmatpush1.bf16.msra.mxu0 %v1950
    %2291 = vmatprep.subr.bf16.mxu0 %v1955
    %2292 = vmatpush1.bf16.msra.mxu0 %v1954
    %2293 = vmatprep.subr.bf16.mxu0 %v1959
    %2294 = vmatpush1.bf16.msra.mxu0 %v1958
    %2295 = vmatprep.subr.bf16.mxu0 %v1963
    %2296 = vmatpush1.bf16.msra.mxu0 %v1962
    %2297 = vmatprep.subr.bf16.mxu0 %v1967
    %2298 = vmatpush1.bf16.msra.mxu0 %v1966
    %2299 = vmatprep.subr.bf16.mxu0 %v1971
    %2300 = vmatpush1.bf16.msra.mxu0 %v1970
    %2301 = vmatprep.subr.bf16.mxu0 %v1975
    %2302 = vmatpush1.bf16.msra.mxu0 %v1974
    %2303 = vmatprep.subr.bf16.mxu0 %v1979
    %2304 = vmatpush1.bf16.msra.mxu0 %v1978
    %2305 = vmatprep.subr.bf16.mxu0 %v1983
    %2306 = vmatpush1.bf16.msra.mxu0 %v1982
    %2307 = vmatprep.subr.bf16.mxu0 %v1987
    %2308 = vmatpush1.bf16.msra.mxu0 %v1986
    %2309 = vmatprep.subr.bf16.mxu0 %v1991
    %2310 = vmatpush1.bf16.msra.mxu0 %v1990
    %2311 = vmatprep.mubr.bf16.mxu0 %v1294
    %2312 = vmatmul.mubr.bf16.gmra.mrb[0].mxu0 %v1282
    %v2313 = vpop.f32.mrb[0].mxu0
    %v2314 = vadd.f32 %v2261, %v2313
    %v2315 = vpop.f32.mrb[0].mxu0
    %v2316 = vadd.f32 %v2263, %v2315
    %v2317 = vpop.f32.mrb[0].mxu0
    %v2318 = vadd.f32 %v2265, %v2317
    %v2319 = vpop.f32.mrb[0].mxu0
    %v2320 = vadd.f32 %v2267, %v2319
    %2321 = vmatprep.mubr.bf16.mxu0 %v1342
    %2322 = vmatmul.mubr.bf16.gmra.mrb[0].mxu0 %v1330
    %v2323 = vpop.f32.mrb[0].mxu0
    %v2324 = vadd.f32 %v2271, %v2323
    %v2325 = vpop.f32.mrb[0].mxu0
    %v2326 = vadd.f32 %v2273, %v2325
    %v2327 = vpop.f32.mrb[0].mxu0
    %v2328 = vadd.f32 %v2275, %v2327
    %v2329 = vpop.f32.mrb[0].mxu0
    %v2330 = vadd.f32 %v2277, %v2329
    %2331 = vdwg.mxu0
    %v2460 = vunpack.c.l.b16 %v1118
    %v2461 = vunpack.c.h.b16 %v1118
    %v2462 = vunpack.c.l.b16 %v1119
    %v2463 = vunpack.c.h.b16 %v1119
    %v2464 = vunpack.c.l.b16 %v1120
    %v2465 = vunpack.c.h.b16 %v1120
    %v2466 = vunpack.c.l.b16 %v1121
    %v2467 = vunpack.c.h.b16 %v1121
    %v2468 = vunpack.c.l.b16 %v1122
    %v2469 = vunpack.c.h.b16 %v1122
    %v2470 = vunpack.c.l.b16 %v1123
    %v2471 = vunpack.c.h.b16 %v1123
    %v2472 = vunpack.c.l.b16 %v1124
    %v2473 = vunpack.c.h.b16 %v1124
    %v2474 = vunpack.c.l.b16 %v1125
    %v2475 = vunpack.c.h.b16 %v1125
    %v2476 = vunpack.c.l.b16 %v1126
    %v2477 = vunpack.c.h.b16 %v1126
    %v2478 = vunpack.c.l.b16 %v1127
    %v2479 = vunpack.c.h.b16 %v1127
    %v2480 = vunpack.c.l.b16 %v1128
    %v2481 = vunpack.c.h.b16 %v1128
    %v2482 = vunpack.c.l.b16 %v1129
    %v2483 = vunpack.c.h.b16 %v1129
    %v2484 = vunpack.c.l.b16 %v1130
    %v2485 = vunpack.c.h.b16 %v1130
    %v2486 = vunpack.c.l.b16 %v1131
    %v2487 = vunpack.c.h.b16 %v1131
    %v2488 = vunpack.c.l.b16 %v1132
    %v2489 = vunpack.c.h.b16 %v1132
    %v2490 = vunpack.c.l.b16 %v1133
    %v2491 = vunpack.c.h.b16 %v1133
    %v2492 = vunpack.c.l.b16 %v1134
    %v2493 = vunpack.c.h.b16 %v1134
    %v2494 = vunpack.c.l.b16 %v1135
    %v2495 = vunpack.c.h.b16 %v1135
    %v2496 = vunpack.c.l.b16 %v1136
    %v2497 = vunpack.c.h.b16 %v1136
    %v2498 = vunpack.c.l.b16 %v1137
    %v2499 = vunpack.c.h.b16 %v1137
    %v2500 = vunpack.c.l.b16 %v1138
    %v2501 = vunpack.c.h.b16 %v1138
    %v2502 = vunpack.c.l.b16 %v1139
    %v2503 = vunpack.c.h.b16 %v1139
    %v2504 = vunpack.c.l.b16 %v1140
    %v2505 = vunpack.c.h.b16 %v1140
    %v2506 = vunpack.c.l.b16 %v1141
    %v2507 = vunpack.c.h.b16 %v1141
    %v2508 = vunpack.c.l.b16 %v1142
    %v2509 = vunpack.c.h.b16 %v1142
    %v2510 = vunpack.c.l.b16 %v1143
    %v2511 = vunpack.c.h.b16 %v1143
    %v2512 = vunpack.c.l.b16 %v1144
    %v2513 = vunpack.c.h.b16 %v1144
    %v2514 = vunpack.c.l.b16 %v1145
    %v2515 = vunpack.c.h.b16 %v1145
    %v2516 = vunpack.c.l.b16 %v1146
    %v2517 = vunpack.c.h.b16 %v1146
    %v2518 = vunpack.c.l.b16 %v1147
    %v2519 = vunpack.c.h.b16 %v1147
    %v2520 = vunpack.c.l.b16 %v1148
    %v2521 = vunpack.c.h.b16 %v1148
    %v2522 = vunpack.c.l.b16 %v1149
    %v2523 = vunpack.c.h.b16 %v1149
    %v2524 = vunpack.c.l.b16 %v1150
    %v2525 = vunpack.c.h.b16 %v1150
    %v2526 = vunpack.c.l.b16 %v1151
    %v2527 = vunpack.c.h.b16 %v1151
    %v2528 = vunpack.c.l.b16 %v1152
    %v2529 = vunpack.c.h.b16 %v1152
    %v2530 = vunpack.c.l.b16 %v1153
    %v2531 = vunpack.c.h.b16 %v1153
    %v2532 = vunpack.c.l.b16 %v1154
    %v2533 = vunpack.c.h.b16 %v1154
    %v2534 = vunpack.c.l.b16 %v1155
    %v2535 = vunpack.c.h.b16 %v1155
    %v2536 = vunpack.c.l.b16 %v1156
    %v2537 = vunpack.c.h.b16 %v1156
    %v2538 = vunpack.c.l.b16 %v1157
    %v2539 = vunpack.c.h.b16 %v1157
    %v2540 = vunpack.c.l.b16 %v1158
    %v2541 = vunpack.c.h.b16 %v1158
    %v2542 = vunpack.c.l.b16 %v1159
    %v2543 = vunpack.c.h.b16 %v1159
    %v2544 = vunpack.c.l.b16 %v1160
    %v2545 = vunpack.c.h.b16 %v1160
    %v2546 = vunpack.c.l.b16 %v1161
    %v2547 = vunpack.c.h.b16 %v1161
    %v2548 = vunpack.c.l.b16 %v1162
    %v2549 = vunpack.c.h.b16 %v1162
    %v2550 = vunpack.c.l.b16 %v1163
    %v2551 = vunpack.c.h.b16 %v1163
    %v2552 = vunpack.c.l.b16 %v1164
    %v2553 = vunpack.c.h.b16 %v1164
    %v2554 = vunpack.c.l.b16 %v1165
    %v2555 = vunpack.c.h.b16 %v1165
    %v2556 = vunpack.c.l.b16 %v1166
    %v2557 = vunpack.c.h.b16 %v1166
    %v2558 = vunpack.c.l.b16 %v1167
    %v2559 = vunpack.c.h.b16 %v1167
    %v2560 = vunpack.c.l.b16 %v1168
    %v2561 = vunpack.c.h.b16 %v1168
    %v2562 = vunpack.c.l.b16 %v1169
    %v2563 = vunpack.c.h.b16 %v1169
    %v2564 = vunpack.c.l.b16 %v1170
    %v2565 = vunpack.c.h.b16 %v1170
    %v2566 = vunpack.c.l.b16 %v1171
    %v2567 = vunpack.c.h.b16 %v1171
    %v2568 = vunpack.c.l.b16 %v1172
    %v2569 = vunpack.c.h.b16 %v1172
    %v2570 = vunpack.c.l.b16 %v1173
    %v2571 = vunpack.c.h.b16 %v1173
    %v2572 = vunpack.c.l.b16 %v1174
    %v2573 = vunpack.c.h.b16 %v1174
    %v2574 = vunpack.c.l.b16 %v1175
    %v2575 = vunpack.c.h.b16 %v1175
    %v2576 = vunpack.c.l.b16 %v1176
    %v2577 = vunpack.c.h.b16 %v1176
    %v2578 = vunpack.c.l.b16 %v1177
    %v2579 = vunpack.c.h.b16 %v1177
    %v2580 = vunpack.c.l.b16 %v1178
    %v2581 = vunpack.c.h.b16 %v1178
    %v2582 = vunpack.c.l.b16 %v1179
    %v2583 = vunpack.c.h.b16 %v1179
    %v2584 = vunpack.c.l.b16 %v1180
    %v2585 = vunpack.c.h.b16 %v1180
    %v2586 = vunpack.c.l.b16 %v1181
    %v2587 = vunpack.c.h.b16 %v1181
    %v2588 = vunpack.c.l.b16 %v1182
    %v2589 = vunpack.c.h.b16 %v1182
    %v2590 = vunpack.c.l.b16 %v1183
    %v2591 = vunpack.c.h.b16 %v1183
    %v2592 = vunpack.c.l.b16 %v1184
    %v2593 = vunpack.c.h.b16 %v1184
    %v2594 = vunpack.c.l.b16 %v1185
    %v2595 = vunpack.c.h.b16 %v1185
    %v2596 = vunpack.c.l.b16 %v1186
    %v2597 = vunpack.c.h.b16 %v1186
    %v2598 = vunpack.c.l.b16 %v1187
    %v2599 = vunpack.c.h.b16 %v1187
    %v2600 = vunpack.c.l.b16 %v1188
    %v2601 = vunpack.c.h.b16 %v1188
    %v2602 = vunpack.c.l.b16 %v1189
    %v2603 = vunpack.c.h.b16 %v1189
    %v2604 = vunpack.c.l.b16 %v1190
    %v2605 = vunpack.c.h.b16 %v1190
    %v2606 = vunpack.c.l.b16 %v1191
    %v2607 = vunpack.c.h.b16 %v1191
    %v2608 = vunpack.c.l.b16 %v1192
    %v2609 = vunpack.c.h.b16 %v1192
    %v2610 = vunpack.c.l.b16 %v1193
    %v2611 = vunpack.c.h.b16 %v1193
    %v2612 = vunpack.c.l.b16 %v1194
    %v2613 = vunpack.c.h.b16 %v1194
    %v2614 = vunpack.c.l.b16 %v1195
    %v2615 = vunpack.c.h.b16 %v1195
    %v2616 = vunpack.c.l.b16 %v1196
    %v2617 = vunpack.c.h.b16 %v1196
    %v2618 = vunpack.c.l.b16 %v1197
    %v2619 = vunpack.c.h.b16 %v1197
    %v2620 = vunpack.c.l.b16 %v1198
    %v2621 = vunpack.c.h.b16 %v1198
    %v2622 = vunpack.c.l.b16 %v1199
    %v2623 = vunpack.c.h.b16 %v1199
    %v2624 = vunpack.c.l.b16 %v1200
    %v2625 = vunpack.c.h.b16 %v1200
    %v2626 = vunpack.c.l.b16 %v1201
    %v2627 = vunpack.c.h.b16 %v1201
    %v2628 = vunpack.c.l.b16 %v1202
    %v2629 = vunpack.c.h.b16 %v1202
    %v2630 = vunpack.c.l.b16 %v1203
    %v2631 = vunpack.c.h.b16 %v1203
    %v2632 = vunpack.c.l.b16 %v1204
    %v2633 = vunpack.c.h.b16 %v1204
    %v2634 = vunpack.c.l.b16 %v1205
    %v2635 = vunpack.c.h.b16 %v1205
    %v2636 = vunpack.c.l.b16 %v1206
    %v2637 = vunpack.c.h.b16 %v1206
    %v2638 = vunpack.c.l.b16 %v1207
    %v2639 = vunpack.c.h.b16 %v1207
    %v2640 = vunpack.c.l.b16 %v1208
    %v2641 = vunpack.c.h.b16 %v1208
    %v2642 = vunpack.c.l.b16 %v1209
    %v2643 = vunpack.c.h.b16 %v1209
    %v2644 = vunpack.c.l.b16 %v1210
    %v2645 = vunpack.c.h.b16 %v1210
    %v2646 = vunpack.c.l.b16 %v1211
    %v2647 = vunpack.c.h.b16 %v1211
    %v2648 = vunpack.c.l.b16 %v1212
    %v2649 = vunpack.c.h.b16 %v1212
    %v2650 = vunpack.c.l.b16 %v1213
    %v2651 = vunpack.c.h.b16 %v1213
    %v2652 = vunpack.c.l.b16 %v1214
    %v2653 = vunpack.c.h.b16 %v1214
    %v2654 = vunpack.c.l.b16 %v1215
    %v2655 = vunpack.c.h.b16 %v1215
    %v2656 = vunpack.c.l.b16 %v1216
    %v2657 = vunpack.c.h.b16 %v1216
    %v2658 = vunpack.c.l.b16 %v1217
    %v2659 = vunpack.c.h.b16 %v1217
    %v2660 = vunpack.c.l.b16 %v1218
    %v2661 = vunpack.c.h.b16 %v1218
    %v2662 = vunpack.c.l.b16 %v1219
    %v2663 = vunpack.c.h.b16 %v1219
    %v2664 = vunpack.c.l.b16 %v1220
    %v2665 = vunpack.c.h.b16 %v1220
    %v2666 = vunpack.c.l.b16 %v1221
    %v2667 = vunpack.c.h.b16 %v1221
    %v2668 = vunpack.c.l.b16 %v1222
    %v2669 = vunpack.c.h.b16 %v1222
    %v2670 = vunpack.c.l.b16 %v1223
    %v2671 = vunpack.c.h.b16 %v1223
    %v2672 = vunpack.c.l.b16 %v1224
    %v2673 = vunpack.c.h.b16 %v1224
    %v2674 = vunpack.c.l.b16 %v1225
    %v2675 = vunpack.c.h.b16 %v1225
    %v2676 = vunpack.c.l.b16 %v1226
    %v2677 = vunpack.c.h.b16 %v1226
    %v2678 = vunpack.c.l.b16 %v1227
    %v2679 = vunpack.c.h.b16 %v1227
    %v2680 = vunpack.c.l.b16 %v1228
    %v2681 = vunpack.c.h.b16 %v1228
    %v2682 = vunpack.c.l.b16 %v1229
    %v2683 = vunpack.c.h.b16 %v1229
    %v2684 = vunpack.c.l.b16 %v1230
    %v2685 = vunpack.c.h.b16 %v1230
    %v2686 = vunpack.c.l.b16 %v1231
    %v2687 = vunpack.c.h.b16 %v1231
    %v2688 = vunpack.c.l.b16 %v1232
    %v2689 = vunpack.c.h.b16 %v1232
    %v2690 = vunpack.c.l.b16 %v1233
    %v2691 = vunpack.c.h.b16 %v1233
    %v2692 = vunpack.c.l.b16 %v1234
    %v2693 = vunpack.c.h.b16 %v1234
    %v2694 = vunpack.c.l.b16 %v1235
    %v2695 = vunpack.c.h.b16 %v1235
    %v2696 = vunpack.c.l.b16 %v1236
    %v2697 = vunpack.c.h.b16 %v1236
    %v2698 = vunpack.c.l.b16 %v1237
    %v2699 = vunpack.c.h.b16 %v1237
    %v2700 = vunpack.c.l.b16 %v1238
    %v2701 = vunpack.c.h.b16 %v1238
    %v2702 = vunpack.c.l.b16 %v1239
    %v2703 = vunpack.c.h.b16 %v1239
    %v2704 = vunpack.c.l.b16 %v1240
    %v2705 = vunpack.c.h.b16 %v1240
    %v2706 = vunpack.c.l.b16 %v1241
    %v2707 = vunpack.c.h.b16 %v1241
    %v2708 = vunpack.c.l.b16 %v1242
    %v2709 = vunpack.c.h.b16 %v1242
    %v2710 = vunpack.c.l.b16 %v1243
    %v2711 = vunpack.c.h.b16 %v1243
    %v2712 = vunpack.c.l.b16 %v1244
    %v2713 = vunpack.c.h.b16 %v1244
    %v2714 = vunpack.c.l.b16 %v1245
    %v2715 = vunpack.c.h.b16 %v1245
    %v2716 = vpack.c.b16 %v2464, %v2460
    %v2717 = vpack.c.b16 %v2465, %v2461
    %v2718 = vpack.c.b16 %v2466, %v2462
    %v2719 = vpack.c.b16 %v2467, %v2463
    %v2720 = vpack.c.b16 %v2472, %v2468
    %v2721 = vpack.c.b16 %v2473, %v2469
    %v2722 = vpack.c.b16 %v2474, %v2470
    %v2723 = vpack.c.b16 %v2475, %v2471
    %v2724 = vpack.c.b16 %v2480, %v2476
    %v2725 = vpack.c.b16 %v2481, %v2477
    %v2726 = vpack.c.b16 %v2482, %v2478
    %v2727 = vpack.c.b16 %v2483, %v2479
    %v2728 = vpack.c.b16 %v2488, %v2484
    %v2729 = vpack.c.b16 %v2489, %v2485
    %v2730 = vpack.c.b16 %v2490, %v2486
    %v2731 = vpack.c.b16 %v2491, %v2487
    %v2732 = vpack.c.b16 %v2496, %v2492
    %v2733 = vpack.c.b16 %v2497, %v2493
    %v2734 = vpack.c.b16 %v2498, %v2494
    %v2735 = vpack.c.b16 %v2499, %v2495
    %v2736 = vpack.c.b16 %v2504, %v2500
    %v2737 = vpack.c.b16 %v2505, %v2501
    %v2738 = vpack.c.b16 %v2506, %v2502
    %v2739 = vpack.c.b16 %v2507, %v2503
    %v2740 = vpack.c.b16 %v2512, %v2508
    %v2741 = vpack.c.b16 %v2513, %v2509
    %v2742 = vpack.c.b16 %v2514, %v2510
    %v2743 = vpack.c.b16 %v2515, %v2511
    %v2744 = vpack.c.b16 %v2520, %v2516
    %v2745 = vpack.c.b16 %v2521, %v2517
    %v2746 = vpack.c.b16 %v2522, %v2518
    %v2747 = vpack.c.b16 %v2523, %v2519
    %v2748 = vpack.c.b16 %v2528, %v2524
    %v2749 = vpack.c.b16 %v2529, %v2525
    %v2750 = vpack.c.b16 %v2530, %v2526
    %v2751 = vpack.c.b16 %v2531, %v2527
    %v2752 = vpack.c.b16 %v2536, %v2532
    %v2753 = vpack.c.b16 %v2537, %v2533
    %v2754 = vpack.c.b16 %v2538, %v2534
    %v2755 = vpack.c.b16 %v2539, %v2535
    %v2756 = vpack.c.b16 %v2544, %v2540
    %v2757 = vpack.c.b16 %v2545, %v2541
    %v2758 = vpack.c.b16 %v2546, %v2542
    %v2759 = vpack.c.b16 %v2547, %v2543
    %v2760 = vpack.c.b16 %v2552, %v2548
    %v2761 = vpack.c.b16 %v2553, %v2549
    %v2762 = vpack.c.b16 %v2554, %v2550
    %v2763 = vpack.c.b16 %v2555, %v2551
    %v2764 = vpack.c.b16 %v2560, %v2556
    %v2765 = vpack.c.b16 %v2561, %v2557
    %v2766 = vpack.c.b16 %v2562, %v2558
    %v2767 = vpack.c.b16 %v2563, %v2559
    %v2768 = vpack.c.b16 %v2568, %v2564
    %v2769 = vpack.c.b16 %v2569, %v2565
    %v2770 = vpack.c.b16 %v2570, %v2566
    %v2771 = vpack.c.b16 %v2571, %v2567
    %v2772 = vpack.c.b16 %v2576, %v2572
    %v2773 = vpack.c.b16 %v2577, %v2573
    %v2774 = vpack.c.b16 %v2578, %v2574
    %v2775 = vpack.c.b16 %v2579, %v2575
    %v2776 = vpack.c.b16 %v2584, %v2580
    %v2777 = vpack.c.b16 %v2585, %v2581
    %v2778 = vpack.c.b16 %v2586, %v2582
    %v2779 = vpack.c.b16 %v2587, %v2583
    %v2780 = vpack.c.b16 %v2592, %v2588
    %v2781 = vpack.c.b16 %v2593, %v2589
    %v2782 = vpack.c.b16 %v2594, %v2590
    %v2783 = vpack.c.b16 %v2595, %v2591
    %v2784 = vpack.c.b16 %v2600, %v2596
    %v2785 = vpack.c.b16 %v2601, %v2597
    %v2786 = vpack.c.b16 %v2602, %v2598
    %v2787 = vpack.c.b16 %v2603, %v2599
    %v2788 = vpack.c.b16 %v2608, %v2604
    %v2789 = vpack.c.b16 %v2609, %v2605
    %v2790 = vpack.c.b16 %v2610, %v2606
    %v2791 = vpack.c.b16 %v2611, %v2607
    %v2792 = vpack.c.b16 %v2616, %v2612
    %v2793 = vpack.c.b16 %v2617, %v2613
    %v2794 = vpack.c.b16 %v2618, %v2614
    %v2795 = vpack.c.b16 %v2619, %v2615
    %v2796 = vpack.c.b16 %v2624, %v2620
    %v2797 = vpack.c.b16 %v2625, %v2621
    %v2798 = vpack.c.b16 %v2626, %v2622
    %v2799 = vpack.c.b16 %v2627, %v2623
    %v2800 = vpack.c.b16 %v2632, %v2628
    %v2801 = vpack.c.b16 %v2633, %v2629
    %v2802 = vpack.c.b16 %v2634, %v2630
    %v2803 = vpack.c.b16 %v2635, %v2631
    %v2804 = vpack.c.b16 %v2640, %v2636
    %v2805 = vpack.c.b16 %v2641, %v2637
    %v2806 = vpack.c.b16 %v2642, %v2638
    %v2807 = vpack.c.b16 %v2643, %v2639
    %v2808 = vpack.c.b16 %v2648, %v2644
    %v2809 = vpack.c.b16 %v2649, %v2645
    %v2810 = vpack.c.b16 %v2650, %v2646
    %v2811 = vpack.c.b16 %v2651, %v2647
    %v2812 = vpack.c.b16 %v2656, %v2652
    %v2813 = vpack.c.b16 %v2657, %v2653
    %v2814 = vpack.c.b16 %v2658, %v2654
    %v2815 = vpack.c.b16 %v2659, %v2655
    %v2816 = vpack.c.b16 %v2664, %v2660
    %v2817 = vpack.c.b16 %v2665, %v2661
    %v2818 = vpack.c.b16 %v2666, %v2662
    %v2819 = vpack.c.b16 %v2667, %v2663
    %v2820 = vpack.c.b16 %v2672, %v2668
    %v2821 = vpack.c.b16 %v2673, %v2669
    %v2822 = vpack.c.b16 %v2674, %v2670
    %v2823 = vpack.c.b16 %v2675, %v2671
    %v2824 = vpack.c.b16 %v2680, %v2676
    %v2825 = vpack.c.b16 %v2681, %v2677
    %v2826 = vpack.c.b16 %v2682, %v2678
    %v2827 = vpack.c.b16 %v2683, %v2679
    %v2828 = vpack.c.b16 %v2688, %v2684
    %v2829 = vpack.c.b16 %v2689, %v2685
    %v2830 = vpack.c.b16 %v2690, %v2686
    %v2831 = vpack.c.b16 %v2691, %v2687
    %v2832 = vpack.c.b16 %v2696, %v2692
    %v2833 = vpack.c.b16 %v2697, %v2693
    %v2834 = vpack.c.b16 %v2698, %v2694
    %v2835 = vpack.c.b16 %v2699, %v2695
    %v2836 = vpack.c.b16 %v2704, %v2700
    %v2837 = vpack.c.b16 %v2705, %v2701
    %v2838 = vpack.c.b16 %v2706, %v2702
    %v2839 = vpack.c.b16 %v2707, %v2703
    %v2840 = vpack.c.b16 %v2712, %v2708
    %v2841 = vpack.c.b16 %v2713, %v2709
    %v2842 = vpack.c.b16 %v2714, %v2710
    %v2843 = vpack.c.b16 %v2715, %v2711
    %2972 = vmatprep.subr.bf16.mxu0 %v2717
    %2973 = vmatpush1.bf16.msra.mxu0 %v2716
    %2974 = vmatprep.subr.bf16.mxu0 %v2721
    %2975 = vmatpush1.bf16.msra.mxu0 %v2720
    %2976 = vmatprep.subr.bf16.mxu0 %v2725
    %2977 = vmatpush1.bf16.msra.mxu0 %v2724
    %2978 = vmatprep.subr.bf16.mxu0 %v2729
    %2979 = vmatpush1.bf16.msra.mxu0 %v2728
    %2980 = vmatprep.subr.bf16.mxu0 %v2733
    %2981 = vmatpush1.bf16.msra.mxu0 %v2732
    %2982 = vmatprep.subr.bf16.mxu0 %v2737
    %2983 = vmatpush1.bf16.msra.mxu0 %v2736
    %2984 = vmatprep.subr.bf16.mxu0 %v2741
    %2985 = vmatpush1.bf16.msra.mxu0 %v2740
    %2986 = vmatprep.subr.bf16.mxu0 %v2745
    %2987 = vmatpush1.bf16.msra.mxu0 %v2744
    %2988 = vmatprep.subr.bf16.mxu0 %v2749
    %2989 = vmatpush1.bf16.msra.mxu0 %v2748
    %2990 = vmatprep.subr.bf16.mxu0 %v2753
    %2991 = vmatpush1.bf16.msra.mxu0 %v2752
    %2992 = vmatprep.subr.bf16.mxu0 %v2757
    %2993 = vmatpush1.bf16.msra.mxu0 %v2756
    %2994 = vmatprep.subr.bf16.mxu0 %v2761
    %2995 = vmatpush1.bf16.msra.mxu0 %v2760
    %2996 = vmatprep.subr.bf16.mxu0 %v2765
    %2997 = vmatpush1.bf16.msra.mxu0 %v2764
    %2998 = vmatprep.subr.bf16.mxu0 %v2769
    %2999 = vmatpush1.bf16.msra.mxu0 %v2768
    %3000 = vmatprep.subr.bf16.mxu0 %v2773
    %3001 = vmatpush1.bf16.msra.mxu0 %v2772
    %3002 = vmatprep.subr.bf16.mxu0 %v2777
    %3003 = vmatpush1.bf16.msra.mxu0 %v2776
    %3004 = vmatprep.mubr.bf16.mxu0 %v1103
    %3005 = vmatmul.mubr.bf16.gmra.mrb[0].mxu0 %v1102
    %v3006 = vpop.f32.mrb[0].mxu0
    %v3007 = vadd.f32 %v2208, %v3006
    %v3008 = vpop.f32.mrb[0].mxu0
    %v3009 = vadd.f32 %v2210, %v3008
    %v3010 = vpop.f32.mrb[0].mxu0
    %v3011 = vadd.f32 %v2212, %v3010
    %v3012 = vpop.f32.mrb[0].mxu0
    %v3013 = vadd.f32 %v2214, %v3012
    %3014 = vmatprep.mubr.bf16.mxu0 %v1107
    %3015 = vmatmul.mubr.bf16.gmra.mrb[0].mxu0 %v1106
    %v3016 = vpop.f32.mrb[0].mxu0
    %v3017 = vadd.f32 %v2218, %v3016
    %v3018 = vpop.f32.mrb[0].mxu0
    %v3019 = vadd.f32 %v2220, %v3018
    %v3020 = vpop.f32.mrb[0].mxu0
    %v3021 = vadd.f32 %v2222, %v3020
    %v3022 = vpop.f32.mrb[0].mxu0
    %v3023 = vadd.f32 %v2224, %v3022
    %3024 = vdwg.mxu0
    %3025 = vmatprep.subr.bf16.mxu0 %v2781
    %3026 = vmatpush1.bf16.msra.mxu0 %v2780
    %3027 = vmatprep.subr.bf16.mxu0 %v2785
    %3028 = vmatpush1.bf16.msra.mxu0 %v2784
    %3029 = vmatprep.subr.bf16.mxu0 %v2789
    %3030 = vmatpush1.bf16.msra.mxu0 %v2788
    %3031 = vmatprep.subr.bf16.mxu0 %v2793
    %3032 = vmatpush1.bf16.msra.mxu0 %v2792
    %3033 = vmatprep.subr.bf16.mxu0 %v2797
    %3034 = vmatpush1.bf16.msra.mxu0 %v2796
    %3035 = vmatprep.subr.bf16.mxu0 %v2801
    %3036 = vmatpush1.bf16.msra.mxu0 %v2800
    %3037 = vmatprep.subr.bf16.mxu0 %v2805
    %3038 = vmatpush1.bf16.msra.mxu0 %v2804
    %3039 = vmatprep.subr.bf16.mxu0 %v2809
    %3040 = vmatpush1.bf16.msra.mxu0 %v2808
    %3041 = vmatprep.subr.bf16.mxu0 %v2813
    %3042 = vmatpush1.bf16.msra.mxu0 %v2812
    %3043 = vmatprep.subr.bf16.mxu0 %v2817
    %3044 = vmatpush1.bf16.msra.mxu0 %v2816
    %3045 = vmatprep.subr.bf16.mxu0 %v2821
    %3046 = vmatpush1.bf16.msra.mxu0 %v2820
    %3047 = vmatprep.subr.bf16.mxu0 %v2825
    %3048 = vmatpush1.bf16.msra.mxu0 %v2824
    %3049 = vmatprep.subr.bf16.mxu0 %v2829
    %3050 = vmatpush1.bf16.msra.mxu0 %v2828
    %3051 = vmatprep.subr.bf16.mxu0 %v2833
    %3052 = vmatpush1.bf16.msra.mxu0 %v2832
    %3053 = vmatprep.subr.bf16.mxu0 %v2837
    %3054 = vmatpush1.bf16.msra.mxu0 %v2836
    %3055 = vmatprep.subr.bf16.mxu0 %v2841
    %3056 = vmatpush1.bf16.msra.mxu0 %v2840
    %3057 = vmatprep.mubr.bf16.mxu0 %v1105
    %3058 = vmatmul.mubr.bf16.gmra.mrb[0].mxu0 %v1104
    %v3059 = vpop.f32.mrb[0].mxu0
    %v3060 = vadd.f32 %v3007, %v3059
    %v3061 = vpop.f32.mrb[0].mxu0
    %v3062 = vadd.f32 %v3009, %v3061
    %v3063 = vpop.f32.mrb[0].mxu0
    %v3064 = vadd.f32 %v3011, %v3063
    %v3065 = vpop.f32.mrb[0].mxu0
    %v3066 = vadd.f32 %v3013, %v3065
    %3067 = vmatprep.mubr.bf16.mxu0 %v1109
    %3068 = vmatmul.mubr.bf16.gmra.mrb[0].mxu0 %v1108
    %v3069 = vpop.f32.mrb[0].mxu0
    %v3070 = vadd.f32 %v3017, %v3069
    %v3071 = vpop.f32.mrb[0].mxu0
    %v3072 = vadd.f32 %v3019, %v3071
    %v3073 = vpop.f32.mrb[0].mxu0
    %v3074 = vadd.f32 %v3021, %v3073
    %v3075 = vpop.f32.mrb[0].mxu0
    %v3076 = vadd.f32 %v3023, %v3075
    %3077 = vdwg.mxu0
    %3078 = vmatprep.subr.bf16.mxu0 %v2719
    %3079 = vmatpush1.bf16.msra.mxu0 %v2718
    %3080 = vmatprep.subr.bf16.mxu0 %v2723
    %3081 = vmatpush1.bf16.msra.mxu0 %v2722
    %3082 = vmatprep.subr.bf16.mxu0 %v2727
    %3083 = vmatpush1.bf16.msra.mxu0 %v2726
    %3084 = vmatprep.subr.bf16.mxu0 %v2731
    %3085 = vmatpush1.bf16.msra.mxu0 %v2730
    %3086 = vmatprep.subr.bf16.mxu0 %v2735
    %3087 = vmatpush1.bf16.msra.mxu0 %v2734
    %3088 = vmatprep.subr.bf16.mxu0 %v2739
    %3089 = vmatpush1.bf16.msra.mxu0 %v2738
    %3090 = vmatprep.subr.bf16.mxu0 %v2743
    %3091 = vmatpush1.bf16.msra.mxu0 %v2742
    %3092 = vmatprep.subr.bf16.mxu0 %v2747
    %3093 = vmatpush1.bf16.msra.mxu0 %v2746
    %3094 = vmatprep.subr.bf16.mxu0 %v2751
    %3095 = vmatpush1.bf16.msra.mxu0 %v2750
    %3096 = vmatprep.subr.bf16.mxu0 %v2755
    %3097 = vmatpush1.bf16.msra.mxu0 %v2754
    %3098 = vmatprep.subr.bf16.mxu0 %v2759
    %3099 = vmatpush1.bf16.msra.mxu0 %v2758
    %3100 = vmatprep.subr.bf16.mxu0 %v2763
    %3101 = vmatpush1.bf16.msra.mxu0 %v2762
    %3102 = vmatprep.subr.bf16.mxu0 %v2767
    %3103 = vmatpush1.bf16.msra.mxu0 %v2766
    %3104 = vmatprep.subr.bf16.mxu0 %v2771
    %3105 = vmatpush1.bf16.msra.mxu0 %v2770
    %3106 = vmatprep.subr.bf16.mxu0 %v2775
    %3107 = vmatpush1.bf16.msra.mxu0 %v2774
    %3108 = vmatprep.subr.bf16.mxu0 %v2779
    %3109 = vmatpush1.bf16.msra.mxu0 %v2778
    %3110 = vmatprep.mubr.bf16.mxu0 %v1103
    %3111 = vmatmul.mubr.bf16.gmra.mrb[0].mxu0 %v1102
    %v3112 = vpop.f32.mrb[0].mxu0
    %v3113 = vadd.f32 %v2314, %v3112
    %v3114 = vpop.f32.mrb[0].mxu0
    %v3115 = vadd.f32 %v2316, %v3114
    %v3116 = vpop.f32.mrb[0].mxu0
    %v3117 = vadd.f32 %v2318, %v3116
    %v3118 = vpop.f32.mrb[0].mxu0
    %v3119 = vadd.f32 %v2320, %v3118
    %3120 = vmatprep.mubr.bf16.mxu0 %v1107
    %3121 = vmatmul.mubr.bf16.gmra.mrb[0].mxu0 %v1106
    %v3122 = vpop.f32.mrb[0].mxu0
    %v3123 = vadd.f32 %v2324, %v3122
    %v3124 = vpop.f32.mrb[0].mxu0
    %v3125 = vadd.f32 %v2326, %v3124
    %v3126 = vpop.f32.mrb[0].mxu0
    %v3127 = vadd.f32 %v2328, %v3126
    %v3128 = vpop.f32.mrb[0].mxu0
    %v3129 = vadd.f32 %v2330, %v3128
    %3130 = vdwg.mxu0
    %3131 = vmatprep.subr.bf16.mxu0 %v2783
    %3132 = vmatpush1.bf16.msra.mxu0 %v2782
    %3133 = vmatprep.subr.bf16.mxu0 %v2787
    %3134 = vmatpush1.bf16.msra.mxu0 %v2786
    %3135 = vmatprep.subr.bf16.mxu0 %v2791
    %3136 = vmatpush1.bf16.msra.mxu0 %v2790
    %3137 = vmatprep.subr.bf16.mxu0 %v2795
    %3138 = vmatpush1.bf16.msra.mxu0 %v2794
    %3139 = vmatprep.subr.bf16.mxu0 %v2799
    %3140 = vmatpush1.bf16.msra.mxu0 %v2798
    %3141 = vmatprep.subr.bf16.mxu0 %v2803
    %3142 = vmatpush1.bf16.msra.mxu0 %v2802
    %3143 = vmatprep.subr.bf16.mxu0 %v2807
    %3144 = vmatpush1.bf16.msra.mxu0 %v2806
    %3145 = vmatprep.subr.bf16.mxu0 %v2811
    %3146 = vmatpush1.bf16.msra.mxu0 %v2810
    %3147 = vmatprep.subr.bf16.mxu0 %v2815
    %3148 = vmatpush1.bf16.msra.mxu0 %v2814
    %3149 = vmatprep.subr.bf16.mxu0 %v2819
    %3150 = vmatpush1.bf16.msra.mxu0 %v2818
    %3151 = vmatprep.subr.bf16.mxu0 %v2823
    %3152 = vmatpush1.bf16.msra.mxu0 %v2822
    %3153 = vmatprep.subr.bf16.mxu0 %v2827
    %3154 = vmatpush1.bf16.msra.mxu0 %v2826
    %3155 = vmatprep.subr.bf16.mxu0 %v2831
    %3156 = vmatpush1.bf16.msra.mxu0 %v2830
    %3157 = vmatprep.subr.bf16.mxu0 %v2835
    %3158 = vmatpush1.bf16.msra.mxu0 %v2834
    %3159 = vmatprep.subr.bf16.mxu0 %v2839
    %3160 = vmatpush1.bf16.msra.mxu0 %v2838
    %3161 = vmatprep.subr.bf16.mxu0 %v2843
    %3162 = vmatpush1.bf16.msra.mxu0 %v2842
    %3163 = vmatprep.mubr.bf16.mxu0 %v1105
    %3164 = vmatmul.mubr.bf16.gmra.mrb[0].mxu0 %v1104
    %v3165 = vpop.f32.mrb[0].mxu0
    %v3166 = vadd.f32 %v3113, %v3165
    %v3167 = vpop.f32.mrb[0].mxu0
    %v3168 = vadd.f32 %v3115, %v3167
    %v3169 = vpop.f32.mrb[0].mxu0
    %v3170 = vadd.f32 %v3117, %v3169
    %v3171 = vpop.f32.mrb[0].mxu0
    %v3172 = vadd.f32 %v3119, %v3171
    %3173 = vmatprep.mubr.bf16.mxu0 %v1109
    %3174 = vmatmul.mubr.bf16.gmra.mrb[0].mxu0 %v1108
    %v3175 = vpop.f32.mrb[0].mxu0
    %v3176 = vadd.f32 %v3123, %v3175
    %v3177 = vpop.f32.mrb[0].mxu0
    %v3178 = vadd.f32 %v3125, %v3177
    %v3179 = vpop.f32.mrb[0].mxu0
    %v3180 = vadd.f32 %v3127, %v3179
    %v3181 = vpop.f32.mrb[0].mxu0
    %v3182 = vadd.f32 %v3129, %v3181
    %3183 = vdwg.mxu0
    %vm3200 = vcmask 1046528
    %v3201 = vrot.slane %v1102, 1
    %v3202 = vrot.slane %v1110, 1
    %v3203 = vsel %vm3200, %v3201, %v3202
    %v3204 = vrot.slane %v1103, 1
    %v3205 = vrot.slane %v1111, 1
    %v3206 = vsel %vm3200, %v3204, %v3205
    %v3207 = vrot.slane %v1104, 1
    %v3208 = vrot.slane %v1112, 1
    %v3209 = vsel %vm3200, %v3207, %v3208
    %v3210 = vrot.slane %v1105, 1
    %v3211 = vrot.slane %v1113, 1
    %v3212 = vsel %vm3200, %v3210, %v3211
    %v3213 = vrot.slane %v1106, 1
    %v3214 = vrot.slane %v1114, 1
    %v3215 = vsel %vm3200, %v3213, %v3214
    %v3216 = vrot.slane %v1107, 1
    %v3217 = vrot.slane %v1115, 1
    %v3218 = vsel %vm3200, %v3216, %v3217
    %v3219 = vrot.slane %v1108, 1
    %v3220 = vrot.slane %v1116, 1
    %v3221 = vsel %vm3200, %v3219, %v3220
    %v3222 = vrot.slane %v1109, 1
    %v3223 = vrot.slane %v1117, 1
    %v3224 = vsel %vm3200, %v3222, %v3223
    %s3233 = scalar_lea.vmem [#allocation13], 2048
    %v3234 = vld [vmem:[%s3233] sm:$0xff]
    %v3235 = vld [vmem:[%s3233 + $0x8] sm:$0xff]
    %v3236 = vld [vmem:[%s3233 + $0x10] sm:$0xff]
    %v3237 = vld [vmem:[%s3233 + $0x18] sm:$0xff]
    %v3238 = vld [vmem:[%s3233 + $0x20] sm:$0xff]
    %v3239 = vld [vmem:[%s3233 + $0x28] sm:$0xff]
    %v3240 = vld [vmem:[%s3233 + $0x30] sm:$0xff]
    %v3241 = vld [vmem:[%s3233 + $0x38] sm:$0xff]
    %v3242 = vld [vmem:[%s3233 + $0x40] sm:$0xff]
    %v3243 = vld [vmem:[%s3233 + $0x48] sm:$0xff]
    %v3244 = vld [vmem:[%s3233 + $0x50] sm:$0xff]
    %v3245 = vld [vmem:[%s3233 + $0x58] sm:$0xff]
    %v3246 = vld [vmem:[%s3233 + $0x60] sm:$0xff]
    %v3247 = vld [vmem:[%s3233 + $0x68] sm:$0xff]
    %v3248 = vld [vmem:[%s3233 + $0x70] sm:$0xff]
    %v3249 = vld [vmem:[%s3233 + $0x78] sm:$0xff]
    %v3250 = vld [vmem:[%s3233 + $0x80] sm:$0xff]
    %v3251 = vld [vmem:[%s3233 + $0x88] sm:$0xff]
    %v3252 = vld [vmem:[%s3233 + $0x90] sm:$0xff]
    %v3253 = vld [vmem:[%s3233 + $0x98] sm:$0xff]
    %v3254 = vld [vmem:[%s3233 + $0xa0] sm:$0xff]
    %v3255 = vld [vmem:[%s3233 + $0xa8] sm:$0xff]
    %v3256 = vld [vmem:[%s3233 + $0xb0] sm:$0xff]
    %v3257 = vld [vmem:[%s3233 + $0xb8] sm:$0xff]
    %v3258 = vld [vmem:[%s3233 + $0xc0] sm:$0xff]
    %v3259 = vld [vmem:[%s3233 + $0xc8] sm:$0xff]
    %v3260 = vld [vmem:[%s3233 + $0xd0] sm:$0xff]
    %v3261 = vld [vmem:[%s3233 + $0xd8] sm:$0xff]
    %v3262 = vld [vmem:[%s3233 + $0xe0] sm:$0xff]
    %v3263 = vld [vmem:[%s3233 + $0xe8] sm:$0xff]
    %v3264 = vld [vmem:[%s3233 + $0xf0] sm:$0xff]
    %v3265 = vld [vmem:[%s3233 + $0xf8] sm:$0xff]
    %v3266 = vld [vmem:[%s3233 + $0x100] sm:$0xff]
    %v3267 = vld [vmem:[%s3233 + $0x108] sm:$0xff]
    %v3268 = vld [vmem:[%s3233 + $0x110] sm:$0xff]
    %v3269 = vld [vmem:[%s3233 + $0x118] sm:$0xff]
    %v3270 = vld [vmem:[%s3233 + $0x120] sm:$0xff]
    %v3271 = vld [vmem:[%s3233 + $0x128] sm:$0xff]
    %v3272 = vld [vmem:[%s3233 + $0x130] sm:$0xff]
    %v3273 = vld [vmem:[%s3233 + $0x138] sm:$0xff]
    %v3274 = vld [vmem:[%s3233 + $0x140] sm:$0xff]
    %v3275 = vld [vmem:[%s3233 + $0x148] sm:$0xff]
    %v3276 = vld [vmem:[%s3233 + $0x150] sm:$0xff]
    %v3277 = vld [vmem:[%s3233 + $0x158] sm:$0xff]
    %v3278 = vld [vmem:[%s3233 + $0x160] sm:$0xff]
    %v3279 = vld [vmem:[%s3233 + $0x168] sm:$0xff]
    %v3280 = vld [vmem:[%s3233 + $0x170] sm:$0xff]
    %v3281 = vld [vmem:[%s3233 + $0x178] sm:$0xff]
    %v3282 = vld [vmem:[%s3233 + $0x180] sm:$0xff]
    %v3283 = vld [vmem:[%s3233 + $0x188] sm:$0xff]
    %v3284 = vld [vmem:[%s3233 + $0x190] sm:$0xff]
    %v3285 = vld [vmem:[%s3233 + $0x198] sm:$0xff]
    %v3286 = vld [vmem:[%s3233 + $0x1a0] sm:$0xff]
    %v3287 = vld [vmem:[%s3233 + $0x1a8] sm:$0xff]
    %v3288 = vld [vmem:[%s3233 + $0x1b0] sm:$0xff]
    %v3289 = vld [vmem:[%s3233 + $0x1b8] sm:$0xff]
    %v3290 = vld [vmem:[%s3233 + $0x1c0] sm:$0xff]
    %v3291 = vld [vmem:[%s3233 + $0x1c8] sm:$0xff]
    %v3292 = vld [vmem:[%s3233 + $0x1d0] sm:$0xff]
    %v3293 = vld [vmem:[%s3233 + $0x1d8] sm:$0xff]
    %v3294 = vld [vmem:[%s3233 + $0x1e0] sm:$0xff]
    %v3295 = vld [vmem:[%s3233 + $0x1e8] sm:$0xff]
    %v3296 = vld [vmem:[%s3233 + $0x1f0] sm:$0xff]
    %v3297 = vld [vmem:[%s3233 + $0x1f8] sm:$0xff]
    %v3298 = vld [vmem:[%s3233 + $0x200] sm:$0xff]
    %v3299 = vld [vmem:[%s3233 + $0x208] sm:$0xff]
    %v3300 = vld [vmem:[%s3233 + $0x210] sm:$0xff]
    %v3301 = vld [vmem:[%s3233 + $0x218] sm:$0xff]
    %v3302 = vld [vmem:[%s3233 + $0x220] sm:$0xff]
    %v3303 = vld [vmem:[%s3233 + $0x228] sm:$0xff]
    %v3304 = vld [vmem:[%s3233 + $0x230] sm:$0xff]
    %v3305 = vld [vmem:[%s3233 + $0x238] sm:$0xff]
    %v3306 = vld [vmem:[%s3233 + $0x240] sm:$0xff]
    %v3307 = vld [vmem:[%s3233 + $0x248] sm:$0xff]
    %v3308 = vld [vmem:[%s3233 + $0x250] sm:$0xff]
    %v3309 = vld [vmem:[%s3233 + $0x258] sm:$0xff]
    %v3310 = vld [vmem:[%s3233 + $0x260] sm:$0xff]
    %v3311 = vld [vmem:[%s3233 + $0x268] sm:$0xff]
    %v3312 = vld [vmem:[%s3233 + $0x270] sm:$0xff]
    %v3313 = vld [vmem:[%s3233 + $0x278] sm:$0xff]
    %v3314 = vld [vmem:[%s3233 + $0x280] sm:$0xff]
    %v3315 = vld [vmem:[%s3233 + $0x288] sm:$0xff]
    %v3316 = vld [vmem:[%s3233 + $0x290] sm:$0xff]
    %v3317 = vld [vmem:[%s3233 + $0x298] sm:$0xff]
    %v3318 = vld [vmem:[%s3233 + $0x2a0] sm:$0xff]
    %v3319 = vld [vmem:[%s3233 + $0x2a8] sm:$0xff]
    %v3320 = vld [vmem:[%s3233 + $0x2b0] sm:$0xff]
    %v3321 = vld [vmem:[%s3233 + $0x2b8] sm:$0xff]
    %v3322 = vld [vmem:[%s3233 + $0x2c0] sm:$0xff]
    %v3323 = vld [vmem:[%s3233 + $0x2c8] sm:$0xff]
    %v3324 = vld [vmem:[%s3233 + $0x2d0] sm:$0xff]
    %v3325 = vld [vmem:[%s3233 + $0x2d8] sm:$0xff]
    %v3326 = vld [vmem:[%s3233 + $0x2e0] sm:$0xff]
    %v3327 = vld [vmem:[%s3233 + $0x2e8] sm:$0xff]
    %v3328 = vld [vmem:[%s3233 + $0x2f0] sm:$0xff]
    %v3329 = vld [vmem:[%s3233 + $0x2f8] sm:$0xff]
    %v3330 = vld [vmem:[%s3233 + $0x300] sm:$0xff]
    %v3331 = vld [vmem:[%s3233 + $0x308] sm:$0xff]
    %v3332 = vld [vmem:[%s3233 + $0x310] sm:$0xff]
    %v3333 = vld [vmem:[%s3233 + $0x318] sm:$0xff]
    %v3334 = vld [vmem:[%s3233 + $0x320] sm:$0xff]
    %v3335 = vld [vmem:[%s3233 + $0x328] sm:$0xff]
    %v3336 = vld [vmem:[%s3233 + $0x330] sm:$0xff]
    %v3337 = vld [vmem:[%s3233 + $0x338] sm:$0xff]
    %v3338 = vld [vmem:[%s3233 + $0x340] sm:$0xff]
    %v3339 = vld [vmem:[%s3233 + $0x348] sm:$0xff]
    %v3340 = vld [vmem:[%s3233 + $0x350] sm:$0xff]
    %v3341 = vld [vmem:[%s3233 + $0x358] sm:$0xff]
    %v3342 = vld [vmem:[%s3233 + $0x360] sm:$0xff]
    %v3343 = vld [vmem:[%s3233 + $0x368] sm:$0xff]
    %v3344 = vld [vmem:[%s3233 + $0x370] sm:$0xff]
    %v3345 = vld [vmem:[%s3233 + $0x378] sm:$0xff]
    %v3346 = vld [vmem:[%s3233 + $0x380] sm:$0xff]
    %v3347 = vld [vmem:[%s3233 + $0x388] sm:$0xff]
    %v3348 = vld [vmem:[%s3233 + $0x390] sm:$0xff]
    %v3349 = vld [vmem:[%s3233 + $0x398] sm:$0xff]
    %v3350 = vld [vmem:[%s3233 + $0x3a0] sm:$0xff]
    %v3351 = vld [vmem:[%s3233 + $0x3a8] sm:$0xff]
    %v3352 = vld [vmem:[%s3233 + $0x3b0] sm:$0xff]
    %v3353 = vld [vmem:[%s3233 + $0x3b8] sm:$0xff]
    %v3354 = vld [vmem:[%s3233 + $0x3c0] sm:$0xff]
    %v3355 = vld [vmem:[%s3233 + $0x3c8] sm:$0xff]
    %v3356 = vld [vmem:[%s3233 + $0x3d0] sm:$0xff]
    %v3357 = vld [vmem:[%s3233 + $0x3d8] sm:$0xff]
    %v3358 = vld [vmem:[%s3233 + $0x3e0] sm:$0xff]
    %v3359 = vld [vmem:[%s3233 + $0x3e8] sm:$0xff]
    %v3360 = vld [vmem:[%s3233 + $0x3f0] sm:$0xff]
    %v3361 = vld [vmem:[%s3233 + $0x3f8] sm:$0xff]
    %v3490 = vunpack.c.l.b16 %v3234
    %v3491 = vunpack.c.h.b16 %v3234
    %v3492 = vunpack.c.l.b16 %v3235
    %v3493 = vunpack.c.h.b16 %v3235
    %v3494 = vunpack.c.l.b16 %v3236
    %v3495 = vunpack.c.h.b16 %v3236
    %v3496 = vunpack.c.l.b16 %v3237
    %v3497 = vunpack.c.h.b16 %v3237
    %v3498 = vunpack.c.l.b16 %v3238
    %v3499 = vunpack.c.h.b16 %v3238
    %v3500 = vunpack.c.l.b16 %v3239
    %v3501 = vunpack.c.h.b16 %v3239
    %v3502 = vunpack.c.l.b16 %v3240
    %v3503 = vunpack.c.h.b16 %v3240
    %v3504 = vunpack.c.l.b16 %v3241
    %v3505 = vunpack.c.h.b16 %v3241
    %v3506 = vunpack.c.l.b16 %v3242
    %v3507 = vunpack.c.h.b16 %v3242
    %v3508 = vunpack.c.l.b16 %v3243
    %v3509 = vunpack.c.h.b16 %v3243
    %v3510 = vunpack.c.l.b16 %v3244
    %v3511 = vunpack.c.h.b16 %v3244
    %v3512 = vunpack.c.l.b16 %v3245
    %v3513 = vunpack.c.h.b16 %v3245
    %v3514 = vunpack.c.l.b16 %v3246
    %v3515 = vunpack.c.h.b16 %v3246
    %v3516 = vunpack.c.l.b16 %v3247
    %v3517 = vunpack.c.h.b16 %v3247
    %v3518 = vunpack.c.l.b16 %v3248
    %v3519 = vunpack.c.h.b16 %v3248
    %v3520 = vunpack.c.l.b16 %v3249
    %v3521 = vunpack.c.h.b16 %v3249
    %v3522 = vunpack.c.l.b16 %v3250
    %v3523 = vunpack.c.h.b16 %v3250
    %v3524 = vunpack.c.l.b16 %v3251
    %v3525 = vunpack.c.h.b16 %v3251
    %v3526 = vunpack.c.l.b16 %v3252
    %v3527 = vunpack.c.h.b16 %v3252
    %v3528 = vunpack.c.l.b16 %v3253
    %v3529 = vunpack.c.h.b16 %v3253
    %v3530 = vunpack.c.l.b16 %v3254
    %v3531 = vunpack.c.h.b16 %v3254
    %v3532 = vunpack.c.l.b16 %v3255
    %v3533 = vunpack.c.h.b16 %v3255
    %v3534 = vunpack.c.l.b16 %v3256
    %v3535 = vunpack.c.h.b16 %v3256
    %v3536 = vunpack.c.l.b16 %v3257
    %v3537 = vunpack.c.h.b16 %v3257
    %v3538 = vunpack.c.l.b16 %v3258
    %v3539 = vunpack.c.h.b16 %v3258
    %v3540 = vunpack.c.l.b16 %v3259
    %v3541 = vunpack.c.h.b16 %v3259
    %v3542 = vunpack.c.l.b16 %v3260
    %v3543 = vunpack.c.h.b16 %v3260
    %v3544 = vunpack.c.l.b16 %v3261
    %v3545 = vunpack.c.h.b16 %v3261
    %v3546 = vunpack.c.l.b16 %v3262
    %v3547 = vunpack.c.h.b16 %v3262
    %v3548 = vunpack.c.l.b16 %v3263
    %v3549 = vunpack.c.h.b16 %v3263
    %v3550 = vunpack.c.l.b16 %v3264
    %v3551 = vunpack.c.h.b16 %v3264
    %v3552 = vunpack.c.l.b16 %v3265
    %v3553 = vunpack.c.h.b16 %v3265
    %v3554 = vunpack.c.l.b16 %v3266
    %v3555 = vunpack.c.h.b16 %v3266
    %v3556 = vunpack.c.l.b16 %v3267
    %v3557 = vunpack.c.h.b16 %v3267
    %v3558 = vunpack.c.l.b16 %v3268
    %v3559 = vunpack.c.h.b16 %v3268
    %v3560 = vunpack.c.l.b16 %v3269
    %v3561 = vunpack.c.h.b16 %v3269
    %v3562 = vunpack.c.l.b16 %v3270
    %v3563 = vunpack.c.h.b16 %v3270
    %v3564 = vunpack.c.l.b16 %v3271
    %v3565 = vunpack.c.h.b16 %v3271
    %v3566 = vunpack.c.l.b16 %v3272
    %v3567 = vunpack.c.h.b16 %v3272
    %v3568 = vunpack.c.l.b16 %v3273
    %v3569 = vunpack.c.h.b16 %v3273
    %v3570 = vunpack.c.l.b16 %v3274
    %v3571 = vunpack.c.h.b16 %v3274
    %v3572 = vunpack.c.l.b16 %v3275
    %v3573 = vunpack.c.h.b16 %v3275
    %v3574 = vunpack.c.l.b16 %v3276
    %v3575 = vunpack.c.h.b16 %v3276
    %v3576 = vunpack.c.l.b16 %v3277
    %v3577 = vunpack.c.h.b16 %v3277
    %v3578 = vunpack.c.l.b16 %v3278
    %v3579 = vunpack.c.h.b16 %v3278
    %v3580 = vunpack.c.l.b16 %v3279
    %v3581 = vunpack.c.h.b16 %v3279
    %v3582 = vunpack.c.l.b16 %v3280
    %v3583 = vunpack.c.h.b16 %v3280
    %v3584 = vunpack.c.l.b16 %v3281
    %v3585 = vunpack.c.h.b16 %v3281
    %v3586 = vunpack.c.l.b16 %v3282
    %v3587 = vunpack.c.h.b16 %v3282
    %v3588 = vunpack.c.l.b16 %v3283
    %v3589 = vunpack.c.h.b16 %v3283
    %v3590 = vunpack.c.l.b16 %v3284
    %v3591 = vunpack.c.h.b16 %v3284
    %v3592 = vunpack.c.l.b16 %v3285
    %v3593 = vunpack.c.h.b16 %v3285
    %v3594 = vunpack.c.l.b16 %v3286
    %v3595 = vunpack.c.h.b16 %v3286
    %v3596 = vunpack.c.l.b16 %v3287
    %v3597 = vunpack.c.h.b16 %v3287
    %v3598 = vunpack.c.l.b16 %v3288
    %v3599 = vunpack.c.h.b16 %v3288
    %v3600 = vunpack.c.l.b16 %v3289
    %v3601 = vunpack.c.h.b16 %v3289
    %v3602 = vunpack.c.l.b16 %v3290
    %v3603 = vunpack.c.h.b16 %v3290
    %v3604 = vunpack.c.l.b16 %v3291
    %v3605 = vunpack.c.h.b16 %v3291
    %v3606 = vunpack.c.l.b16 %v3292
    %v3607 = vunpack.c.h.b16 %v3292
    %v3608 = vunpack.c.l.b16 %v3293
    %v3609 = vunpack.c.h.b16 %v3293
    %v3610 = vunpack.c.l.b16 %v3294
    %v3611 = vunpack.c.h.b16 %v3294
    %v3612 = vunpack.c.l.b16 %v3295
    %v3613 = vunpack.c.h.b16 %v3295
    %v3614 = vunpack.c.l.b16 %v3296
    %v3615 = vunpack.c.h.b16 %v3296
    %v3616 = vunpack.c.l.b16 %v3297
    %v3617 = vunpack.c.h.b16 %v3297
    %v3618 = vunpack.c.l.b16 %v3298
    %v3619 = vunpack.c.h.b16 %v3298
    %v3620 = vunpack.c.l.b16 %v3299
    %v3621 = vunpack.c.h.b16 %v3299
    %v3622 = vunpack.c.l.b16 %v3300
    %v3623 = vunpack.c.h.b16 %v3300
    %v3624 = vunpack.c.l.b16 %v3301
    %v3625 = vunpack.c.h.b16 %v3301
    %v3626 = vunpack.c.l.b16 %v3302
    %v3627 = vunpack.c.h.b16 %v3302
    %v3628 = vunpack.c.l.b16 %v3303
    %v3629 = vunpack.c.h.b16 %v3303
    %v3630 = vunpack.c.l.b16 %v3304
    %v3631 = vunpack.c.h.b16 %v3304
    %v3632 = vunpack.c.l.b16 %v3305
    %v3633 = vunpack.c.h.b16 %v3305
    %v3634 = vunpack.c.l.b16 %v3306
    %v3635 = vunpack.c.h.b16 %v3306
    %v3636 = vunpack.c.l.b16 %v3307
    %v3637 = vunpack.c.h.b16 %v3307
    %v3638 = vunpack.c.l.b16 %v3308
    %v3639 = vunpack.c.h.b16 %v3308
    %v3640 = vunpack.c.l.b16 %v3309
    %v3641 = vunpack.c.h.b16 %v3309
    %v3642 = vunpack.c.l.b16 %v3310
    %v3643 = vunpack.c.h.b16 %v3310
    %v3644 = vunpack.c.l.b16 %v3311
    %v3645 = vunpack.c.h.b16 %v3311
    %v3646 = vunpack.c.l.b16 %v3312
    %v3647 = vunpack.c.h.b16 %v3312
    %v3648 = vunpack.c.l.b16 %v3313
    %v3649 = vunpack.c.h.b16 %v3313
    %v3650 = vunpack.c.l.b16 %v3314
    %v3651 = vunpack.c.h.b16 %v3314
    %v3652 = vunpack.c.l.b16 %v3315
    %v3653 = vunpack.c.h.b16 %v3315
    %v3654 = vunpack.c.l.b16 %v3316
    %v3655 = vunpack.c.h.b16 %v3316
    %v3656 = vunpack.c.l.b16 %v3317
    %v3657 = vunpack.c.h.b16 %v3317
    %v3658 = vunpack.c.l.b16 %v3318
    %v3659 = vunpack.c.h.b16 %v3318
    %v3660 = vunpack.c.l.b16 %v3319
    %v3661 = vunpack.c.h.b16 %v3319
    %v3662 = vunpack.c.l.b16 %v3320
    %v3663 = vunpack.c.h.b16 %v3320
    %v3664 = vunpack.c.l.b16 %v3321
    %v3665 = vunpack.c.h.b16 %v3321
    %v3666 = vunpack.c.l.b16 %v3322
    %v3667 = vunpack.c.h.b16 %v3322
    %v3668 = vunpack.c.l.b16 %v3323
    %v3669 = vunpack.c.h.b16 %v3323
    %v3670 = vunpack.c.l.b16 %v3324
    %v3671 = vunpack.c.h.b16 %v3324
    %v3672 = vunpack.c.l.b16 %v3325
    %v3673 = vunpack.c.h.b16 %v3325
    %v3674 = vunpack.c.l.b16 %v3326
    %v3675 = vunpack.c.h.b16 %v3326
    %v3676 = vunpack.c.l.b16 %v3327
    %v3677 = vunpack.c.h.b16 %v3327
    %v3678 = vunpack.c.l.b16 %v3328
    %v3679 = vunpack.c.h.b16 %v3328
    %v3680 = vunpack.c.l.b16 %v3329
    %v3681 = vunpack.c.h.b16 %v3329
    %v3682 = vunpack.c.l.b16 %v3330
    %v3683 = vunpack.c.h.b16 %v3330
    %v3684 = vunpack.c.l.b16 %v3331
    %v3685 = vunpack.c.h.b16 %v3331
    %v3686 = vunpack.c.l.b16 %v3332
    %v3687 = vunpack.c.h.b16 %v3332
    %v3688 = vunpack.c.l.b16 %v3333
    %v3689 = vunpack.c.h.b16 %v3333
    %v3690 = vunpack.c.l.b16 %v3334
    %v3691 = vunpack.c.h.b16 %v3334
    %v3692 = vunpack.c.l.b16 %v3335
    %v3693 = vunpack.c.h.b16 %v3335
    %v3694 = vunpack.c.l.b16 %v3336
    %v3695 = vunpack.c.h.b16 %v3336
    %v3696 = vunpack.c.l.b16 %v3337
    %v3697 = vunpack.c.h.b16 %v3337
    %v3698 = vunpack.c.l.b16 %v3338
    %v3699 = vunpack.c.h.b16 %v3338
    %v3700 = vunpack.c.l.b16 %v3339
    %v3701 = vunpack.c.h.b16 %v3339
    %v3702 = vunpack.c.l.b16 %v3340
    %v3703 = vunpack.c.h.b16 %v3340
    %v3704 = vunpack.c.l.b16 %v3341
    %v3705 = vunpack.c.h.b16 %v3341
    %v3706 = vunpack.c.l.b16 %v3342
    %v3707 = vunpack.c.h.b16 %v3342
    %v3708 = vunpack.c.l.b16 %v3343
    %v3709 = vunpack.c.h.b16 %v3343
    %v3710 = vunpack.c.l.b16 %v3344
    %v3711 = vunpack.c.h.b16 %v3344
    %v3712 = vunpack.c.l.b16 %v3345
    %v3713 = vunpack.c.h.b16 %v3345
    %v3714 = vunpack.c.l.b16 %v3346
    %v3715 = vunpack.c.h.b16 %v3346
    %v3716 = vunpack.c.l.b16 %v3347
    %v3717 = vunpack.c.h.b16 %v3347
    %v3718 = vunpack.c.l.b16 %v3348
    %v3719 = vunpack.c.h.b16 %v3348
    %v3720 = vunpack.c.l.b16 %v3349
    %v3721 = vunpack.c.h.b16 %v3349
    %v3722 = vunpack.c.l.b16 %v3350
    %v3723 = vunpack.c.h.b16 %v3350
    %v3724 = vunpack.c.l.b16 %v3351
    %v3725 = vunpack.c.h.b16 %v3351
    %v3726 = vunpack.c.l.b16 %v3352
    %v3727 = vunpack.c.h.b16 %v3352
    %v3728 = vunpack.c.l.b16 %v3353
    %v3729 = vunpack.c.h.b16 %v3353
    %v3730 = vunpack.c.l.b16 %v3354
    %v3731 = vunpack.c.h.b16 %v3354
    %v3732 = vunpack.c.l.b16 %v3355
    %v3733 = vunpack.c.h.b16 %v3355
    %v3734 = vunpack.c.l.b16 %v3356
    %v3735 = vunpack.c.h.b16 %v3356
    %v3736 = vunpack.c.l.b16 %v3357
    %v3737 = vunpack.c.h.b16 %v3357
    %v3738 = vunpack.c.l.b16 %v3358
    %v3739 = vunpack.c.h.b16 %v3358
    %v3740 = vunpack.c.l.b16 %v3359
    %v3741 = vunpack.c.h.b16 %v3359
    %v3742 = vunpack.c.l.b16 %v3360
    %v3743 = vunpack.c.h.b16 %v3360
    %v3744 = vunpack.c.l.b16 %v3361
    %v3745 = vunpack.c.h.b16 %v3361
    %v3746 = vpack.c.b16 %v3494, %v3490
    %v3747 = vpack.c.b16 %v3495, %v3491
    %v3748 = vpack.c.b16 %v3496, %v3492
    %v3749 = vpack.c.b16 %v3497, %v3493
    %v3750 = vpack.c.b16 %v3502, %v3498
    %v3751 = vpack.c.b16 %v3503, %v3499
    %v3752 = vpack.c.b16 %v3504, %v3500
    %v3753 = vpack.c.b16 %v3505, %v3501
    %v3754 = vpack.c.b16 %v3510, %v3506
    %v3755 = vpack.c.b16 %v3511, %v3507
    %v3756 = vpack.c.b16 %v3512, %v3508
    %v3757 = vpack.c.b16 %v3513, %v3509
    %v3758 = vpack.c.b16 %v3518, %v3514
    %v3759 = vpack.c.b16 %v3519, %v3515
    %v3760 = vpack.c.b16 %v3520, %v3516
    %v3761 = vpack.c.b16 %v3521, %v3517
    %v3762 = vpack.c.b16 %v3526, %v3522
    %v3763 = vpack.c.b16 %v3527, %v3523
    %v3764 = vpack.c.b16 %v3528, %v3524
    %v3765 = vpack.c.b16 %v3529, %v3525
    %v3766 = vpack.c.b16 %v3534, %v3530
    %v3767 = vpack.c.b16 %v3535, %v3531
    %v3768 = vpack.c.b16 %v3536, %v3532
    %v3769 = vpack.c.b16 %v3537, %v3533
    %v3770 = vpack.c.b16 %v3542, %v3538
    %v3771 = vpack.c.b16 %v3543, %v3539
    %v3772 = vpack.c.b16 %v3544, %v3540
    %v3773 = vpack.c.b16 %v3545, %v3541
    %v3774 = vpack.c.b16 %v3550, %v3546
    %v3775 = vpack.c.b16 %v3551, %v3547
    %v3776 = vpack.c.b16 %v3552, %v3548
    %v3777 = vpack.c.b16 %v3553, %v3549
    %v3778 = vpack.c.b16 %v3558, %v3554
    %v3779 = vpack.c.b16 %v3559, %v3555
    %v3780 = vpack.c.b16 %v3560, %v3556
    %v3781 = vpack.c.b16 %v3561, %v3557
    %v3782 = vpack.c.b16 %v3566, %v3562
    %v3783 = vpack.c.b16 %v3567, %v3563
    %v3784 = vpack.c.b16 %v3568, %v3564
    %v3785 = vpack.c.b16 %v3569, %v3565
    %v3786 = vpack.c.b16 %v3574, %v3570
    %v3787 = vpack.c.b16 %v3575, %v3571
    %v3788 = vpack.c.b16 %v3576, %v3572
    %v3789 = vpack.c.b16 %v3577, %v3573
    %v3790 = vpack.c.b16 %v3582, %v3578
    %v3791 = vpack.c.b16 %v3583, %v3579
    %v3792 = vpack.c.b16 %v3584, %v3580
    %v3793 = vpack.c.b16 %v3585, %v3581
    %v3794 = vpack.c.b16 %v3590, %v3586
    %v3795 = vpack.c.b16 %v3591, %v3587
    %v3796 = vpack.c.b16 %v3592, %v3588
    %v3797 = vpack.c.b16 %v3593, %v3589
    %v3798 = vpack.c.b16 %v3598, %v3594
    %v3799 = vpack.c.b16 %v3599, %v3595
    %v3800 = vpack.c.b16 %v3600, %v3596
    %v3801 = vpack.c.b16 %v3601, %v3597
    %v3802 = vpack.c.b16 %v3606, %v3602
    %v3803 = vpack.c.b16 %v3607, %v3603
    %v3804 = vpack.c.b16 %v3608, %v3604
    %v3805 = vpack.c.b16 %v3609, %v3605
    %v3806 = vpack.c.b16 %v3614, %v3610
    %v3807 = vpack.c.b16 %v3615, %v3611
    %v3808 = vpack.c.b16 %v3616, %v3612
    %v3809 = vpack.c.b16 %v3617, %v3613
    %v3810 = vpack.c.b16 %v3622, %v3618
    %v3811 = vpack.c.b16 %v3623, %v3619
    %v3812 = vpack.c.b16 %v3624, %v3620
    %v3813 = vpack.c.b16 %v3625, %v3621
    %v3814 = vpack.c.b16 %v3630, %v3626
    %v3815 = vpack.c.b16 %v3631, %v3627
    %v3816 = vpack.c.b16 %v3632, %v3628
    %v3817 = vpack.c.b16 %v3633, %v3629
    %v3818 = vpack.c.b16 %v3638, %v3634
    %v3819 = vpack.c.b16 %v3639, %v3635
    %v3820 = vpack.c.b16 %v3640, %v3636
    %v3821 = vpack.c.b16 %v3641, %v3637
    %v3822 = vpack.c.b16 %v3646, %v3642
    %v3823 = vpack.c.b16 %v3647, %v3643
    %v3824 = vpack.c.b16 %v3648, %v3644
    %v3825 = vpack.c.b16 %v3649, %v3645
    %v3826 = vpack.c.b16 %v3654, %v3650
    %v3827 = vpack.c.b16 %v3655, %v3651
    %v3828 = vpack.c.b16 %v3656, %v3652
    %v3829 = vpack.c.b16 %v3657, %v3653
    %v3830 = vpack.c.b16 %v3662, %v3658
    %v3831 = vpack.c.b16 %v3663, %v3659
    %v3832 = vpack.c.b16 %v3664, %v3660
    %v3833 = vpack.c.b16 %v3665, %v3661
    %v3834 = vpack.c.b16 %v3670, %v3666
    %v3835 = vpack.c.b16 %v3671, %v3667
    %v3836 = vpack.c.b16 %v3672, %v3668
    %v3837 = vpack.c.b16 %v3673, %v3669
    %v3838 = vpack.c.b16 %v3678, %v3674
    %v3839 = vpack.c.b16 %v3679, %v3675
    %v3840 = vpack.c.b16 %v3680, %v3676
    %v3841 = vpack.c.b16 %v3681, %v3677
    %v3842 = vpack.c.b16 %v3686, %v3682
    %v3843 = vpack.c.b16 %v3687, %v3683
    %v3844 = vpack.c.b16 %v3688, %v3684
    %v3845 = vpack.c.b16 %v3689, %v3685
    %v3846 = vpack.c.b16 %v3694, %v3690
    %v3847 = vpack.c.b16 %v3695, %v3691
    %v3848 = vpack.c.b16 %v3696, %v3692
    %v3849 = vpack.c.b16 %v3697, %v3693
    %v3850 = vpack.c.b16 %v3702, %v3698
    %v3851 = vpack.c.b16 %v3703, %v3699
    %v3852 = vpack.c.b16 %v3704, %v3700
    %v3853 = vpack.c.b16 %v3705, %v3701
    %v3854 = vpack.c.b16 %v3710, %v3706
    %v3855 = vpack.c.b16 %v3711, %v3707
    %v3856 = vpack.c.b16 %v3712, %v3708
    %v3857 = vpack.c.b16 %v3713, %v3709
    %v3858 = vpack.c.b16 %v3718, %v3714
    %v3859 = vpack.c.b16 %v3719, %v3715
    %v3860 = vpack.c.b16 %v3720, %v3716
    %v3861 = vpack.c.b16 %v3721, %v3717
    %v3862 = vpack.c.b16 %v3726, %v3722
    %v3863 = vpack.c.b16 %v3727, %v3723
    %v3864 = vpack.c.b16 %v3728, %v3724
    %v3865 = vpack.c.b16 %v3729, %v3725
    %v3866 = vpack.c.b16 %v3734, %v3730
    %v3867 = vpack.c.b16 %v3735, %v3731
    %v3868 = vpack.c.b16 %v3736, %v3732
    %v3869 = vpack.c.b16 %v3737, %v3733
    %v3870 = vpack.c.b16 %v3742, %v3738
    %v3871 = vpack.c.b16 %v3743, %v3739
    %v3872 = vpack.c.b16 %v3744, %v3740
    %v3873 = vpack.c.b16 %v3745, %v3741
    %4002 = vmatprep.subr.bf16.mxu0 %v3747
    %4003 = vmatpush1.bf16.msra.mxu0 %v3746
    %4004 = vmatprep.subr.bf16.mxu0 %v3751
    %4005 = vmatpush1.bf16.msra.mxu0 %v3750
    %4006 = vmatprep.subr.bf16.mxu0 %v3755
    %4007 = vmatpush1.bf16.msra.mxu0 %v3754
    %4008 = vmatprep.subr.bf16.mxu0 %v3759
    %4009 = vmatpush1.bf16.msra.mxu0 %v3758
    %4010 = vmatprep.subr.bf16.mxu0 %v3763
    %4011 = vmatpush1.bf16.msra.mxu0 %v3762
    %4012 = vmatprep.subr.bf16.mxu0 %v3767
    %4013 = vmatpush1.bf16.msra.mxu0 %v3766
    %4014 = vmatprep.subr.bf16.mxu0 %v3771
    %4015 = vmatpush1.bf16.msra.mxu0 %v3770
    %4016 = vmatprep.subr.bf16.mxu0 %v3775
    %4017 = vmatpush1.bf16.msra.mxu0 %v3774
    %4018 = vmatprep.subr.bf16.mxu0 %v3779
    %4019 = vmatpush1.bf16.msra.mxu0 %v3778
    %4020 = vmatprep.subr.bf16.mxu0 %v3783
    %4021 = vmatpush1.bf16.msra.mxu0 %v3782
    %4022 = vmatprep.subr.bf16.mxu0 %v3787
    %4023 = vmatpush1.bf16.msra.mxu0 %v3786
    %4024 = vmatprep.subr.bf16.mxu0 %v3791
    %4025 = vmatpush1.bf16.msra.mxu0 %v3790
    %4026 = vmatprep.subr.bf16.mxu0 %v3795
    %4027 = vmatpush1.bf16.msra.mxu0 %v3794
    %4028 = vmatprep.subr.bf16.mxu0 %v3799
    %4029 = vmatpush1.bf16.msra.mxu0 %v3798
    %4030 = vmatprep.subr.bf16.mxu0 %v3803
    %4031 = vmatpush1.bf16.msra.mxu0 %v3802
    %4032 = vmatprep.subr.bf16.mxu0 %v3807
    %4033 = vmatpush1.bf16.msra.mxu0 %v3806
    %4034 = vmatprep.mubr.bf16.mxu0 %v3206
    %4035 = vmatmul.mubr.bf16.gmra.mrb[0].mxu0 %v3203
    %v4036 = vpop.f32.mrb[0].mxu0
    %v4037 = vadd.f32 0.0, %v4036
    %v4038 = vpop.f32.mrb[0].mxu0
    %v4039 = vadd.f32 0.0, %v4038
    %v4040 = vpop.f32.mrb[0].mxu0
    %v4041 = vadd.f32 0.0, %v4040
    %v4042 = vpop.f32.mrb[0].mxu0
    %v4043 = vadd.f32 0.0, %v4042
    %4044 = vmatprep.mubr.bf16.mxu0 %v3218
    %4045 = vmatmul.mubr.bf16.gmra.mrb[0].mxu0 %v3215
    %v4046 = vpop.f32.mrb[0].mxu0
    %v4047 = vadd.f32 0.0, %v4046
    %v4048 = vpop.f32.mrb[0].mxu0
    %v4049 = vadd.f32 0.0, %v4048
    %v4050 = vpop.f32.mrb[0].mxu0
    %v4051 = vadd.f32 0.0, %v4050
    %v4052 = vpop.f32.mrb[0].mxu0
    %v4053 = vadd.f32 0.0, %v4052
    %4054 = vdwg.mxu0
    %4055 = vmatprep.subr.bf16.mxu0 %v3811
    %4056 = vmatpush1.bf16.msra.mxu0 %v3810
    %4057 = vmatprep.subr.bf16.mxu0 %v3815
    %4058 = vmatpush1.bf16.msra.mxu0 %v3814
    %4059 = vmatprep.subr.bf16.mxu0 %v3819
    %4060 = vmatpush1.bf16.msra.mxu0 %v3818
    %4061 = vmatprep.subr.bf16.mxu0 %v3823
    %4062 = vmatpush1.bf16.msra.mxu0 %v3822
    %4063 = vmatprep.subr.bf16.mxu0 %v3827
    %4064 = vmatpush1.bf16.msra.mxu0 %v3826
    %4065 = vmatprep.subr.bf16.mxu0 %v3831
    %4066 = vmatpush1.bf16.msra.mxu0 %v3830
    %4067 = vmatprep.subr.bf16.mxu0 %v3835
    %4068 = vmatpush1.bf16.msra.mxu0 %v3834
    %4069 = vmatprep.subr.bf16.mxu0 %v3839
    %4070 = vmatpush1.bf16.msra.mxu0 %v3838
    %4071 = vmatprep.subr.bf16.mxu0 %v3843
    %4072 = vmatpush1.bf16.msra.mxu0 %v3842
    %4073 = vmatprep.subr.bf16.mxu0 %v3847
    %4074 = vmatpush1.bf16.msra.mxu0 %v3846
    %4075 = vmatprep.subr.bf16.mxu0 %v3851
    %4076 = vmatpush1.bf16.msra.mxu0 %v3850
    %4077 = vmatprep.subr.bf16.mxu0 %v3855
    %4078 = vmatpush1.bf16.msra.mxu0 %v3854
    %4079 = vmatprep.subr.bf16.mxu0 %v3859
    %4080 = vmatpush1.bf16.msra.mxu0 %v3858
    %4081 = vmatprep.subr.bf16.mxu0 %v3863
    %4082 = vmatpush1.bf16.msra.mxu0 %v3862
    %4083 = vmatprep.subr.bf16.mxu0 %v3867
    %4084 = vmatpush1.bf16.msra.mxu0 %v3866
    %4085 = vmatprep.subr.bf16.mxu0 %v3871
    %4086 = vmatpush1.bf16.msra.mxu0 %v3870
    %4087 = vmatprep.mubr.bf16.mxu0 %v3212
    %4088 = vmatmul.mubr.bf16.gmra.mrb[0].mxu0 %v3209
    %v4089 = vpop.f32.mrb[0].mxu0
    %v4090 = vadd.f32 %v4037, %v4089
    %v4091 = vpop.f32.mrb[0].mxu0
    %v4092 = vadd.f32 %v4039, %v4091
    %v4093 = vpop.f32.mrb[0].mxu0
    %v4094 = vadd.f32 %v4041, %v4093
    %v4095 = vpop.f32.mrb[0].mxu0
    %v4096 = vadd.f32 %v4043, %v4095
    %4097 = vmatprep.mubr.bf16.mxu0 %v3224
    %4098 = vmatmul.mubr.bf16.gmra.mrb[0].mxu0 %v3221
    %v4099 = vpop.f32.mrb[0].mxu0
    %v4100 = vadd.f32 %v4047, %v4099
    %v4101 = vpop.f32.mrb[0].mxu0
    %v4102 = vadd.f32 %v4049, %v4101
    %v4103 = vpop.f32.mrb[0].mxu0
    %v4104 = vadd.f32 %v4051, %v4103
    %v4105 = vpop.f32.mrb[0].mxu0
    %v4106 = vadd.f32 %v4053, %v4105
    %4107 = vdwg.mxu0
    %4108 = vmatprep.subr.bf16.mxu0 %v3749
    %4109 = vmatpush1.bf16.msra.mxu0 %v3748
    %4110 = vmatprep.subr.bf16.mxu0 %v3753
    %4111 = vmatpush1.bf16.msra.mxu0 %v3752
    %4112 = vmatprep.subr.bf16.mxu0 %v3757
    %4113 = vmatpush1.bf16.msra.mxu0 %v3756
    %4114 = vmatprep.subr.bf16.mxu0 %v3761
    %4115 = vmatpush1.bf16.msra.mxu0 %v3760
    %4116 = vmatprep.subr.bf16.mxu0 %v3765
    %4117 = vmatpush1.bf16.msra.mxu0 %v3764
    %4118 = vmatprep.subr.bf16.mxu0 %v3769
    %4119 = vmatpush1.bf16.msra.mxu0 %v3768
    %4120 = vmatprep.subr.bf16.mxu0 %v3773
    %4121 = vmatpush1.bf16.msra.mxu0 %v3772
    %4122 = vmatprep.subr.bf16.mxu0 %v3777
    %4123 = vmatpush1.bf16.msra.mxu0 %v3776
    %4124 = vmatprep.subr.bf16.mxu0 %v3781
    %4125 = vmatpush1.bf16.msra.mxu0 %v3780
    %4126 = vmatprep.subr.bf16.mxu0 %v3785
    %4127 = vmatpush1.bf16.msra.mxu0 %v3784
    %4128 = vmatprep.subr.bf16.mxu0 %v3789
    %4129 = vmatpush1.bf16.msra.mxu0 %v3788
    %4130 = vmatprep.subr.bf16.mxu0 %v3793
    %4131 = vmatpush1.bf16.msra.mxu0 %v3792
    %4132 = vmatprep.subr.bf16.mxu0 %v3797
    %4133 = vmatpush1.bf16.msra.mxu0 %v3796
    %4134 = vmatprep.subr.bf16.mxu0 %v3801
    %4135 = vmatpush1.bf16.msra.mxu0 %v3800
    %4136 = vmatprep.subr.bf16.mxu0 %v3805
    %4137 = vmatpush1.bf16.msra.mxu0 %v3804
    %4138 = vmatprep.subr.bf16.mxu0 %v3809
    %4139 = vmatpush1.bf16.msra.mxu0 %v3808
    %4140 = vmatprep.mubr.bf16.mxu0 %v3206
    %4141 = vmatmul.mubr.bf16.gmra.mrb[0].mxu0 %v3203
    %v4142 = vpop.f32.mrb[0].mxu0
    %v4143 = vadd.f32 0.0, %v4142
    %v4144 = vpop.f32.mrb[0].mxu0
    %v4145 = vadd.f32 0.0, %v4144
    %v4146 = vpop.f32.mrb[0].mxu0
    %v4147 = vadd.f32 0.0, %v4146
    %v4148 = vpop.f32.mrb[0].mxu0
    %v4149 = vadd.f32 0.0, %v4148
    %4150 = vmatprep.mubr.bf16.mxu0 %v3218
    %4151 = vmatmul.mubr.bf16.gmra.mrb[0].mxu0 %v3215
    %v4152 = vpop.f32.mrb[0].mxu0
    %v4153 = vadd.f32 0.0, %v4152
    %v4154 = vpop.f32.mrb[0].mxu0
    %v4155 = vadd.f32 0.0, %v4154
    %v4156 = vpop.f32.mrb[0].mxu0
    %v4157 = vadd.f32 0.0, %v4156
    %v4158 = vpop.f32.mrb[0].mxu0
    %v4159 = vadd.f32 0.0, %v4158
    %4160 = vdwg.mxu0
    %4161 = vmatprep.subr.bf16.mxu0 %v3813
    %4162 = vmatpush1.bf16.msra.mxu0 %v3812
    %4163 = vmatprep.subr.bf16.mxu0 %v3817
    %4164 = vmatpush1.bf16.msra.mxu0 %v3816
    %4165 = vmatprep.subr.bf16.mxu0 %v3821
    %4166 = vmatpush1.bf16.msra.mxu0 %v3820
    %4167 = vmatprep.subr.bf16.mxu0 %v3825
    %4168 = vmatpush1.bf16.msra.mxu0 %v3824
    %4169 = vmatprep.subr.bf16.mxu0 %v3829
    %4170 = vmatpush1.bf16.msra.mxu0 %v3828
    %4171 = vmatprep.subr.bf16.mxu0 %v3833
    %4172 = vmatpush1.bf16.msra.mxu0 %v3832
    %4173 = vmatprep.subr.bf16.mxu0 %v3837
    %4174 = vmatpush1.bf16.msra.mxu0 %v3836
    %4175 = vmatprep.subr.bf16.mxu0 %v3841
    %4176 = vmatpush1.bf16.msra.mxu0 %v3840
    %4177 = vmatprep.subr.bf16.mxu0 %v3845
    %4178 = vmatpush1.bf16.msra.mxu0 %v3844
    %4179 = vmatprep.subr.bf16.mxu0 %v3849
    %4180 = vmatpush1.bf16.msra.mxu0 %v3848
    %4181 = vmatprep.subr.bf16.mxu0 %v3853
    %4182 = vmatpush1.bf16.msra.mxu0 %v3852
    %4183 = vmatprep.subr.bf16.mxu0 %v3857
    %4184 = vmatpush1.bf16.msra.mxu0 %v3856
    %4185 = vmatprep.subr.bf16.mxu0 %v3861
    %4186 = vmatpush1.bf16.msra.mxu0 %v3860
    %4187 = vmatprep.subr.bf16.mxu0 %v3865
    %4188 = vmatpush1.bf16.msra.mxu0 %v3864
    %4189 = vmatprep.subr.bf16.mxu0 %v3869
    %4190 = vmatpush1.bf16.msra.mxu0 %v3868
    %4191 = vmatprep.subr.bf16.mxu0 %v3873
    %4192 = vmatpush1.bf16.msra.mxu0 %v3872
    %4193 = vmatprep.mubr.bf16.mxu0 %v3212
    %4194 = vmatmul.mubr.bf16.gmra.mrb[0].mxu0 %v3209
    %v4195 = vpop.f32.mrb[0].mxu0
    %v4196 = vadd.f32 %v4143, %v4195
    %v4197 = vpop.f32.mrb[0].mxu0
    %v4198 = vadd.f32 %v4145, %v4197
    %v4199 = vpop.f32.mrb[0].mxu0
    %v4200 = vadd.f32 %v4147, %v4199
    %v4201 = vpop.f32.mrb[0].mxu0
    %v4202 = vadd.f32 %v4149, %v4201
    %4203 = vmatprep.mubr.bf16.mxu0 %v3224
    %4204 = vmatmul.mubr.bf16.gmra.mrb[0].mxu0 %v3221
    %v4205 = vpop.f32.mrb[0].mxu0
    %v4206 = vadd.f32 %v4153, %v4205
    %v4207 = vpop.f32.mrb[0].mxu0
    %v4208 = vadd.f32 %v4155, %v4207
    %v4209 = vpop.f32.mrb[0].mxu0
    %v4210 = vadd.f32 %v4157, %v4209
    %v4211 = vpop.f32.mrb[0].mxu0
    %v4212 = vadd.f32 %v4159, %v4211
    %4213 = vdwg.mxu0
    %v4214 = vadd.f32 %v3060, %v4090
    %v4215 = vadd.f32 %v3062, %v4092
    %v4216 = vadd.f32 %v3166, %v4196
    %v4217 = vadd.f32 %v3168, %v4198
    %v4218 = vadd.f32 %v3064, %v4094
    %v4219 = vadd.f32 %v3066, %v4096
    %v4220 = vadd.f32 %v3170, %v4200
    %v4221 = vadd.f32 %v3172, %v4202
    %v4222 = vadd.f32 %v3070, %v4100
    %v4223 = vadd.f32 %v3072, %v4102
    %v4224 = vadd.f32 %v3176, %v4206
    %v4225 = vadd.f32 %v3178, %v4208
    %v4226 = vadd.f32 %v3074, %v4104
    %v4227 = vadd.f32 %v3076, %v4106
    %v4228 = vadd.f32 %v3180, %v4210
    %v4229 = vadd.f32 %v3182, %v4212
    %v4230 = vadd.f32 %v4214, %v4218
    %v4231 = vadd.f32 %v4230, %v4222
    %v4232 = vadd.f32 %v4231, %v4226
    %v4233 = vrot.slane %v4232, 4
    %v4234 = vadd.f32 %v4232, %v4233
    %v4235 = vrot.slane %v4234, 2
    %v4236 = vadd.f32 %v4234, %v4235
    %v4237 = vrot.slane %v4236, 1
    %v4238 = vadd.f32 %v4236, %v4237
    %v4239 = vadd.f32 %v4215, %v4219
    %v4240 = vadd.f32 %v4239, %v4223
    %v4241 = vadd.f32 %v4240, %v4227
    %v4242 = vrot.slane %v4241, 4
    %v4243 = vadd.f32 %v4241, %v4242
    %v4244 = vrot.slane %v4243, 2
    %v4245 = vadd.f32 %v4243, %v4244
    %v4246 = vrot.slane %v4245, 1
    %v4247 = vadd.f32 %v4245, %v4246
    %v4248 = vadd.f32 %v4216, %v4220
    %v4249 = vadd.f32 %v4248, %v4224
    %v4250 = vadd.f32 %v4249, %v4228
    %v4251 = vrot.slane %v4250, 4
    %v4252 = vadd.f32 %v4250, %v4251
    %v4253 = vrot.slane %v4252, 2
    %v4254 = vadd.f32 %v4252, %v4253
    %v4255 = vrot.slane %v4254, 1
    %v4256 = vadd.f32 %v4254, %v4255
    %v4257 = vadd.f32 %v4217, %v4221
    %v4258 = vadd.f32 %v4257, %v4225
    %v4259 = vadd.f32 %v4258, %v4229
    %v4260 = vrot.slane %v4259, 4
    %v4261 = vadd.f32 %v4259, %v4260
    %v4262 = vrot.slane %v4261, 2
    %v4263 = vadd.f32 %v4261, %v4262
    %v4264 = vrot.slane %v4263, 1
    %v4265 = vadd.f32 %v4263, %v4264
    %v4266 = vmul.f32 %v4214, %v4214
    %v4267 = vmul.f32 %v4215, %v4215
    %v4268 = vmul.f32 %v4216, %v4216
    %v4269 = vmul.f32 %v4217, %v4217
    %v4270 = vmul.f32 %v4218, %v4218
    %v4271 = vmul.f32 %v4219, %v4219
    %v4272 = vmul.f32 %v4220, %v4220
    %v4273 = vmul.f32 %v4221, %v4221
    %v4274 = vmul.f32 %v4222, %v4222
    %v4275 = vmul.f32 %v4223, %v4223
    %v4276 = vmul.f32 %v4224, %v4224
    %v4277 = vmul.f32 %v4225, %v4225
    %v4278 = vmul.f32 %v4226, %v4226
    %v4279 = vmul.f32 %v4227, %v4227
    %v4280 = vmul.f32 %v4228, %v4228
    %v4281 = vmul.f32 %v4229, %v4229
    %v4282 = vadd.f32 %v4266, %v4270
    %v4283 = vadd.f32 %v4282, %v4274
    %v4284 = vadd.f32 %v4283, %v4278
    %v4285 = vrot.slane %v4284, 4
    %v4286 = vadd.f32 %v4284, %v4285
    %v4287 = vrot.slane %v4286, 2
    %v4288 = vadd.f32 %v4286, %v4287
    %v4289 = vrot.slane %v4288, 1
    %v4290 = vadd.f32 %v4288, %v4289
    %v4291 = vadd.f32 %v4267, %v4271
    %v4292 = vadd.f32 %v4291, %v4275
    %v4293 = vadd.f32 %v4292, %v4279
    %v4294 = vrot.slane %v4293, 4
    %v4295 = vadd.f32 %v4293, %v4294
    %v4296 = vrot.slane %v4295, 2
    %v4297 = vadd.f32 %v4295, %v4296
    %v4298 = vrot.slane %v4297, 1
    %v4299 = vadd.f32 %v4297, %v4298
    %v4300 = vadd.f32 %v4268, %v4272
    %v4301 = vadd.f32 %v4300, %v4276
    %v4302 = vadd.f32 %v4301, %v4280
    %v4303 = vrot.slane %v4302, 4
    %v4304 = vadd.f32 %v4302, %v4303
    %v4305 = vrot.slane %v4304, 2
    %v4306 = vadd.f32 %v4304, %v4305
    %v4307 = vrot.slane %v4306, 1
    %v4308 = vadd.f32 %v4306, %v4307
    %v4309 = vadd.f32 %v4269, %v4273
    %v4310 = vadd.f32 %v4309, %v4277
    %v4311 = vadd.f32 %v4310, %v4281
    %v4312 = vrot.slane %v4311, 4
    %v4313 = vadd.f32 %v4311, %v4312
    %v4314 = vrot.slane %v4313, 2
    %v4315 = vadd.f32 %v4313, %v4314
    %v4316 = vrot.slane %v4315, 1
    %v4317 = vadd.f32 %v4315, %v4316
    %v4318 = vsel %vm499, %v4238, %v4290
    %v4319 = vsel %vm499, %v4247, %v4299
    %v4320 = vsel %vm499, %v4256, %v4308
    %v4321 = vsel %vm499, %v4265, %v4317
    %4322 = vmatprep.subr.mxu0 0.0
    %4323 = vmatpush1.msra.mxu0 %v504
    %4324 = vmatprep.subr.mxu0 0.0
    %4325 = vmatpush1.msra.mxu0 %v505
    %4326 = vmatprep.subr.mxu0 0.0
    %4327 = vmatpush1.msra.mxu0 %v506
    %4328 = vmatprep.subr.mxu0 0.0
    %4329 = vmatpush1.msra.mxu0 %v507
    %4330 = vmatprep.subr.mxu0 0.0
    %4331 = vmatpush1.msra.mxu0 %v508
    %4332 = vmatprep.subr.mxu0 0.0
    %4333 = vmatpush1.msra.mxu0 %v509
    %4334 = vmatprep.subr.mxu0 0.0
    %4335 = vmatpush1.msra.mxu0 %v510
    %4336 = vmatprep.subr.mxu0 0.0
    %4337 = vmatpush1.msra.mxu0 %v511
    %4338 = vmatprep.subr.mxu0 0.0
    %4339 = vmatpush1.msra.mxu0 %v512
    %4340 = vmatprep.subr.mxu0 0.0
    %4341 = vmatpush1.msra.mxu0 %v513
    %4342 = vmatprep.subr.mxu0 0.0
    %4343 = vmatpush1.msra.mxu0 %v514
    %4344 = vmatprep.subr.mxu0 0.0
    %4345 = vmatpush1.msra.mxu0 %v515
    %4346 = vmatprep.subr.mxu0 0.0
    %4347 = vmatpush1.msra.mxu0 %v516
    %4348 = vmatprep.subr.mxu0 0.0
    %4349 = vmatpush1.msra.mxu0 %v517
    %4350 = vmatprep.subr.mxu0 0.0
    %4351 = vmatpush1.msra.mxu0 %v518
    %4352 = vmatprep.subr.mxu0 0.0
    %4353 = vmatpush1.msra.mxu0 %v519
    %4354 = vmatprep.subr.mxu0 0.0
    %4355 = vmatpush1.msra.mxu0 %v520
    %4356 = vmatprep.subr.mxu0 0.0
    %4357 = vmatpush1.msra.mxu0 %v521
    %4358 = vmatprep.subr.mxu0 0.0
    %4359 = vmatpush1.msra.mxu0 %v522
    %4360 = vmatprep.subr.mxu0 0.0
    %4361 = vmatpush1.msra.mxu0 %v523
    %4362 = vmatprep.subr.mxu0 0.0
    %4363 = vmatpush1.msra.mxu0 %v524
    %4364 = vmatprep.subr.mxu0 0.0
    %4365 = vmatpush1.msra.mxu0 %v525
    %4366 = vmatprep.subr.mxu0 0.0
    %4367 = vmatpush1.msra.mxu0 %v526
    %4368 = vmatprep.subr.mxu0 0.0
    %4369 = vmatpush1.msra.mxu0 %v527
    %4370 = vmatprep.subr.mxu0 0.0
    %4371 = vmatpush1.msra.mxu0 %v528
    %4372 = vmatprep.subr.mxu0 0.0
    %4373 = vmatpush1.msra.mxu0 %v529
    %4374 = vmatprep.subr.mxu0 0.0
    %4375 = vmatpush1.msra.mxu0 %v530
    %4376 = vmatprep.subr.mxu0 0.0
    %4377 = vmatpush1.msra.mxu0 %v531
    %4378 = vmatprep.subr.mxu0 0.0
    %4379 = vmatpush1.msra.mxu0 %v532
    %4380 = vmatprep.subr.mxu0 0.0
    %4381 = vmatpush1.msra.mxu0 %v533
    %4382 = vmatprep.subr.mxu0 0.0
    %4383 = vmatpush1.msra.mxu0 %v534
    %4384 = vmatprep.subr.mxu0 0.0
    %4385 = vmatpush1.msra.mxu0 %v535
    %4386 = vmatprep.mubr.f32.mxu0 %v4319
    %4387 = vmatmul.mubr.f32.gmra.mrb[0].mxu0 %v4318
    %v4388 = vpop.f32.mrb[0].mxu0
    %v4389 = vadd.f32 0.0, %v4388
    %v4390 = vpop.f32.mrb[0].mxu0
    %4391 = vdwg.mxu0
    %4392 = vmatprep.subr.mxu0 0.0
    %4393 = vmatpush1.msra.mxu0 %v536
    %4394 = vmatprep.subr.mxu0 0.0
    %4395 = vmatpush1.msra.mxu0 %v537
    %4396 = vmatprep.subr.mxu0 0.0
    %4397 = vmatpush1.msra.mxu0 %v538
    %4398 = vmatprep.subr.mxu0 0.0
    %4399 = vmatpush1.msra.mxu0 %v539
    %4400 = vmatprep.subr.mxu0 0.0
    %4401 = vmatpush1.msra.mxu0 %v540
    %4402 = vmatprep.subr.mxu0 0.0
    %4403 = vmatpush1.msra.mxu0 %v541
    %4404 = vmatprep.subr.mxu0 0.0
    %4405 = vmatpush1.msra.mxu0 %v542
    %4406 = vmatprep.subr.mxu0 0.0
    %4407 = vmatpush1.msra.mxu0 %v543
    %4408 = vmatprep.subr.mxu0 0.0
    %4409 = vmatpush1.msra.mxu0 %v544
    %4410 = vmatprep.subr.mxu0 0.0
    %4411 = vmatpush1.msra.mxu0 %v545
    %4412 = vmatprep.subr.mxu0 0.0
    %4413 = vmatpush1.msra.mxu0 %v546
    %4414 = vmatprep.subr.mxu0 0.0
    %4415 = vmatpush1.msra.mxu0 %v547
    %4416 = vmatprep.subr.mxu0 0.0
    %4417 = vmatpush1.msra.mxu0 %v548
    %4418 = vmatprep.subr.mxu0 0.0
    %4419 = vmatpush1.msra.mxu0 %v549
    %4420 = vmatprep.subr.mxu0 0.0
    %4421 = vmatpush1.msra.mxu0 %v550
    %4422 = vmatprep.subr.mxu0 0.0
    %4423 = vmatpush1.msra.mxu0 %v551
    %4424 = vmatprep.subr.mxu0 0.0
    %4425 = vmatpush1.msra.mxu0 %v552
    %4426 = vmatprep.subr.mxu0 0.0
    %4427 = vmatpush1.msra.mxu0 %v553
    %4428 = vmatprep.subr.mxu0 0.0
    %4429 = vmatpush1.msra.mxu0 %v554
    %4430 = vmatprep.subr.mxu0 0.0
    %4431 = vmatpush1.msra.mxu0 %v555
    %4432 = vmatprep.subr.mxu0 0.0
    %4433 = vmatpush1.msra.mxu0 %v556
    %4434 = vmatprep.subr.mxu0 0.0
    %4435 = vmatpush1.msra.mxu0 %v557
    %4436 = vmatprep.subr.mxu0 0.0
    %4437 = vmatpush1.msra.mxu0 %v558
    %4438 = vmatprep.subr.mxu0 0.0
    %4439 = vmatpush1.msra.mxu0 %v559
    %4440 = vmatprep.subr.mxu0 0.0
    %4441 = vmatpush1.msra.mxu0 %v560
    %4442 = vmatprep.subr.mxu0 0.0
    %4443 = vmatpush1.msra.mxu0 %v561
    %4444 = vmatprep.subr.mxu0 0.0
    %4445 = vmatpush1.msra.mxu0 %v562
    %4446 = vmatprep.subr.mxu0 0.0
    %4447 = vmatpush1.msra.mxu0 %v563
    %4448 = vmatprep.subr.mxu0 0.0
    %4449 = vmatpush1.msra.mxu0 %v564
    %4450 = vmatprep.subr.mxu0 0.0
    %4451 = vmatpush1.msra.mxu0 %v565
    %4452 = vmatprep.subr.mxu0 0.0
    %4453 = vmatpush1.msra.mxu0 %v566
    %4454 = vmatprep.subr.mxu0 0.0
    %4455 = vmatpush1.msra.mxu0 %v567
    %4456 = vmatprep.mubr.f32.mxu0 %v4321
    %4457 = vmatmul.mubr.f32.gmra.mrb[0].mxu0 %v4320
    %v4458 = vpop.f32.mrb[0].mxu0
    %v4459 = vadd.f32 %v4389, %v4458
    %v4460 = vpop.f32.mrb[0].mxu0
    %4461 = vdwg.mxu0
    %v4462 = vmul.f32 %v4459, 0.001953125
    %v4463 = vmul.f32 %v4462, %v4462
    %v4465 = vrot.slane %v4463, 7
    %v4467 = vsub.f32 %v4462, %v4465
    %v4468 = vld [vmem:[#allocation14] sm:$0x1]
    %v4469 = vadd.f32 %v4467, 1e-05
    %v4470 = vrsqrt.pop %v4469
    %v4473 = vunpack.c.l.s4 1966171168
    %v4474 = vunpack.c.0.s8 %v4473
    %v4475 = vlaneseq
    %v4476 = vshrl.u32 %v4475, 7
    %v4477 = vsub.s32 %v4474, %v4476
    %v4478 = vrot.slane %v4470, %v4477
    %v4479 = vcombine.high %v4478, %v4478
    %v4481 = vunpack.c.l.s4 1966171168
    %v4482 = vunpack.c.0.s8 %v4481
    %v4483 = vlaneseq
    %v4484 = vshrl.u32 %v4483, 7
    %v4485 = vsub.s32 %v4482, %v4484
    %v4486 = vrot.slane %v4479, %v4485
    %v4488 = vmul.f32 %v4468, %v4486
    %v4489 = vld [vmem:[#allocation16] sm:$0x1]
    %v4490 = vmul.f32 %v4462, %v4488
    %v4491 = vsub.f32 %v4489, %v4490
    %v4493 = vlaneseq
    %v4494 = vshrl.u32 %v4493, 7
    %v4495 = vsub.s32 0, %v4494
    %v4496 = vrot.slane %v4491, %v4495
    %v4498 = vsel %vm499, %v4488, %v4496
    %v4500 = vsel %vm761, %v4498, 0
    %4502 = vmatprep.subr.mxu0 %v746
    %4503 = vmatpush1.msra.mxu0 %v745
    %4504 = vmatprep.subr.mxu0 %v750
    %4505 = vmatpush1.msra.mxu0 %v749
    %4506 = vmatprep.subr.mxu0 %v754
    %4507 = vmatpush1.msra.mxu0 %v753
    %4508 = vmatprep.subr.mxu0 %v758
    %4509 = vmatpush1.msra.mxu0 %v757
    %4510 = vmatprep.subr.mxu0 0.0
    %4511 = vmatpush1.msra.mxu0 0.0
    %4512 = vmatprep.subr.mxu0 0.0
    %4513 = vmatpush1.msra.mxu0 0.0
    %4514 = vmatprep.subr.mxu0 0.0
    %4515 = vmatpush1.msra.mxu0 0.0
    %4516 = vmatprep.subr.mxu0 0.0
    %4517 = vmatpush1.msra.mxu0 0.0
    %4518 = vmatprep.subr.mxu0 0.0
    %4519 = vmatpush1.msra.mxu0 0.0
    %4520 = vmatprep.subr.mxu0 0.0
    %4521 = vmatpush1.msra.mxu0 0.0
    %4522 = vmatprep.subr.mxu0 0.0
    %4523 = vmatpush1.msra.mxu0 0.0
    %4524 = vmatprep.subr.mxu0 0.0
    %4525 = vmatpush1.msra.mxu0 0.0
    %4526 = vmatprep.subr.mxu0 0.0
    %4527 = vmatpush1.msra.mxu0 0.0
    %4528 = vmatprep.subr.mxu0 0.0
    %4529 = vmatpush1.msra.mxu0 0.0
    %4530 = vmatprep.subr.mxu0 0.0
    %4531 = vmatpush1.msra.mxu0 0.0
    %4532 = vmatprep.subr.mxu0 0.0
    %4533 = vmatpush1.msra.mxu0 0.0
    %4534 = vmatprep.subr.mxu0 0.0
    %4535 = vmatpush1.msra.mxu0 0.0
    %4536 = vmatprep.subr.mxu0 0.0
    %4537 = vmatpush1.msra.mxu0 0.0
    %4538 = vmatprep.subr.mxu0 0.0
    %4539 = vmatpush1.msra.mxu0 0.0
    %4540 = vmatprep.subr.mxu0 0.0
    %4541 = vmatpush1.msra.mxu0 0.0
    %4542 = vmatprep.subr.mxu0 0.0
    %4543 = vmatpush1.msra.mxu0 0.0
    %4544 = vmatprep.subr.mxu0 0.0
    %4545 = vmatpush1.msra.mxu0 0.0
    %4546 = vmatprep.subr.mxu0 0.0
    %4547 = vmatpush1.msra.mxu0 0.0
    %4548 = vmatprep.subr.mxu0 0.0
    %4549 = vmatpush1.msra.mxu0 0.0
    %4550 = vmatprep.subr.mxu0 0.0
    %4551 = vmatpush1.msra.mxu0 0.0
    %4552 = vmatprep.subr.mxu0 0.0
    %4553 = vmatpush1.msra.mxu0 0.0
    %4554 = vmatprep.subr.mxu0 0.0
    %4555 = vmatpush1.msra.mxu0 0.0
    %4556 = vmatprep.subr.mxu0 0.0
    %4557 = vmatpush1.msra.mxu0 0.0
    %4558 = vmatprep.subr.mxu0 0.0
    %4559 = vmatpush1.msra.mxu0 0.0
    %4560 = vmatprep.subr.mxu0 0.0
    %4561 = vmatpush1.msra.mxu0 0.0
    %4562 = vmatprep.subr.mxu0 0.0
    %4563 = vmatpush1.msra.mxu0 0.0
    %4564 = vmatprep.subr.mxu0 0.0
    %4565 = vmatpush1.msra.mxu0 0.0
    %4566 = vmatprep.mubr.f32.mxu0 0.0
    %4567 = vmatmul.mubr.f32.gmra.mrb[0].mxu0 %v4500
    %v4568 = vpop.f32.mrb[0].mxu0
    %v4569 = vadd.f32 0.0, %v4568
    %v4570 = vpop.f32.mrb[0].mxu0
    %v4571 = vadd.f32 0.0, %v4570
    %4572 = vdwg.mxu0
    %4573 = vmatprep.subr.mxu0 %v748
    %4574 = vmatpush1.msra.mxu0 %v747
    %4575 = vmatprep.subr.mxu0 %v752
    %4576 = vmatpush1.msra.mxu0 %v751
    %4577 = vmatprep.subr.mxu0 %v756
    %4578 = vmatpush1.msra.mxu0 %v755
    %4579 = vmatprep.subr.mxu0 %v760
    %4580 = vmatpush1.msra.mxu0 %v759
    %4581 = vmatprep.subr.mxu0 0.0
    %4582 = vmatpush1.msra.mxu0 0.0
    %4583 = vmatprep.subr.mxu0 0.0
    %4584 = vmatpush1.msra.mxu0 0.0
    %4585 = vmatprep.subr.mxu0 0.0
    %4586 = vmatpush1.msra.mxu0 0.0
    %4587 = vmatprep.subr.mxu0 0.0
    %4588 = vmatpush1.msra.mxu0 0.0
    %4589 = vmatprep.subr.mxu0 0.0
    %4590 = vmatpush1.msra.mxu0 0.0
    %4591 = vmatprep.subr.mxu0 0.0
    %4592 = vmatpush1.msra.mxu0 0.0
    %4593 = vmatprep.subr.mxu0 0.0
    %4594 = vmatpush1.msra.mxu0 0.0
    %4595 = vmatprep.subr.mxu0 0.0
    %4596 = vmatpush1.msra.mxu0 0.0
    %4597 = vmatprep.subr.mxu0 0.0
    %4598 = vmatpush1.msra.mxu0 0.0
    %4599 = vmatprep.subr.mxu0 0.0
    %4600 = vmatpush1.msra.mxu0 0.0
    %4601 = vmatprep.subr.mxu0 0.0
    %4602 = vmatpush1.msra.mxu0 0.0
    %4603 = vmatprep.subr.mxu0 0.0
    %4604 = vmatpush1.msra.mxu0 0.0
    %4605 = vmatprep.subr.mxu0 0.0
    %4606 = vmatpush1.msra.mxu0 0.0
    %4607 = vmatprep.subr.mxu0 0.0
    %4608 = vmatpush1.msra.mxu0 0.0
    %4609 = vmatprep.subr.mxu0 0.0
    %4610 = vmatpush1.msra.mxu0 0.0
    %4611 = vmatprep.subr.mxu0 0.0
    %4612 = vmatpush1.msra.mxu0 0.0
    %4613 = vmatprep.subr.mxu0 0.0
    %4614 = vmatpush1.msra.mxu0 0.0
    %4615 = vmatprep.subr.mxu0 0.0
    %4616 = vmatpush1.msra.mxu0 0.0
    %4617 = vmatprep.subr.mxu0 0.0
    %4618 = vmatpush1.msra.mxu0 0.0
    %4619 = vmatprep.subr.mxu0 0.0
    %4620 = vmatpush1.msra.mxu0 0.0
    %4621 = vmatprep.subr.mxu0 0.0
    %4622 = vmatpush1.msra.mxu0 0.0
    %4623 = vmatprep.subr.mxu0 0.0
    %4624 = vmatpush1.msra.mxu0 0.0
    %4625 = vmatprep.subr.mxu0 0.0
    %4626 = vmatpush1.msra.mxu0 0.0
    %4627 = vmatprep.subr.mxu0 0.0
    %4628 = vmatpush1.msra.mxu0 0.0
    %4629 = vmatprep.subr.mxu0 0.0
    %4630 = vmatpush1.msra.mxu0 0.0
    %4631 = vmatprep.subr.mxu0 0.0
    %4632 = vmatpush1.msra.mxu0 0.0
    %4633 = vmatprep.subr.mxu0 0.0
    %4634 = vmatpush1.msra.mxu0 0.0
    %4635 = vmatprep.subr.mxu0 0.0
    %4636 = vmatpush1.msra.mxu0 0.0
    %4637 = vmatprep.mubr.f32.mxu0 0.0
    %4638 = vmatmul.mubr.f32.gmra.mrb[0].mxu0 %v4500
    %v4639 = vpop.f32.mrb[0].mxu0
    %v4640 = vadd.f32 0.0, %v4639
    %v4641 = vpop.f32.mrb[0].mxu0
    %v4642 = vadd.f32 0.0, %v4641
    %4643 = vdwg.mxu0
    %v4644 = vlaneseq
    %v4645 = vshrl.u32 %v4644, 7
    %v4646 = vsub.s32 0, %v4645
    %v4647 = vrot.slane %v4569, %v4646
    %v4648 = vlaneseq
    %v4649 = vshrl.u32 %v4648, 7
    %v4650 = vsub.s32 0, %v4649
    %v4651 = vrot.slane %v4571, %v4650
    %v4652 = vlaneseq
    %v4653 = vshrl.u32 %v4652, 7
    %v4654 = vsub.s32 0, %v4653
    %v4655 = vrot.slane %v4640, %v4654
    %v4656 = vlaneseq
    %v4657 = vshrl.u32 %v4656, 7
    %v4658 = vsub.s32 0, %v4657
    %v4659 = vrot.slane %v4642, %v4658
    %v4660 = vmul.f32 %v4214, %v4647
    %v4661 = vmul.f32 %v4215, %v4651
    %v4662 = vmul.f32 %v4216, %v4655
    %v4663 = vmul.f32 %v4217, %v4659
    %v4664 = vmul.f32 %v4218, %v4647
    %v4665 = vmul.f32 %v4219, %v4651
    %v4666 = vmul.f32 %v4220, %v4655
    %v4667 = vmul.f32 %v4221, %v4659
    %v4668 = vmul.f32 %v4222, %v4647
    %v4669 = vmul.f32 %v4223, %v4651
    %v4670 = vmul.f32 %v4224, %v4655
    %v4671 = vmul.f32 %v4225, %v4659
    %v4672 = vmul.f32 %v4226, %v4647
    %v4673 = vmul.f32 %v4227, %v4651
    %v4674 = vmul.f32 %v4228, %v4655
    %v4675 = vmul.f32 %v4229, %v4659
    %v4676 = vlaneseq
    %v4677 = vshrl.u32 %v4676, 7
    %v4678 = vsub.s32 1, %v4677
    %v4679 = vrot.slane %v4569, %v4678
    %v4680 = vlaneseq
    %v4681 = vshrl.u32 %v4680, 7
    %v4682 = vsub.s32 1, %v4681
    %v4683 = vrot.slane %v4571, %v4682
    %v4684 = vlaneseq
    %v4685 = vshrl.u32 %v4684, 7
    %v4686 = vsub.s32 1, %v4685
    %v4687 = vrot.slane %v4640, %v4686
    %v4688 = vlaneseq
    %v4689 = vshrl.u32 %v4688, 7
    %v4690 = vsub.s32 1, %v4689
    %v4691 = vrot.slane %v4642, %v4690
    %v4692 = vadd.f32 %v4660, %v4679
    %v4693 = vadd.f32 %v4661, %v4683
    %v4694 = vadd.f32 %v4662, %v4687
    %v4695 = vadd.f32 %v4663, %v4691
    %v4696 = vadd.f32 %v4664, %v4679
    %v4697 = vadd.f32 %v4665, %v4683
    %v4698 = vadd.f32 %v4666, %v4687
    %v4699 = vadd.f32 %v4667, %v4691
    %v4700 = vadd.f32 %v4668, %v4679
    %v4701 = vadd.f32 %v4669, %v4683
    %v4702 = vadd.f32 %v4670, %v4687
    %v4703 = vadd.f32 %v4671, %v4691
    %v4704 = vadd.f32 %v4672, %v4679
    %v4705 = vadd.f32 %v4673, %v4683
    %v4706 = vadd.f32 %v4674, %v4687
    %v4707 = vadd.f32 %v4675, %v4691
    %vm4708 = vcmp.gt.f32.partialorder %v4692, 0.0
    %vm4709 = vcmp.gt.f32.partialorder %v4693, 0.0
    %vm4710 = vcmp.gt.f32.partialorder %v4694, 0.0
    %vm4711 = vcmp.gt.f32.partialorder %v4695, 0.0
    %vm4712 = vcmp.gt.f32.partialorder %v4696, 0.0
    %vm4713 = vcmp.gt.f32.partialorder %v4697, 0.0
    %vm4714 = vcmp.gt.f32.partialorder %v4698, 0.0
    %vm4715 = vcmp.gt.f32.partialorder %v4699, 0.0
    %vm4716 = vcmp.gt.f32.partialorder %v4700, 0.0
    %vm4717 = vcmp.gt.f32.partialorder %v4701, 0.0
    %vm4718 = vcmp.gt.f32.partialorder %v4702, 0.0
    %vm4719 = vcmp.gt.f32.partialorder %v4703, 0.0
    %vm4720 = vcmp.gt.f32.partialorder %v4704, 0.0
    %vm4721 = vcmp.gt.f32.partialorder %v4705, 0.0
    %vm4722 = vcmp.gt.f32.partialorder %v4706, 0.0
    %vm4723 = vcmp.gt.f32.partialorder %v4707, 0.0
    %v4724 = vmul.f32 %v4692, 0.01
    %v4725 = vmul.f32 %v4693, 0.01
    %v4726 = vmul.f32 %v4694, 0.01
    %v4727 = vmul.f32 %v4695, 0.01
    %v4728 = vmul.f32 %v4696, 0.01
    %v4729 = vmul.f32 %v4697, 0.01
    %v4730 = vmul.f32 %v4698, 0.01
    %v4731 = vmul.f32 %v4699, 0.01
    %v4732 = vmul.f32 %v4700, 0.01
    %v4733 = vmul.f32 %v4701, 0.01
    %v4734 = vmul.f32 %v4702, 0.01
    %v4735 = vmul.f32 %v4703, 0.01
    %v4736 = vmul.f32 %v4704, 0.01
    %v4737 = vmul.f32 %v4705, 0.01
    %v4738 = vmul.f32 %v4706, 0.01
    %v4739 = vmul.f32 %v4707, 0.01
    %v4740 = vsel %vm4708, %v4692, %v4724
    %v4741 = vsel %vm4709, %v4693, %v4725
    %v4742 = vsel %vm4710, %v4694, %v4726
    %v4743 = vsel %vm4711, %v4695, %v4727
    %v4744 = vsel %vm4712, %v4696, %v4728
    %v4745 = vsel %vm4713, %v4697, %v4729
    %v4746 = vsel %vm4714, %v4698, %v4730
    %v4747 = vsel %vm4715, %v4699, %v4731
    %v4748 = vsel %vm4716, %v4700, %v4732
    %v4749 = vsel %vm4717, %v4701, %v4733
    %v4750 = vsel %vm4718, %v4702, %v4734
    %v4751 = vsel %vm4719, %v4703, %v4735
    %v4752 = vsel %vm4720, %v4704, %v4736
    %v4753 = vsel %vm4721, %v4705, %v4737
    %v4754 = vsel %vm4722, %v4706, %v4738
    %v4755 = vsel %vm4723, %v4707, %v4739
    %v4756 = vpack.c.bf16 %v4744, %v4740
    %v4757 = vpack.c.bf16 %v4745, %v4741
    %v4758 = vpack.c.bf16 %v4746, %v4742
    %v4759 = vpack.c.bf16 %v4747, %v4743
    %v4760 = vpack.c.bf16 %v4752, %v4748
    %v4761 = vpack.c.bf16 %v4753, %v4749
    %v4762 = vpack.c.bf16 %v4754, %v4750
    %v4763 = vpack.c.bf16 %v4755, %v4751
    %v4765 = vshrl.u32 %v4756, 16
    %v4767 = vrot.slane %v4765, 7
    %v4768 = vshll.u32 %v4756, 16
    %v4770 = vor.u32 %v4767, %v4768
    %v4772 = vshrl.u32 %v4757, 16
    %v4774 = vrot.slane %v4772, 7
    %v4775 = vshll.u32 %v4757, 16
    %v4777 = vor.u32 %v4774, %v4775
    %v4779 = vshrl.u32 %v4758, 16
    %v4781 = vrot.slane %v4779, 7
    %v4782 = vshll.u32 %v4758, 16
    %v4784 = vor.u32 %v4781, %v4782
    %v4786 = vshrl.u32 %v4759, 16
    %v4788 = vrot.slane %v4786, 7
    %v4789 = vshll.u32 %v4759, 16
    %v4791 = vor.u32 %v4788, %v4789
    %v4793 = vshrl.u32 %v4760, 16
    %v4795 = vrot.slane %v4793, 7
    %v4796 = vshll.u32 %v4760, 16
    %v4798 = vor.u32 %v4795, %v4796
    %v4800 = vshrl.u32 %v4761, 16
    %v4802 = vrot.slane %v4800, 7
    %v4803 = vshll.u32 %v4761, 16
    %v4805 = vor.u32 %v4802, %v4803
    %v4807 = vshrl.u32 %v4762, 16
    %v4809 = vrot.slane %v4807, 7
    %v4810 = vshll.u32 %v4762, 16
    %v4812 = vor.u32 %v4809, %v4810
    %v4814 = vshrl.u32 %v4763, 16
    %v4816 = vrot.slane %v4814, 7
    %v4817 = vshll.u32 %v4763, 16
    %v4819 = vor.u32 %v4816, %v4817
    %v4836 = vsel %vm1101, 0, %v4770
    %v4837 = vsel %vm1101, 0, %v4777
    %v4838 = vsel %vm1101, 0, %v4784
    %v4839 = vsel %vm1101, 0, %v4791
    %v4840 = vsel %vm1101, 0, %v4798
    %v4841 = vsel %vm1101, 0, %v4805
    %v4842 = vsel %vm1101, 0, %v4812
    %v4843 = vsel %vm1101, 0, %v4819
    %v4844 = vsel %vm1101, %v4767, 0
    %v4845 = vsel %vm1101, %v4774, 0
    %v4846 = vsel %vm1101, %v4781, 0
    %v4847 = vsel %vm1101, %v4788, 0
    %v4848 = vsel %vm1101, %v4795, 0
    %v4849 = vsel %vm1101, %v4802, 0
    %v4850 = vsel %vm1101, %v4809, 0
    %v4851 = vsel %vm1101, %v4816, 0
    %v4852 = vld [vmem:[#allocation17] sm:$0xff]
    %v4853 = vld [vmem:[#allocation17 + $0x8] sm:$0xff]
    %v4854 = vld [vmem:[#allocation17 + $0x10] sm:$0xff]
    %v4855 = vld [vmem:[#allocation17 + $0x18] sm:$0xff]
    %v4856 = vld [vmem:[#allocation17 + $0x20] sm:$0xff]
    %v4857 = vld [vmem:[#allocation17 + $0x28] sm:$0xff]
    %v4858 = vld [vmem:[#allocation17 + $0x30] sm:$0xff]
    %v4859 = vld [vmem:[#allocation17 + $0x38] sm:$0xff]
    %v4860 = vld [vmem:[#allocation17 + $0x40] sm:$0xff]
    %v4861 = vld [vmem:[#allocation17 + $0x48] sm:$0xff]
    %v4862 = vld [vmem:[#allocation17 + $0x50] sm:$0xff]
    %v4863 = vld [vmem:[#allocation17 + $0x58] sm:$0xff]
    %v4864 = vld [vmem:[#allocation17 + $0x60] sm:$0xff]
    %v4865 = vld [vmem:[#allocation17 + $0x68] sm:$0xff]
    %v4866 = vld [vmem:[#allocation17 + $0x70] sm:$0xff]
    %v4867 = vld [vmem:[#allocation17 + $0x78] sm:$0xff]
    %v4868 = vld [vmem:[#allocation17 + $0x80] sm:$0xff]
    %v4869 = vld [vmem:[#allocation17 + $0x88] sm:$0xff]
    %v4870 = vld [vmem:[#allocation17 + $0x90] sm:$0xff]
    %v4871 = vld [vmem:[#allocation17 + $0x98] sm:$0xff]
    %v4872 = vld [vmem:[#allocation17 + $0xa0] sm:$0xff]
    %v4873 = vld [vmem:[#allocation17 + $0xa8] sm:$0xff]
    %v4874 = vld [vmem:[#allocation17 + $0xb0] sm:$0xff]
    %v4875 = vld [vmem:[#allocation17 + $0xb8] sm:$0xff]
    %v4876 = vld [vmem:[#allocation17 + $0xc0] sm:$0xff]
    %v4877 = vld [vmem:[#allocation17 + $0xc8] sm:$0xff]
    %v4878 = vld [vmem:[#allocation17 + $0xd0] sm:$0xff]
    %v4879 = vld [vmem:[#allocation17 + $0xd8] sm:$0xff]
    %v4880 = vld [vmem:[#allocation17 + $0xe0] sm:$0xff]
    %v4881 = vld [vmem:[#allocation17 + $0xe8] sm:$0xff]
    %v4882 = vld [vmem:[#allocation17 + $0xf0] sm:$0xff]
    %v4883 = vld [vmem:[#allocation17 + $0xf8] sm:$0xff]
    %v4884 = vld [vmem:[#allocation17 + $0x100] sm:$0xff]
    %v4885 = vld [vmem:[#allocation17 + $0x108] sm:$0xff]
    %v4886 = vld [vmem:[#allocation17 + $0x110] sm:$0xff]
    %v4887 = vld [vmem:[#allocation17 + $0x118] sm:$0xff]
    %v4888 = vld [vmem:[#allocation17 + $0x120] sm:$0xff]
    %v4889 = vld [vmem:[#allocation17 + $0x128] sm:$0xff]
    %v4890 = vld [vmem:[#allocation17 + $0x130] sm:$0xff]
    %v4891 = vld [vmem:[#allocation17 + $0x138] sm:$0xff]
    %v4892 = vld [vmem:[#allocation17 + $0x140] sm:$0xff]
    %v4893 = vld [vmem:[#allocation17 + $0x148] sm:$0xff]
    %v4894 = vld [vmem:[#allocation17 + $0x150] sm:$0xff]
    %v4895 = vld [vmem:[#allocation17 + $0x158] sm:$0xff]
    %v4896 = vld [vmem:[#allocation17 + $0x160] sm:$0xff]
    %v4897 = vld [vmem:[#allocation17 + $0x168] sm:$0xff]
    %v4898 = vld [vmem:[#allocation17 + $0x170] sm:$0xff]
    %v4899 = vld [vmem:[#allocation17 + $0x178] sm:$0xff]
    %v4900 = vld [vmem:[#allocation17 + $0x180] sm:$0xff]
    %v4901 = vld [vmem:[#allocation17 + $0x188] sm:$0xff]
    %v4902 = vld [vmem:[#allocation17 + $0x190] sm:$0xff]
    %v4903 = vld [vmem:[#allocation17 + $0x198] sm:$0xff]
    %v4904 = vld [vmem:[#allocation17 + $0x1a0] sm:$0xff]
    %v4905 = vld [vmem:[#allocation17 + $0x1a8] sm:$0xff]
    %v4906 = vld [vmem:[#allocation17 + $0x1b0] sm:$0xff]
    %v4907 = vld [vmem:[#allocation17 + $0x1b8] sm:$0xff]
    %v4908 = vld [vmem:[#allocation17 + $0x1c0] sm:$0xff]
    %v4909 = vld [vmem:[#allocation17 + $0x1c8] sm:$0xff]
    %v4910 = vld [vmem:[#allocation17 + $0x1d0] sm:$0xff]
    %v4911 = vld [vmem:[#allocation17 + $0x1d8] sm:$0xff]
    %v4912 = vld [vmem:[#allocation17 + $0x1e0] sm:$0xff]
    %v4913 = vld [vmem:[#allocation17 + $0x1e8] sm:$0xff]
    %v4914 = vld [vmem:[#allocation17 + $0x1f0] sm:$0xff]
    %v4915 = vld [vmem:[#allocation17 + $0x1f8] sm:$0xff]
    %v4916 = vld [vmem:[#allocation17 + $0x200] sm:$0xff]
    %v4917 = vld [vmem:[#allocation17 + $0x208] sm:$0xff]
    %v4918 = vld [vmem:[#allocation17 + $0x210] sm:$0xff]
    %v4919 = vld [vmem:[#allocation17 + $0x218] sm:$0xff]
    %v4920 = vld [vmem:[#allocation17 + $0x220] sm:$0xff]
    %v4921 = vld [vmem:[#allocation17 + $0x228] sm:$0xff]
    %v4922 = vld [vmem:[#allocation17 + $0x230] sm:$0xff]
    %v4923 = vld [vmem:[#allocation17 + $0x238] sm:$0xff]
    %v4924 = vld [vmem:[#allocation17 + $0x240] sm:$0xff]
    %v4925 = vld [vmem:[#allocation17 + $0x248] sm:$0xff]
    %v4926 = vld [vmem:[#allocation17 + $0x250] sm:$0xff]
    %v4927 = vld [vmem:[#allocation17 + $0x258] sm:$0xff]
    %v4928 = vld [vmem:[#allocation17 + $0x260] sm:$0xff]
    %v4929 = vld [vmem:[#allocation17 + $0x268] sm:$0xff]
    %v4930 = vld [vmem:[#allocation17 + $0x270] sm:$0xff]
    %v4931 = vld [vmem:[#allocation17 + $0x278] sm:$0xff]
    %v4932 = vld [vmem:[#allocation17 + $0x280] sm:$0xff]
    %v4933 = vld [vmem:[#allocation17 + $0x288] sm:$0xff]
    %v4934 = vld [vmem:[#allocation17 + $0x290] sm:$0xff]
    %v4935 = vld [vmem:[#allocation17 + $0x298] sm:$0xff]
    %v4936 = vld [vmem:[#allocation17 + $0x2a0] sm:$0xff]
    %v4937 = vld [vmem:[#allocation17 + $0x2a8] sm:$0xff]
    %v4938 = vld [vmem:[#allocation17 + $0x2b0] sm:$0xff]
    %v4939 = vld [vmem:[#allocation17 + $0x2b8] sm:$0xff]
    %v4940 = vld [vmem:[#allocation17 + $0x2c0] sm:$0xff]
    %v4941 = vld [vmem:[#allocation17 + $0x2c8] sm:$0xff]
    %v4942 = vld [vmem:[#allocation17 + $0x2d0] sm:$0xff]
    %v4943 = vld [vmem:[#allocation17 + $0x2d8] sm:$0xff]
    %v4944 = vld [vmem:[#allocation17 + $0x2e0] sm:$0xff]
    %v4945 = vld [vmem:[#allocation17 + $0x2e8] sm:$0xff]
    %v4946 = vld [vmem:[#allocation17 + $0x2f0] sm:$0xff]
    %v4947 = vld [vmem:[#allocation17 + $0x2f8] sm:$0xff]
    %v4948 = vld [vmem:[#allocation17 + $0x300] sm:$0xff]
    %v4949 = vld [vmem:[#allocation17 + $0x308] sm:$0xff]
    %v4950 = vld [vmem:[#allocation17 + $0x310] sm:$0xff]
    %v4951 = vld [vmem:[#allocation17 + $0x318] sm:$0xff]
    %v4952 = vld [vmem:[#allocation17 + $0x320] sm:$0xff]
    %v4953 = vld [vmem:[#allocation17 + $0x328] sm:$0xff]
    %v4954 = vld [vmem:[#allocation17 + $0x330] sm:$0xff]
    %v4955 = vld [vmem:[#allocation17 + $0x338] sm:$0xff]
    %v4956 = vld [vmem:[#allocation17 + $0x340] sm:$0xff]
    %v4957 = vld [vmem:[#allocation17 + $0x348] sm:$0xff]
    %v4958 = vld [vmem:[#allocation17 + $0x350] sm:$0xff]
    %v4959 = vld [vmem:[#allocation17 + $0x358] sm:$0xff]
    %v4960 = vld [vmem:[#allocation17 + $0x360] sm:$0xff]
    %v4961 = vld [vmem:[#allocation17 + $0x368] sm:$0xff]
    %v4962 = vld [vmem:[#allocation17 + $0x370] sm:$0xff]
    %v4963 = vld [vmem:[#allocation17 + $0x378] sm:$0xff]
    %v4964 = vld [vmem:[#allocation17 + $0x380] sm:$0xff]
    %v4965 = vld [vmem:[#allocation17 + $0x388] sm:$0xff]
    %v4966 = vld [vmem:[#allocation17 + $0x390] sm:$0xff]
    %v4967 = vld [vmem:[#allocation17 + $0x398] sm:$0xff]
    %v4968 = vld [vmem:[#allocation17 + $0x3a0] sm:$0xff]
    %v4969 = vld [vmem:[#allocation17 + $0x3a8] sm:$0xff]
    %v4970 = vld [vmem:[#allocation17 + $0x3b0] sm:$0xff]
    %v4971 = vld [vmem:[#allocation17 + $0x3b8] sm:$0xff]
    %v4972 = vld [vmem:[#allocation17 + $0x3c0] sm:$0xff]
    %v4973 = vld [vmem:[#allocation17 + $0x3c8] sm:$0xff]
    %v4974 = vld [vmem:[#allocation17 + $0x3d0] sm:$0xff]
    %v4975 = vld [vmem:[#allocation17 + $0x3d8] sm:$0xff]
    %v4976 = vld [vmem:[#allocation17 + $0x3e0] sm:$0xff]
    %v4977 = vld [vmem:[#allocation17 + $0x3e8] sm:$0xff]
    %v4978 = vld [vmem:[#allocation17 + $0x3f0] sm:$0xff]
    %v4979 = vld [vmem:[#allocation17 + $0x3f8] sm:$0xff]
    %v4981 = vshrl.u32 %v4836, 16
    %v4983 = vshll.u32 %v4836, 16
    %v4985 = vrot.slane %v4983, 1
    %v4986 = vor.u32 %v4981, %v4985
    %v4988 = vshll.u32 %v4844, 16
    %v4990 = vrot.slane %v4988, 1
    %v4991 = vsel %vm1246, %v4986, %v4990
    %v4993 = vshrl.u32 %v4837, 16
    %v4995 = vshll.u32 %v4837, 16
    %v4997 = vrot.slane %v4995, 1
    %v4998 = vor.u32 %v4993, %v4997
    %v5000 = vshll.u32 %v4845, 16
    %v5002 = vrot.slane %v5000, 1
    %v5003 = vsel %vm1246, %v4998, %v5002
    %v5005 = vshrl.u32 %v4838, 16
    %v5007 = vshll.u32 %v4838, 16
    %v5009 = vrot.slane %v5007, 1
    %v5010 = vor.u32 %v5005, %v5009
    %v5012 = vshll.u32 %v4846, 16
    %v5014 = vrot.slane %v5012, 1
    %v5015 = vsel %vm1246, %v5010, %v5014
    %v5017 = vshrl.u32 %v4839, 16
    %v5019 = vshll.u32 %v4839, 16
    %v5021 = vrot.slane %v5019, 1
    %v5022 = vor.u32 %v5017, %v5021
    %v5024 = vshll.u32 %v4847, 16
    %v5026 = vrot.slane %v5024, 1
    %v5027 = vsel %vm1246, %v5022, %v5026
    %v5029 = vshrl.u32 %v4840, 16
    %v5031 = vshll.u32 %v4840, 16
    %v5033 = vrot.slane %v5031, 1
    %v5034 = vor.u32 %v5029, %v5033
    %v5036 = vshll.u32 %v4848, 16
    %v5038 = vrot.slane %v5036, 1
    %v5039 = vsel %vm1246, %v5034, %v5038
    %v5041 = vshrl.u32 %v4841, 16
    %v5043 = vshll.u32 %v4841, 16
    %v5045 = vrot.slane %v5043, 1
    %v5046 = vor.u32 %v5041, %v5045
    %v5048 = vshll.u32 %v4849, 16
    %v5050 = vrot.slane %v5048, 1
    %v5051 = vsel %vm1246, %v5046, %v5050
    %v5053 = vshrl.u32 %v4842, 16
    %v5055 = vshll.u32 %v4842, 16
    %v5057 = vrot.slane %v5055, 1
    %v5058 = vor.u32 %v5053, %v5057
    %v5060 = vshll.u32 %v4850, 16
    %v5062 = vrot.slane %v5060, 1
    %v5063 = vsel %vm1246, %v5058, %v5062
    %v5065 = vshrl.u32 %v4843, 16
    %v5067 = vshll.u32 %v4843, 16
    %v5069 = vrot.slane %v5067, 1
    %v5070 = vor.u32 %v5065, %v5069
    %v5072 = vshll.u32 %v4851, 16
    %v5074 = vrot.slane %v5072, 1
    %v5075 = vsel %vm1246, %v5070, %v5074
    %s5084 = scalar_lea.vmem [#allocation17], 1024
    %v5085 = vld [vmem:[%s5084] sm:$0xff]
    %v5086 = vld [vmem:[%s5084 + $0x8] sm:$0xff]
    %v5087 = vld [vmem:[%s5084 + $0x10] sm:$0xff]
    %v5088 = vld [vmem:[%s5084 + $0x18] sm:$0xff]
    %v5089 = vld [vmem:[%s5084 + $0x20] sm:$0xff]
    %v5090 = vld [vmem:[%s5084 + $0x28] sm:$0xff]
    %v5091 = vld [vmem:[%s5084 + $0x30] sm:$0xff]
    %v5092 = vld [vmem:[%s5084 + $0x38] sm:$0xff]
    %v5093 = vld [vmem:[%s5084 + $0x40] sm:$0xff]
    %v5094 = vld [vmem:[%s5084 + $0x48] sm:$0xff]
    %v5095 = vld [vmem:[%s5084 + $0x50] sm:$0xff]
    %v5096 = vld [vmem:[%s5084 + $0x58] sm:$0xff]
    %v5097 = vld [vmem:[%s5084 + $0x60] sm:$0xff]
    %v5098 = vld [vmem:[%s5084 + $0x68] sm:$0xff]
    %v5099 = vld [vmem:[%s5084 + $0x70] sm:$0xff]
    %v5100 = vld [vmem:[%s5084 + $0x78] sm:$0xff]
    %v5101 = vld [vmem:[%s5084 + $0x80] sm:$0xff]
    %v5102 = vld [vmem:[%s5084 + $0x88] sm:$0xff]
    %v5103 = vld [vmem:[%s5084 + $0x90] sm:$0xff]
    %v5104 = vld [vmem:[%s5084 + $0x98] sm:$0xff]
    %v5105 = vld [vmem:[%s5084 + $0xa0] sm:$0xff]
    %v5106 = vld [vmem:[%s5084 + $0xa8] sm:$0xff]
    %v5107 = vld [vmem:[%s5084 + $0xb0] sm:$0xff]
    %v5108 = vld [vmem:[%s5084 + $0xb8] sm:$0xff]
    %v5109 = vld [vmem:[%s5084 + $0xc0] sm:$0xff]
    %v5110 = vld [vmem:[%s5084 + $0xc8] sm:$0xff]
    %v5111 = vld [vmem:[%s5084 + $0xd0] sm:$0xff]
    %v5112 = vld [vmem:[%s5084 + $0xd8] sm:$0xff]
    %v5113 = vld [vmem:[%s5084 + $0xe0] sm:$0xff]
    %v5114 = vld [vmem:[%s5084 + $0xe8] sm:$0xff]
    %v5115 = vld [vmem:[%s5084 + $0xf0] sm:$0xff]
    %v5116 = vld [vmem:[%s5084 + $0xf8] sm:$0xff]
    %v5117 = vld [vmem:[%s5084 + $0x100] sm:$0xff]
    %v5118 = vld [vmem:[%s5084 + $0x108] sm:$0xff]
    %v5119 = vld [vmem:[%s5084 + $0x110] sm:$0xff]
    %v5120 = vld [vmem:[%s5084 + $0x118] sm:$0xff]
    %v5121 = vld [vmem:[%s5084 + $0x120] sm:$0xff]
    %v5122 = vld [vmem:[%s5084 + $0x128] sm:$0xff]
    %v5123 = vld [vmem:[%s5084 + $0x130] sm:$0xff]
    %v5124 = vld [vmem:[%s5084 + $0x138] sm:$0xff]
    %v5125 = vld [vmem:[%s5084 + $0x140] sm:$0xff]
    %v5126 = vld [vmem:[%s5084 + $0x148] sm:$0xff]
    %v5127 = vld [vmem:[%s5084 + $0x150] sm:$0xff]
    %v5128 = vld [vmem:[%s5084 + $0x158] sm:$0xff]
    %v5129 = vld [vmem:[%s5084 + $0x160] sm:$0xff]
    %v5130 = vld [vmem:[%s5084 + $0x168] sm:$0xff]
    %v5131 = vld [vmem:[%s5084 + $0x170] sm:$0xff]
    %v5132 = vld [vmem:[%s5084 + $0x178] sm:$0xff]
    %v5133 = vld [vmem:[%s5084 + $0x180] sm:$0xff]
    %v5134 = vld [vmem:[%s5084 + $0x188] sm:$0xff]
    %v5135 = vld [vmem:[%s5084 + $0x190] sm:$0xff]
    %v5136 = vld [vmem:[%s5084 + $0x198] sm:$0xff]
    %v5137 = vld [vmem:[%s5084 + $0x1a0] sm:$0xff]
    %v5138 = vld [vmem:[%s5084 + $0x1a8] sm:$0xff]
    %v5139 = vld [vmem:[%s5084 + $0x1b0] sm:$0xff]
    %v5140 = vld [vmem:[%s5084 + $0x1b8] sm:$0xff]
    %v5141 = vld [vmem:[%s5084 + $0x1c0] sm:$0xff]
    %v5142 = vld [vmem:[%s5084 + $0x1c8] sm:$0xff]
    %v5143 = vld [vmem:[%s5084 + $0x1d0] sm:$0xff]
    %v5144 = vld [vmem:[%s5084 + $0x1d8] sm:$0xff]
    %v5145 = vld [vmem:[%s5084 + $0x1e0] sm:$0xff]
    %v5146 = vld [vmem:[%s5084 + $0x1e8] sm:$0xff]
    %v5147 = vld [vmem:[%s5084 + $0x1f0] sm:$0xff]
    %v5148 = vld [vmem:[%s5084 + $0x1f8] sm:$0xff]
    %v5149 = vld [vmem:[%s5084 + $0x200] sm:$0xff]
    %v5150 = vld [vmem:[%s5084 + $0x208] sm:$0xff]
    %v5151 = vld [vmem:[%s5084 + $0x210] sm:$0xff]
    %v5152 = vld [vmem:[%s5084 + $0x218] sm:$0xff]
    %v5153 = vld [vmem:[%s5084 + $0x220] sm:$0xff]
    %v5154 = vld [vmem:[%s5084 + $0x228] sm:$0xff]
    %v5155 = vld [vmem:[%s5084 + $0x230] sm:$0xff]
    %v5156 = vld [vmem:[%s5084 + $0x238] sm:$0xff]
    %v5157 = vld [vmem:[%s5084 + $0x240] sm:$0xff]
    %v5158 = vld [vmem:[%s5084 + $0x248] sm:$0xff]
    %v5159 = vld [vmem:[%s5084 + $0x250] sm:$0xff]
    %v5160 = vld [vmem:[%s5084 + $0x258] sm:$0xff]
    %v5161 = vld [vmem:[%s5084 + $0x260] sm:$0xff]
    %v5162 = vld [vmem:[%s5084 + $0x268] sm:$0xff]
    %v5163 = vld [vmem:[%s5084 + $0x270] sm:$0xff]
    %v5164 = vld [vmem:[%s5084 + $0x278] sm:$0xff]
    %v5165 = vld [vmem:[%s5084 + $0x280] sm:$0xff]
    %v5166 = vld [vmem:[%s5084 + $0x288] sm:$0xff]
    %v5167 = vld [vmem:[%s5084 + $0x290] sm:$0xff]
    %v5168 = vld [vmem:[%s5084 + $0x298] sm:$0xff]
    %v5169 = vld [vmem:[%s5084 + $0x2a0] sm:$0xff]
    %v5170 = vld [vmem:[%s5084 + $0x2a8] sm:$0xff]
    %v5171 = vld [vmem:[%s5084 + $0x2b0] sm:$0xff]
    %v5172 = vld [vmem:[%s5084 + $0x2b8] sm:$0xff]
    %v5173 = vld [vmem:[%s5084 + $0x2c0] sm:$0xff]
    %v5174 = vld [vmem:[%s5084 + $0x2c8] sm:$0xff]
    %v5175 = vld [vmem:[%s5084 + $0x2d0] sm:$0xff]
    %v5176 = vld [vmem:[%s5084 + $0x2d8] sm:$0xff]
    %v5177 = vld [vmem:[%s5084 + $0x2e0] sm:$0xff]
    %v5178 = vld [vmem:[%s5084 + $0x2e8] sm:$0xff]
    %v5179 = vld [vmem:[%s5084 + $0x2f0] sm:$0xff]
    %v5180 = vld [vmem:[%s5084 + $0x2f8] sm:$0xff]
    %v5181 = vld [vmem:[%s5084 + $0x300] sm:$0xff]
    %v5182 = vld [vmem:[%s5084 + $0x308] sm:$0xff]
    %v5183 = vld [vmem:[%s5084 + $0x310] sm:$0xff]
    %v5184 = vld [vmem:[%s5084 + $0x318] sm:$0xff]
    %v5185 = vld [vmem:[%s5084 + $0x320] sm:$0xff]
    %v5186 = vld [vmem:[%s5084 + $0x328] sm:$0xff]
    %v5187 = vld [vmem:[%s5084 + $0x330] sm:$0xff]
    %v5188 = vld [vmem:[%s5084 + $0x338] sm:$0xff]
    %v5189 = vld [vmem:[%s5084 + $0x340] sm:$0xff]
    %v5190 = vld [vmem:[%s5084 + $0x348] sm:$0xff]
    %v5191 = vld [vmem:[%s5084 + $0x350] sm:$0xff]
    %v5192 = vld [vmem:[%s5084 + $0x358] sm:$0xff]
    %v5193 = vld [vmem:[%s5084 + $0x360] sm:$0xff]
    %v5194 = vld [vmem:[%s5084 + $0x368] sm:$0xff]
    %v5195 = vld [vmem:[%s5084 + $0x370] sm:$0xff]
    %v5196 = vld [vmem:[%s5084 + $0x378] sm:$0xff]
    %v5197 = vld [vmem:[%s5084 + $0x380] sm:$0xff]
    %v5198 = vld [vmem:[%s5084 + $0x388] sm:$0xff]
    %v5199 = vld [vmem:[%s5084 + $0x390] sm:$0xff]
    %v5200 = vld [vmem:[%s5084 + $0x398] sm:$0xff]
    %v5201 = vld [vmem:[%s5084 + $0x3a0] sm:$0xff]
    %v5202 = vld [vmem:[%s5084 + $0x3a8] sm:$0xff]
    %v5203 = vld [vmem:[%s5084 + $0x3b0] sm:$0xff]
    %v5204 = vld [vmem:[%s5084 + $0x3b8] sm:$0xff]
    %v5205 = vld [vmem:[%s5084 + $0x3c0] sm:$0xff]
    %v5206 = vld [vmem:[%s5084 + $0x3c8] sm:$0xff]
    %v5207 = vld [vmem:[%s5084 + $0x3d0] sm:$0xff]
    %v5208 = vld [vmem:[%s5084 + $0x3d8] sm:$0xff]
    %v5209 = vld [vmem:[%s5084 + $0x3e0] sm:$0xff]
    %v5210 = vld [vmem:[%s5084 + $0x3e8] sm:$0xff]
    %v5211 = vld [vmem:[%s5084 + $0x3f0] sm:$0xff]
    %v5212 = vld [vmem:[%s5084 + $0x3f8] sm:$0xff]
    %v5341 = vunpack.c.l.b16 %v5085
    %v5342 = vunpack.c.h.b16 %v5085
    %v5343 = vunpack.c.l.b16 %v5086
    %v5344 = vunpack.c.h.b16 %v5086
    %v5345 = vunpack.c.l.b16 %v5087
    %v5346 = vunpack.c.h.b16 %v5087
    %v5347 = vunpack.c.l.b16 %v5088
    %v5348 = vunpack.c.h.b16 %v5088
    %v5349 = vunpack.c.l.b16 %v5089
    %v5350 = vunpack.c.h.b16 %v5089
    %v5351 = vunpack.c.l.b16 %v5090
    %v5352 = vunpack.c.h.b16 %v5090
    %v5353 = vunpack.c.l.b16 %v5091
    %v5354 = vunpack.c.h.b16 %v5091
    %v5355 = vunpack.c.l.b16 %v5092
    %v5356 = vunpack.c.h.b16 %v5092
    %v5357 = vunpack.c.l.b16 %v5093
    %v5358 = vunpack.c.h.b16 %v5093
    %v5359 = vunpack.c.l.b16 %v5094
    %v5360 = vunpack.c.h.b16 %v5094
    %v5361 = vunpack.c.l.b16 %v5095
    %v5362 = vunpack.c.h.b16 %v5095
    %v5363 = vunpack.c.l.b16 %v5096
    %v5364 = vunpack.c.h.b16 %v5096
    %v5365 = vunpack.c.l.b16 %v5097
    %v5366 = vunpack.c.h.b16 %v5097
    %v5367 = vunpack.c.l.b16 %v5098
    %v5368 = vunpack.c.h.b16 %v5098
    %v5369 = vunpack.c.l.b16 %v5099
    %v5370 = vunpack.c.h.b16 %v5099
    %v5371 = vunpack.c.l.b16 %v5100
    %v5372 = vunpack.c.h.b16 %v5100
    %v5373 = vunpack.c.l.b16 %v5101
    %v5374 = vunpack.c.h.b16 %v5101
    %v5375 = vunpack.c.l.b16 %v5102
    %v5376 = vunpack.c.h.b16 %v5102
    %v5377 = vunpack.c.l.b16 %v5103
    %v5378 = vunpack.c.h.b16 %v5103
    %v5379 = vunpack.c.l.b16 %v5104
    %v5380 = vunpack.c.h.b16 %v5104
    %v5381 = vunpack.c.l.b16 %v5105
    %v5382 = vunpack.c.h.b16 %v5105
    %v5383 = vunpack.c.l.b16 %v5106
    %v5384 = vunpack.c.h.b16 %v5106
    %v5385 = vunpack.c.l.b16 %v5107
    %v5386 = vunpack.c.h.b16 %v5107
    %v5387 = vunpack.c.l.b16 %v5108
    %v5388 = vunpack.c.h.b16 %v5108
    %v5389 = vunpack.c.l.b16 %v5109
    %v5390 = vunpack.c.h.b16 %v5109
    %v5391 = vunpack.c.l.b16 %v5110
    %v5392 = vunpack.c.h.b16 %v5110
    %v5393 = vunpack.c.l.b16 %v5111
    %v5394 = vunpack.c.h.b16 %v5111
    %v5395 = vunpack.c.l.b16 %v5112
    %v5396 = vunpack.c.h.b16 %v5112
    %v5397 = vunpack.c.l.b16 %v5113
    %v5398 = vunpack.c.h.b16 %v5113
    %v5399 = vunpack.c.l.b16 %v5114
    %v5400 = vunpack.c.h.b16 %v5114
    %v5401 = vunpack.c.l.b16 %v5115
    %v5402 = vunpack.c.h.b16 %v5115
    %v5403 = vunpack.c.l.b16 %v5116
    %v5404 = vunpack.c.h.b16 %v5116
    %v5405 = vunpack.c.l.b16 %v5117
    %v5406 = vunpack.c.h.b16 %v5117
    %v5407 = vunpack.c.l.b16 %v5118
    %v5408 = vunpack.c.h.b16 %v5118
    %v5409 = vunpack.c.l.b16 %v5119
    %v5410 = vunpack.c.h.b16 %v5119
    %v5411 = vunpack.c.l.b16 %v5120
    %v5412 = vunpack.c.h.b16 %v5120
    %v5413 = vunpack.c.l.b16 %v5121
    %v5414 = vunpack.c.h.b16 %v5121
    %v5415 = vunpack.c.l.b16 %v5122
    %v5416 = vunpack.c.h.b16 %v5122
    %v5417 = vunpack.c.l.b16 %v5123
    %v5418 = vunpack.c.h.b16 %v5123
    %v5419 = vunpack.c.l.b16 %v5124
    %v5420 = vunpack.c.h.b16 %v5124
    %v5421 = vunpack.c.l.b16 %v5125
    %v5422 = vunpack.c.h.b16 %v5125
    %v5423 = vunpack.c.l.b16 %v5126
    %v5424 = vunpack.c.h.b16 %v5126
    %v5425 = vunpack.c.l.b16 %v5127
    %v5426 = vunpack.c.h.b16 %v5127
    %v5427 = vunpack.c.l.b16 %v5128
    %v5428 = vunpack.c.h.b16 %v5128
    %v5429 = vunpack.c.l.b16 %v5129
    %v5430 = vunpack.c.h.b16 %v5129
    %v5431 = vunpack.c.l.b16 %v5130
    %v5432 = vunpack.c.h.b16 %v5130
    %v5433 = vunpack.c.l.b16 %v5131
    %v5434 = vunpack.c.h.b16 %v5131
    %v5435 = vunpack.c.l.b16 %v5132
    %v5436 = vunpack.c.h.b16 %v5132
    %v5437 = vunpack.c.l.b16 %v5133
    %v5438 = vunpack.c.h.b16 %v5133
    %v5439 = vunpack.c.l.b16 %v5134
    %v5440 = vunpack.c.h.b16 %v5134
    %v5441 = vunpack.c.l.b16 %v5135
    %v5442 = vunpack.c.h.b16 %v5135
    %v5443 = vunpack.c.l.b16 %v5136
    %v5444 = vunpack.c.h.b16 %v5136
    %v5445 = vunpack.c.l.b16 %v5137
    %v5446 = vunpack.c.h.b16 %v5137
    %v5447 = vunpack.c.l.b16 %v5138
    %v5448 = vunpack.c.h.b16 %v5138
    %v5449 = vunpack.c.l.b16 %v5139
    %v5450 = vunpack.c.h.b16 %v5139
    %v5451 = vunpack.c.l.b16 %v5140
    %v5452 = vunpack.c.h.b16 %v5140
    %v5453 = vunpack.c.l.b16 %v5141
    %v5454 = vunpack.c.h.b16 %v5141
    %v5455 = vunpack.c.l.b16 %v5142
    %v5456 = vunpack.c.h.b16 %v5142
    %v5457 = vunpack.c.l.b16 %v5143
    %v5458 = vunpack.c.h.b16 %v5143
    %v5459 = vunpack.c.l.b16 %v5144
    %v5460 = vunpack.c.h.b16 %v5144
    %v5461 = vunpack.c.l.b16 %v5145
    %v5462 = vunpack.c.h.b16 %v5145
    %v5463 = vunpack.c.l.b16 %v5146
    %v5464 = vunpack.c.h.b16 %v5146
    %v5465 = vunpack.c.l.b16 %v5147
    %v5466 = vunpack.c.h.b16 %v5147
    %v5467 = vunpack.c.l.b16 %v5148
    %v5468 = vunpack.c.h.b16 %v5148
    %v5469 = vunpack.c.l.b16 %v5149
    %v5470 = vunpack.c.h.b16 %v5149
    %v5471 = vunpack.c.l.b16 %v5150
    %v5472 = vunpack.c.h.b16 %v5150
    %v5473 = vunpack.c.l.b16 %v5151
    %v5474 = vunpack.c.h.b16 %v5151
    %v5475 = vunpack.c.l.b16 %v5152
    %v5476 = vunpack.c.h.b16 %v5152
    %v5477 = vunpack.c.l.b16 %v5153
    %v5478 = vunpack.c.h.b16 %v5153
    %v5479 = vunpack.c.l.b16 %v5154
    %v5480 = vunpack.c.h.b16 %v5154
    %v5481 = vunpack.c.l.b16 %v5155
    %v5482 = vunpack.c.h.b16 %v5155
    %v5483 = vunpack.c.l.b16 %v5156
    %v5484 = vunpack.c.h.b16 %v5156
    %v5485 = vunpack.c.l.b16 %v5157
    %v5486 = vunpack.c.h.b16 %v5157
    %v5487 = vunpack.c.l.b16 %v5158
    %v5488 = vunpack.c.h.b16 %v5158
    %v5489 = vunpack.c.l.b16 %v5159
    %v5490 = vunpack.c.h.b16 %v5159
    %v5491 = vunpack.c.l.b16 %v5160
    %v5492 = vunpack.c.h.b16 %v5160
    %v5493 = vunpack.c.l.b16 %v5161
    %v5494 = vunpack.c.h.b16 %v5161
    %v5495 = vunpack.c.l.b16 %v5162
    %v5496 = vunpack.c.h.b16 %v5162
    %v5497 = vunpack.c.l.b16 %v5163
    %v5498 = vunpack.c.h.b16 %v5163
    %v5499 = vunpack.c.l.b16 %v5164
    %v5500 = vunpack.c.h.b16 %v5164
    %v5501 = vunpack.c.l.b16 %v5165
    %v5502 = vunpack.c.h.b16 %v5165
    %v5503 = vunpack.c.l.b16 %v5166
    %v5504 = vunpack.c.h.b16 %v5166
    %v5505 = vunpack.c.l.b16 %v5167
    %v5506 = vunpack.c.h.b16 %v5167
    %v5507 = vunpack.c.l.b16 %v5168
    %v5508 = vunpack.c.h.b16 %v5168
    %v5509 = vunpack.c.l.b16 %v5169
    %v5510 = vunpack.c.h.b16 %v5169
    %v5511 = vunpack.c.l.b16 %v5170
    %v5512 = vunpack.c.h.b16 %v5170
    %v5513 = vunpack.c.l.b16 %v5171
    %v5514 = vunpack.c.h.b16 %v5171
    %v5515 = vunpack.c.l.b16 %v5172
    %v5516 = vunpack.c.h.b16 %v5172
    %v5517 = vunpack.c.l.b16 %v5173
    %v5518 = vunpack.c.h.b16 %v5173
    %v5519 = vunpack.c.l.b16 %v5174
    %v5520 = vunpack.c.h.b16 %v5174
    %v5521 = vunpack.c.l.b16 %v5175
    %v5522 = vunpack.c.h.b16 %v5175
    %v5523 = vunpack.c.l.b16 %v5176
    %v5524 = vunpack.c.h.b16 %v5176
    %v5525 = vunpack.c.l.b16 %v5177
    %v5526 = vunpack.c.h.b16 %v5177
    %v5527 = vunpack.c.l.b16 %v5178
    %v5528 = vunpack.c.h.b16 %v5178
    %v5529 = vunpack.c.l.b16 %v5179
    %v5530 = vunpack.c.h.b16 %v5179
    %v5531 = vunpack.c.l.b16 %v5180
    %v5532 = vunpack.c.h.b16 %v5180
    %v5533 = vunpack.c.l.b16 %v5181
    %v5534 = vunpack.c.h.b16 %v5181
    %v5535 = vunpack.c.l.b16 %v5182
    %v5536 = vunpack.c.h.b16 %v5182
    %v5537 = vunpack.c.l.b16 %v5183
    %v5538 = vunpack.c.h.b16 %v5183
    %v5539 = vunpack.c.l.b16 %v5184
    %v5540 = vunpack.c.h.b16 %v5184
    %v5541 = vunpack.c.l.b16 %v5185
    %v5542 = vunpack.c.h.b16 %v5185
    %v5543 = vunpack.c.l.b16 %v5186
    %v5544 = vunpack.c.h.b16 %v5186
    %v5545 = vunpack.c.l.b16 %v5187
    %v5546 = vunpack.c.h.b16 %v5187
    %v5547 = vunpack.c.l.b16 %v5188
    %v5548 = vunpack.c.h.b16 %v5188
    %v5549 = vunpack.c.l.b16 %v5189
    %v5550 = vunpack.c.h.b16 %v5189
    %v5551 = vunpack.c.l.b16 %v5190
    %v5552 = vunpack.c.h.b16 %v5190
    %v5553 = vunpack.c.l.b16 %v5191
    %v5554 = vunpack.c.h.b16 %v5191
    %v5555 = vunpack.c.l.b16 %v5192
    %v5556 = vunpack.c.h.b16 %v5192
    %v5557 = vunpack.c.l.b16 %v5193
    %v5558 = vunpack.c.h.b16 %v5193
    %v5559 = vunpack.c.l.b16 %v5194
    %v5560 = vunpack.c.h.b16 %v5194
    %v5561 = vunpack.c.l.b16 %v5195
    %v5562 = vunpack.c.h.b16 %v5195
    %v5563 = vunpack.c.l.b16 %v5196
    %v5564 = vunpack.c.h.b16 %v5196
    %v5565 = vunpack.c.l.b16 %v5197
    %v5566 = vunpack.c.h.b16 %v5197
    %v5567 = vunpack.c.l.b16 %v5198
    %v5568 = vunpack.c.h.b16 %v5198
    %v5569 = vunpack.c.l.b16 %v5199
    %v5570 = vunpack.c.h.b16 %v5199
    %v5571 = vunpack.c.l.b16 %v5200
    %v5572 = vunpack.c.h.b16 %v5200
    %v5573 = vunpack.c.l.b16 %v5201
    %v5574 = vunpack.c.h.b16 %v5201
    %v5575 = vunpack.c.l.b16 %v5202
    %v5576 = vunpack.c.h.b16 %v5202
    %v5577 = vunpack.c.l.b16 %v5203
    %v5578 = vunpack.c.h.b16 %v5203
    %v5579 = vunpack.c.l.b16 %v5204
    %v5580 = vunpack.c.h.b16 %v5204
    %v5581 = vunpack.c.l.b16 %v5205
    %v5582 = vunpack.c.h.b16 %v5205
    %v5583 = vunpack.c.l.b16 %v5206
    %v5584 = vunpack.c.h.b16 %v5206
    %v5585 = vunpack.c.l.b16 %v5207
    %v5586 = vunpack.c.h.b16 %v5207
    %v5587 = vunpack.c.l.b16 %v5208
    %v5588 = vunpack.c.h.b16 %v5208
    %v5589 = vunpack.c.l.b16 %v5209
    %v5590 = vunpack.c.h.b16 %v5209
    %v5591 = vunpack.c.l.b16 %v5210
    %v5592 = vunpack.c.h.b16 %v5210
    %v5593 = vunpack.c.l.b16 %v5211
    %v5594 = vunpack.c.h.b16 %v5211
    %v5595 = vunpack.c.l.b16 %v5212
    %v5596 = vunpack.c.h.b16 %v5212
    %v5597 = vpack.c.b16 %v5345, %v5341
    %v5598 = vpack.c.b16 %v5346, %v5342
    %v5599 = vpack.c.b16 %v5347, %v5343
    %v5600 = vpack.c.b16 %v5348, %v5344
    %v5601 = vpack.c.b16 %v5353, %v5349
    %v5602 = vpack.c.b16 %v5354, %v5350
    %v5603 = vpack.c.b16 %v5355, %v5351
    %v5604 = vpack.c.b16 %v5356, %v5352
    %v5605 = vpack.c.b16 %v5361, %v5357
    %v5606 = vpack.c.b16 %v5362, %v5358
    %v5607 = vpack.c.b16 %v5363, %v5359
    %v5608 = vpack.c.b16 %v5364, %v5360
    %v5609 = vpack.c.b16 %v5369, %v5365
    %v5610 = vpack.c.b16 %v5370, %v5366
    %v5611 = vpack.c.b16 %v5371, %v5367
    %v5612 = vpack.c.b16 %v5372, %v5368
    %v5613 = vpack.c.b16 %v5377, %v5373
    %v5614 = vpack.c.b16 %v5378, %v5374
    %v5615 = vpack.c.b16 %v5379, %v5375
    %v5616 = vpack.c.b16 %v5380, %v5376
    %v5617 = vpack.c.b16 %v5385, %v5381
    %v5618 = vpack.c.b16 %v5386, %v5382
    %v5619 = vpack.c.b16 %v5387, %v5383
    %v5620 = vpack.c.b16 %v5388, %v5384
    %v5621 = vpack.c.b16 %v5393, %v5389
    %v5622 = vpack.c.b16 %v5394, %v5390
    %v5623 = vpack.c.b16 %v5395, %v5391
    %v5624 = vpack.c.b16 %v5396, %v5392
    %v5625 = vpack.c.b16 %v5401, %v5397
    %v5626 = vpack.c.b16 %v5402, %v5398
    %v5627 = vpack.c.b16 %v5403, %v5399
    %v5628 = vpack.c.b16 %v5404, %v5400
    %v5629 = vpack.c.b16 %v5409, %v5405
    %v5630 = vpack.c.b16 %v5410, %v5406
    %v5631 = vpack.c.b16 %v5411, %v5407
    %v5632 = vpack.c.b16 %v5412, %v5408
    %v5633 = vpack.c.b16 %v5417, %v5413
    %v5634 = vpack.c.b16 %v5418, %v5414
    %v5635 = vpack.c.b16 %v5419, %v5415
    %v5636 = vpack.c.b16 %v5420, %v5416
    %v5637 = vpack.c.b16 %v5425, %v5421
    %v5638 = vpack.c.b16 %v5426, %v5422
    %v5639 = vpack.c.b16 %v5427, %v5423
    %v5640 = vpack.c.b16 %v5428, %v5424
    %v5641 = vpack.c.b16 %v5433, %v5429
    %v5642 = vpack.c.b16 %v5434, %v5430
    %v5643 = vpack.c.b16 %v5435, %v5431
    %v5644 = vpack.c.b16 %v5436, %v5432
    %v5645 = vpack.c.b16 %v5441, %v5437
    %v5646 = vpack.c.b16 %v5442, %v5438
    %v5647 = vpack.c.b16 %v5443, %v5439
    %v5648 = vpack.c.b16 %v5444, %v5440
    %v5649 = vpack.c.b16 %v5449, %v5445
    %v5650 = vpack.c.b16 %v5450, %v5446
    %v5651 = vpack.c.b16 %v5451, %v5447
    %v5652 = vpack.c.b16 %v5452, %v5448
    %v5653 = vpack.c.b16 %v5457, %v5453
    %v5654 = vpack.c.b16 %v5458, %v5454
    %v5655 = vpack.c.b16 %v5459, %v5455
    %v5656 = vpack.c.b16 %v5460, %v5456
    %v5657 = vpack.c.b16 %v5465, %v5461
    %v5658 = vpack.c.b16 %v5466, %v5462
    %v5659 = vpack.c.b16 %v5467, %v5463
    %v5660 = vpack.c.b16 %v5468, %v5464
    %v5661 = vpack.c.b16 %v5473, %v5469
    %v5662 = vpack.c.b16 %v5474, %v5470
    %v5663 = vpack.c.b16 %v5475, %v5471
    %v5664 = vpack.c.b16 %v5476, %v5472
    %v5665 = vpack.c.b16 %v5481, %v5477
    %v5666 = vpack.c.b16 %v5482, %v5478
    %v5667 = vpack.c.b16 %v5483, %v5479
    %v5668 = vpack.c.b16 %v5484, %v5480
    %v5669 = vpack.c.b16 %v5489, %v5485
    %v5670 = vpack.c.b16 %v5490, %v5486
    %v5671 = vpack.c.b16 %v5491, %v5487
    %v5672 = vpack.c.b16 %v5492, %v5488
    %v5673 = vpack.c.b16 %v5497, %v5493
    %v5674 = vpack.c.b16 %v5498, %v5494
    %v5675 = vpack.c.b16 %v5499, %v5495
    %v5676 = vpack.c.b16 %v5500, %v5496
    %v5677 = vpack.c.b16 %v5505, %v5501
    %v5678 = vpack.c.b16 %v5506, %v5502
    %v5679 = vpack.c.b16 %v5507, %v5503
    %v5680 = vpack.c.b16 %v5508, %v5504
    %v5681 = vpack.c.b16 %v5513, %v5509
    %v5682 = vpack.c.b16 %v5514, %v5510
    %v5683 = vpack.c.b16 %v5515, %v5511
    %v5684 = vpack.c.b16 %v5516, %v5512
    %v5685 = vpack.c.b16 %v5521, %v5517
    %v5686 = vpack.c.b16 %v5522, %v5518
    %v5687 = vpack.c.b16 %v5523, %v5519
    %v5688 = vpack.c.b16 %v5524, %v5520
    %v5689 = vpack.c.b16 %v5529, %v5525
    %v5690 = vpack.c.b16 %v5530, %v5526
    %v5691 = vpack.c.b16 %v5531, %v5527
    %v5692 = vpack.c.b16 %v5532, %v5528
    %v5693 = vpack.c.b16 %v5537, %v5533
    %v5694 = vpack.c.b16 %v5538, %v5534
    %v5695 = vpack.c.b16 %v5539, %v5535
    %v5696 = vpack.c.b16 %v5540, %v5536
    %v5697 = vpack.c.b16 %v5545, %v5541
    %v5698 = vpack.c.b16 %v5546, %v5542
    %v5699 = vpack.c.b16 %v5547, %v5543
    %v5700 = vpack.c.b16 %v5548, %v5544
    %v5701 = vpack.c.b16 %v5553, %v5549
    %v5702 = vpack.c.b16 %v5554, %v5550
    %v5703 = vpack.c.b16 %v5555, %v5551
    %v5704 = vpack.c.b16 %v5556, %v5552
    %v5705 = vpack.c.b16 %v5561, %v5557
    %v5706 = vpack.c.b16 %v5562, %v5558
    %v5707 = vpack.c.b16 %v5563, %v5559
    %v5708 = vpack.c.b16 %v5564, %v5560
    %v5709 = vpack.c.b16 %v5569, %v5565
    %v5710 = vpack.c.b16 %v5570, %v5566
    %v5711 = vpack.c.b16 %v5571, %v5567
    %v5712 = vpack.c.b16 %v5572, %v5568
    %v5713 = vpack.c.b16 %v5577, %v5573
    %v5714 = vpack.c.b16 %v5578, %v5574
    %v5715 = vpack.c.b16 %v5579, %v5575
    %v5716 = vpack.c.b16 %v5580, %v5576
    %v5717 = vpack.c.b16 %v5585, %v5581
    %v5718 = vpack.c.b16 %v5586, %v5582
    %v5719 = vpack.c.b16 %v5587, %v5583
    %v5720 = vpack.c.b16 %v5588, %v5584
    %v5721 = vpack.c.b16 %v5593, %v5589
    %v5722 = vpack.c.b16 %v5594, %v5590
    %v5723 = vpack.c.b16 %v5595, %v5591
    %v5724 = vpack.c.b16 %v5596, %v5592
    %5853 = vmatprep.subr.bf16.mxu0 %v5598
    %5854 = vmatpush1.bf16.msra.mxu0 %v5597
    %5855 = vmatprep.subr.bf16.mxu0 %v5602
    %5856 = vmatpush1.bf16.msra.mxu0 %v5601
    %5857 = vmatprep.subr.bf16.mxu0 %v5606
    %5858 = vmatpush1.bf16.msra.mxu0 %v5605
    %5859 = vmatprep.subr.bf16.mxu0 %v5610
    %5860 = vmatpush1.bf16.msra.mxu0 %v5609
    %5861 = vmatprep.subr.bf16.mxu0 %v5614
    %5862 = vmatpush1.bf16.msra.mxu0 %v5613
    %5863 = vmatprep.subr.bf16.mxu0 %v5618
    %5864 = vmatpush1.bf16.msra.mxu0 %v5617
    %5865 = vmatprep.subr.bf16.mxu0 %v5622
    %5866 = vmatpush1.bf16.msra.mxu0 %v5621
    %5867 = vmatprep.subr.bf16.mxu0 %v5626
    %5868 = vmatpush1.bf16.msra.mxu0 %v5625
    %5869 = vmatprep.subr.bf16.mxu0 %v5630
    %5870 = vmatpush1.bf16.msra.mxu0 %v5629
    %5871 = vmatprep.subr.bf16.mxu0 %v5634
    %5872 = vmatpush1.bf16.msra.mxu0 %v5633
    %5873 = vmatprep.subr.bf16.mxu0 %v5638
    %5874 = vmatpush1.bf16.msra.mxu0 %v5637
    %5875 = vmatprep.subr.bf16.mxu0 %v5642
    %5876 = vmatpush1.bf16.msra.mxu0 %v5641
    %5877 = vmatprep.subr.bf16.mxu0 %v5646
    %5878 = vmatpush1.bf16.msra.mxu0 %v5645
    %5879 = vmatprep.subr.bf16.mxu0 %v5650
    %5880 = vmatpush1.bf16.msra.mxu0 %v5649
    %5881 = vmatprep.subr.bf16.mxu0 %v5654
    %5882 = vmatpush1.bf16.msra.mxu0 %v5653
    %5883 = vmatprep.subr.bf16.mxu0 %v5658
    %5884 = vmatpush1.bf16.msra.mxu0 %v5657
    %5885 = vmatprep.mubr.bf16.mxu0 %v5003
    %5886 = vmatmul.mubr.bf16.gmra.mrb[0].mxu0 %v4991
    %v5887 = vpop.f32.mrb[0].mxu0
    %v5888 = vadd.f32 0.0, %v5887
    %v5889 = vpop.f32.mrb[0].mxu0
    %v5890 = vadd.f32 0.0, %v5889
    %v5891 = vpop.f32.mrb[0].mxu0
    %v5892 = vadd.f32 0.0, %v5891
    %v5893 = vpop.f32.mrb[0].mxu0
    %v5894 = vadd.f32 0.0, %v5893
    %5895 = vmatprep.mubr.bf16.mxu0 %v5051
    %5896 = vmatmul.mubr.bf16.gmra.mrb[0].mxu0 %v5039
    %v5897 = vpop.f32.mrb[0].mxu0
    %v5898 = vadd.f32 0.0, %v5897
    %v5899 = vpop.f32.mrb[0].mxu0
    %v5900 = vadd.f32 0.0, %v5899
    %v5901 = vpop.f32.mrb[0].mxu0
    %v5902 = vadd.f32 0.0, %v5901
    %v5903 = vpop.f32.mrb[0].mxu0
    %v5904 = vadd.f32 0.0, %v5903
    %5905 = vdwg.mxu0
    %5906 = vmatprep.subr.bf16.mxu0 %v5662
    %5907 = vmatpush1.bf16.msra.mxu0 %v5661
    %5908 = vmatprep.subr.bf16.mxu0 %v5666
    %5909 = vmatpush1.bf16.msra.mxu0 %v5665
    %5910 = vmatprep.subr.bf16.mxu0 %v5670
    %5911 = vmatpush1.bf16.msra.mxu0 %v5669
    %5912 = vmatprep.subr.bf16.mxu0 %v5674
    %5913 = vmatpush1.bf16.msra.mxu0 %v5673
    %5914 = vmatprep.subr.bf16.mxu0 %v5678
    %5915 = vmatpush1.bf16.msra.mxu0 %v5677
    %5916 = vmatprep.subr.bf16.mxu0 %v5682
    %5917 = vmatpush1.bf16.msra.mxu0 %v5681
    %5918 = vmatprep.subr.bf16.mxu0 %v5686
    %5919 = vmatpush1.bf16.msra.mxu0 %v5685
    %5920 = vmatprep.subr.bf16.mxu0 %v5690
    %5921 = vmatpush1.bf16.msra.mxu0 %v5689
    %5922 = vmatprep.subr.bf16.mxu0 %v5694
    %5923 = vmatpush1.bf16.msra.mxu0 %v5693
    %5924 = vmatprep.subr.bf16.mxu0 %v5698
    %5925 = vmatpush1.bf16.msra.mxu0 %v5697
    %5926 = vmatprep.subr.bf16.mxu0 %v5702
    %5927 = vmatpush1.bf16.msra.mxu0 %v5701
    %5928 = vmatprep.subr.bf16.mxu0 %v5706
    %5929 = vmatpush1.bf16.msra.mxu0 %v5705
    %5930 = vmatprep.subr.bf16.mxu0 %v5710
    %5931 = vmatpush1.bf16.msra.mxu0 %v5709
    %5932 = vmatprep.subr.bf16.mxu0 %v5714
    %5933 = vmatpush1.bf16.msra.mxu0 %v5713
    %5934 = vmatprep.subr.bf16.mxu0 %v5718
    %5935 = vmatpush1.bf16.msra.mxu0 %v5717
    %5936 = vmatprep.subr.bf16.mxu0 %v5722
    %5937 = vmatpush1.bf16.msra.mxu0 %v5721
    %5938 = vmatprep.mubr.bf16.mxu0 %v5027
    %5939 = vmatmul.mubr.bf16.gmra.mrb[0].mxu0 %v5015
    %v5940 = vpop.f32.mrb[0].mxu0
    %v5941 = vadd.f32 %v5888, %v5940
    %v5942 = vpop.f32.mrb[0].mxu0
    %v5943 = vadd.f32 %v5890, %v5942
    %v5944 = vpop.f32.mrb[0].mxu0
    %v5945 = vadd.f32 %v5892, %v5944
    %v5946 = vpop.f32.mrb[0].mxu0
    %v5947 = vadd.f32 %v5894, %v5946
    %5948 = vmatprep.mubr.bf16.mxu0 %v5075
    %5949 = vmatmul.mubr.bf16.gmra.mrb[0].mxu0 %v5063
    %v5950 = vpop.f32.mrb[0].mxu0
    %v5951 = vadd.f32 %v5898, %v5950
    %v5952 = vpop.f32.mrb[0].mxu0
    %v5953 = vadd.f32 %v5900, %v5952
    %v5954 = vpop.f32.mrb[0].mxu0
    %v5955 = vadd.f32 %v5902, %v5954
    %v5956 = vpop.f32.mrb[0].mxu0
    %v5957 = vadd.f32 %v5904, %v5956
    %5958 = vdwg.mxu0
    %5959 = vmatprep.subr.bf16.mxu0 %v5600
    %5960 = vmatpush1.bf16.msra.mxu0 %v5599
    %5961 = vmatprep.subr.bf16.mxu0 %v5604
    %5962 = vmatpush1.bf16.msra.mxu0 %v5603
    %5963 = vmatprep.subr.bf16.mxu0 %v5608
    %5964 = vmatpush1.bf16.msra.mxu0 %v5607
    %5965 = vmatprep.subr.bf16.mxu0 %v5612
    %5966 = vmatpush1.bf16.msra.mxu0 %v5611
    %5967 = vmatprep.subr.bf16.mxu0 %v5616
    %5968 = vmatpush1.bf16.msra.mxu0 %v5615
    %5969 = vmatprep.subr.bf16.mxu0 %v5620
    %5970 = vmatpush1.bf16.msra.mxu0 %v5619
    %5971 = vmatprep.subr.bf16.mxu0 %v5624
    %5972 = vmatpush1.bf16.msra.mxu0 %v5623
    %5973 = vmatprep.subr.bf16.mxu0 %v5628
    %5974 = vmatpush1.bf16.msra.mxu0 %v5627
    %5975 = vmatprep.subr.bf16.mxu0 %v5632
    %5976 = vmatpush1.bf16.msra.mxu0 %v5631
    %5977 = vmatprep.subr.bf16.mxu0 %v5636
    %5978 = vmatpush1.bf16.msra.mxu0 %v5635
    %5979 = vmatprep.subr.bf16.mxu0 %v5640
    %5980 = vmatpush1.bf16.msra.mxu0 %v5639
    %5981 = vmatprep.subr.bf16.mxu0 %v5644
    %5982 = vmatpush1.bf16.msra.mxu0 %v5643
    %5983 = vmatprep.subr.bf16.mxu0 %v5648
    %5984 = vmatpush1.bf16.msra.mxu0 %v5647
    %5985 = vmatprep.subr.bf16.mxu0 %v5652
    %5986 = vmatpush1.bf16.msra.mxu0 %v5651
    %5987 = vmatprep.subr.bf16.mxu0 %v5656
    %5988 = vmatpush1.bf16.msra.mxu0 %v5655
    %5989 = vmatprep.subr.bf16.mxu0 %v5660
    %5990 = vmatpush1.bf16.msra.mxu0 %v5659
    %5991 = vmatprep.mubr.bf16.mxu0 %v5003
    %5992 = vmatmul.mubr.bf16.gmra.mrb[0].mxu0 %v4991
    %v5993 = vpop.f32.mrb[0].mxu0
    %v5994 = vadd.f32 0.0, %v5993
    %v5995 = vpop.f32.mrb[0].mxu0
    %v5996 = vadd.f32 0.0, %v5995
    %v5997 = vpop.f32.mrb[0].mxu0
    %v5998 = vadd.f32 0.0, %v5997
    %v5999 = vpop.f32.mrb[0].mxu0
    %v6000 = vadd.f32 0.0, %v5999
    %6001 = vmatprep.mubr.bf16.mxu0 %v5051
    %6002 = vmatmul.mubr.bf16.gmra.mrb[0].mxu0 %v5039
    %v6003 = vpop.f32.mrb[0].mxu0
    %v6004 = vadd.f32 0.0, %v6003
    %v6005 = vpop.f32.mrb[0].mxu0
    %v6006 = vadd.f32 0.0, %v6005
    %v6007 = vpop.f32.mrb[0].mxu0
    %v6008 = vadd.f32 0.0, %v6007
    %v6009 = vpop.f32.mrb[0].mxu0
    %v6010 = vadd.f32 0.0, %v6009
    %6011 = vdwg.mxu0
    %6012 = vmatprep.subr.bf16.mxu0 %v5664
    %6013 = vmatpush1.bf16.msra.mxu0 %v5663
    %6014 = vmatprep.subr.bf16.mxu0 %v5668
    %6015 = vmatpush1.bf16.msra.mxu0 %v5667
    %6016 = vmatprep.subr.bf16.mxu0 %v5672
    %6017 = vmatpush1.bf16.msra.mxu0 %v5671
    %6018 = vmatprep.subr.bf16.mxu0 %v5676
    %6019 = vmatpush1.bf16.msra.mxu0 %v5675
    %6020 = vmatprep.subr.bf16.mxu0 %v5680
    %6021 = vmatpush1.bf16.msra.mxu0 %v5679
    %6022 = vmatprep.subr.bf16.mxu0 %v5684
    %6023 = vmatpush1.bf16.msra.mxu0 %v5683
    %6024 = vmatprep.subr.bf16.mxu0 %v5688
    %6025 = vmatpush1.bf16.msra.mxu0 %v5687
    %6026 = vmatprep.subr.bf16.mxu0 %v5692
    %6027 = vmatpush1.bf16.msra.mxu0 %v5691
    %6028 = vmatprep.subr.bf16.mxu0 %v5696
    %6029 = vmatpush1.bf16.msra.mxu0 %v5695
    %6030 = vmatprep.subr.bf16.mxu0 %v5700
    %6031 = vmatpush1.bf16.msra.mxu0 %v5699
    %6032 = vmatprep.subr.bf16.mxu0 %v5704
    %6033 = vmatpush1.bf16.msra.mxu0 %v5703
    %6034 = vmatprep.subr.bf16.mxu0 %v5708
    %6035 = vmatpush1.bf16.msra.mxu0 %v5707
    %6036 = vmatprep.subr.bf16.mxu0 %v5712
    %6037 = vmatpush1.bf16.msra.mxu0 %v5711
    %6038 = vmatprep.subr.bf16.mxu0 %v5716
    %6039 = vmatpush1.bf16.msra.mxu0 %v5715
    %6040 = vmatprep.subr.bf16.mxu0 %v5720
    %6041 = vmatpush1.bf16.msra.mxu0 %v5719
    %6042 = vmatprep.subr.bf16.mxu0 %v5724
    %6043 = vmatpush1.bf16.msra.mxu0 %v5723
    %6044 = vmatprep.mubr.bf16.mxu0 %v5027
    %6045 = vmatmul.mubr.bf16.gmra.mrb[0].mxu0 %v5015
    %v6046 = vpop.f32.mrb[0].mxu0
    %v6047 = vadd.f32 %v5994, %v6046
    %v6048 = vpop.f32.mrb[0].mxu0
    %v6049 = vadd.f32 %v5996, %v6048
    %v6050 = vpop.f32.mrb[0].mxu0
    %v6051 = vadd.f32 %v5998, %v6050
    %v6052 = vpop.f32.mrb[0].mxu0
    %v6053 = vadd.f32 %v6000, %v6052
    %6054 = vmatprep.mubr.bf16.mxu0 %v5075
    %6055 = vmatmul.mubr.bf16.gmra.mrb[0].mxu0 %v5063
    %v6056 = vpop.f32.mrb[0].mxu0
    %v6057 = vadd.f32 %v6004, %v6056
    %v6058 = vpop.f32.mrb[0].mxu0
    %v6059 = vadd.f32 %v6006, %v6058
    %v6060 = vpop.f32.mrb[0].mxu0
    %v6061 = vadd.f32 %v6008, %v6060
    %v6062 = vpop.f32.mrb[0].mxu0
    %v6063 = vadd.f32 %v6010, %v6062
    %6064 = vdwg.mxu0
    %v6193 = vunpack.c.l.b16 %v4852
    %v6194 = vunpack.c.h.b16 %v4852
    %v6195 = vunpack.c.l.b16 %v4853
    %v6196 = vunpack.c.h.b16 %v4853
    %v6197 = vunpack.c.l.b16 %v4854
    %v6198 = vunpack.c.h.b16 %v4854
    %v6199 = vunpack.c.l.b16 %v4855
    %v6200 = vunpack.c.h.b16 %v4855
    %v6201 = vunpack.c.l.b16 %v4856
    %v6202 = vunpack.c.h.b16 %v4856
    %v6203 = vunpack.c.l.b16 %v4857
    %v6204 = vunpack.c.h.b16 %v4857
    %v6205 = vunpack.c.l.b16 %v4858
    %v6206 = vunpack.c.h.b16 %v4858
    %v6207 = vunpack.c.l.b16 %v4859
    %v6208 = vunpack.c.h.b16 %v4859
    %v6209 = vunpack.c.l.b16 %v4860
    %v6210 = vunpack.c.h.b16 %v4860
    %v6211 = vunpack.c.l.b16 %v4861
    %v6212 = vunpack.c.h.b16 %v4861
    %v6213 = vunpack.c.l.b16 %v4862
    %v6214 = vunpack.c.h.b16 %v4862
    %v6215 = vunpack.c.l.b16 %v4863
    %v6216 = vunpack.c.h.b16 %v4863
    %v6217 = vunpack.c.l.b16 %v4864
    %v6218 = vunpack.c.h.b16 %v4864
    %v6219 = vunpack.c.l.b16 %v4865
    %v6220 = vunpack.c.h.b16 %v4865
    %v6221 = vunpack.c.l.b16 %v4866
    %v6222 = vunpack.c.h.b16 %v4866
    %v6223 = vunpack.c.l.b16 %v4867
    %v6224 = vunpack.c.h.b16 %v4867
    %v6225 = vunpack.c.l.b16 %v4868
    %v6226 = vunpack.c.h.b16 %v4868
    %v6227 = vunpack.c.l.b16 %v4869
    %v6228 = vunpack.c.h.b16 %v4869
    %v6229 = vunpack.c.l.b16 %v4870
    %v6230 = vunpack.c.h.b16 %v4870
    %v6231 = vunpack.c.l.b16 %v4871
    %v6232 = vunpack.c.h.b16 %v4871
    %v6233 = vunpack.c.l.b16 %v4872
    %v6234 = vunpack.c.h.b16 %v4872
    %v6235 = vunpack.c.l.b16 %v4873
    %v6236 = vunpack.c.h.b16 %v4873
    %v6237 = vunpack.c.l.b16 %v4874
    %v6238 = vunpack.c.h.b16 %v4874
    %v6239 = vunpack.c.l.b16 %v4875
    %v6240 = vunpack.c.h.b16 %v4875
    %v6241 = vunpack.c.l.b16 %v4876
    %v6242 = vunpack.c.h.b16 %v4876
    %v6243 = vunpack.c.l.b16 %v4877
    %v6244 = vunpack.c.h.b16 %v4877
    %v6245 = vunpack.c.l.b16 %v4878
    %v6246 = vunpack.c.h.b16 %v4878
    %v6247 = vunpack.c.l.b16 %v4879
    %v6248 = vunpack.c.h.b16 %v4879
    %v6249 = vunpack.c.l.b16 %v4880
    %v6250 = vunpack.c.h.b16 %v4880
    %v6251 = vunpack.c.l.b16 %v4881
    %v6252 = vunpack.c.h.b16 %v4881
    %v6253 = vunpack.c.l.b16 %v4882
    %v6254 = vunpack.c.h.b16 %v4882
    %v6255 = vunpack.c.l.b16 %v4883
    %v6256 = vunpack.c.h.b16 %v4883
    %v6257 = vunpack.c.l.b16 %v4884
    %v6258 = vunpack.c.h.b16 %v4884
    %v6259 = vunpack.c.l.b16 %v4885
    %v6260 = vunpack.c.h.b16 %v4885
    %v6261 = vunpack.c.l.b16 %v4886
    %v6262 = vunpack.c.h.b16 %v4886
    %v6263 = vunpack.c.l.b16 %v4887
    %v6264 = vunpack.c.h.b16 %v4887
    %v6265 = vunpack.c.l.b16 %v4888
    %v6266 = vunpack.c.h.b16 %v4888
    %v6267 = vunpack.c.l.b16 %v4889
    %v6268 = vunpack.c.h.b16 %v4889
    %v6269 = vunpack.c.l.b16 %v4890
    %v6270 = vunpack.c.h.b16 %v4890
    %v6271 = vunpack.c.l.b16 %v4891
    %v6272 = vunpack.c.h.b16 %v4891
    %v6273 = vunpack.c.l.b16 %v4892
    %v6274 = vunpack.c.h.b16 %v4892
    %v6275 = vunpack.c.l.b16 %v4893
    %v6276 = vunpack.c.h.b16 %v4893
    %v6277 = vunpack.c.l.b16 %v4894
    %v6278 = vunpack.c.h.b16 %v4894
    %v6279 = vunpack.c.l.b16 %v4895
    %v6280 = vunpack.c.h.b16 %v4895
    %v6281 = vunpack.c.l.b16 %v4896
    %v6282 = vunpack.c.h.b16 %v4896
    %v6283 = vunpack.c.l.b16 %v4897
    %v6284 = vunpack.c.h.b16 %v4897
    %v6285 = vunpack.c.l.b16 %v4898
    %v6286 = vunpack.c.h.b16 %v4898
    %v6287 = vunpack.c.l.b16 %v4899
    %v6288 = vunpack.c.h.b16 %v4899
    %v6289 = vunpack.c.l.b16 %v4900
    %v6290 = vunpack.c.h.b16 %v4900
    %v6291 = vunpack.c.l.b16 %v4901
    %v6292 = vunpack.c.h.b16 %v4901
    %v6293 = vunpack.c.l.b16 %v4902
    %v6294 = vunpack.c.h.b16 %v4902
    %v6295 = vunpack.c.l.b16 %v4903
    %v6296 = vunpack.c.h.b16 %v4903
    %v6297 = vunpack.c.l.b16 %v4904
    %v6298 = vunpack.c.h.b16 %v4904
    %v6299 = vunpack.c.l.b16 %v4905
    %v6300 = vunpack.c.h.b16 %v4905
    %v6301 = vunpack.c.l.b16 %v4906
    %v6302 = vunpack.c.h.b16 %v4906
    %v6303 = vunpack.c.l.b16 %v4907
    %v6304 = vunpack.c.h.b16 %v4907
    %v6305 = vunpack.c.l.b16 %v4908
    %v6306 = vunpack.c.h.b16 %v4908
    %v6307 = vunpack.c.l.b16 %v4909
    %v6308 = vunpack.c.h.b16 %v4909
    %v6309 = vunpack.c.l.b16 %v4910
    %v6310 = vunpack.c.h.b16 %v4910
    %v6311 = vunpack.c.l.b16 %v4911
    %v6312 = vunpack.c.h.b16 %v4911
    %v6313 = vunpack.c.l.b16 %v4912
    %v6314 = vunpack.c.h.b16 %v4912
    %v6315 = vunpack.c.l.b16 %v4913
    %v6316 = vunpack.c.h.b16 %v4913
    %v6317 = vunpack.c.l.b16 %v4914
    %v6318 = vunpack.c.h.b16 %v4914
    %v6319 = vunpack.c.l.b16 %v4915
    %v6320 = vunpack.c.h.b16 %v4915
    %v6321 = vunpack.c.l.b16 %v4916
    %v6322 = vunpack.c.h.b16 %v4916
    %v6323 = vunpack.c.l.b16 %v4917
    %v6324 = vunpack.c.h.b16 %v4917
    %v6325 = vunpack.c.l.b16 %v4918
    %v6326 = vunpack.c.h.b16 %v4918
    %v6327 = vunpack.c.l.b16 %v4919
    %v6328 = vunpack.c.h.b16 %v4919
    %v6329 = vunpack.c.l.b16 %v4920
    %v6330 = vunpack.c.h.b16 %v4920
    %v6331 = vunpack.c.l.b16 %v4921
    %v6332 = vunpack.c.h.b16 %v4921
    %v6333 = vunpack.c.l.b16 %v4922
    %v6334 = vunpack.c.h.b16 %v4922
    %v6335 = vunpack.c.l.b16 %v4923
    %v6336 = vunpack.c.h.b16 %v4923
    %v6337 = vunpack.c.l.b16 %v4924
    %v6338 = vunpack.c.h.b16 %v4924
    %v6339 = vunpack.c.l.b16 %v4925
    %v6340 = vunpack.c.h.b16 %v4925
    %v6341 = vunpack.c.l.b16 %v4926
    %v6342 = vunpack.c.h.b16 %v4926
    %v6343 = vunpack.c.l.b16 %v4927
    %v6344 = vunpack.c.h.b16 %v4927
    %v6345 = vunpack.c.l.b16 %v4928
    %v6346 = vunpack.c.h.b16 %v4928
    %v6347 = vunpack.c.l.b16 %v4929
    %v6348 = vunpack.c.h.b16 %v4929
    %v6349 = vunpack.c.l.b16 %v4930
    %v6350 = vunpack.c.h.b16 %v4930
    %v6351 = vunpack.c.l.b16 %v4931
    %v6352 = vunpack.c.h.b16 %v4931
    %v6353 = vunpack.c.l.b16 %v4932
    %v6354 = vunpack.c.h.b16 %v4932
    %v6355 = vunpack.c.l.b16 %v4933
    %v6356 = vunpack.c.h.b16 %v4933
    %v6357 = vunpack.c.l.b16 %v4934
    %v6358 = vunpack.c.h.b16 %v4934
    %v6359 = vunpack.c.l.b16 %v4935
    %v6360 = vunpack.c.h.b16 %v4935
    %v6361 = vunpack.c.l.b16 %v4936
    %v6362 = vunpack.c.h.b16 %v4936
    %v6363 = vunpack.c.l.b16 %v4937
    %v6364 = vunpack.c.h.b16 %v4937
    %v6365 = vunpack.c.l.b16 %v4938
    %v6366 = vunpack.c.h.b16 %v4938
    %v6367 = vunpack.c.l.b16 %v4939
    %v6368 = vunpack.c.h.b16 %v4939
    %v6369 = vunpack.c.l.b16 %v4940
    %v6370 = vunpack.c.h.b16 %v4940
    %v6371 = vunpack.c.l.b16 %v4941
    %v6372 = vunpack.c.h.b16 %v4941
    %v6373 = vunpack.c.l.b16 %v4942
    %v6374 = vunpack.c.h.b16 %v4942
    %v6375 = vunpack.c.l.b16 %v4943
    %v6376 = vunpack.c.h.b16 %v4943
    %v6377 = vunpack.c.l.b16 %v4944
    %v6378 = vunpack.c.h.b16 %v4944
    %v6379 = vunpack.c.l.b16 %v4945
    %v6380 = vunpack.c.h.b16 %v4945
    %v6381 = vunpack.c.l.b16 %v4946
    %v6382 = vunpack.c.h.b16 %v4946
    %v6383 = vunpack.c.l.b16 %v4947
    %v6384 = vunpack.c.h.b16 %v4947
    %v6385 = vunpack.c.l.b16 %v4948
    %v6386 = vunpack.c.h.b16 %v4948
    %v6387 = vunpack.c.l.b16 %v4949
    %v6388 = vunpack.c.h.b16 %v4949
    %v6389 = vunpack.c.l.b16 %v4950
    %v6390 = vunpack.c.h.b16 %v4950
    %v6391 = vunpack.c.l.b16 %v4951
    %v6392 = vunpack.c.h.b16 %v4951
    %v6393 = vunpack.c.l.b16 %v4952
    %v6394 = vunpack.c.h.b16 %v4952
    %v6395 = vunpack.c.l.b16 %v4953
    %v6396 = vunpack.c.h.b16 %v4953
    %v6397 = vunpack.c.l.b16 %v4954
    %v6398 = vunpack.c.h.b16 %v4954
    %v6399 = vunpack.c.l.b16 %v4955
    %v6400 = vunpack.c.h.b16 %v4955
    %v6401 = vunpack.c.l.b16 %v4956
    %v6402 = vunpack.c.h.b16 %v4956
    %v6403 = vunpack.c.l.b16 %v4957
    %v6404 = vunpack.c.h.b16 %v4957
    %v6405 = vunpack.c.l.b16 %v4958
    %v6406 = vunpack.c.h.b16 %v4958
    %v6407 = vunpack.c.l.b16 %v4959
    %v6408 = vunpack.c.h.b16 %v4959
    %v6409 = vunpack.c.l.b16 %v4960
    %v6410 = vunpack.c.h.b16 %v4960
    %v6411 = vunpack.c.l.b16 %v4961
    %v6412 = vunpack.c.h.b16 %v4961
    %v6413 = vunpack.c.l.b16 %v4962
    %v6414 = vunpack.c.h.b16 %v4962
    %v6415 = vunpack.c.l.b16 %v4963
    %v6416 = vunpack.c.h.b16 %v4963
    %v6417 = vunpack.c.l.b16 %v4964
    %v6418 = vunpack.c.h.b16 %v4964
    %v6419 = vunpack.c.l.b16 %v4965
    %v6420 = vunpack.c.h.b16 %v4965
    %v6421 = vunpack.c.l.b16 %v4966
    %v6422 = vunpack.c.h.b16 %v4966
    %v6423 = vunpack.c.l.b16 %v4967
    %v6424 = vunpack.c.h.b16 %v4967
    %v6425 = vunpack.c.l.b16 %v4968
    %v6426 = vunpack.c.h.b16 %v4968
    %v6427 = vunpack.c.l.b16 %v4969
    %v6428 = vunpack.c.h.b16 %v4969
    %v6429 = vunpack.c.l.b16 %v4970
    %v6430 = vunpack.c.h.b16 %v4970
    %v6431 = vunpack.c.l.b16 %v4971
    %v6432 = vunpack.c.h.b16 %v4971
    %v6433 = vunpack.c.l.b16 %v4972
    %v6434 = vunpack.c.h.b16 %v4972
    %v6435 = vunpack.c.l.b16 %v4973
    %v6436 = vunpack.c.h.b16 %v4973
    %v6437 = vunpack.c.l.b16 %v4974
    %v6438 = vunpack.c.h.b16 %v4974
    %v6439 = vunpack.c.l.b16 %v4975
    %v6440 = vunpack.c.h.b16 %v4975
    %v6441 = vunpack.c.l.b16 %v4976
    %v6442 = vunpack.c.h.b16 %v4976
    %v6443 = vunpack.c.l.b16 %v4977
    %v6444 = vunpack.c.h.b16 %v4977
    %v6445 = vunpack.c.l.b16 %v4978
    %v6446 = vunpack.c.h.b16 %v4978
    %v6447 = vunpack.c.l.b16 %v4979
    %v6448 = vunpack.c.h.b16 %v4979
    %v6449 = vpack.c.b16 %v6197, %v6193
    %v6450 = vpack.c.b16 %v6198, %v6194
    %v6451 = vpack.c.b16 %v6199, %v6195
    %v6452 = vpack.c.b16 %v6200, %v6196
    %v6453 = vpack.c.b16 %v6205, %v6201
    %v6454 = vpack.c.b16 %v6206, %v6202
    %v6455 = vpack.c.b16 %v6207, %v6203
    %v6456 = vpack.c.b16 %v6208, %v6204
    %v6457 = vpack.c.b16 %v6213, %v6209
    %v6458 = vpack.c.b16 %v6214, %v6210
    %v6459 = vpack.c.b16 %v6215, %v6211
    %v6460 = vpack.c.b16 %v6216, %v6212
    %v6461 = vpack.c.b16 %v6221, %v6217
    %v6462 = vpack.c.b16 %v6222, %v6218
    %v6463 = vpack.c.b16 %v6223, %v6219
    %v6464 = vpack.c.b16 %v6224, %v6220
    %v6465 = vpack.c.b16 %v6229, %v6225
    %v6466 = vpack.c.b16 %v6230, %v6226
    %v6467 = vpack.c.b16 %v6231, %v6227
    %v6468 = vpack.c.b16 %v6232, %v6228
    %v6469 = vpack.c.b16 %v6237, %v6233
    %v6470 = vpack.c.b16 %v6238, %v6234
    %v6471 = vpack.c.b16 %v6239, %v6235
    %v6472 = vpack.c.b16 %v6240, %v6236
    %v6473 = vpack.c.b16 %v6245, %v6241
    %v6474 = vpack.c.b16 %v6246, %v6242
    %v6475 = vpack.c.b16 %v6247, %v6243
    %v6476 = vpack.c.b16 %v6248, %v6244
    %v6477 = vpack.c.b16 %v6253, %v6249
    %v6478 = vpack.c.b16 %v6254, %v6250
    %v6479 = vpack.c.b16 %v6255, %v6251
    %v6480 = vpack.c.b16 %v6256, %v6252
    %v6481 = vpack.c.b16 %v6261, %v6257
    %v6482 = vpack.c.b16 %v6262, %v6258
    %v6483 = vpack.c.b16 %v6263, %v6259
    %v6484 = vpack.c.b16 %v6264, %v6260
    %v6485 = vpack.c.b16 %v6269, %v6265
    %v6486 = vpack.c.b16 %v6270, %v6266
    %v6487 = vpack.c.b16 %v6271, %v6267
    %v6488 = vpack.c.b16 %v6272, %v6268
    %v6489 = vpack.c.b16 %v6277, %v6273
    %v6490 = vpack.c.b16 %v6278, %v6274
    %v6491 = vpack.c.b16 %v6279, %v6275
    %v6492 = vpack.c.b16 %v6280, %v6276
    %v6493 = vpack.c.b16 %v6285, %v6281
    %v6494 = vpack.c.b16 %v6286, %v6282
    %v6495 = vpack.c.b16 %v6287, %v6283
    %v6496 = vpack.c.b16 %v6288, %v6284
    %v6497 = vpack.c.b16 %v6293, %v6289
    %v6498 = vpack.c.b16 %v6294, %v6290
    %v6499 = vpack.c.b16 %v6295, %v6291
    %v6500 = vpack.c.b16 %v6296, %v6292
    %v6501 = vpack.c.b16 %v6301, %v6297
    %v6502 = vpack.c.b16 %v6302, %v6298
    %v6503 = vpack.c.b16 %v6303, %v6299
    %v6504 = vpack.c.b16 %v6304, %v6300
    %v6505 = vpack.c.b16 %v6309, %v6305
    %v6506 = vpack.c.b16 %v6310, %v6306
    %v6507 = vpack.c.b16 %v6311, %v6307
    %v6508 = vpack.c.b16 %v6312, %v6308
    %v6509 = vpack.c.b16 %v6317, %v6313
    %v6510 = vpack.c.b16 %v6318, %v6314
    %v6511 = vpack.c.b16 %v6319, %v6315
    %v6512 = vpack.c.b16 %v6320, %v6316
    %v6513 = vpack.c.b16 %v6325, %v6321
    %v6514 = vpack.c.b16 %v6326, %v6322
    %v6515 = vpack.c.b16 %v6327, %v6323
    %v6516 = vpack.c.b16 %v6328, %v6324
    %v6517 = vpack.c.b16 %v6333, %v6329
    %v6518 = vpack.c.b16 %v6334, %v6330
    %v6519 = vpack.c.b16 %v6335, %v6331
    %v6520 = vpack.c.b16 %v6336, %v6332
    %v6521 = vpack.c.b16 %v6341, %v6337
    %v6522 = vpack.c.b16 %v6342, %v6338
    %v6523 = vpack.c.b16 %v6343, %v6339
    %v6524 = vpack.c.b16 %v6344, %v6340
    %v6525 = vpack.c.b16 %v6349, %v6345
    %v6526 = vpack.c.b16 %v6350, %v6346
    %v6527 = vpack.c.b16 %v6351, %v6347
    %v6528 = vpack.c.b16 %v6352, %v6348
    %v6529 = vpack.c.b16 %v6357, %v6353
    %v6530 = vpack.c.b16 %v6358, %v6354
    %v6531 = vpack.c.b16 %v6359, %v6355
    %v6532 = vpack.c.b16 %v6360, %v6356
    %v6533 = vpack.c.b16 %v6365, %v6361
    %v6534 = vpack.c.b16 %v6366, %v6362
    %v6535 = vpack.c.b16 %v6367, %v6363
    %v6536 = vpack.c.b16 %v6368, %v6364
    %v6537 = vpack.c.b16 %v6373, %v6369
    %v6538 = vpack.c.b16 %v6374, %v6370
    %v6539 = vpack.c.b16 %v6375, %v6371
    %v6540 = vpack.c.b16 %v6376, %v6372
    %v6541 = vpack.c.b16 %v6381, %v6377
    %v6542 = vpack.c.b16 %v6382, %v6378
    %v6543 = vpack.c.b16 %v6383, %v6379
    %v6544 = vpack.c.b16 %v6384, %v6380
    %v6545 = vpack.c.b16 %v6389, %v6385
    %v6546 = vpack.c.b16 %v6390, %v6386
    %v6547 = vpack.c.b16 %v6391, %v6387
    %v6548 = vpack.c.b16 %v6392, %v6388
    %v6549 = vpack.c.b16 %v6397, %v6393
    %v6550 = vpack.c.b16 %v6398, %v6394
    %v6551 = vpack.c.b16 %v6399, %v6395
    %v6552 = vpack.c.b16 %v6400, %v6396
    %v6553 = vpack.c.b16 %v6405, %v6401
    %v6554 = vpack.c.b16 %v6406, %v6402
    %v6555 = vpack.c.b16 %v6407, %v6403
    %v6556 = vpack.c.b16 %v6408, %v6404
    %v6557 = vpack.c.b16 %v6413, %v6409
    %v6558 = vpack.c.b16 %v6414, %v6410
    %v6559 = vpack.c.b16 %v6415, %v6411
    %v6560 = vpack.c.b16 %v6416, %v6412
    %v6561 = vpack.c.b16 %v6421, %v6417
    %v6562 = vpack.c.b16 %v6422, %v6418
    %v6563 = vpack.c.b16 %v6423, %v6419
    %v6564 = vpack.c.b16 %v6424, %v6420
    %v6565 = vpack.c.b16 %v6429, %v6425
    %v6566 = vpack.c.b16 %v6430, %v6426
    %v6567 = vpack.c.b16 %v6431, %v6427
    %v6568 = vpack.c.b16 %v6432, %v6428
    %v6569 = vpack.c.b16 %v6437, %v6433
    %v6570 = vpack.c.b16 %v6438, %v6434
    %v6571 = vpack.c.b16 %v6439, %v6435
    %v6572 = vpack.c.b16 %v6440, %v6436
    %v6573 = vpack.c.b16 %v6445, %v6441
    %v6574 = vpack.c.b16 %v6446, %v6442
    %v6575 = vpack.c.b16 %v6447, %v6443
    %v6576 = vpack.c.b16 %v6448, %v6444
    %6705 = vmatprep.subr.bf16.mxu0 %v6450
    %6706 = vmatpush1.bf16.msra.mxu0 %v6449
    %6707 = vmatprep.subr.bf16.mxu0 %v6454
    %6708 = vmatpush1.bf16.msra.mxu0 %v6453
    %6709 = vmatprep.subr.bf16.mxu0 %v6458
    %6710 = vmatpush1.bf16.msra.mxu0 %v6457
    %6711 = vmatprep.subr.bf16.mxu0 %v6462
    %6712 = vmatpush1.bf16.msra.mxu0 %v6461
    %6713 = vmatprep.subr.bf16.mxu0 %v6466
    %6714 = vmatpush1.bf16.msra.mxu0 %v6465
    %6715 = vmatprep.subr.bf16.mxu0 %v6470
    %6716 = vmatpush1.bf16.msra.mxu0 %v6469
    %6717 = vmatprep.subr.bf16.mxu0 %v6474
    %6718 = vmatpush1.bf16.msra.mxu0 %v6473
    %6719 = vmatprep.subr.bf16.mxu0 %v6478
    %6720 = vmatpush1.bf16.msra.mxu0 %v6477
    %6721 = vmatprep.subr.bf16.mxu0 %v6482
    %6722 = vmatpush1.bf16.msra.mxu0 %v6481
    %6723 = vmatprep.subr.bf16.mxu0 %v6486
    %6724 = vmatpush1.bf16.msra.mxu0 %v6485
    %6725 = vmatprep.subr.bf16.mxu0 %v6490
    %6726 = vmatpush1.bf16.msra.mxu0 %v6489
    %6727 = vmatprep.subr.bf16.mxu0 %v6494
    %6728 = vmatpush1.bf16.msra.mxu0 %v6493
    %6729 = vmatprep.subr.bf16.mxu0 %v6498
    %6730 = vmatpush1.bf16.msra.mxu0 %v6497
    %6731 = vmatprep.subr.bf16.mxu0 %v6502
    %6732 = vmatpush1.bf16.msra.mxu0 %v6501
    %6733 = vmatprep.subr.bf16.mxu0 %v6506
    %6734 = vmatpush1.bf16.msra.mxu0 %v6505
    %6735 = vmatprep.subr.bf16.mxu0 %v6510
    %6736 = vmatpush1.bf16.msra.mxu0 %v6509
    %6737 = vmatprep.mubr.bf16.mxu0 %v4837
    %6738 = vmatmul.mubr.bf16.gmra.mrb[0].mxu0 %v4836
    %v6739 = vpop.f32.mrb[0].mxu0
    %v6740 = vadd.f32 %v5941, %v6739
    %v6741 = vpop.f32.mrb[0].mxu0
    %v6742 = vadd.f32 %v5943, %v6741
    %v6743 = vpop.f32.mrb[0].mxu0
    %v6744 = vadd.f32 %v5945, %v6743
    %v6745 = vpop.f32.mrb[0].mxu0
    %v6746 = vadd.f32 %v5947, %v6745
    %6747 = vmatprep.mubr.bf16.mxu0 %v4841
    %6748 = vmatmul.mubr.bf16.gmra.mrb[0].mxu0 %v4840
    %v6749 = vpop.f32.mrb[0].mxu0
    %v6750 = vadd.f32 %v5951, %v6749
    %v6751 = vpop.f32.mrb[0].mxu0
    %v6752 = vadd.f32 %v5953, %v6751
    %v6753 = vpop.f32.mrb[0].mxu0
    %v6754 = vadd.f32 %v5955, %v6753
    %v6755 = vpop.f32.mrb[0].mxu0
    %v6756 = vadd.f32 %v5957, %v6755
    %6757 = vdwg.mxu0
    %6758 = vmatprep.subr.bf16.mxu0 %v6514
    %6759 = vmatpush1.bf16.msra.mxu0 %v6513
    %6760 = vmatprep.subr.bf16.mxu0 %v6518
    %6761 = vmatpush1.bf16.msra.mxu0 %v6517
    %6762 = vmatprep.subr.bf16.mxu0 %v6522
    %6763 = vmatpush1.bf16.msra.mxu0 %v6521
    %6764 = vmatprep.subr.bf16.mxu0 %v6526
    %6765 = vmatpush1.bf16.msra.mxu0 %v6525
    %6766 = vmatprep.subr.bf16.mxu0 %v6530
    %6767 = vmatpush1.bf16.msra.mxu0 %v6529
    %6768 = vmatprep.subr.bf16.mxu0 %v6534
    %6769 = vmatpush1.bf16.msra.mxu0 %v6533
    %6770 = vmatprep.subr.bf16.mxu0 %v6538
    %6771 = vmatpush1.bf16.msra.mxu0 %v6537
    %6772 = vmatprep.subr.bf16.mxu0 %v6542
    %6773 = vmatpush1.bf16.msra.mxu0 %v6541
    %6774 = vmatprep.subr.bf16.mxu0 %v6546
    %6775 = vmatpush1.bf16.msra.mxu0 %v6545
    %6776 = vmatprep.subr.bf16.mxu0 %v6550
    %6777 = vmatpush1.bf16.msra.mxu0 %v6549
    %6778 = vmatprep.subr.bf16.mxu0 %v6554
    %6779 = vmatpush1.bf16.msra.mxu0 %v6553
    %6780 = vmatprep.subr.bf16.mxu0 %v6558
    %6781 = vmatpush1.bf16.msra.mxu0 %v6557
    %6782 = vmatprep.subr.bf16.mxu0 %v6562
    %6783 = vmatpush1.bf16.msra.mxu0 %v6561
    %6784 = vmatprep.subr.bf16.mxu0 %v6566
    %6785 = vmatpush1.bf16.msra.mxu0 %v6565
    %6786 = vmatprep.subr.bf16.mxu0 %v6570
    %6787 = vmatpush1.bf16.msra.mxu0 %v6569
    %6788 = vmatprep.subr.bf16.mxu0 %v6574
    %6789 = vmatpush1.bf16.msra.mxu0 %v6573
    %6790 = vmatprep.mubr.bf16.mxu0 %v4839
    %6791 = vmatmul.mubr.bf16.gmra.mrb[0].mxu0 %v4838
    %v6792 = vpop.f32.mrb[0].mxu0
    %v6793 = vadd.f32 %v6740, %v6792
    %v6794 = vpop.f32.mrb[0].mxu0
    %v6795 = vadd.f32 %v6742, %v6794
    %v6796 = vpop.f32.mrb[0].mxu0
    %v6797 = vadd.f32 %v6744, %v6796
    %v6798 = vpop.f32.mrb[0].mxu0
    %v6799 = vadd.f32 %v6746, %v6798
    %6800 = vmatprep.mubr.bf16.mxu0 %v4843
    %6801 = vmatmul.mubr.bf16.gmra.mrb[0].mxu0 %v4842
    %v6802 = vpop.f32.mrb[0].mxu0
    %v6803 = vadd.f32 %v6750, %v6802
    %v6804 = vpop.f32.mrb[0].mxu0
    %v6805 = vadd.f32 %v6752, %v6804
    %v6806 = vpop.f32.mrb[0].mxu0
    %v6807 = vadd.f32 %v6754, %v6806
    %v6808 = vpop.f32.mrb[0].mxu0
    %v6809 = vadd.f32 %v6756, %v6808
    %6810 = vdwg.mxu0
    %6811 = vmatprep.subr.bf16.mxu0 %v6452
    %6812 = vmatpush1.bf16.msra.mxu0 %v6451
    %6813 = vmatprep.subr.bf16.mxu0 %v6456
    %6814 = vmatpush1.bf16.msra.mxu0 %v6455
    %6815 = vmatprep.subr.bf16.mxu0 %v6460
    %6816 = vmatpush1.bf16.msra.mxu0 %v6459
    %6817 = vmatprep.subr.bf16.mxu0 %v6464
    %6818 = vmatpush1.bf16.msra.mxu0 %v6463
    %6819 = vmatprep.subr.bf16.mxu0 %v6468
    %6820 = vmatpush1.bf16.msra.mxu0 %v6467
    %6821 = vmatprep.subr.bf16.mxu0 %v6472
    %6822 = vmatpush1.bf16.msra.mxu0 %v6471
    %6823 = vmatprep.subr.bf16.mxu0 %v6476
    %6824 = vmatpush1.bf16.msra.mxu0 %v6475
    %6825 = vmatprep.subr.bf16.mxu0 %v6480
    %6826 = vmatpush1.bf16.msra.mxu0 %v6479
    %6827 = vmatprep.subr.bf16.mxu0 %v6484
    %6828 = vmatpush1.bf16.msra.mxu0 %v6483
    %6829 = vmatprep.subr.bf16.mxu0 %v6488
    %6830 = vmatpush1.bf16.msra.mxu0 %v6487
    %6831 = vmatprep.subr.bf16.mxu0 %v6492
    %6832 = vmatpush1.bf16.msra.mxu0 %v6491
    %6833 = vmatprep.subr.bf16.mxu0 %v6496
    %6834 = vmatpush1.bf16.msra.mxu0 %v6495
    %6835 = vmatprep.subr.bf16.mxu0 %v6500
    %6836 = vmatpush1.bf16.msra.mxu0 %v6499
    %6837 = vmatprep.subr.bf16.mxu0 %v6504
    %6838 = vmatpush1.bf16.msra.mxu0 %v6503
    %6839 = vmatprep.subr.bf16.mxu0 %v6508
    %6840 = vmatpush1.bf16.msra.mxu0 %v6507
    %6841 = vmatprep.subr.bf16.mxu0 %v6512
    %6842 = vmatpush1.bf16.msra.mxu0 %v6511
    %6843 = vmatprep.mubr.bf16.mxu0 %v4837
    %6844 = vmatmul.mubr.bf16.gmra.mrb[0].mxu0 %v4836
    %v6845 = vpop.f32.mrb[0].mxu0
    %v6846 = vadd.f32 %v6047, %v6845
    %v6847 = vpop.f32.mrb[0].mxu0
    %v6848 = vadd.f32 %v6049, %v6847
    %v6849 = vpop.f32.mrb[0].mxu0
    %v6850 = vadd.f32 %v6051, %v6849
    %v6851 = vpop.f32.mrb[0].mxu0
    %v6852 = vadd.f32 %v6053, %v6851
    %6853 = vmatprep.mubr.bf16.mxu0 %v4841
    %6854 = vmatmul.mubr.bf16.gmra.mrb[0].mxu0 %v4840
    %v6855 = vpop.f32.mrb[0].mxu0
    %v6856 = vadd.f32 %v6057, %v6855
    %v6857 = vpop.f32.mrb[0].mxu0
    %v6858 = vadd.f32 %v6059, %v6857
    %v6859 = vpop.f32.mrb[0].mxu0
    %v6860 = vadd.f32 %v6061, %v6859
    %v6861 = vpop.f32.mrb[0].mxu0
    %v6862 = vadd.f32 %v6063, %v6861
    %6863 = vdwg.mxu0
    %6864 = vmatprep.subr.bf16.mxu0 %v6516
    %6865 = vmatpush1.bf16.msra.mxu0 %v6515
    %6866 = vmatprep.subr.bf16.mxu0 %v6520
    %6867 = vmatpush1.bf16.msra.mxu0 %v6519
    %6868 = vmatprep.subr.bf16.mxu0 %v6524
    %6869 = vmatpush1.bf16.msra.mxu0 %v6523
    %6870 = vmatprep.subr.bf16.mxu0 %v6528
    %6871 = vmatpush1.bf16.msra.mxu0 %v6527
    %6872 = vmatprep.subr.bf16.mxu0 %v6532
    %6873 = vmatpush1.bf16.msra.mxu0 %v6531
    %6874 = vmatprep.subr.bf16.mxu0 %v6536
    %6875 = vmatpush1.bf16.msra.mxu0 %v6535
    %6876 = vmatprep.subr.bf16.mxu0 %v6540
    %6877 = vmatpush1.bf16.msra.mxu0 %v6539
    %6878 = vmatprep.subr.bf16.mxu0 %v6544
    %6879 = vmatpush1.bf16.msra.mxu0 %v6543
    %6880 = vmatprep.subr.bf16.mxu0 %v6548
    %6881 = vmatpush1.bf16.msra.mxu0 %v6547
    %6882 = vmatprep.subr.bf16.mxu0 %v6552
    %6883 = vmatpush1.bf16.msra.mxu0 %v6551
    %6884 = vmatprep.subr.bf16.mxu0 %v6556
    %6885 = vmatpush1.bf16.msra.mxu0 %v6555
    %6886 = vmatprep.subr.bf16.mxu0 %v6560
    %6887 = vmatpush1.bf16.msra.mxu0 %v6559
    %6888 = vmatprep.subr.bf16.mxu0 %v6564
    %6889 = vmatpush1.bf16.msra.mxu0 %v6563
    %6890 = vmatprep.subr.bf16.mxu0 %v6568
    %6891 = vmatpush1.bf16.msra.mxu0 %v6567
    %6892 = vmatprep.subr.bf16.mxu0 %v6572
    %6893 = vmatpush1.bf16.msra.mxu0 %v6571
    %6894 = vmatprep.subr.bf16.mxu0 %v6576
    %6895 = vmatpush1.bf16.msra.mxu0 %v6575
    %6896 = vmatprep.mubr.bf16.mxu0 %v4839
    %6897 = vmatmul.mubr.bf16.gmra.mrb[0].mxu0 %v4838
    %v6898 = vpop.f32.mrb[0].mxu0
    %v6899 = vadd.f32 %v6846, %v6898
    %v6900 = vpop.f32.mrb[0].mxu0
    %v6901 = vadd.f32 %v6848, %v6900
    %v6902 = vpop.f32.mrb[0].mxu0
    %v6903 = vadd.f32 %v6850, %v6902
    %v6904 = vpop.f32.mrb[0].mxu0
    %v6905 = vadd.f32 %v6852, %v6904
    %6906 = vmatprep.mubr.bf16.mxu0 %v4843
    %6907 = vmatmul.mubr.bf16.gmra.mrb[0].mxu0 %v4842
    %v6908 = vpop.f32.mrb[0].mxu0
    %v6909 = vadd.f32 %v6856, %v6908
    %v6910 = vpop.f32.mrb[0].mxu0
    %v6911 = vadd.f32 %v6858, %v6910
    %v6912 = vpop.f32.mrb[0].mxu0
    %v6913 = vadd.f32 %v6860, %v6912
    %v6914 = vpop.f32.mrb[0].mxu0
    %v6915 = vadd.f32 %v6862, %v6914
    %6916 = vdwg.mxu0
    %v6933 = vrot.slane %v4836, 1
    %v6934 = vrot.slane %v4844, 1
    %v6935 = vsel %vm3200, %v6933, %v6934
    %v6936 = vrot.slane %v4837, 1
    %v6937 = vrot.slane %v4845, 1
    %v6938 = vsel %vm3200, %v6936, %v6937
    %v6939 = vrot.slane %v4838, 1
    %v6940 = vrot.slane %v4846, 1
    %v6941 = vsel %vm3200, %v6939, %v6940
    %v6942 = vrot.slane %v4839, 1
    %v6943 = vrot.slane %v4847, 1
    %v6944 = vsel %vm3200, %v6942, %v6943
    %v6945 = vrot.slane %v4840, 1
    %v6946 = vrot.slane %v4848, 1
    %v6947 = vsel %vm3200, %v6945, %v6946
    %v6948 = vrot.slane %v4841, 1
    %v6949 = vrot.slane %v4849, 1
    %v6950 = vsel %vm3200, %v6948, %v6949
    %v6951 = vrot.slane %v4842, 1
    %v6952 = vrot.slane %v4850, 1
    %v6953 = vsel %vm3200, %v6951, %v6952
    %v6954 = vrot.slane %v4843, 1
    %v6955 = vrot.slane %v4851, 1
    %v6956 = vsel %vm3200, %v6954, %v6955
    %s6965 = scalar_lea.vmem [#allocation17], 2048
    %v6966 = vld [vmem:[%s6965] sm:$0xff]
    %v6967 = vld [vmem:[%s6965 + $0x8] sm:$0xff]
    %v6968 = vld [vmem:[%s6965 + $0x10] sm:$0xff]
    %v6969 = vld [vmem:[%s6965 + $0x18] sm:$0xff]
    %v6970 = vld [vmem:[%s6965 + $0x20] sm:$0xff]
    %v6971 = vld [vmem:[%s6965 + $0x28] sm:$0xff]
    %v6972 = vld [vmem:[%s6965 + $0x30] sm:$0xff]
    %v6973 = vld [vmem:[%s6965 + $0x38] sm:$0xff]
    %v6974 = vld [vmem:[%s6965 + $0x40] sm:$0xff]
    %v6975 = vld [vmem:[%s6965 + $0x48] sm:$0xff]
    %v6976 = vld [vmem:[%s6965 + $0x50] sm:$0xff]
    %v6977 = vld [vmem:[%s6965 + $0x58] sm:$0xff]
    %v6978 = vld [vmem:[%s6965 + $0x60] sm:$0xff]
    %v6979 = vld [vmem:[%s6965 + $0x68] sm:$0xff]
    %v6980 = vld [vmem:[%s6965 + $0x70] sm:$0xff]
    %v6981 = vld [vmem:[%s6965 + $0x78] sm:$0xff]
    %v6982 = vld [vmem:[%s6965 + $0x80] sm:$0xff]
    %v6983 = vld [vmem:[%s6965 + $0x88] sm:$0xff]
    %v6984 = vld [vmem:[%s6965 + $0x90] sm:$0xff]
    %v6985 = vld [vmem:[%s6965 + $0x98] sm:$0xff]
    %v6986 = vld [vmem:[%s6965 + $0xa0] sm:$0xff]
    %v6987 = vld [vmem:[%s6965 + $0xa8] sm:$0xff]
    %v6988 = vld [vmem:[%s6965 + $0xb0] sm:$0xff]
    %v6989 = vld [vmem:[%s6965 + $0xb8] sm:$0xff]
    %v6990 = vld [vmem:[%s6965 + $0xc0] sm:$0xff]
    %v6991 = vld [vmem:[%s6965 + $0xc8] sm:$0xff]
    %v6992 = vld [vmem:[%s6965 + $0xd0] sm:$0xff]
    %v6993 = vld [vmem:[%s6965 + $0xd8] sm:$0xff]
    %v6994 = vld [vmem:[%s6965 + $0xe0] sm:$0xff]
    %v6995 = vld [vmem:[%s6965 + $0xe8] sm:$0xff]
    %v6996 = vld [vmem:[%s6965 + $0xf0] sm:$0xff]
    %v6997 = vld [vmem:[%s6965 + $0xf8] sm:$0xff]
    %v6998 = vld [vmem:[%s6965 + $0x100] sm:$0xff]
    %v6999 = vld [vmem:[%s6965 + $0x108] sm:$0xff]
    %v7000 = vld [vmem:[%s6965 + $0x110] sm:$0xff]
    %v7001 = vld [vmem:[%s6965 + $0x118] sm:$0xff]
    %v7002 = vld [vmem:[%s6965 + $0x120] sm:$0xff]
    %v7003 = vld [vmem:[%s6965 + $0x128] sm:$0xff]
    %v7004 = vld [vmem:[%s6965 + $0x130] sm:$0xff]
    %v7005 = vld [vmem:[%s6965 + $0x138] sm:$0xff]
    %v7006 = vld [vmem:[%s6965 + $0x140] sm:$0xff]
    %v7007 = vld [vmem:[%s6965 + $0x148] sm:$0xff]
    %v7008 = vld [vmem:[%s6965 + $0x150] sm:$0xff]
    %v7009 = vld [vmem:[%s6965 + $0x158] sm:$0xff]
    %v7010 = vld [vmem:[%s6965 + $0x160] sm:$0xff]
    %v7011 = vld [vmem:[%s6965 + $0x168] sm:$0xff]
    %v7012 = vld [vmem:[%s6965 + $0x170] sm:$0xff]
    %v7013 = vld [vmem:[%s6965 + $0x178] sm:$0xff]
    %v7014 = vld [vmem:[%s6965 + $0x180] sm:$0xff]
    %v7015 = vld [vmem:[%s6965 + $0x188] sm:$0xff]
    %v7016 = vld [vmem:[%s6965 + $0x190] sm:$0xff]
    %v7017 = vld [vmem:[%s6965 + $0x198] sm:$0xff]
    %v7018 = vld [vmem:[%s6965 + $0x1a0] sm:$0xff]
    %v7019 = vld [vmem:[%s6965 + $0x1a8] sm:$0xff]
    %v7020 = vld [vmem:[%s6965 + $0x1b0] sm:$0xff]
    %v7021 = vld [vmem:[%s6965 + $0x1b8] sm:$0xff]
    %v7022 = vld [vmem:[%s6965 + $0x1c0] sm:$0xff]
    %v7023 = vld [vmem:[%s6965 + $0x1c8] sm:$0xff]
    %v7024 = vld [vmem:[%s6965 + $0x1d0] sm:$0xff]
    %v7025 = vld [vmem:[%s6965 + $0x1d8] sm:$0xff]
    %v7026 = vld [vmem:[%s6965 + $0x1e0] sm:$0xff]
    %v7027 = vld [vmem:[%s6965 + $0x1e8] sm:$0xff]
    %v7028 = vld [vmem:[%s6965 + $0x1f0] sm:$0xff]
    %v7029 = vld [vmem:[%s6965 + $0x1f8] sm:$0xff]
    %v7030 = vld [vmem:[%s6965 + $0x200] sm:$0xff]
    %v7031 = vld [vmem:[%s6965 + $0x208] sm:$0xff]
    %v7032 = vld [vmem:[%s6965 + $0x210] sm:$0xff]
    %v7033 = vld [vmem:[%s6965 + $0x218] sm:$0xff]
    %v7034 = vld [vmem:[%s6965 + $0x220] sm:$0xff]
    %v7035 = vld [vmem:[%s6965 + $0x228] sm:$0xff]
    %v7036 = vld [vmem:[%s6965 + $0x230] sm:$0xff]
    %v7037 = vld [vmem:[%s6965 + $0x238] sm:$0xff]
    %v7038 = vld [vmem:[%s6965 + $0x240] sm:$0xff]
    %v7039 = vld [vmem:[%s6965 + $0x248] sm:$0xff]
    %v7040 = vld [vmem:[%s6965 + $0x250] sm:$0xff]
    %v7041 = vld [vmem:[%s6965 + $0x258] sm:$0xff]
    %v7042 = vld [vmem:[%s6965 + $0x260] sm:$0xff]
    %v7043 = vld [vmem:[%s6965 + $0x268] sm:$0xff]
    %v7044 = vld [vmem:[%s6965 + $0x270] sm:$0xff]
    %v7045 = vld [vmem:[%s6965 + $0x278] sm:$0xff]
    %v7046 = vld [vmem:[%s6965 + $0x280] sm:$0xff]
    %v7047 = vld [vmem:[%s6965 + $0x288] sm:$0xff]
    %v7048 = vld [vmem:[%s6965 + $0x290] sm:$0xff]
    %v7049 = vld [vmem:[%s6965 + $0x298] sm:$0xff]
    %v7050 = vld [vmem:[%s6965 + $0x2a0] sm:$0xff]
    %v7051 = vld [vmem:[%s6965 + $0x2a8] sm:$0xff]
    %v7052 = vld [vmem:[%s6965 + $0x2b0] sm:$0xff]
    %v7053 = vld [vmem:[%s6965 + $0x2b8] sm:$0xff]
    %v7054 = vld [vmem:[%s6965 + $0x2c0] sm:$0xff]
    %v7055 = vld [vmem:[%s6965 + $0x2c8] sm:$0xff]
    %v7056 = vld [vmem:[%s6965 + $0x2d0] sm:$0xff]
    %v7057 = vld [vmem:[%s6965 + $0x2d8] sm:$0xff]
    %v7058 = vld [vmem:[%s6965 + $0x2e0] sm:$0xff]
    %v7059 = vld [vmem:[%s6965 + $0x2e8] sm:$0xff]
    %v7060 = vld [vmem:[%s6965 + $0x2f0] sm:$0xff]
    %v7061 = vld [vmem:[%s6965 + $0x2f8] sm:$0xff]
    %v7062 = vld [vmem:[%s6965 + $0x300] sm:$0xff]
    %v7063 = vld [vmem:[%s6965 + $0x308] sm:$0xff]
    %v7064 = vld [vmem:[%s6965 + $0x310] sm:$0xff]
    %v7065 = vld [vmem:[%s6965 + $0x318] sm:$0xff]
    %v7066 = vld [vmem:[%s6965 + $0x320] sm:$0xff]
    %v7067 = vld [vmem:[%s6965 + $0x328] sm:$0xff]
    %v7068 = vld [vmem:[%s6965 + $0x330] sm:$0xff]
    %v7069 = vld [vmem:[%s6965 + $0x338] sm:$0xff]
    %v7070 = vld [vmem:[%s6965 + $0x340] sm:$0xff]
    %v7071 = vld [vmem:[%s6965 + $0x348] sm:$0xff]
    %v7072 = vld [vmem:[%s6965 + $0x350] sm:$0xff]
    %v7073 = vld [vmem:[%s6965 + $0x358] sm:$0xff]
    %v7074 = vld [vmem:[%s6965 + $0x360] sm:$0xff]
    %v7075 = vld [vmem:[%s6965 + $0x368] sm:$0xff]
    %v7076 = vld [vmem:[%s6965 + $0x370] sm:$0xff]
    %v7077 = vld [vmem:[%s6965 + $0x378] sm:$0xff]
    %v7078 = vld [vmem:[%s6965 + $0x380] sm:$0xff]
    %v7079 = vld [vmem:[%s6965 + $0x388] sm:$0xff]
    %v7080 = vld [vmem:[%s6965 + $0x390] sm:$0xff]
    %v7081 = vld [vmem:[%s6965 + $0x398] sm:$0xff]
    %v7082 = vld [vmem:[%s6965 + $0x3a0] sm:$0xff]
    %v7083 = vld [vmem:[%s6965 + $0x3a8] sm:$0xff]
    %v7084 = vld [vmem:[%s6965 + $0x3b0] sm:$0xff]
    %v7085 = vld [vmem:[%s6965 + $0x3b8] sm:$0xff]
    %v7086 = vld [vmem:[%s6965 + $0x3c0] sm:$0xff]
    %v7087 = vld [vmem:[%s6965 + $0x3c8] sm:$0xff]
    %v7088 = vld [vmem:[%s6965 + $0x3d0] sm:$0xff]
    %v7089 = vld [vmem:[%s6965 + $0x3d8] sm:$0xff]
    %v7090 = vld [vmem:[%s6965 + $0x3e0] sm:$0xff]
    %v7091 = vld [vmem:[%s6965 + $0x3e8] sm:$0xff]
    %v7092 = vld [vmem:[%s6965 + $0x3f0] sm:$0xff]
    %v7093 = vld [vmem:[%s6965 + $0x3f8] sm:$0xff]
    %v7222 = vunpack.c.l.b16 %v6966
    %v7223 = vunpack.c.h.b16 %v6966
    %v7224 = vunpack.c.l.b16 %v6967
    %v7225 = vunpack.c.h.b16 %v6967
    %v7226 = vunpack.c.l.b16 %v6968
    %v7227 = vunpack.c.h.b16 %v6968
    %v7228 = vunpack.c.l.b16 %v6969
    %v7229 = vunpack.c.h.b16 %v6969
    %v7230 = vunpack.c.l.b16 %v6970
    %v7231 = vunpack.c.h.b16 %v6970
    %v7232 = vunpack.c.l.b16 %v6971
    %v7233 = vunpack.c.h.b16 %v6971
    %v7234 = vunpack.c.l.b16 %v6972
    %v7235 = vunpack.c.h.b16 %v6972
    %v7236 = vunpack.c.l.b16 %v6973
    %v7237 = vunpack.c.h.b16 %v6973
    %v7238 = vunpack.c.l.b16 %v6974
    %v7239 = vunpack.c.h.b16 %v6974
    %v7240 = vunpack.c.l.b16 %v6975
    %v7241 = vunpack.c.h.b16 %v6975
    %v7242 = vunpack.c.l.b16 %v6976
    %v7243 = vunpack.c.h.b16 %v6976
    %v7244 = vunpack.c.l.b16 %v6977
    %v7245 = vunpack.c.h.b16 %v6977
    %v7246 = vunpack.c.l.b16 %v6978
    %v7247 = vunpack.c.h.b16 %v6978
    %v7248 = vunpack.c.l.b16 %v6979
    %v7249 = vunpack.c.h.b16 %v6979
    %v7250 = vunpack.c.l.b16 %v6980
    %v7251 = vunpack.c.h.b16 %v6980
    %v7252 = vunpack.c.l.b16 %v6981
    %v7253 = vunpack.c.h.b16 %v6981
    %v7254 = vunpack.c.l.b16 %v6982
    %v7255 = vunpack.c.h.b16 %v6982
    %v7256 = vunpack.c.l.b16 %v6983
    %v7257 = vunpack.c.h.b16 %v6983
    %v7258 = vunpack.c.l.b16 %v6984
    %v7259 = vunpack.c.h.b16 %v6984
    %v7260 = vunpack.c.l.b16 %v6985
    %v7261 = vunpack.c.h.b16 %v6985
    %v7262 = vunpack.c.l.b16 %v6986
    %v7263 = vunpack.c.h.b16 %v6986
    %v7264 = vunpack.c.l.b16 %v6987
    %v7265 = vunpack.c.h.b16 %v6987
    %v7266 = vunpack.c.l.b16 %v6988
    %v7267 = vunpack.c.h.b16 %v6988
    %v7268 = vunpack.c.l.b16 %v6989
    %v7269 = vunpack.c.h.b16 %v6989
    %v7270 = vunpack.c.l.b16 %v6990
    %v7271 = vunpack.c.h.b16 %v6990
    %v7272 = vunpack.c.l.b16 %v6991
    %v7273 = vunpack.c.h.b16 %v6991
    %v7274 = vunpack.c.l.b16 %v6992
    %v7275 = vunpack.c.h.b16 %v6992
    %v7276 = vunpack.c.l.b16 %v6993
    %v7277 = vunpack.c.h.b16 %v6993
    %v7278 = vunpack.c.l.b16 %v6994
    %v7279 = vunpack.c.h.b16 %v6994
    %v7280 = vunpack.c.l.b16 %v6995
    %v7281 = vunpack.c.h.b16 %v6995
    %v7282 = vunpack.c.l.b16 %v6996
    %v7283 = vunpack.c.h.b16 %v6996
    %v7284 = vunpack.c.l.b16 %v6997
    %v7285 = vunpack.c.h.b16 %v6997
    %v7286 = vunpack.c.l.b16 %v6998
    %v7287 = vunpack.c.h.b16 %v6998
    %v7288 = vunpack.c.l.b16 %v6999
    %v7289 = vunpack.c.h.b16 %v6999
    %v7290 = vunpack.c.l.b16 %v7000
    %v7291 = vunpack.c.h.b16 %v7000
    %v7292 = vunpack.c.l.b16 %v7001
    %v7293 = vunpack.c.h.b16 %v7001
    %v7294 = vunpack.c.l.b16 %v7002
    %v7295 = vunpack.c.h.b16 %v7002
    %v7296 = vunpack.c.l.b16 %v7003
    %v7297 = vunpack.c.h.b16 %v7003
    %v7298 = vunpack.c.l.b16 %v7004
    %v7299 = vunpack.c.h.b16 %v7004
    %v7300 = vunpack.c.l.b16 %v7005
    %v7301 = vunpack.c.h.b16 %v7005
    %v7302 = vunpack.c.l.b16 %v7006
    %v7303 = vunpack.c.h.b16 %v7006
    %v7304 = vunpack.c.l.b16 %v7007
    %v7305 = vunpack.c.h.b16 %v7007
    %v7306 = vunpack.c.l.b16 %v7008
    %v7307 = vunpack.c.h.b16 %v7008
    %v7308 = vunpack.c.l.b16 %v7009
    %v7309 = vunpack.c.h.b16 %v7009
    %v7310 = vunpack.c.l.b16 %v7010
    %v7311 = vunpack.c.h.b16 %v7010
    %v7312 = vunpack.c.l.b16 %v7011
    %v7313 = vunpack.c.h.b16 %v7011
    %v7314 = vunpack.c.l.b16 %v7012
    %v7315 = vunpack.c.h.b16 %v7012
    %v7316 = vunpack.c.l.b16 %v7013
    %v7317 = vunpack.c.h.b16 %v7013
    %v7318 = vunpack.c.l.b16 %v7014
    %v7319 = vunpack.c.h.b16 %v7014
    %v7320 = vunpack.c.l.b16 %v7015
    %v7321 = vunpack.c.h.b16 %v7015
    %v7322 = vunpack.c.l.b16 %v7016
    %v7323 = vunpack.c.h.b16 %v7016
    %v7324 = vunpack.c.l.b16 %v7017
    %v7325 = vunpack.c.h.b16 %v7017
    %v7326 = vunpack.c.l.b16 %v7018
    %v7327 = vunpack.c.h.b16 %v7018
    %v7328 = vunpack.c.l.b16 %v7019
    %v7329 = vunpack.c.h.b16 %v7019
    %v7330 = vunpack.c.l.b16 %v7020
    %v7331 = vunpack.c.h.b16 %v7020
    %v7332 = vunpack.c.l.b16 %v7021
    %v7333 = vunpack.c.h.b16 %v7021
    %v7334 = vunpack.c.l.b16 %v7022
    %v7335 = vunpack.c.h.b16 %v7022
    %v7336 = vunpack.c.l.b16 %v7023
    %v7337 = vunpack.c.h.b16 %v7023
    %v7338 = vunpack.c.l.b16 %v7024
    %v7339 = vunpack.c.h.b16 %v7024
    %v7340 = vunpack.c.l.b16 %v7025
    %v7341 = vunpack.c.h.b16 %v7025
    %v7342 = vunpack.c.l.b16 %v7026
    %v7343 = vunpack.c.h.b16 %v7026
    %v7344 = vunpack.c.l.b16 %v7027
    %v7345 = vunpack.c.h.b16 %v7027
    %v7346 = vunpack.c.l.b16 %v7028
    %v7347 = vunpack.c.h.b16 %v7028
    %v7348 = vunpack.c.l.b16 %v7029
    %v7349 = vunpack.c.h.b16 %v7029
    %v7350 = vunpack.c.l.b16 %v7030
    %v7351 = vunpack.c.h.b16 %v7030
    %v7352 = vunpack.c.l.b16 %v7031
    %v7353 = vunpack.c.h.b16 %v7031
    %v7354 = vunpack.c.l.b16 %v7032
    %v7355 = vunpack.c.h.b16 %v7032
    %v7356 = vunpack.c.l.b16 %v7033
    %v7357 = vunpack.c.h.b16 %v7033
    %v7358 = vunpack.c.l.b16 %v7034
    %v7359 = vunpack.c.h.b16 %v7034
    %v7360 = vunpack.c.l.b16 %v7035
    %v7361 = vunpack.c.h.b16 %v7035
    %v7362 = vunpack.c.l.b16 %v7036
    %v7363 = vunpack.c.h.b16 %v7036
    %v7364 = vunpack.c.l.b16 %v7037
    %v7365 = vunpack.c.h.b16 %v7037
    %v7366 = vunpack.c.l.b16 %v7038
    %v7367 = vunpack.c.h.b16 %v7038
    %v7368 = vunpack.c.l.b16 %v7039
    %v7369 = vunpack.c.h.b16 %v7039
    %v7370 = vunpack.c.l.b16 %v7040
    %v7371 = vunpack.c.h.b16 %v7040
    %v7372 = vunpack.c.l.b16 %v7041
    %v7373 = vunpack.c.h.b16 %v7041
    %v7374 = vunpack.c.l.b16 %v7042
    %v7375 = vunpack.c.h.b16 %v7042
    %v7376 = vunpack.c.l.b16 %v7043
    %v7377 = vunpack.c.h.b16 %v7043
    %v7378 = vunpack.c.l.b16 %v7044
    %v7379 = vunpack.c.h.b16 %v7044
    %v7380 = vunpack.c.l.b16 %v7045
    %v7381 = vunpack.c.h.b16 %v7045
    %v7382 = vunpack.c.l.b16 %v7046
    %v7383 = vunpack.c.h.b16 %v7046
    %v7384 = vunpack.c.l.b16 %v7047
    %v7385 = vunpack.c.h.b16 %v7047
    %v7386 = vunpack.c.l.b16 %v7048
    %v7387 = vunpack.c.h.b16 %v7048
    %v7388 = vunpack.c.l.b16 %v7049
    %v7389 = vunpack.c.h.b16 %v7049
    %v7390 = vunpack.c.l.b16 %v7050
    %v7391 = vunpack.c.h.b16 %v7050
    %v7392 = vunpack.c.l.b16 %v7051
    %v7393 = vunpack.c.h.b16 %v7051
    %v7394 = vunpack.c.l.b16 %v7052
    %v7395 = vunpack.c.h.b16 %v7052
    %v7396 = vunpack.c.l.b16 %v7053
    %v7397 = vunpack.c.h.b16 %v7053
    %v7398 = vunpack.c.l.b16 %v7054
    %v7399 = vunpack.c.h.b16 %v7054
    %v7400 = vunpack.c.l.b16 %v7055
    %v7401 = vunpack.c.h.b16 %v7055
    %v7402 = vunpack.c.l.b16 %v7056
    %v7403 = vunpack.c.h.b16 %v7056
    %v7404 = vunpack.c.l.b16 %v7057
    %v7405 = vunpack.c.h.b16 %v7057
    %v7406 = vunpack.c.l.b16 %v7058
    %v7407 = vunpack.c.h.b16 %v7058
    %v7408 = vunpack.c.l.b16 %v7059
    %v7409 = vunpack.c.h.b16 %v7059
    %v7410 = vunpack.c.l.b16 %v7060
    %v7411 = vunpack.c.h.b16 %v7060
    %v7412 = vunpack.c.l.b16 %v7061
    %v7413 = vunpack.c.h.b16 %v7061
    %v7414 = vunpack.c.l.b16 %v7062
    %v7415 = vunpack.c.h.b16 %v7062
    %v7416 = vunpack.c.l.b16 %v7063
    %v7417 = vunpack.c.h.b16 %v7063
    %v7418 = vunpack.c.l.b16 %v7064
    %v7419 = vunpack.c.h.b16 %v7064
    %v7420 = vunpack.c.l.b16 %v7065
    %v7421 = vunpack.c.h.b16 %v7065
    %v7422 = vunpack.c.l.b16 %v7066
    %v7423 = vunpack.c.h.b16 %v7066
    %v7424 = vunpack.c.l.b16 %v7067
    %v7425 = vunpack.c.h.b16 %v7067
    %v7426 = vunpack.c.l.b16 %v7068
    %v7427 = vunpack.c.h.b16 %v7068
    %v7428 = vunpack.c.l.b16 %v7069
    %v7429 = vunpack.c.h.b16 %v7069
    %v7430 = vunpack.c.l.b16 %v7070
    %v7431 = vunpack.c.h.b16 %v7070
    %v7432 = vunpack.c.l.b16 %v7071
    %v7433 = vunpack.c.h.b16 %v7071
    %v7434 = vunpack.c.l.b16 %v7072
    %v7435 = vunpack.c.h.b16 %v7072
    %v7436 = vunpack.c.l.b16 %v7073
    %v7437 = vunpack.c.h.b16 %v7073
    %v7438 = vunpack.c.l.b16 %v7074
    %v7439 = vunpack.c.h.b16 %v7074
    %v7440 = vunpack.c.l.b16 %v7075
    %v7441 = vunpack.c.h.b16 %v7075
    %v7442 = vunpack.c.l.b16 %v7076
    %v7443 = vunpack.c.h.b16 %v7076
    %v7444 = vunpack.c.l.b16 %v7077
    %v7445 = vunpack.c.h.b16 %v7077
    %v7446 = vunpack.c.l.b16 %v7078
    %v7447 = vunpack.c.h.b16 %v7078
    %v7448 = vunpack.c.l.b16 %v7079
    %v7449 = vunpack.c.h.b16 %v7079
    %v7450 = vunpack.c.l.b16 %v7080
    %v7451 = vunpack.c.h.b16 %v7080
    %v7452 = vunpack.c.l.b16 %v7081
    %v7453 = vunpack.c.h.b16 %v7081
    %v7454 = vunpack.c.l.b16 %v7082
    %v7455 = vunpack.c.h.b16 %v7082
    %v7456 = vunpack.c.l.b16 %v7083
    %v7457 = vunpack.c.h.b16 %v7083
    %v7458 = vunpack.c.l.b16 %v7084
    %v7459 = vunpack.c.h.b16 %v7084
    %v7460 = vunpack.c.l.b16 %v7085
    %v7461 = vunpack.c.h.b16 %v7085
    %v7462 = vunpack.c.l.b16 %v7086
    %v7463 = vunpack.c.h.b16 %v7086
    %v7464 = vunpack.c.l.b16 %v7087
    %v7465 = vunpack.c.h.b16 %v7087
    %v7466 = vunpack.c.l.b16 %v7088
    %v7467 = vunpack.c.h.b16 %v7088
    %v7468 = vunpack.c.l.b16 %v7089
    %v7469 = vunpack.c.h.b16 %v7089
    %v7470 = vunpack.c.l.b16 %v7090
    %v7471 = vunpack.c.h.b16 %v7090
    %v7472 = vunpack.c.l.b16 %v7091
    %v7473 = vunpack.c.h.b16 %v7091
    %v7474 = vunpack.c.l.b16 %v7092
    %v7475 = vunpack.c.h.b16 %v7092
    %v7476 = vunpack.c.l.b16 %v7093
    %v7477 = vunpack.c.h.b16 %v7093
    %v7478 = vpack.c.b16 %v7226, %v7222
    %v7479 = vpack.c.b16 %v7227, %v7223
    %v7480 = vpack.c.b16 %v7228, %v7224
    %v7481 = vpack.c.b16 %v7229, %v7225
    %v7482 = vpack.c.b16 %v7234, %v7230
    %v7483 = vpack.c.b16 %v7235, %v7231
    %v7484 = vpack.c.b16 %v7236, %v7232
    %v7485 = vpack.c.b16 %v7237, %v7233
    %v7486 = vpack.c.b16 %v7242, %v7238
    %v7487 = vpack.c.b16 %v7243, %v7239
    %v7488 = vpack.c.b16 %v7244, %v7240
    %v7489 = vpack.c.b16 %v7245, %v7241
    %v7490 = vpack.c.b16 %v7250, %v7246
    %v7491 = vpack.c.b16 %v7251, %v7247
    %v7492 = vpack.c.b16 %v7252, %v7248
    %v7493 = vpack.c.b16 %v7253, %v7249
    %v7494 = vpack.c.b16 %v7258, %v7254
    %v7495 = vpack.c.b16 %v7259, %v7255
    %v7496 = vpack.c.b16 %v7260, %v7256
    %v7497 = vpack.c.b16 %v7261, %v7257
    %v7498 = vpack.c.b16 %v7266, %v7262
    %v7499 = vpack.c.b16 %v7267, %v7263
    %v7500 = vpack.c.b16 %v7268, %v7264
    %v7501 = vpack.c.b16 %v7269, %v7265
    %v7502 = vpack.c.b16 %v7274, %v7270
    %v7503 = vpack.c.b16 %v7275, %v7271
    %v7504 = vpack.c.b16 %v7276, %v7272
    %v7505 = vpack.c.b16 %v7277, %v7273
    %v7506 = vpack.c.b16 %v7282, %v7278
    %v7507 = vpack.c.b16 %v7283, %v7279
    %v7508 = vpack.c.b16 %v7284, %v7280
    %v7509 = vpack.c.b16 %v7285, %v7281
    %v7510 = vpack.c.b16 %v7290, %v7286
    %v7511 = vpack.c.b16 %v7291, %v7287
    %v7512 = vpack.c.b16 %v7292, %v7288
    %v7513 = vpack.c.b16 %v7293, %v7289
    %v7514 = vpack.c.b16 %v7298, %v7294
    %v7515 = vpack.c.b16 %v7299, %v7295
    %v7516 = vpack.c.b16 %v7300, %v7296
    %v7517 = vpack.c.b16 %v7301, %v7297
    %v7518 = vpack.c.b16 %v7306, %v7302
    %v7519 = vpack.c.b16 %v7307, %v7303
    %v7520 = vpack.c.b16 %v7308, %v7304
    %v7521 = vpack.c.b16 %v7309, %v7305
    %v7522 = vpack.c.b16 %v7314, %v7310
    %v7523 = vpack.c.b16 %v7315, %v7311
    %v7524 = vpack.c.b16 %v7316, %v7312
    %v7525 = vpack.c.b16 %v7317, %v7313
    %v7526 = vpack.c.b16 %v7322, %v7318
    %v7527 = vpack.c.b16 %v7323, %v7319
    %v7528 = vpack.c.b16 %v7324, %v7320
    %v7529 = vpack.c.b16 %v7325, %v7321
    %v7530 = vpack.c.b16 %v7330, %v7326
    %v7531 = vpack.c.b16 %v7331, %v7327
    %v7532 = vpack.c.b16 %v7332, %v7328
    %v7533 = vpack.c.b16 %v7333, %v7329
    %v7534 = vpack.c.b16 %v7338, %v7334
    %v7535 = vpack.c.b16 %v7339, %v7335
    %v7536 = vpack.c.b16 %v7340, %v7336
    %v7537 = vpack.c.b16 %v7341, %v7337
    %v7538 = vpack.c.b16 %v7346, %v7342
    %v7539 = vpack.c.b16 %v7347, %v7343
    %v7540 = vpack.c.b16 %v7348, %v7344
    %v7541 = vpack.c.b16 %v7349, %v7345
    %v7542 = vpack.c.b16 %v7354, %v7350
    %v7543 = vpack.c.b16 %v7355, %v7351
    %v7544 = vpack.c.b16 %v7356, %v7352
    %v7545 = vpack.c.b16 %v7357, %v7353
    %v7546 = vpack.c.b16 %v7362, %v7358
    %v7547 = vpack.c.b16 %v7363, %v7359
    %v7548 = vpack.c.b16 %v7364, %v7360
    %v7549 = vpack.c.b16 %v7365, %v7361
    %v7550 = vpack.c.b16 %v7370, %v7366
    %v7551 = vpack.c.b16 %v7371, %v7367
    %v7552 = vpack.c.b16 %v7372, %v7368
    %v7553 = vpack.c.b16 %v7373, %v7369
    %v7554 = vpack.c.b16 %v7378, %v7374
    %v7555 = vpack.c.b16 %v7379, %v7375
    %v7556 = vpack.c.b16 %v7380, %v7376
    %v7557 = vpack.c.b16 %v7381, %v7377
    %v7558 = vpack.c.b16 %v7386, %v7382
    %v7559 = vpack.c.b16 %v7387, %v7383
    %v7560 = vpack.c.b16 %v7388, %v7384
    %v7561 = vpack.c.b16 %v7389, %v7385
    %v7562 = vpack.c.b16 %v7394, %v7390
    %v7563 = vpack.c.b16 %v7395, %v7391
    %v7564 = vpack.c.b16 %v7396, %v7392
    %v7565 = vpack.c.b16 %v7397, %v7393
    %v7566 = vpack.c.b16 %v7402, %v7398
    %v7567 = vpack.c.b16 %v7403, %v7399
    %v7568 = vpack.c.b16 %v7404, %v7400
    %v7569 = vpack.c.b16 %v7405, %v7401
    %v7570 = vpack.c.b16 %v7410, %v7406
    %v7571 = vpack.c.b16 %v7411, %v7407
    %v7572 = vpack.c.b16 %v7412, %v7408
    %v7573 = vpack.c.b16 %v7413, %v7409
    %v7574 = vpack.c.b16 %v7418, %v7414
    %v7575 = vpack.c.b16 %v7419, %v7415
    %v7576 = vpack.c.b16 %v7420, %v7416
    %v7577 = vpack.c.b16 %v7421, %v7417
    %v7578 = vpack.c.b16 %v7426, %v7422
    %v7579 = vpack.c.b16 %v7427, %v7423
    %v7580 = vpack.c.b16 %v7428, %v7424
    %v7581 = vpack.c.b16 %v7429, %v7425
    %v7582 = vpack.c.b16 %v7434, %v7430
    %v7583 = vpack.c.b16 %v7435, %v7431
    %v7584 = vpack.c.b16 %v7436, %v7432
    %v7585 = vpack.c.b16 %v7437, %v7433
    %v7586 = vpack.c.b16 %v7442, %v7438
    %v7587 = vpack.c.b16 %v7443, %v7439
    %v7588 = vpack.c.b16 %v7444, %v7440
    %v7589 = vpack.c.b16 %v7445, %v7441
    %v7590 = vpack.c.b16 %v7450, %v7446
    %v7591 = vpack.c.b16 %v7451, %v7447
    %v7592 = vpack.c.b16 %v7452, %v7448
    %v7593 = vpack.c.b16 %v7453, %v7449
    %v7594 = vpack.c.b16 %v7458, %v7454
    %v7595 = vpack.c.b16 %v7459, %v7455
    %v7596 = vpack.c.b16 %v7460, %v7456
    %v7597 = vpack.c.b16 %v7461, %v7457
    %v7598 = vpack.c.b16 %v7466, %v7462
    %v7599 = vpack.c.b16 %v7467, %v7463
    %v7600 = vpack.c.b16 %v7468, %v7464
    %v7601 = vpack.c.b16 %v7469, %v7465
    %v7602 = vpack.c.b16 %v7474, %v7470
    %v7603 = vpack.c.b16 %v7475, %v7471
    %v7604 = vpack.c.b16 %v7476, %v7472
    %v7605 = vpack.c.b16 %v7477, %v7473
    %7734 = vmatprep.subr.bf16.mxu0 %v7479
    %7735 = vmatpush1.bf16.msra.mxu0 %v7478
    %7736 = vmatprep.subr.bf16.mxu0 %v7483
    %7737 = vmatpush1.bf16.msra.mxu0 %v7482
    %7738 = vmatprep.subr.bf16.mxu0 %v7487
    %7739 = vmatpush1.bf16.msra.mxu0 %v7486
    %7740 = vmatprep.subr.bf16.mxu0 %v7491
    %7741 = vmatpush1.bf16.msra.mxu0 %v7490
    %7742 = vmatprep.subr.bf16.mxu0 %v7495
    %7743 = vmatpush1.bf16.msra.mxu0 %v7494
    %7744 = vmatprep.subr.bf16.mxu0 %v7499
    %7745 = vmatpush1.bf16.msra.mxu0 %v7498
    %7746 = vmatprep.subr.bf16.mxu0 %v7503
    %7747 = vmatpush1.bf16.msra.mxu0 %v7502
    %7748 = vmatprep.subr.bf16.mxu0 %v7507
    %7749 = vmatpush1.bf16.msra.mxu0 %v7506
    %7750 = vmatprep.subr.bf16.mxu0 %v7511
    %7751 = vmatpush1.bf16.msra.mxu0 %v7510
    %7752 = vmatprep.subr.bf16.mxu0 %v7515
    %7753 = vmatpush1.bf16.msra.mxu0 %v7514
    %7754 = vmatprep.subr.bf16.mxu0 %v7519
    %7755 = vmatpush1.bf16.msra.mxu0 %v7518
    %7756 = vmatprep.subr.bf16.mxu0 %v7523
    %7757 = vmatpush1.bf16.msra.mxu0 %v7522
    %7758 = vmatprep.subr.bf16.mxu0 %v7527
    %7759 = vmatpush1.bf16.msra.mxu0 %v7526
    %7760 = vmatprep.subr.bf16.mxu0 %v7531
    %7761 = vmatpush1.bf16.msra.mxu0 %v7530
    %7762 = vmatprep.subr.bf16.mxu0 %v7535
    %7763 = vmatpush1.bf16.msra.mxu0 %v7534
    %7764 = vmatprep.subr.bf16.mxu0 %v7539
    %7765 = vmatpush1.bf16.msra.mxu0 %v7538
    %7766 = vmatprep.mubr.bf16.mxu0 %v6938
    %7767 = vmatmul.mubr.bf16.gmra.mrb[0].mxu0 %v6935
    %v7768 = vpop.f32.mrb[0].mxu0
    %v7769 = vadd.f32 0.0, %v7768
    %v7770 = vpop.f32.mrb[0].mxu0
    %v7771 = vadd.f32 0.0, %v7770
    %v7772 = vpop.f32.mrb[0].mxu0
    %v7773 = vadd.f32 0.0, %v7772
    %v7774 = vpop.f32.mrb[0].mxu0
    %v7775 = vadd.f32 0.0, %v7774
    %7776 = vmatprep.mubr.bf16.mxu0 %v6950
    %7777 = vmatmul.mubr.bf16.gmra.mrb[0].mxu0 %v6947
    %v7778 = vpop.f32.mrb[0].mxu0
    %v7779 = vadd.f32 0.0, %v7778
    %v7780 = vpop.f32.mrb[0].mxu0
    %v7781 = vadd.f32 0.0, %v7780
    %v7782 = vpop.f32.mrb[0].mxu0
    %v7783 = vadd.f32 0.0, %v7782
    %v7784 = vpop.f32.mrb[0].mxu0
    %v7785 = vadd.f32 0.0, %v7784
    %7786 = vdwg.mxu0
    %7787 = vmatprep.subr.bf16.mxu0 %v7543
    %7788 = vmatpush1.bf16.msra.mxu0 %v7542
    %7789 = vmatprep.subr.bf16.mxu0 %v7547
    %7790 = vmatpush1.bf16.msra.mxu0 %v7546
    %7791 = vmatprep.subr.bf16.mxu0 %v7551
    %7792 = vmatpush1.bf16.msra.mxu0 %v7550
    %7793 = vmatprep.subr.bf16.mxu0 %v7555
    %7794 = vmatpush1.bf16.msra.mxu0 %v7554
    %7795 = vmatprep.subr.bf16.mxu0 %v7559
    %7796 = vmatpush1.bf16.msra.mxu0 %v7558
    %7797 = vmatprep.subr.bf16.mxu0 %v7563
    %7798 = vmatpush1.bf16.msra.mxu0 %v7562
    %7799 = vmatprep.subr.bf16.mxu0 %v7567
    %7800 = vmatpush1.bf16.msra.mxu0 %v7566
    %7801 = vmatprep.subr.bf16.mxu0 %v7571
    %7802 = vmatpush1.bf16.msra.mxu0 %v7570
    %7803 = vmatprep.subr.bf16.mxu0 %v7575
    %7804 = vmatpush1.bf16.msra.mxu0 %v7574
    %7805 = vmatprep.subr.bf16.mxu0 %v7579
    %7806 = vmatpush1.bf16.msra.mxu0 %v7578
    %7807 = vmatprep.subr.bf16.mxu0 %v7583
    %7808 = vmatpush1.bf16.msra.mxu0 %v7582
    %7809 = vmatprep.subr.bf16.mxu0 %v7587
    %7810 = vmatpush1.bf16.msra.mxu0 %v7586
    %7811 = vmatprep.subr.bf16.mxu0 %v7591
    %7812 = vmatpush1.bf16.msra.mxu0 %v7590
    %7813 = vmatprep.subr.bf16.mxu0 %v7595
    %7814 = vmatpush1.bf16.msra.mxu0 %v7594
    %7815 = vmatprep.subr.bf16.mxu0 %v7599
    %7816 = vmatpush1.bf16.msra.mxu0 %v7598
    %7817 = vmatprep.subr.bf16.mxu0 %v7603
    %7818 = vmatpush1.bf16.msra.mxu0 %v7602
    %7819 = vmatprep.mubr.bf16.mxu0 %v6944
    %7820 = vmatmul.mubr.bf16.gmra.mrb[0].mxu0 %v6941
    %v7821 = vpop.f32.mrb[0].mxu0
    %v7822 = vadd.f32 %v7769, %v7821
    %v7823 = vpop.f32.mrb[0].mxu0
    %v7824 = vadd.f32 %v7771, %v7823
    %v7825 = vpop.f32.mrb[0].mxu0
    %v7826 = vadd.f32 %v7773, %v7825
    %v7827 = vpop.f32.mrb[0].mxu0
    %v7828 = vadd.f32 %v7775, %v7827
    %7829 = vmatprep.mubr.bf16.mxu0 %v6956
    %7830 = vmatmul.mubr.bf16.gmra.mrb[0].mxu0 %v6953
    %v7831 = vpop.f32.mrb[0].mxu0
    %v7832 = vadd.f32 %v7779, %v7831
    %v7833 = vpop.f32.mrb[0].mxu0
    %v7834 = vadd.f32 %v7781, %v7833
    %v7835 = vpop.f32.mrb[0].mxu0
    %v7836 = vadd.f32 %v7783, %v7835
    %v7837 = vpop.f32.mrb[0].mxu0
    %v7838 = vadd.f32 %v7785, %v7837
    %7839 = vdwg.mxu0
    %7840 = vmatprep.subr.bf16.mxu0 %v7481
    %7841 = vmatpush1.bf16.msra.mxu0 %v7480
    %7842 = vmatprep.subr.bf16.mxu0 %v7485
    %7843 = vmatpush1.bf16.msra.mxu0 %v7484
    %7844 = vmatprep.subr.bf16.mxu0 %v7489
    %7845 = vmatpush1.bf16.msra.mxu0 %v7488
    %7846 = vmatprep.subr.bf16.mxu0 %v7493
    %7847 = vmatpush1.bf16.msra.mxu0 %v7492
    %7848 = vmatprep.subr.bf16.mxu0 %v7497
    %7849 = vmatpush1.bf16.msra.mxu0 %v7496
    %7850 = vmatprep.subr.bf16.mxu0 %v7501
    %7851 = vmatpush1.bf16.msra.mxu0 %v7500
    %7852 = vmatprep.subr.bf16.mxu0 %v7505
    %7853 = vmatpush1.bf16.msra.mxu0 %v7504
    %7854 = vmatprep.subr.bf16.mxu0 %v7509
    %7855 = vmatpush1.bf16.msra.mxu0 %v7508
    %7856 = vmatprep.subr.bf16.mxu0 %v7513
    %7857 = vmatpush1.bf16.msra.mxu0 %v7512
    %7858 = vmatprep.subr.bf16.mxu0 %v7517
    %7859 = vmatpush1.bf16.msra.mxu0 %v7516
    %7860 = vmatprep.subr.bf16.mxu0 %v7521
    %7861 = vmatpush1.bf16.msra.mxu0 %v7520
    %7862 = vmatprep.subr.bf16.mxu0 %v7525
    %7863 = vmatpush1.bf16.msra.mxu0 %v7524
    %7864 = vmatprep.subr.bf16.mxu0 %v7529
    %7865 = vmatpush1.bf16.msra.mxu0 %v7528
    %7866 = vmatprep.subr.bf16.mxu0 %v7533
    %7867 = vmatpush1.bf16.msra.mxu0 %v7532
    %7868 = vmatprep.subr.bf16.mxu0 %v7537
    %7869 = vmatpush1.bf16.msra.mxu0 %v7536
    %7870 = vmatprep.subr.bf16.mxu0 %v7541
    %7871 = vmatpush1.bf16.msra.mxu0 %v7540
    %7872 = vmatprep.mubr.bf16.mxu0 %v6938
    %7873 = vmatmul.mubr.bf16.gmra.mrb[0].mxu0 %v6935
    %v7874 = vpop.f32.mrb[0].mxu0
    %v7875 = vadd.f32 0.0, %v7874
    %v7876 = vpop.f32.mrb[0].mxu0
    %v7877 = vadd.f32 0.0, %v7876
    %v7878 = vpop.f32.mrb[0].mxu0
    %v7879 = vadd.f32 0.0, %v7878
    %v7880 = vpop.f32.mrb[0].mxu0
    %v7881 = vadd.f32 0.0, %v7880
    %7882 = vmatprep.mubr.bf16.mxu0 %v6950
    %7883 = vmatmul.mubr.bf16.gmra.mrb[0].mxu0 %v6947
    %v7884 = vpop.f32.mrb[0].mxu0
    %v7885 = vadd.f32 0.0, %v7884
    %v7886 = vpop.f32.mrb[0].mxu0
    %v7887 = vadd.f32 0.0, %v7886
    %v7888 = vpop.f32.mrb[0].mxu0
    %v7889 = vadd.f32 0.0, %v7888
    %v7890 = vpop.f32.mrb[0].mxu0
    %v7891 = vadd.f32 0.0, %v7890
    %7892 = vdwg.mxu0
    %7893 = vmatprep.subr.bf16.mxu0 %v7545
    %7894 = vmatpush1.bf16.msra.mxu0 %v7544
    %7895 = vmatprep.subr.bf16.mxu0 %v7549
    %7896 = vmatpush1.bf16.msra.mxu0 %v7548
    %7897 = vmatprep.subr.bf16.mxu0 %v7553
    %7898 = vmatpush1.bf16.msra.mxu0 %v7552
    %7899 = vmatprep.subr.bf16.mxu0 %v7557
    %7900 = vmatpush1.bf16.msra.mxu0 %v7556
    %7901 = vmatprep.subr.bf16.mxu0 %v7561
    %7902 = vmatpush1.bf16.msra.mxu0 %v7560
    %7903 = vmatprep.subr.bf16.mxu0 %v7565
    %7904 = vmatpush1.bf16.msra.mxu0 %v7564
    %7905 = vmatprep.subr.bf16.mxu0 %v7569
    %7906 = vmatpush1.bf16.msra.mxu0 %v7568
    %7907 = vmatprep.subr.bf16.mxu0 %v7573
    %7908 = vmatpush1.bf16.msra.mxu0 %v7572
    %7909 = vmatprep.subr.bf16.mxu0 %v7577
    %7910 = vmatpush1.bf16.msra.mxu0 %v7576
    %7911 = vmatprep.subr.bf16.mxu0 %v7581
    %7912 = vmatpush1.bf16.msra.mxu0 %v7580
    %7913 = vmatprep.subr.bf16.mxu0 %v7585
    %7914 = vmatpush1.bf16.msra.mxu0 %v7584
    %7915 = vmatprep.subr.bf16.mxu0 %v7589
    %7916 = vmatpush1.bf16.msra.mxu0 %v7588
    %7917 = vmatprep.subr.bf16.mxu0 %v7593
    %7918 = vmatpush1.bf16.msra.mxu0 %v7592
    %7919 = vmatprep.subr.bf16.mxu0 %v7597
    %7920 = vmatpush1.bf16.msra.mxu0 %v7596
    %7921 = vmatprep.subr.bf16.mxu0 %v7601
    %7922 = vmatpush1.bf16.msra.mxu0 %v7600
    %7923 = vmatprep.subr.bf16.mxu0 %v7605
    %7924 = vmatpush1.bf16.msra.mxu0 %v7604
    %7925 = vmatprep.mubr.bf16.mxu0 %v6944
    %7926 = vmatmul.mubr.bf16.gmra.mrb[0].mxu0 %v6941
    %v7927 = vpop.f32.mrb[0].mxu0
    %v7928 = vadd.f32 %v7875, %v7927
    %v7929 = vpop.f32.mrb[0].mxu0
    %v7930 = vadd.f32 %v7877, %v7929
    %v7931 = vpop.f32.mrb[0].mxu0
    %v7932 = vadd.f32 %v7879, %v7931
    %v7933 = vpop.f32.mrb[0].mxu0
    %v7934 = vadd.f32 %v7881, %v7933
    %7935 = vmatprep.mubr.bf16.mxu0 %v6956
    %7936 = vmatmul.mubr.bf16.gmra.mrb[0].mxu0 %v6953
    %v7937 = vpop.f32.mrb[0].mxu0
    %v7938 = vadd.f32 %v7885, %v7937
    %v7939 = vpop.f32.mrb[0].mxu0
    %v7940 = vadd.f32 %v7887, %v7939
    %v7941 = vpop.f32.mrb[0].mxu0
    %v7942 = vadd.f32 %v7889, %v7941
    %v7943 = vpop.f32.mrb[0].mxu0
    %v7944 = vadd.f32 %v7891, %v7943
    %7945 = vdwg.mxu0
    %v7946 = vadd.f32 %v6793, %v7822
    %v7947 = vadd.f32 %v6795, %v7824
    %v7948 = vadd.f32 %v6899, %v7928
    %v7949 = vadd.f32 %v6901, %v7930
    %v7950 = vadd.f32 %v6797, %v7826
    %v7951 = vadd.f32 %v6799, %v7828
    %v7952 = vadd.f32 %v6903, %v7932
    %v7953 = vadd.f32 %v6905, %v7934
    %v7954 = vadd.f32 %v6803, %v7832
    %v7955 = vadd.f32 %v6805, %v7834
    %v7956 = vadd.f32 %v6909, %v7938
    %v7957 = vadd.f32 %v6911, %v7940
    %v7958 = vadd.f32 %v6807, %v7836
    %v7959 = vadd.f32 %v6809, %v7838
    %v7960 = vadd.f32 %v6913, %v7942
    %v7961 = vadd.f32 %v6915, %v7944
    %v7962 = vadd.f32 %v7946, %v340
    %v7963 = vadd.f32 %v7947, %v342
    %v7964 = vadd.f32 %v7948, %v393
    %v7965 = vadd.f32 %v7949, %v395
    %v7966 = vadd.f32 %v7950, %v344
    %v7967 = vadd.f32 %v7951, %v346
    %v7968 = vadd.f32 %v7952, %v397
    %v7969 = vadd.f32 %v7953, %v399
    %v7970 = vadd.f32 %v7954, %v350
    %v7971 = vadd.f32 %v7955, %v352
    %v7972 = vadd.f32 %v7956, %v403
    %v7973 = vadd.f32 %v7957, %v405
    %v7974 = vadd.f32 %v7958, %v354
    %v7975 = vadd.f32 %v7959, %v356
    %v7976 = vadd.f32 %v7960, %v407
    %v7977 = vadd.f32 %v7961, %v409
    %7978 = vst [vmem:[#allocation19] sm:$0xff] %v7962
    %7979 = vst [vmem:[#allocation19 + $0x8] sm:$0xff] %v7963
    %7980 = vst [vmem:[#allocation19 + $0x10] sm:$0xff] %v7964
    %7981 = vst [vmem:[#allocation19 + $0x18] sm:$0xff] %v7965
    %7982 = vst [vmem:[#allocation19 + $0x20] sm:$0xff] %v7966
    %7983 = vst [vmem:[#allocation19 + $0x28] sm:$0xff] %v7967
    %7984 = vst [vmem:[#allocation19 + $0x30] sm:$0xff] %v7968
    %7985 = vst [vmem:[#allocation19 + $0x38] sm:$0xff] %v7969
    %7986 = vst [vmem:[#allocation19 + $0x40] sm:$0xff] %v7970
    %7987 = vst [vmem:[#allocation19 + $0x48] sm:$0xff] %v7971
    %7988 = vst [vmem:[#allocation19 + $0x50] sm:$0xff] %v7972
    %7989 = vst [vmem:[#allocation19 + $0x58] sm:$0xff] %v7973
    %7990 = vst [vmem:[#allocation19 + $0x60] sm:$0xff] %v7974
    %7991 = vst [vmem:[#allocation19 + $0x68] sm:$0xff] %v7975
    %7992 = vst [vmem:[#allocation19 + $0x70] sm:$0xff] %v7976
    %7993 = vst [vmem:[#allocation19 + $0x78] sm:$0xff] %v7977
    // Predicated region
    $region86: #{tpu_custom_call.1} parent=1 // pred_check
      _
    $region87: #{tpu_custom_call.1} parent=1 // pred_check_branch
      %7995 = sbr.rel (0) target = $region89
    $region88: #{tpu_custom_call.1} parent=1 // pred_region
      %s7997 = ssub.s32 2048, 2048
      %7998 = vsyncadd [#allocation4], %s7997
      %s7999 = sshll.u32 [#allocation19], 4
      %s8000 = int_to_ptr.vmem [resolvable:$true] %s7999
      %8005 = dma.vmem_to_hbm [thread:$0]  %s8000, 2048, %s11, [#allocation4], 512, 512, 32
    $region89: #{tpu_custom_call.1} parent=1 // pred_fallthru
      _
    // Predicated region
    $region90: #{tpu_custom_call.1} parent=1 // pred_check
      _
    $region91: #{tpu_custom_call.1} parent=1 // pred_check_branch
      %8007 = sbr.rel (0) target = $region93
    $region92: #{tpu_custom_call.1} parent=1 // pred_region
      %8008 = dma.done [#allocation4], 2048
    $region93: #{tpu_custom_call.1} parent=1 // pred_fallthru
      _
    %8009 = vsyncpa [#allocation3], 1
    %8010 = vsyncpa [#allocation6], 1
    %8011 = vsyncpa [#allocation9], 1
    %8012 = vsyncpa [#allocation12], 1
    %8013 = vsyncpa [#allocation15], 1
    %8014 = vsyncpa [#allocation18], 1
    %8015 = vsyncpa [#allocation4], 1

</llo_original>
